<compile_context>
chip_gen: v5e
topology: v5e:2x2
jax: 0.10.0
libtpu: 0.0.40
codegen_flags: <defaults>
</compile_context>

<pallas_src>
from functools import partial

import jax
import jax.numpy as jnp
from jax import lax
from jax.experimental import pallas as pl
from jax.experimental.pallas import tpu as pltpu

EPS = 1e-5          # BatchNorm2d default eps
NEG_SLOPE = 0.01    # LeakyReLU default negative_slope
_VMEM_LIMIT = 32 * 1024 * 1024


def _cdiv(a, b):
    return -(-a // b)


def _round_up(x, m):
    return _cdiv(x, m) * m


# --------------------------------- kernel ----------------------------------- #

def _conv_cnn_kernel(x_ref, w_ref, g_ref, bt_ref, vm_ref, o_ref, p_sc, y_sc, *,
                     K, Cin, OH, OW, OWP, TOH, Kd, KdP, FH, FW, n_imgs):
    # x_ref : [1, PHP, PWP, Cin] f32  padded image block (DMA'd once per image)
    # w_ref : [KdP, Cout]        bf16 conv weights, contraction zero-padded to KdP
    # g_ref/bt_ref : [1, Cout]   f32  BN gamma / beta
    # vm_ref: [OHP, OWP, 1]      f32  validity mask (1 inside the real OHxOW region)
    # o_ref : [N, FH, FW, Cout]  f32  final pooled output (written on the last step)
    # p_sc  : [TOH, OWP, KdP]    f32  VMEM patch staging (in-kernel im2col)
    # y_sc  : [N, OHP, OWP, Cout] f32 VMEM-resident conv output
    n = pl.program_id(0)
    j = pl.program_id(1)
    C = o_ref.shape[-1]
    base = j * TOH

    # -------- conv phase: in-VMEM tap-wise im2col + one full-depth MXU matmul --------
    if KdP > Kd:
        # weights in the padded tail are zero, but uninitialized VMEM could be NaN
        p_sc[:, :, Kd:] = jnp.zeros((TOH, OWP, KdP - Kd), jnp.float32)
    for kh in range(K):
        for kw in range(K):
            c0 = (kh * K + kw) * Cin
            p_sc[:, :, c0:c0 + Cin] = x_ref[0, pl.ds(base + kh, TOH), pl.ds(kw, OWP), :]
    pm = p_sc[...].reshape(TOH * OWP, KdP).astype(jnp.bfloat16)
    acc = jnp.dot(pm, w_ref[...], preferred_element_type=jnp.float32)    # [TOH*OWP, C]
    y_sc[n, pl.ds(base, TOH)] = acc.reshape(TOH, OWP, C)

    # -------- finalize at the last grid step: BN (batch stats) + LeakyReLU + pools ----
    last = jnp.logical_and(n == pl.num_programs(0) - 1, j == pl.num_programs(1) - 1)

    @pl.when(last)
    def _finalize():
        vm = vm_ref[...]                                    # [OHP, OWP, 1]
        inv_cnt = 1.0 / float(n_imgs * OH * OW)

        # two-pass batch statistics over the VMEM-resident conv output
        # TODO(synk): the fully-resident y_sc (and this Python loop over the batch)
        # assumes N*OHP*OWP*Cout*4 fits comfortably in VMEM; for large shapes fall
        # back to a two-pass pipeline with a bf16 HBM intermediate.
        tot = jnp.zeros((1, 1, C), jnp.float32)
        for nn in range(n_imgs):
            tot = tot + jnp.sum(y_sc[nn] * vm, axis=(0, 1), keepdims=True)
        mean = tot * inv_cnt
        vtot = jnp.zeros((1, 1, C), jnp.float32)
        for nn in range(n_imgs):
            d = (y_sc[nn] - mean) * vm
            vtot = vtot + jnp.sum(d * d, axis=(0, 1), keepdims=True)
        var = vtot * inv_cnt
        scale = g_ref[...].reshape(1, 1, C) * lax.rsqrt(var + EPS)
        shift = bt_ref[...].reshape(1, 1, C) - mean * scale

        for nn in range(n_imgs):
            z = y_sc[nn] * scale + shift
            z = jnp.where(z > 0, z, NEG_SLOPE * z)           # LeakyReLU
            # MaxPool2d(2) then AvgPool2d(2): each output = mean of four 2x2 maxima
            # inside a 4x4 window; H handled via (free) leading-dim reshapes/slices,
            # W via static sublane slices.
            zz = z[:4 * FH].reshape(FH, 4, OWP, C)
            top = zz[:, 0:2]
            bot = zz[:, 2:4]
            for fw in range(FW):
                c0 = 4 * fw
                q00 = jnp.max(top[:, :, c0:c0 + 2, :], axis=(1, 2))
                q01 = jnp.max(top[:, :, c0 + 2:c0 + 4, :], axis=(1, 2))
                q10 = jnp.max(bot[:, :, c0:c0 + 2, :], axis=(1, 2))
                q11 = jnp.max(bot[:, :, c0 + 2:c0 + 4, :], axis=(1, 2))
                o_ref[nn, :, fw, :] = (q00 + q01 + q10 + q11) * 0.25


# ------------------------------ forward pass -------------------------------- #

def conv_cnn_forward(x_nchw, params, *, kernel_size=7, padding=2, pool=2, avg=True):
    """Forward pass of ConvCNN. x_nchw: [N, Cin, H, W] float32 -> [N, Cout, H', W']."""
    assert pool == 2 and avg, "only the module defaults (pool=2, avg=True) are implemented"
    w, _b, gamma, beta = params          # conv bias is exactly absorbed by batch-stat BN
    N, Cin, H, W = x_nchw.shape
    Cout = w.shape[0]
    K = kernel_size
    OH = H + 2 * padding - K + 1
    OW = W + 2 * padding - K + 1
    FH, FW = OH // 4, OW // 4            # MaxPool2d(2) then AvgPool2d(2), both floor mode
    assert FH > 0 and FW > 0

    TOH = 8                              # conv output rows per grid step
    GOH = _cdiv(OH, TOH)
    OHP = GOH * TOH
    OWP = _round_up(OW, 8)               # sublane-aligned conv width (extra cols masked)
    PHP = OHP + K - 1
    PWP = OWP + K - 1

    # Padded NHWC input: read once per image inside the kernel (no im2col blow-up).
    x_nhwc = jnp.transpose(x_nchw, (0, 2, 3, 1)).astype(jnp.float32)
    x_p = jnp.pad(x_nhwc, ((0, 0),
                           (padding, PHP - H - padding),
                           (padding, PWP - W - padding),
                           (0, 0)))

    # Weights [Cout, Cin, K, K] -> [(kh, kw, ci), Cout], contraction padded to 256, bf16.
    Kd = K * K * Cin
    KdP = _round_up(Kd, 256)
    w_mat = jnp.transpose(w, (2, 3, 1, 0)).reshape(Kd, Cout).astype(jnp.bfloat16)
    w_mat = jnp.pad(w_mat, ((0, KdP - Kd), (0, 0)))

    # Validity mask for the OHP/OWP padding rows/cols (BN stats must exclude them).
    valid = ((jnp.arange(OHP)[:, None] < OH) &
             (jnp.arange(OWP)[None, :] < OW)).astype(jnp.float32)[:, :, None]

    g2 = gamma.astype(jnp.float32).reshape(1, Cout)
    bt2 = beta.astype(jnp.float32).reshape(1, Cout)

    kern = partial(_conv_cnn_kernel, K=K, Cin=Cin, OH=OH, OW=OW, OWP=OWP, TOH=TOH,
                   Kd=Kd, KdP=KdP, FH=FH, FW=FW, n_imgs=N)

    out = pl.pallas_call(
        kern,
        out_shape=jax.ShapeDtypeStruct((N, FH, FW, Cout), jnp.float32),
        grid=(N, GOH),
        in_specs=[
            pl.BlockSpec((1, PHP, PWP, Cin), lambda n, j: (n, 0, 0, 0)),
            pl.BlockSpec((KdP, Cout), lambda n, j: (0, 0)),
            pl.BlockSpec((1, Cout), lambda n, j: (0, 0)),
            pl.BlockSpec((1, Cout), lambda n, j: (0, 0)),
            pl.BlockSpec((OHP, OWP, 1), lambda n, j: (0, 0, 0)),
        ],
        out_specs=pl.BlockSpec((N, FH, FW, Cout), lambda n, j: (0, 0, 0, 0)),
        scratch_shapes=[
            pltpu.VMEM((TOH, OWP, KdP), jnp.float32),        # patch staging
            pltpu.VMEM((N, OHP, OWP, Cout), jnp.float32),    # resident conv output
        ],
        compiler_params=pltpu.CompilerParams(
            # Batch-statistics BN couples every grid step through the resident scratch,
            # so both axes must be "arbitrary" (no v7x megacore sharding; accepted
            # trade-off for keeping the conv output out of HBM).
            dimension_semantics=("arbitrary", "arbitrary"),
            vmem_limit_bytes=_VMEM_LIMIT),
    )(x_p, w_mat, g2, bt2, valid)

    return jnp.transpose(out, (0, 3, 1, 2))                  # back to NCHW


# --------------------------- pure-JAX reference ----------------------------- #

def conv_cnn_reference(x, params):
    w, b, gamma, beta = params
    y = jax.lax.conv_general_dilated(
        x, w, window_strides=(1, 1), padding=[(2, 2), (2, 2)],
        dimension_numbers=("NCHW", "OIHW", "NCHW"))
    y = y + b.reshape(1, -1, 1, 1)
    mean = jnp.mean(y, axis=(0, 2, 3), keepdims=True)
    var = jnp.mean((y - mean) ** 2, axis=(0, 2, 3), keepdims=True)
    y = (y - mean) / jnp.sqrt(var + EPS) * gamma.reshape(1, -1, 1, 1) + beta.reshape(1, -1, 1, 1)
    y = jnp.where(y > 0, y, NEG_SLOPE * y)
    y = jax.lax.reduce_window(y, -jnp.inf, jax.lax.max, (1, 1, 2, 2), (1, 1, 2, 2), "VALID")
    y = jax.lax.reduce_window(y, 0.0, jax.lax.add, (1, 1, 2, 2), (1, 1, 2, 2), "VALID") / 4.0
    return y


# --------------------------------- main ------------------------------------ #

if __name__ == "__main__":
    key = jax.random.PRNGKey(0)
    k1, k2, k3, k4, k5 = jax.random.split(key, 5)

    N, Cin, H, W = 2, 4, 16, 16
    Cout, K = 8, 7

    x = jax.random.normal(k1, (N, Cin, H, W), jnp.float32)
    fan_in = Cin * K * K
    w = jax.random.normal(k2, (Cout, Cin, K, K), jnp.float32) / jnp.sqrt(fan_in)
    b = 0.1 * jax.random.normal(k3, (Cout,), jnp.float32)
    gamma = 1.0 + 0.1 * jax.random.normal(k4, (Cout,), jnp.float32)
    beta = 0.1 * jax.random.normal(k5, (Cout,), jnp.float32)
    params = (w, b, gamma, beta)

    fwd = jax.jit(conv_cnn_forward)
    out = jax.block_until_ready(fwd(x, params))
    ref = jax.block_until_ready(conv_cnn_reference(x, params))

    # H=16 -> conv 14 -> maxpool 7 -> avgpool 3
    assert out.shape == (N, Cout, 3, 3), out.shape
    # bf16 matmul operands -> slightly relaxed tolerance vs the f32 reference
    assert jnp.allclose(out, ref, rtol=2e-2, atol=2e-2), float(jnp.max(jnp.abs(out - ref)))
    print("KERNEL_OK")
</pallas_src>

<mosaic_0001>
module attributes {stable_mosaic.version = 11 : i64} {
  func.func @_conv_cnn_kernel(%arg0: i32, %arg1: i32, %arg2: memref<1x22x22x4xf32, #tpu.memory_space<vmem>>, %arg3: memref<256x8xbf16, #tpu.memory_space<vmem>>, %arg4: memref<1x8xf32, #tpu.memory_space<vmem>>, %arg5: memref<1x8xf32, #tpu.memory_space<vmem>>, %arg6: memref<16x16x1xf32, #tpu.memory_space<vmem>>, %arg7: memref<2x3x3x8xf32, #tpu.memory_space<vmem>>, %arg8: memref<8x16x256xf32, #tpu.memory_space<vmem>>, %arg9: memref<2x16x16x8xf32, #tpu.memory_space<vmem>>) attributes {dimension_semantics = [#tpu.dimension_semantics<arbitrary>, #tpu.dimension_semantics<arbitrary>], iteration_bounds = array<i64: 2, 2>, scalar_prefetch = 0 : i64, scratch_operands = 2 : i64, tpu.core_type = #tpu.core_type<tc>, window_params = [{transform_indices = @transform_0, window_bounds = array<i64: 1, 22, 22, 4>}, {pipeline_mode = #tpu.pipeline_mode<synchronous>, transform_indices = @transform_1, window_bounds = array<i64: 256, 8>}, {pipeline_mode = #tpu.pipeline_mode<synchronous>, transform_indices = @transform_2, window_bounds = array<i64: 1, 8>}, {pipeline_mode = #tpu.pipeline_mode<synchronous>, transform_indices = @transform_3, window_bounds = array<i64: 1, 8>}, {pipeline_mode = #tpu.pipeline_mode<synchronous>, transform_indices = @transform_4, window_bounds = array<i64: 16, 16, 1>}, {pipeline_mode = #tpu.pipeline_mode<synchronous>, transform_indices = @transform_5, window_bounds = array<i64: 2, 3, 3, 8>}]} {
    %c8_i32 = arith.constant 8 : i32
    %0 = arith.muli %arg1, %c8_i32 : i32
    %cst = arith.constant 0.000000e+00 : f32
    %1 = vector.broadcast %cst : f32 to vector<8x16x60xf32>
    %c0 = arith.constant 0 : index
    %c0_0 = arith.constant 0 : index
    %c196 = arith.constant 196 : index
    %2 = vector.load %arg8[%c0, %c0_0, %c196] : memref<8x16x256xf32, #tpu.memory_space<vmem>>, vector<8x16x60xf32>
    tpu.vector_store %arg8[%c0, %c0_0, %c196], %1 {strides = array<i32>} : memref<8x16x256xf32, #tpu.memory_space<vmem>>, vector<8x16x60xf32>,
    %c0_i32 = arith.constant 0 : i32
    %3 = arith.addi %0, %c0_i32 : i32
    %c0_1 = arith.constant 0 : index
    %4 = arith.index_cast %3 : i32 to index
    %c0_2 = arith.constant 0 : index
    %c0_3 = arith.constant 0 : index
    %5 = vector.load %arg2[%c0_1, %4, %c0_2, %c0_3] : memref<1x22x22x4xf32, #tpu.memory_space<vmem>>, vector<1x8x16x4xf32>
    %6 = vector.shape_cast %5 : vector<1x8x16x4xf32> to vector<8x16x4xf32>
    %c0_4 = arith.constant 0 : index
    %c0_5 = arith.constant 0 : index
    %c0_6 = arith.constant 0 : index
    %7 = vector.load %arg8[%c0_4, %c0_5, %c0_6] : memref<8x16x256xf32, #tpu.memory_space<vmem>>, vector<8x16x4xf32>
    tpu.vector_store %arg8[%c0_4, %c0_5, %c0_6], %6 {strides = array<i32>} : memref<8x16x256xf32, #tpu.memory_space<vmem>>, vector<8x16x4xf32>,
    %c0_i32_7 = arith.constant 0 : i32
    %8 = arith.addi %0, %c0_i32_7 : i32
    %c0_8 = arith.constant 0 : index
    %9 = arith.index_cast %8 : i32 to index
    %c1 = arith.constant 1 : index
    %c0_9 = arith.constant 0 : index
    %10 = vector.load %arg2[%c0_8, %9, %c1, %c0_9] : memref<1x22x22x4xf32, #tpu.memory_space<vmem>>, vector<1x8x16x4xf32>
    %11 = vector.shape_cast %10 : vector<1x8x16x4xf32> to vector<8x16x4xf32>
    %c0_10 = arith.constant 0 : index
    %c0_11 = arith.constant 0 : index
    %c4 = arith.constant 4 : index
    %12 = vector.load %arg8[%c0_10, %c0_11, %c4] : memref<8x16x256xf32, #tpu.memory_space<vmem>>, vector<8x16x4xf32>
    tpu.vector_store %arg8[%c0_10, %c0_11, %c4], %11 {strides = array<i32>} : memref<8x16x256xf32, #tpu.memory_space<vmem>>, vector<8x16x4xf32>,
    %c0_i32_12 = arith.constant 0 : i32
    %13 = arith.addi %0, %c0_i32_12 : i32
    %c0_13 = arith.constant 0 : index
    %14 = arith.index_cast %13 : i32 to index
    %c2 = arith.constant 2 : index
    %c0_14 = arith.constant 0 : index
    %15 = vector.load %arg2[%c0_13, %14, %c2, %c0_14] : memref<1x22x22x4xf32, #tpu.memory_space<vmem>>, vector<1x8x16x4xf32>
    %16 = vector.shape_cast %15 : vector<1x8x16x4xf32> to vector<8x16x4xf32>
    %c0_15 = arith.constant 0 : index
    %c0_16 = arith.constant 0 : index
    %c8 = arith.constant 8 : index
    %17 = vector.load %arg8[%c0_15, %c0_16, %c8] : memref<8x16x256xf32, #tpu.memory_space<vmem>>, vector<8x16x4xf32>
    tpu.vector_store %arg8[%c0_15, %c0_16, %c8], %16 {strides = array<i32>} : memref<8x16x256xf32, #tpu.memory_space<vmem>>, vector<8x16x4xf32>,
    %c0_i32_17 = arith.constant 0 : i32
    %18 = arith.addi %0, %c0_i32_17 : i32
    %c0_18 = arith.constant 0 : index
    %19 = arith.index_cast %18 : i32 to index
    %c3 = arith.constant 3 : index
    %c0_19 = arith.constant 0 : index
    %20 = vector.load %arg2[%c0_18, %19, %c3, %c0_19] : memref<1x22x22x4xf32, #tpu.memory_space<vmem>>, vector<1x8x16x4xf32>
    %21 = vector.shape_cast %20 : vector<1x8x16x4xf32> to vector<8x16x4xf32>
    %c0_20 = arith.constant 0 : index
    %c0_21 = arith.constant 0 : index
    %c12 = arith.constant 12 : index
    %22 = vector.load %arg8[%c0_20, %c0_21, %c12] : memref<8x16x256xf32, #tpu.memory_space<vmem>>, vector<8x16x4xf32>
    tpu.vector_store %arg8[%c0_20, %c0_21, %c12], %21 {strides = array<i32>} : memref<8x16x256xf32, #tpu.memory_space<vmem>>, vector<8x16x4xf32>,
    %c0_i32_22 = arith.constant 0 : i32
    %23 = arith.addi %0, %c0_i32_22 : i32
    %c0_23 = arith.constant 0 : index
    %24 = arith.index_cast %23 : i32 to index
    %c4_24 = arith.constant 4 : index
    %c0_25 = arith.constant 0 : index
    %25 = vector.load %arg2[%c0_23, %24, %c4_24, %c0_25] : memref<1x22x22x4xf32, #tpu.memory_space<vmem>>, vector<1x8x16x4xf32>
    %26 = vector.shape_cast %25 : vector<1x8x16x4xf32> to vector<8x16x4xf32>
    %c0_26 = arith.constant 0 : index
    %c0_27 = arith.constant 0 : index
    %c16 = arith.constant 16 : index
    %27 = vector.load %arg8[%c0_26, %c0_27, %c16] : memref<8x16x256xf32, #tpu.memory_space<vmem>>, vector<8x16x4xf32>
    tpu.vector_store %arg8[%c0_26, %c0_27, %c16], %26 {strides = array<i32>} : memref<8x16x256xf32, #tpu.memory_space<vmem>>, vector<8x16x4xf32>,
    %c0_i32_28 = arith.constant 0 : i32
    %28 = arith.addi %0, %c0_i32_28 : i32
    %c0_29 = arith.constant 0 : index
    %29 = arith.index_cast %28 : i32 to index
    %c5 = arith.constant 5 : index
    %c0_30 = arith.constant 0 : index
    %30 = vector.load %arg2[%c0_29, %29, %c5, %c0_30] : memref<1x22x22x4xf32, #tpu.memory_space<vmem>>, vector<1x8x16x4xf32>
    %31 = vector.shape_cast %30 : vector<1x8x16x4xf32> to vector<8x16x4xf32>
    %c0_31 = arith.constant 0 : index
    %c0_32 = arith.constant 0 : index
    %c20 = arith.constant 20 : index
    %32 = vector.load %arg8[%c0_31, %c0_32, %c20] : memref<8x16x256xf32, #tpu.memory_space<vmem>>, vector<8x16x4xf32>
    tpu.vector_store %arg8[%c0_31, %c0_32, %c20], %31 {strides = array<i32>} : memref<8x16x256xf32, #tpu.memory_space<vmem>>, vector<8x16x4xf32>,
    %c0_i32_33 = arith.constant 0 : i32
    %33 = arith.addi %0, %c0_i32_33 : i32
    %c0_34 = arith.constant 0 : index
    %34 = arith.index_cast %33 : i32 to index
    %c6 = arith.constant 6 : index
    %c0_35 = arith.constant 0 : index
    %35 = vector.load %arg2[%c0_34, %34, %c6, %c0_35] : memref<1x22x22x4xf32, #tpu.memory_space<vmem>>, vector<1x8x16x4xf32>
    %36 = vector.shape_cast %35 : vector<1x8x16x4xf32> to vector<8x16x4xf32>
    %c0_36 = arith.constant 0 : index
    %c0_37 = arith.constant 0 : index
    %c24 = arith.constant 24 : index
    %37 = vector.load %arg8[%c0_36, %c0_37, %c24] : memref<8x16x256xf32, #tpu.memory_space<vmem>>, vector<8x16x4xf32>
    tpu.vector_store %arg8[%c0_36, %c0_37, %c24], %36 {strides = array<i32>} : memref<8x16x256xf32, #tpu.memory_space<vmem>>, vector<8x16x4xf32>,
    %c1_i32 = arith.constant 1 : i32
    %38 = arith.addi %0, %c1_i32 : i32
    %c0_38 = arith.constant 0 : index
    %39 = arith.index_cast %38 : i32 to index
    %c0_39 = arith.constant 0 : index
    %c0_40 = arith.constant 0 : index
    %40 = vector.load %arg2[%c0_38, %39, %c0_39, %c0_40] : memref<1x22x22x4xf32, #tpu.memory_space<vmem>>, vector<1x8x16x4xf32>
    %41 = vector.shape_cast %40 : vector<1x8x16x4xf32> to vector<8x16x4xf32>
    %c0_41 = arith.constant 0 : index
    %c0_42 = arith.constant 0 : index
    %c28 = arith.constant 28 : index
    %42 = vector.load %arg8[%c0_41, %c0_42, %c28] : memref<8x16x256xf32, #tpu.memory_space<vmem>>, vector<8x16x4xf32>
    tpu.vector_store %arg8[%c0_41, %c0_42, %c28], %41 {strides = array<i32>} : memref<8x16x256xf32, #tpu.memory_space<vmem>>, vector<8x16x4xf32>,
    %c1_i32_43 = arith.constant 1 : i32
    %43 = arith.addi %0, %c1_i32_43 : i32
    %c0_44 = arith.constant 0 : index
    %44 = arith.index_cast %43 : i32 to index
    %c1_45 = arith.constant 1 : index
    %c0_46 = arith.constant 0 : index
    %45 = vector.load %arg2[%c0_44, %44, %c1_45, %c0_46] : memref<1x22x22x4xf32, #tpu.memory_space<vmem>>, vector<1x8x16x4xf32>
    %46 = vector.shape_cast %45 : vector<1x8x16x4xf32> to vector<8x16x4xf32>
    %c0_47 = arith.constant 0 : index
    %c0_48 = arith.constant 0 : index
    %c32 = arith.constant 32 : index
    %47 = vector.load %arg8[%c0_47, %c0_48, %c32] : memref<8x16x256xf32, #tpu.memory_space<vmem>>, vector<8x16x4xf32>
    tpu.vector_store %arg8[%c0_47, %c0_48, %c32], %46 {strides = array<i32>} : memref<8x16x256xf32, #tpu.memory_space<vmem>>, vector<8x16x4xf32>,
    %c1_i32_49 = arith.constant 1 : i32
    %48 = arith.addi %0, %c1_i32_49 : i32
    %c0_50 = arith.constant 0 : index
    %49 = arith.index_cast %48 : i32 to index
    %c2_51 = arith.constant 2 : index
    %c0_52 = arith.constant 0 : index
    %50 = vector.load %arg2[%c0_50, %49, %c2_51, %c0_52] : memref<1x22x22x4xf32, #tpu.memory_space<vmem>>, vector<1x8x16x4xf32>
    %51 = vector.shape_cast %50 : vector<1x8x16x4xf32> to vector<8x16x4xf32>
    %c0_53 = arith.constant 0 : index
    %c0_54 = arith.constant 0 : index
    %c36 = arith.constant 36 : index
    %52 = vector.load %arg8[%c0_53, %c0_54, %c36] : memref<8x16x256xf32, #tpu.memory_space<vmem>>, vector<8x16x4xf32>
    tpu.vector_store %arg8[%c0_53, %c0_54, %c36], %51 {strides = array<i32>} : memref<8x16x256xf32, #tpu.memory_space<vmem>>, vector<8x16x4xf32>,
    %c1_i32_55 = arith.constant 1 : i32
    %53 = arith.addi %0, %c1_i32_55 : i32
    %c0_56 = arith.constant 0 : index
    %54 = arith.index_cast %53 : i32 to index
    %c3_57 = arith.constant 3 : index
    %c0_58 = arith.constant 0 : index
    %55 = vector.load %arg2[%c0_56, %54, %c3_57, %c0_58] : memref<1x22x22x4xf32, #tpu.memory_space<vmem>>, vector<1x8x16x4xf32>
    %56 = vector.shape_cast %55 : vector<1x8x16x4xf32> to vector<8x16x4xf32>
    %c0_59 = arith.constant 0 : index
    %c0_60 = arith.constant 0 : index
    %c40 = arith.constant 40 : index
    %57 = vector.load %arg8[%c0_59, %c0_60, %c40] : memref<8x16x256xf32, #tpu.memory_space<vmem>>, vector<8x16x4xf32>
    tpu.vector_store %arg8[%c0_59, %c0_60, %c40], %56 {strides = array<i32>} : memref<8x16x256xf32, #tpu.memory_space<vmem>>, vector<8x16x4xf32>,
    %c1_i32_61 = arith.constant 1 : i32
    %58 = arith.addi %0, %c1_i32_61 : i32
    %c0_62 = arith.constant 0 : index
    %59 = arith.index_cast %58 : i32 to index
    %c4_63 = arith.constant 4 : index
    %c0_64 = arith.constant 0 : index
    %60 = vector.load %arg2[%c0_62, %59, %c4_63, %c0_64] : memref<1x22x22x4xf32, #tpu.memory_space<vmem>>, vector<1x8x16x4xf32>
    %61 = vector.shape_cast %60 : vector<1x8x16x4xf32> to vector<8x16x4xf32>
    %c0_65 = arith.constant 0 : index
    %c0_66 = arith.constant 0 : index
    %c44 = arith.constant 44 : index
    %62 = vector.load %arg8[%c0_65, %c0_66, %c44] : memref<8x16x256xf32, #tpu.memory_space<vmem>>, vector<8x16x4xf32>
    tpu.vector_store %arg8[%c0_65, %c0_66, %c44], %61 {strides = array<i32>} : memref<8x16x256xf32, #tpu.memory_space<vmem>>, vector<8x16x4xf32>,
    %c1_i32_67 = arith.constant 1 : i32
    %63 = arith.addi %0, %c1_i32_67 : i32
    %c0_68 = arith.constant 0 : index
    %64 = arith.index_cast %63 : i32 to index
    %c5_69 = arith.constant 5 : index
    %c0_70 = arith.constant 0 : index
    %65 = vector.load %arg2[%c0_68, %64, %c5_69, %c0_70] : memref<1x22x22x4xf32, #tpu.memory_space<vmem>>, vector<1x8x16x4xf32>
    %66 = vector.shape_cast %65 : vector<1x8x16x4xf32> to vector<8x16x4xf32>
    %c0_71 = arith.constant 0 : index
    %c0_72 = arith.constant 0 : index
    %c48 = arith.constant 48 : index
    %67 = vector.load %arg8[%c0_71, %c0_72, %c48] : memref<8x16x256xf32, #tpu.memory_space<vmem>>, vector<8x16x4xf32>
    tpu.vector_store %arg8[%c0_71, %c0_72, %c48], %66 {strides = array<i32>} : memref<8x16x256xf32, #tpu.memory_space<vmem>>, vector<8x16x4xf32>,
    %c1_i32_73 = arith.constant 1 : i32
    %68 = arith.addi %0, %c1_i32_73 : i32
    %c0_74 = arith.constant 0 : index
    %69 = arith.index_cast %68 : i32 to index
    %c6_75 = arith.constant 6 : index
    %c0_76 = arith.constant 0 : index
    %70 = vector.load %arg2[%c0_74, %69, %c6_75, %c0_76] : memref<1x22x22x4xf32, #tpu.memory_space<vmem>>, vector<1x8x16x4xf32>
    %71 = vector.shape_cast %70 : vector<1x8x16x4xf32> to vector<8x16x4xf32>
    %c0_77 = arith.constant 0 : index
    %c0_78 = arith.constant 0 : index
    %c52 = arith.constant 52 : index
    %72 = vector.load %arg8[%c0_77, %c0_78, %c52] : memref<8x16x256xf32, #tpu.memory_space<vmem>>, vector<8x16x4xf32>
    tpu.vector_store %arg8[%c0_77, %c0_78, %c52], %71 {strides = array<i32>} : memref<8x16x256xf32, #tpu.memory_space<vmem>>, vector<8x16x4xf32>,
    %c2_i32 = arith.constant 2 : i32
    %73 = arith.addi %0, %c2_i32 : i32
    %c0_79 = arith.constant 0 : index
    %74 = arith.index_cast %73 : i32 to index
    %c0_80 = arith.constant 0 : index
    %c0_81 = arith.constant 0 : index
    %75 = vector.load %arg2[%c0_79, %74, %c0_80, %c0_81] : memref<1x22x22x4xf32, #tpu.memory_space<vmem>>, vector<1x8x16x4xf32>
    %76 = vector.shape_cast %75 : vector<1x8x16x4xf32> to vector<8x16x4xf32>
    %c0_82 = arith.constant 0 : index
    %c0_83 = arith.constant 0 : index
    %c56 = arith.constant 56 : index
    %77 = vector.load %arg8[%c0_82, %c0_83, %c56] : memref<8x16x256xf32, #tpu.memory_space<vmem>>, vector<8x16x4xf32>
    tpu.vector_store %arg8[%c0_82, %c0_83, %c56], %76 {strides = array<i32>} : memref<8x16x256xf32, #tpu.memory_space<vmem>>, vector<8x16x4xf32>,
    %c2_i32_84 = arith.constant 2 : i32
    %78 = arith.addi %0, %c2_i32_84 : i32
    %c0_85 = arith.constant 0 : index
    %79 = arith.index_cast %78 : i32 to index
    %c1_86 = arith.constant 1 : index
    %c0_87 = arith.constant 0 : index
    %80 = vector.load %arg2[%c0_85, %79, %c1_86, %c0_87] : memref<1x22x22x4xf32, #tpu.memory_space<vmem>>, vector<1x8x16x4xf32>
    %81 = vector.shape_cast %80 : vector<1x8x16x4xf32> to vector<8x16x4xf32>
    %c0_88 = arith.constant 0 : index
    %c0_89 = arith.constant 0 : index
    %c60 = arith.constant 60 : index
    %82 = vector.load %arg8[%c0_88, %c0_89, %c60] : memref<8x16x256xf32, #tpu.memory_space<vmem>>, vector<8x16x4xf32>
    tpu.vector_store %arg8[%c0_88, %c0_89, %c60], %81 {strides = array<i32>} : memref<8x16x256xf32, #tpu.memory_space<vmem>>, vector<8x16x4xf32>,
    %c2_i32_90 = arith.constant 2 : i32
    %83 = arith.addi %0, %c2_i32_90 : i32
    %c0_91 = arith.constant 0 : index
    %84 = arith.index_cast %83 : i32 to index
    %c2_92 = arith.constant 2 : index
    %c0_93 = arith.constant 0 : index
    %85 = vector.load %arg2[%c0_91, %84, %c2_92, %c0_93] : memref<1x22x22x4xf32, #tpu.memory_space<vmem>>, vector<1x8x16x4xf32>
    %86 = vector.shape_cast %85 : vector<1x8x16x4xf32> to vector<8x16x4xf32>
    %c0_94 = arith.constant 0 : index
    %c0_95 = arith.constant 0 : index
    %c64 = arith.constant 64 : index
    %87 = vector.load %arg8[%c0_94, %c0_95, %c64] : memref<8x16x256xf32, #tpu.memory_space<vmem>>, vector<8x16x4xf32>
    tpu.vector_store %arg8[%c0_94, %c0_95, %c64], %86 {strides = array<i32>} : memref<8x16x256xf32, #tpu.memory_space<vmem>>, vector<8x16x4xf32>,
    %c2_i32_96 = arith.constant 2 : i32
    %88 = arith.addi %0, %c2_i32_96 : i32
    %c0_97 = arith.constant 0 : index
    %89 = arith.index_cast %88 : i32 to index
    %c3_98 = arith.constant 3 : index
    %c0_99 = arith.constant 0 : index
    %90 = vector.load %arg2[%c0_97, %89, %c3_98, %c0_99] : memref<1x22x22x4xf32, #tpu.memory_space<vmem>>, vector<1x8x16x4xf32>
    %91 = vector.shape_cast %90 : vector<1x8x16x4xf32> to vector<8x16x4xf32>
    %c0_100 = arith.constant 0 : index
    %c0_101 = arith.constant 0 : index
    %c68 = arith.constant 68 : index
    %92 = vector.load %arg8[%c0_100, %c0_101, %c68] : memref<8x16x256xf32, #tpu.memory_space<vmem>>, vector<8x16x4xf32>
    tpu.vector_store %arg8[%c0_100, %c0_101, %c68], %91 {strides = array<i32>} : memref<8x16x256xf32, #tpu.memory_space<vmem>>, vector<8x16x4xf32>,
    %c2_i32_102 = arith.constant 2 : i32
    %93 = arith.addi %0, %c2_i32_102 : i32
    %c0_103 = arith.constant 0 : index
    %94 = arith.index_cast %93 : i32 to index
    %c4_104 = arith.constant 4 : index
    %c0_105 = arith.constant 0 : index
    %95 = vector.load %arg2[%c0_103, %94, %c4_104, %c0_105] : memref<1x22x22x4xf32, #tpu.memory_space<vmem>>, vector<1x8x16x4xf32>
    %96 = vector.shape_cast %95 : vector<1x8x16x4xf32> to vector<8x16x4xf32>
    %c0_106 = arith.constant 0 : index
    %c0_107 = arith.constant 0 : index
    %c72 = arith.constant 72 : index
    %97 = vector.load %arg8[%c0_106, %c0_107, %c72] : memref<8x16x256xf32, #tpu.memory_space<vmem>>, vector<8x16x4xf32>
    tpu.vector_store %arg8[%c0_106, %c0_107, %c72], %96 {strides = array<i32>} : memref<8x16x256xf32, #tpu.memory_space<vmem>>, vector<8x16x4xf32>,
    %c2_i32_108 = arith.constant 2 : i32
    %98 = arith.addi %0, %c2_i32_108 : i32
    %c0_109 = arith.constant 0 : index
    %99 = arith.index_cast %98 : i32 to index
    %c5_110 = arith.constant 5 : index
    %c0_111 = arith.constant 0 : index
    %100 = vector.load %arg2[%c0_109, %99, %c5_110, %c0_111] : memref<1x22x22x4xf32, #tpu.memory_space<vmem>>, vector<1x8x16x4xf32>
    %101 = vector.shape_cast %100 : vector<1x8x16x4xf32> to vector<8x16x4xf32>
    %c0_112 = arith.constant 0 : index
    %c0_113 = arith.constant 0 : index
    %c76 = arith.constant 76 : index
    %102 = vector.load %arg8[%c0_112, %c0_113, %c76] : memref<8x16x256xf32, #tpu.memory_space<vmem>>, vector<8x16x4xf32>
    tpu.vector_store %arg8[%c0_112, %c0_113, %c76], %101 {strides = array<i32>} : memref<8x16x256xf32, #tpu.memory_space<vmem>>, vector<8x16x4xf32>,
    %c2_i32_114 = arith.constant 2 : i32
    %103 = arith.addi %0, %c2_i32_114 : i32
    %c0_115 = arith.constant 0 : index
    %104 = arith.index_cast %103 : i32 to index
    %c6_116 = arith.constant 6 : index
    %c0_117 = arith.constant 0 : index
    %105 = vector.load %arg2[%c0_115, %104, %c6_116, %c0_117] : memref<1x22x22x4xf32, #tpu.memory_space<vmem>>, vector<1x8x16x4xf32>
    %106 = vector.shape_cast %105 : vector<1x8x16x4xf32> to vector<8x16x4xf32>
    %c0_118 = arith.constant 0 : index
    %c0_119 = arith.constant 0 : index
    %c80 = arith.constant 80 : index
    %107 = vector.load %arg8[%c0_118, %c0_119, %c80] : memref<8x16x256xf32, #tpu.memory_space<vmem>>, vector<8x16x4xf32>
    tpu.vector_store %arg8[%c0_118, %c0_119, %c80], %106 {strides = array<i32>} : memref<8x16x256xf32, #tpu.memory_space<vmem>>, vector<8x16x4xf32>,
    %c3_i32 = arith.constant 3 : i32
    %108 = arith.addi %0, %c3_i32 : i32
    %c0_120 = arith.constant 0 : index
    %109 = arith.index_cast %108 : i32 to index
    %c0_121 = arith.constant 0 : index
    %c0_122 = arith.constant 0 : index
    %110 = vector.load %arg2[%c0_120, %109, %c0_121, %c0_122] : memref<1x22x22x4xf32, #tpu.memory_space<vmem>>, vector<1x8x16x4xf32>
    %111 = vector.shape_cast %110 : vector<1x8x16x4xf32> to vector<8x16x4xf32>
    %c0_123 = arith.constant 0 : index
    %c0_124 = arith.constant 0 : index
    %c84 = arith.constant 84 : index
    %112 = vector.load %arg8[%c0_123, %c0_124, %c84] : memref<8x16x256xf32, #tpu.memory_space<vmem>>, vector<8x16x4xf32>
    tpu.vector_store %arg8[%c0_123, %c0_124, %c84], %111 {strides = array<i32>} : memref<8x16x256xf32, #tpu.memory_space<vmem>>, vector<8x16x4xf32>,
    %c3_i32_125 = arith.constant 3 : i32
    %113 = arith.addi %0, %c3_i32_125 : i32
    %c0_126 = arith.constant 0 : index
    %114 = arith.index_cast %113 : i32 to index
    %c1_127 = arith.constant 1 : index
    %c0_128 = arith.constant 0 : index
    %115 = vector.load %arg2[%c0_126, %114, %c1_127, %c0_128] : memref<1x22x22x4xf32, #tpu.memory_space<vmem>>, vector<1x8x16x4xf32>
    %116 = vector.shape_cast %115 : vector<1x8x16x4xf32> to vector<8x16x4xf32>
    %c0_129 = arith.constant 0 : index
    %c0_130 = arith.constant 0 : index
    %c88 = arith.constant 88 : index
    %117 = vector.load %arg8[%c0_129, %c0_130, %c88] : memref<8x16x256xf32, #tpu.memory_space<vmem>>, vector<8x16x4xf32>
    tpu.vector_store %arg8[%c0_129, %c0_130, %c88], %116 {strides = array<i32>} : memref<8x16x256xf32, #tpu.memory_space<vmem>>, vector<8x16x4xf32>,
    %c3_i32_131 = arith.constant 3 : i32
    %118 = arith.addi %0, %c3_i32_131 : i32
    %c0_132 = arith.constant 0 : index
    %119 = arith.index_cast %118 : i32 to index
    %c2_133 = arith.constant 2 : index
    %c0_134 = arith.constant 0 : index
    %120 = vector.load %arg2[%c0_132, %119, %c2_133, %c0_134] : memref<1x22x22x4xf32, #tpu.memory_space<vmem>>, vector<1x8x16x4xf32>
    %121 = vector.shape_cast %120 : vector<1x8x16x4xf32> to vector<8x16x4xf32>
    %c0_135 = arith.constant 0 : index
    %c0_136 = arith.constant 0 : index
    %c92 = arith.constant 92 : index
    %122 = vector.load %arg8[%c0_135, %c0_136, %c92] : memref<8x16x256xf32, #tpu.memory_space<vmem>>, vector<8x16x4xf32>
    tpu.vector_store %arg8[%c0_135, %c0_136, %c92], %121 {strides = array<i32>} : memref<8x16x256xf32, #tpu.memory_space<vmem>>, vector<8x16x4xf32>,
    %c3_i32_137 = arith.constant 3 : i32
    %123 = arith.addi %0, %c3_i32_137 : i32
    %c0_138 = arith.constant 0 : index
    %124 = arith.index_cast %123 : i32 to index
    %c3_139 = arith.constant 3 : index
    %c0_140 = arith.constant 0 : index
    %125 = vector.load %arg2[%c0_138, %124, %c3_139, %c0_140] : memref<1x22x22x4xf32, #tpu.memory_space<vmem>>, vector<1x8x16x4xf32>
    %126 = vector.shape_cast %125 : vector<1x8x16x4xf32> to vector<8x16x4xf32>
    %c0_141 = arith.constant 0 : index
    %c0_142 = arith.constant 0 : index
    %c96 = arith.constant 96 : index
    %127 = vector.load %arg8[%c0_141, %c0_142, %c96] : memref<8x16x256xf32, #tpu.memory_space<vmem>>, vector<8x16x4xf32>
    tpu.vector_store %arg8[%c0_141, %c0_142, %c96], %126 {strides = array<i32>} : memref<8x16x256xf32, #tpu.memory_space<vmem>>, vector<8x16x4xf32>,
    %c3_i32_143 = arith.constant 3 : i32
    %128 = arith.addi %0, %c3_i32_143 : i32
    %c0_144 = arith.constant 0 : index
    %129 = arith.index_cast %128 : i32 to index
    %c4_145 = arith.constant 4 : index
    %c0_146 = arith.constant 0 : index
    %130 = vector.load %arg2[%c0_144, %129, %c4_145, %c0_146] : memref<1x22x22x4xf32, #tpu.memory_space<vmem>>, vector<1x8x16x4xf32>
    %131 = vector.shape_cast %130 : vector<1x8x16x4xf32> to vector<8x16x4xf32>
    %c0_147 = arith.constant 0 : index
    %c0_148 = arith.constant 0 : index
    %c100 = arith.constant 100 : index
    %132 = vector.load %arg8[%c0_147, %c0_148, %c100] : memref<8x16x256xf32, #tpu.memory_space<vmem>>, vector<8x16x4xf32>
    tpu.vector_store %arg8[%c0_147, %c0_148, %c100], %131 {strides = array<i32>} : memref<8x16x256xf32, #tpu.memory_space<vmem>>, vector<8x16x4xf32>,
    %c3_i32_149 = arith.constant 3 : i32
    %133 = arith.addi %0, %c3_i32_149 : i32
    %c0_150 = arith.constant 0 : index
    %134 = arith.index_cast %133 : i32 to index
    %c5_151 = arith.constant 5 : index
    %c0_152 = arith.constant 0 : index
    %135 = vector.load %arg2[%c0_150, %134, %c5_151, %c0_152] : memref<1x22x22x4xf32, #tpu.memory_space<vmem>>, vector<1x8x16x4xf32>
    %136 = vector.shape_cast %135 : vector<1x8x16x4xf32> to vector<8x16x4xf32>
    %c0_153 = arith.constant 0 : index
    %c0_154 = arith.constant 0 : index
    %c104 = arith.constant 104 : index
    %137 = vector.load %arg8[%c0_153, %c0_154, %c104] : memref<8x16x256xf32, #tpu.memory_space<vmem>>, vector<8x16x4xf32>
    tpu.vector_store %arg8[%c0_153, %c0_154, %c104], %136 {strides = array<i32>} : memref<8x16x256xf32, #tpu.memory_space<vmem>>, vector<8x16x4xf32>,
    %c3_i32_155 = arith.constant 3 : i32
    %138 = arith.addi %0, %c3_i32_155 : i32
    %c0_156 = arith.constant 0 : index
    %139 = arith.index_cast %138 : i32 to index
    %c6_157 = arith.constant 6 : index
    %c0_158 = arith.constant 0 : index
    %140 = vector.load %arg2[%c0_156, %139, %c6_157, %c0_158] : memref<1x22x22x4xf32, #tpu.memory_space<vmem>>, vector<1x8x16x4xf32>
    %141 = vector.shape_cast %140 : vector<1x8x16x4xf32> to vector<8x16x4xf32>
    %c0_159 = arith.constant 0 : index
    %c0_160 = arith.constant 0 : index
    %c108 = arith.constant 108 : index
    %142 = vector.load %arg8[%c0_159, %c0_160, %c108] : memref<8x16x256xf32, #tpu.memory_space<vmem>>, vector<8x16x4xf32>
    tpu.vector_store %arg8[%c0_159, %c0_160, %c108], %141 {strides = array<i32>} : memref<8x16x256xf32, #tpu.memory_space<vmem>>, vector<8x16x4xf32>,
    %c4_i32 = arith.constant 4 : i32
    %143 = arith.addi %0, %c4_i32 : i32
    %c0_161 = arith.constant 0 : index
    %144 = arith.index_cast %143 : i32 to index
    %c0_162 = arith.constant 0 : index
    %c0_163 = arith.constant 0 : index
    %145 = vector.load %arg2[%c0_161, %144, %c0_162, %c0_163] : memref<1x22x22x4xf32, #tpu.memory_space<vmem>>, vector<1x8x16x4xf32>
    %146 = vector.shape_cast %145 : vector<1x8x16x4xf32> to vector<8x16x4xf32>
    %c0_164 = arith.constant 0 : index
    %c0_165 = arith.constant 0 : index
    %c112 = arith.constant 112 : index
    %147 = vector.load %arg8[%c0_164, %c0_165, %c112] : memref<8x16x256xf32, #tpu.memory_space<vmem>>, vector<8x16x4xf32>
    tpu.vector_store %arg8[%c0_164, %c0_165, %c112], %146 {strides = array<i32>} : memref<8x16x256xf32, #tpu.memory_space<vmem>>, vector<8x16x4xf32>,
    %c4_i32_166 = arith.constant 4 : i32
    %148 = arith.addi %0, %c4_i32_166 : i32
    %c0_167 = arith.constant 0 : index
    %149 = arith.index_cast %148 : i32 to index
    %c1_168 = arith.constant 1 : index
    %c0_169 = arith.constant 0 : index
    %150 = vector.load %arg2[%c0_167, %149, %c1_168, %c0_169] : memref<1x22x22x4xf32, #tpu.memory_space<vmem>>, vector<1x8x16x4xf32>
    %151 = vector.shape_cast %150 : vector<1x8x16x4xf32> to vector<8x16x4xf32>
    %c0_170 = arith.constant 0 : index
    %c0_171 = arith.constant 0 : index
    %c116 = arith.constant 116 : index
    %152 = vector.load %arg8[%c0_170, %c0_171, %c116] : memref<8x16x256xf32, #tpu.memory_space<vmem>>, vector<8x16x4xf32>
    tpu.vector_store %arg8[%c0_170, %c0_171, %c116], %151 {strides = array<i32>} : memref<8x16x256xf32, #tpu.memory_space<vmem>>, vector<8x16x4xf32>,
    %c4_i32_172 = arith.constant 4 : i32
    %153 = arith.addi %0, %c4_i32_172 : i32
    %c0_173 = arith.constant 0 : index
    %154 = arith.index_cast %153 : i32 to index
    %c2_174 = arith.constant 2 : index
    %c0_175 = arith.constant 0 : index
    %155 = vector.load %arg2[%c0_173, %154, %c2_174, %c0_175] : memref<1x22x22x4xf32, #tpu.memory_space<vmem>>, vector<1x8x16x4xf32>
    %156 = vector.shape_cast %155 : vector<1x8x16x4xf32> to vector<8x16x4xf32>
    %c0_176 = arith.constant 0 : index
    %c0_177 = arith.constant 0 : index
    %c120 = arith.constant 120 : index
    %157 = vector.load %arg8[%c0_176, %c0_177, %c120] : memref<8x16x256xf32, #tpu.memory_space<vmem>>, vector<8x16x4xf32>
    tpu.vector_store %arg8[%c0_176, %c0_177, %c120], %156 {strides = array<i32>} : memref<8x16x256xf32, #tpu.memory_space<vmem>>, vector<8x16x4xf32>,
    %c4_i32_178 = arith.constant 4 : i32
    %158 = arith.addi %0, %c4_i32_178 : i32
    %c0_179 = arith.constant 0 : index
    %159 = arith.index_cast %158 : i32 to index
    %c3_180 = arith.constant 3 : index
    %c0_181 = arith.constant 0 : index
    %160 = vector.load %arg2[%c0_179, %159, %c3_180, %c0_181] : memref<1x22x22x4xf32, #tpu.memory_space<vmem>>, vector<1x8x16x4xf32>
    %161 = vector.shape_cast %160 : vector<1x8x16x4xf32> to vector<8x16x4xf32>
    %c0_182 = arith.constant 0 : index
    %c0_183 = arith.constant 0 : index
    %c124 = arith.constant 124 : index
    %162 = vector.load %arg8[%c0_182, %c0_183, %c124] : memref<8x16x256xf32, #tpu.memory_space<vmem>>, vector<8x16x4xf32>
    tpu.vector_store %arg8[%c0_182, %c0_183, %c124], %161 {strides = array<i32>} : memref<8x16x256xf32, #tpu.memory_space<vmem>>, vector<8x16x4xf32>,
    %c4_i32_184 = arith.constant 4 : i32
    %163 = arith.addi %0, %c4_i32_184 : i32
    %c0_185 = arith.constant 0 : index
    %164 = arith.index_cast %163 : i32 to index
    %c4_186 = arith.constant 4 : index
    %c0_187 = arith.constant 0 : index
    %165 = vector.load %arg2[%c0_185, %164, %c4_186, %c0_187] : memref<1x22x22x4xf32, #tpu.memory_space<vmem>>, vector<1x8x16x4xf32>
    %166 = vector.shape_cast %165 : vector<1x8x16x4xf32> to vector<8x16x4xf32>
    %c0_188 = arith.constant 0 : index
    %c0_189 = arith.constant 0 : index
    %c128 = arith.constant 128 : index
    %167 = vector.load %arg8[%c0_188, %c0_189, %c128] : memref<8x16x256xf32, #tpu.memory_space<vmem>>, vector<8x16x4xf32>
    tpu.vector_store %arg8[%c0_188, %c0_189, %c128], %166 {strides = array<i32>} : memref<8x16x256xf32, #tpu.memory_space<vmem>>, vector<8x16x4xf32>,
    %c4_i32_190 = arith.constant 4 : i32
    %168 = arith.addi %0, %c4_i32_190 : i32
    %c0_191 = arith.constant 0 : index
    %169 = arith.index_cast %168 : i32 to index
    %c5_192 = arith.constant 5 : index
    %c0_193 = arith.constant 0 : index
    %170 = vector.load %arg2[%c0_191, %169, %c5_192, %c0_193] : memref<1x22x22x4xf32, #tpu.memory_space<vmem>>, vector<1x8x16x4xf32>
    %171 = vector.shape_cast %170 : vector<1x8x16x4xf32> to vector<8x16x4xf32>
    %c0_194 = arith.constant 0 : index
    %c0_195 = arith.constant 0 : index
    %c132 = arith.constant 132 : index
    %172 = vector.load %arg8[%c0_194, %c0_195, %c132] : memref<8x16x256xf32, #tpu.memory_space<vmem>>, vector<8x16x4xf32>
    tpu.vector_store %arg8[%c0_194, %c0_195, %c132], %171 {strides = array<i32>} : memref<8x16x256xf32, #tpu.memory_space<vmem>>, vector<8x16x4xf32>,
    %c4_i32_196 = arith.constant 4 : i32
    %173 = arith.addi %0, %c4_i32_196 : i32
    %c0_197 = arith.constant 0 : index
    %174 = arith.index_cast %173 : i32 to index
    %c6_198 = arith.constant 6 : index
    %c0_199 = arith.constant 0 : index
    %175 = vector.load %arg2[%c0_197, %174, %c6_198, %c0_199] : memref<1x22x22x4xf32, #tpu.memory_space<vmem>>, vector<1x8x16x4xf32>
    %176 = vector.shape_cast %175 : vector<1x8x16x4xf32> to vector<8x16x4xf32>
    %c0_200 = arith.constant 0 : index
    %c0_201 = arith.constant 0 : index
    %c136 = arith.constant 136 : index
    %177 = vector.load %arg8[%c0_200, %c0_201, %c136] : memref<8x16x256xf32, #tpu.memory_space<vmem>>, vector<8x16x4xf32>
    tpu.vector_store %arg8[%c0_200, %c0_201, %c136], %176 {strides = array<i32>} : memref<8x16x256xf32, #tpu.memory_space<vmem>>, vector<8x16x4xf32>,
    %c5_i32 = arith.constant 5 : i32
    %178 = arith.addi %0, %c5_i32 : i32
    %c0_202 = arith.constant 0 : index
    %179 = arith.index_cast %178 : i32 to index
    %c0_203 = arith.constant 0 : index
    %c0_204 = arith.constant 0 : index
    %180 = vector.load %arg2[%c0_202, %179, %c0_203, %c0_204] : memref<1x22x22x4xf32, #tpu.memory_space<vmem>>, vector<1x8x16x4xf32>
    %181 = vector.shape_cast %180 : vector<1x8x16x4xf32> to vector<8x16x4xf32>
    %c0_205 = arith.constant 0 : index
    %c0_206 = arith.constant 0 : index
    %c140 = arith.constant 140 : index
    %182 = vector.load %arg8[%c0_205, %c0_206, %c140] : memref<8x16x256xf32, #tpu.memory_space<vmem>>, vector<8x16x4xf32>
    tpu.vector_store %arg8[%c0_205, %c0_206, %c140], %181 {strides = array<i32>} : memref<8x16x256xf32, #tpu.memory_space<vmem>>, vector<8x16x4xf32>,
    %c5_i32_207 = arith.constant 5 : i32
    %183 = arith.addi %0, %c5_i32_207 : i32
    %c0_208 = arith.constant 0 : index
    %184 = arith.index_cast %183 : i32 to index
    %c1_209 = arith.constant 1 : index
    %c0_210 = arith.constant 0 : index
    %185 = vector.load %arg2[%c0_208, %184, %c1_209, %c0_210] : memref<1x22x22x4xf32, #tpu.memory_space<vmem>>, vector<1x8x16x4xf32>
    %186 = vector.shape_cast %185 : vector<1x8x16x4xf32> to vector<8x16x4xf32>
    %c0_211 = arith.constant 0 : index
    %c0_212 = arith.constant 0 : index
    %c144 = arith.constant 144 : index
    %187 = vector.load %arg8[%c0_211, %c0_212, %c144] : memref<8x16x256xf32, #tpu.memory_space<vmem>>, vector<8x16x4xf32>
    tpu.vector_store %arg8[%c0_211, %c0_212, %c144], %186 {strides = array<i32>} : memref<8x16x256xf32, #tpu.memory_space<vmem>>, vector<8x16x4xf32>,
    %c5_i32_213 = arith.constant 5 : i32
    %188 = arith.addi %0, %c5_i32_213 : i32
    %c0_214 = arith.constant 0 : index
    %189 = arith.index_cast %188 : i32 to index
    %c2_215 = arith.constant 2 : index
    %c0_216 = arith.constant 0 : index
    %190 = vector.load %arg2[%c0_214, %189, %c2_215, %c0_216] : memref<1x22x22x4xf32, #tpu.memory_space<vmem>>, vector<1x8x16x4xf32>
    %191 = vector.shape_cast %190 : vector<1x8x16x4xf32> to vector<8x16x4xf32>
    %c0_217 = arith.constant 0 : index
    %c0_218 = arith.constant 0 : index
    %c148 = arith.constant 148 : index
    %192 = vector.load %arg8[%c0_217, %c0_218, %c148] : memref<8x16x256xf32, #tpu.memory_space<vmem>>, vector<8x16x4xf32>
    tpu.vector_store %arg8[%c0_217, %c0_218, %c148], %191 {strides = array<i32>} : memref<8x16x256xf32, #tpu.memory_space<vmem>>, vector<8x16x4xf32>,
    %c5_i32_219 = arith.constant 5 : i32
    %193 = arith.addi %0, %c5_i32_219 : i32
    %c0_220 = arith.constant 0 : index
    %194 = arith.index_cast %193 : i32 to index
    %c3_221 = arith.constant 3 : index
    %c0_222 = arith.constant 0 : index
    %195 = vector.load %arg2[%c0_220, %194, %c3_221, %c0_222] : memref<1x22x22x4xf32, #tpu.memory_space<vmem>>, vector<1x8x16x4xf32>
    %196 = vector.shape_cast %195 : vector<1x8x16x4xf32> to vector<8x16x4xf32>
    %c0_223 = arith.constant 0 : index
    %c0_224 = arith.constant 0 : index
    %c152 = arith.constant 152 : index
    %197 = vector.load %arg8[%c0_223, %c0_224, %c152] : memref<8x16x256xf32, #tpu.memory_space<vmem>>, vector<8x16x4xf32>
    tpu.vector_store %arg8[%c0_223, %c0_224, %c152], %196 {strides = array<i32>} : memref<8x16x256xf32, #tpu.memory_space<vmem>>, vector<8x16x4xf32>,
    %c5_i32_225 = arith.constant 5 : i32
    %198 = arith.addi %0, %c5_i32_225 : i32
    %c0_226 = arith.constant 0 : index
    %199 = arith.index_cast %198 : i32 to index
    %c4_227 = arith.constant 4 : index
    %c0_228 = arith.constant 0 : index
    %200 = vector.load %arg2[%c0_226, %199, %c4_227, %c0_228] : memref<1x22x22x4xf32, #tpu.memory_space<vmem>>, vector<1x8x16x4xf32>
    %201 = vector.shape_cast %200 : vector<1x8x16x4xf32> to vector<8x16x4xf32>
    %c0_229 = arith.constant 0 : index
    %c0_230 = arith.constant 0 : index
    %c156 = arith.constant 156 : index
    %202 = vector.load %arg8[%c0_229, %c0_230, %c156] : memref<8x16x256xf32, #tpu.memory_space<vmem>>, vector<8x16x4xf32>
    tpu.vector_store %arg8[%c0_229, %c0_230, %c156], %201 {strides = array<i32>} : memref<8x16x256xf32, #tpu.memory_space<vmem>>, vector<8x16x4xf32>,
    %c5_i32_231 = arith.constant 5 : i32
    %203 = arith.addi %0, %c5_i32_231 : i32
    %c0_232 = arith.constant 0 : index
    %204 = arith.index_cast %203 : i32 to index
    %c5_233 = arith.constant 5 : index
    %c0_234 = arith.constant 0 : index
    %205 = vector.load %arg2[%c0_232, %204, %c5_233, %c0_234] : memref<1x22x22x4xf32, #tpu.memory_space<vmem>>, vector<1x8x16x4xf32>
    %206 = vector.shape_cast %205 : vector<1x8x16x4xf32> to vector<8x16x4xf32>
    %c0_235 = arith.constant 0 : index
    %c0_236 = arith.constant 0 : index
    %c160 = arith.constant 160 : index
    %207 = vector.load %arg8[%c0_235, %c0_236, %c160] : memref<8x16x256xf32, #tpu.memory_space<vmem>>, vector<8x16x4xf32>
    tpu.vector_store %arg8[%c0_235, %c0_236, %c160], %206 {strides = array<i32>} : memref<8x16x256xf32, #tpu.memory_space<vmem>>, vector<8x16x4xf32>,
    %c5_i32_237 = arith.constant 5 : i32
    %208 = arith.addi %0, %c5_i32_237 : i32
    %c0_238 = arith.constant 0 : index
    %209 = arith.index_cast %208 : i32 to index
    %c6_239 = arith.constant 6 : index
    %c0_240 = arith.constant 0 : index
    %210 = vector.load %arg2[%c0_238, %209, %c6_239, %c0_240] : memref<1x22x22x4xf32, #tpu.memory_space<vmem>>, vector<1x8x16x4xf32>
    %211 = vector.shape_cast %210 : vector<1x8x16x4xf32> to vector<8x16x4xf32>
    %c0_241 = arith.constant 0 : index
    %c0_242 = arith.constant 0 : index
    %c164 = arith.constant 164 : index
    %212 = vector.load %arg8[%c0_241, %c0_242, %c164] : memref<8x16x256xf32, #tpu.memory_space<vmem>>, vector<8x16x4xf32>
    tpu.vector_store %arg8[%c0_241, %c0_242, %c164], %211 {strides = array<i32>} : memref<8x16x256xf32, #tpu.memory_space<vmem>>, vector<8x16x4xf32>,
    %c6_i32 = arith.constant 6 : i32
    %213 = arith.addi %0, %c6_i32 : i32
    %c0_243 = arith.constant 0 : index
    %214 = arith.index_cast %213 : i32 to index
    %c0_244 = arith.constant 0 : index
    %c0_245 = arith.constant 0 : index
    %215 = vector.load %arg2[%c0_243, %214, %c0_244, %c0_245] : memref<1x22x22x4xf32, #tpu.memory_space<vmem>>, vector<1x8x16x4xf32>
    %216 = vector.shape_cast %215 : vector<1x8x16x4xf32> to vector<8x16x4xf32>
    %c0_246 = arith.constant 0 : index
    %c0_247 = arith.constant 0 : index
    %c168 = arith.constant 168 : index
    %217 = vector.load %arg8[%c0_246, %c0_247, %c168] : memref<8x16x256xf32, #tpu.memory_space<vmem>>, vector<8x16x4xf32>
    tpu.vector_store %arg8[%c0_246, %c0_247, %c168], %216 {strides = array<i32>} : memref<8x16x256xf32, #tpu.memory_space<vmem>>, vector<8x16x4xf32>,
    %c6_i32_248 = arith.constant 6 : i32
    %218 = arith.addi %0, %c6_i32_248 : i32
    %c0_249 = arith.constant 0 : index
    %219 = arith.index_cast %218 : i32 to index
    %c1_250 = arith.constant 1 : index
    %c0_251 = arith.constant 0 : index
    %220 = vector.load %arg2[%c0_249, %219, %c1_250, %c0_251] : memref<1x22x22x4xf32, #tpu.memory_space<vmem>>, vector<1x8x16x4xf32>
    %221 = vector.shape_cast %220 : vector<1x8x16x4xf32> to vector<8x16x4xf32>
    %c0_252 = arith.constant 0 : index
    %c0_253 = arith.constant 0 : index
    %c172 = arith.constant 172 : index
    %222 = vector.load %arg8[%c0_252, %c0_253, %c172] : memref<8x16x256xf32, #tpu.memory_space<vmem>>, vector<8x16x4xf32>
    tpu.vector_store %arg8[%c0_252, %c0_253, %c172], %221 {strides = array<i32>} : memref<8x16x256xf32, #tpu.memory_space<vmem>>, vector<8x16x4xf32>,
    %c6_i32_254 = arith.constant 6 : i32
    %223 = arith.addi %0, %c6_i32_254 : i32
    %c0_255 = arith.constant 0 : index
    %224 = arith.index_cast %223 : i32 to index
    %c2_256 = arith.constant 2 : index
    %c0_257 = arith.constant 0 : index
    %225 = vector.load %arg2[%c0_255, %224, %c2_256, %c0_257] : memref<1x22x22x4xf32, #tpu.memory_space<vmem>>, vector<1x8x16x4xf32>
    %226 = vector.shape_cast %225 : vector<1x8x16x4xf32> to vector<8x16x4xf32>
    %c0_258 = arith.constant 0 : index
    %c0_259 = arith.constant 0 : index
    %c176 = arith.constant 176 : index
    %227 = vector.load %arg8[%c0_258, %c0_259, %c176] : memref<8x16x256xf32, #tpu.memory_space<vmem>>, vector<8x16x4xf32>
    tpu.vector_store %arg8[%c0_258, %c0_259, %c176], %226 {strides = array<i32>} : memref<8x16x256xf32, #tpu.memory_space<vmem>>, vector<8x16x4xf32>,
    %c6_i32_260 = arith.constant 6 : i32
    %228 = arith.addi %0, %c6_i32_260 : i32
    %c0_261 = arith.constant 0 : index
    %229 = arith.index_cast %228 : i32 to index
    %c3_262 = arith.constant 3 : index
    %c0_263 = arith.constant 0 : index
    %230 = vector.load %arg2[%c0_261, %229, %c3_262, %c0_263] : memref<1x22x22x4xf32, #tpu.memory_space<vmem>>, vector<1x8x16x4xf32>
    %231 = vector.shape_cast %230 : vector<1x8x16x4xf32> to vector<8x16x4xf32>
    %c0_264 = arith.constant 0 : index
    %c0_265 = arith.constant 0 : index
    %c180 = arith.constant 180 : index
    %232 = vector.load %arg8[%c0_264, %c0_265, %c180] : memref<8x16x256xf32, #tpu.memory_space<vmem>>, vector<8x16x4xf32>
    tpu.vector_store %arg8[%c0_264, %c0_265, %c180], %231 {strides = array<i32>} : memref<8x16x256xf32, #tpu.memory_space<vmem>>, vector<8x16x4xf32>,
    %c6_i32_266 = arith.constant 6 : i32
    %233 = arith.addi %0, %c6_i32_266 : i32
    %c0_267 = arith.constant 0 : index
    %234 = arith.index_cast %233 : i32 to index
    %c4_268 = arith.constant 4 : index
    %c0_269 = arith.constant 0 : index
    %235 = vector.load %arg2[%c0_267, %234, %c4_268, %c0_269] : memref<1x22x22x4xf32, #tpu.memory_space<vmem>>, vector<1x8x16x4xf32>
    %236 = vector.shape_cast %235 : vector<1x8x16x4xf32> to vector<8x16x4xf32>
    %c0_270 = arith.constant 0 : index
    %c0_271 = arith.constant 0 : index
    %c184 = arith.constant 184 : index
    %237 = vector.load %arg8[%c0_270, %c0_271, %c184] : memref<8x16x256xf32, #tpu.memory_space<vmem>>, vector<8x16x4xf32>
    tpu.vector_store %arg8[%c0_270, %c0_271, %c184], %236 {strides = array<i32>} : memref<8x16x256xf32, #tpu.memory_space<vmem>>, vector<8x16x4xf32>,
    %c6_i32_272 = arith.constant 6 : i32
    %238 = arith.addi %0, %c6_i32_272 : i32
    %c0_273 = arith.constant 0 : index
    %239 = arith.index_cast %238 : i32 to index
    %c5_274 = arith.constant 5 : index
    %c0_275 = arith.constant 0 : index
    %240 = vector.load %arg2[%c0_273, %239, %c5_274, %c0_275] : memref<1x22x22x4xf32, #tpu.memory_space<vmem>>, vector<1x8x16x4xf32>
    %241 = vector.shape_cast %240 : vector<1x8x16x4xf32> to vector<8x16x4xf32>
    %c0_276 = arith.constant 0 : index
    %c0_277 = arith.constant 0 : index
    %c188 = arith.constant 188 : index
    %242 = vector.load %arg8[%c0_276, %c0_277, %c188] : memref<8x16x256xf32, #tpu.memory_space<vmem>>, vector<8x16x4xf32>
    tpu.vector_store %arg8[%c0_276, %c0_277, %c188], %241 {strides = array<i32>} : memref<8x16x256xf32, #tpu.memory_space<vmem>>, vector<8x16x4xf32>,
    %c6_i32_278 = arith.constant 6 : i32
    %243 = arith.addi %0, %c6_i32_278 : i32
    %c0_279 = arith.constant 0 : index
    %244 = arith.index_cast %243 : i32 to index
    %c6_280 = arith.constant 6 : index
    %c0_281 = arith.constant 0 : index
    %245 = vector.load %arg2[%c0_279, %244, %c6_280, %c0_281] : memref<1x22x22x4xf32, #tpu.memory_space<vmem>>, vector<1x8x16x4xf32>
    %246 = vector.shape_cast %245 : vector<1x8x16x4xf32> to vector<8x16x4xf32>
    %c0_282 = arith.constant 0 : index
    %c0_283 = arith.constant 0 : index
    %c192 = arith.constant 192 : index
    %247 = vector.load %arg8[%c0_282, %c0_283, %c192] : memref<8x16x256xf32, #tpu.memory_space<vmem>>, vector<8x16x4xf32>
    tpu.vector_store %arg8[%c0_282, %c0_283, %c192], %246 {strides = array<i32>} : memref<8x16x256xf32, #tpu.memory_space<vmem>>, vector<8x16x4xf32>,
    %c0_284 = arith.constant 0 : index
    %c0_285 = arith.constant 0 : index
    %c0_286 = arith.constant 0 : index
    %248 = vector.load %arg8[%c0_284, %c0_285, %c0_286] : memref<8x16x256xf32, #tpu.memory_space<vmem>>, vector<8x16x256xf32>
    %249 = vector.shape_cast %248 : vector<8x16x256xf32> to vector<128x256xf32>
    %250 = arith.truncf %249 : vector<128x256xf32> to vector<128x256xbf16>
    %c0_287 = arith.constant 0 : index
    %c0_288 = arith.constant 0 : index
    %251 = vector.load %arg3[%c0_287, %c0_288] : memref<256x8xbf16, #tpu.memory_space<vmem>>, vector<256x8xbf16>
    %cst_289 = arith.constant dense<0.000000e+00> : vector<128x8xf32>
    %252 = tpu.matmul %250, %251, %cst_289 {dimension_numbers = #tpu.dot_dimension_numbers<[1], [0], [0], [1], [0, 0, 1, 1], [], []>} : vector<128x256xbf16>, vector<256x8xbf16>, vector<128x8xf32> -> vector<128x8xf32>
    %253 = vector.shape_cast %252 : vector<128x8xf32> to vector<8x16x8xf32>
    %254 = arith.index_cast %arg0 : i32 to index
    %255 = arith.index_cast %0 : i32 to index
    %c0_290 = arith.constant 0 : index
    %c0_291 = arith.constant 0 : index
    %256 = vector.load %arg9[%254, %255, %c0_290, %c0_291] : memref<2x16x16x8xf32, #tpu.memory_space<vmem>>, vector<1x8x16x8xf32>
    %257 = vector.shape_cast %256 : vector<1x8x16x8xf32> to vector<8x16x8xf32>
    %258 = vector.shape_cast %253 : vector<8x16x8xf32> to vector<1x8x16x8xf32>
    tpu.vector_store %arg9[%254, %255, %c0_290, %c0_291], %258 {strides = array<i32>} : memref<2x16x16x8xf32, #tpu.memory_space<vmem>>, vector<1x8x16x8xf32>,
    %c1_i32_292 = arith.constant 1 : i32
    %259 = arith.cmpi eq, %arg0, %c1_i32_292 : i32
    %c1_i32_293 = arith.constant 1 : i32
    %260 = arith.cmpi eq, %arg1, %c1_i32_293 : i32
    %261 = arith.andi %259, %260 : i1
    %262 = arith.extui %261 : i1 to i32
    %c0_i32_294 = arith.constant 0 : i32
    %263 = arith.cmpi ne, %262, %c0_i32_294 : i32
    scf.if %263 {
      %c0_295 = arith.constant 0 : index
      %c0_296 = arith.constant 0 : index
      %c0_297 = arith.constant 0 : index
      %264 = vector.load %arg6[%c0_295, %c0_296, %c0_297] : memref<16x16x1xf32, #tpu.memory_space<vmem>>, vector<16x16x1xf32>
      %cst_298 = arith.constant 0.000000e+00 : f32
      %265 = vector.broadcast %cst_298 : f32 to vector<1x1x8xf32>
      %c0_299 = arith.constant 0 : index
      %c0_300 = arith.constant 0 : index
      %c0_301 = arith.constant 0 : index
      %c0_302 = arith.constant 0 : index
      %266 = vector.load %arg9[%c0_299, %c0_300, %c0_301, %c0_302] : memref<2x16x16x8xf32, #tpu.memory_space<vmem>>, vector<1x16x16x8xf32>
      %267 = vector.shape_cast %266 : vector<1x16x16x8xf32> to vector<16x16x8xf32>
      %268 = vector.broadcast %264 : vector<16x16x1xf32> to vector<16x16x8xf32>
      %269 = arith.mulf %267, %268 : vector<16x16x8xf32>
      %cst_303 = arith.constant dense<0.000000e+00> : vector<8xf32>
      %270 = vector.multi_reduction <add>, %269, %cst_303 [0, 1] : vector<16x16x8xf32> to vector<8xf32>
      %271 = vector.shape_cast %270 : vector<8xf32> to vector<1x1x8xf32>
      %272 = arith.addf %265, %271 : vector<1x1x8xf32>
      %c1_304 = arith.constant 1 : index
      %c0_305 = arith.constant 0 : index
      %c0_306 = arith.constant 0 : index
      %c0_307 = arith.constant 0 : index
      %273 = vector.load %arg9[%c1_304, %c0_305, %c0_306, %c0_307] : memref<2x16x16x8xf32, #tpu.memory_space<vmem>>, vector<1x16x16x8xf32>
      %274 = vector.shape_cast %273 : vector<1x16x16x8xf32> to vector<16x16x8xf32>
      %275 = vector.broadcast %264 : vector<16x16x1xf32> to vector<16x16x8xf32>
      %276 = arith.mulf %274, %275 : vector<16x16x8xf32>
      %cst_308 = arith.constant dense<0.000000e+00> : vector<8xf32>
      %277 = vector.multi_reduction <add>, %276, %cst_308 [0, 1] : vector<16x16x8xf32> to vector<8xf32>
      %278 = vector.shape_cast %277 : vector<8xf32> to vector<1x1x8xf32>
      %279 = arith.addf %272, %278 : vector<1x1x8xf32>
      %cst_309 = arith.constant 0.00255102036 : f32
      %280 = vector.broadcast %cst_309 : f32 to vector<1x1x8xf32>
      %281 = arith.mulf %279, %280 : vector<1x1x8xf32>
      %cst_310 = arith.constant 0.000000e+00 : f32
      %282 = vector.broadcast %cst_310 : f32 to vector<1x1x8xf32>
      %c0_311 = arith.constant 0 : index
      %c0_312 = arith.constant 0 : index
      %c0_313 = arith.constant 0 : index
      %c0_314 = arith.constant 0 : index
      %283 = vector.load %arg9[%c0_311, %c0_312, %c0_313, %c0_314] : memref<2x16x16x8xf32, #tpu.memory_space<vmem>>, vector<1x16x16x8xf32>
      %284 = vector.shape_cast %283 : vector<1x16x16x8xf32> to vector<16x16x8xf32>
      %285 = vector.broadcast %281 : vector<1x1x8xf32> to vector<16x16x8xf32>
      %286 = arith.subf %284, %285 : vector<16x16x8xf32>
      %287 = vector.broadcast %264 : vector<16x16x1xf32> to vector<16x16x8xf32>
      %288 = arith.mulf %286, %287 : vector<16x16x8xf32>
      %289 = arith.mulf %288, %288 : vector<16x16x8xf32>
      %cst_315 = arith.constant dense<0.000000e+00> : vector<8xf32>
      %290 = vector.multi_reduction <add>, %289, %cst_315 [0, 1] : vector<16x16x8xf32> to vector<8xf32>
      %291 = vector.shape_cast %290 : vector<8xf32> to vector<1x1x8xf32>
      %292 = arith.addf %282, %291 : vector<1x1x8xf32>
      %c1_316 = arith.constant 1 : index
      %c0_317 = arith.constant 0 : index
      %c0_318 = arith.constant 0 : index
      %c0_319 = arith.constant 0 : index
      %293 = vector.load %arg9[%c1_316, %c0_317, %c0_318, %c0_319] : memref<2x16x16x8xf32, #tpu.memory_space<vmem>>, vector<1x16x16x8xf32>
      %294 = vector.shape_cast %293 : vector<1x16x16x8xf32> to vector<16x16x8xf32>
      %295 = vector.broadcast %281 : vector<1x1x8xf32> to vector<16x16x8xf32>
      %296 = arith.subf %294, %295 : vector<16x16x8xf32>
      %297 = vector.broadcast %264 : vector<16x16x1xf32> to vector<16x16x8xf32>
      %298 = arith.mulf %296, %297 : vector<16x16x8xf32>
      %299 = arith.mulf %298, %298 : vector<16x16x8xf32>
      %cst_320 = arith.constant dense<0.000000e+00> : vector<8xf32>
      %300 = vector.multi_reduction <add>, %299, %cst_320 [0, 1] : vector<16x16x8xf32> to vector<8xf32>
      %301 = vector.shape_cast %300 : vector<8xf32> to vector<1x1x8xf32>
      %302 = arith.addf %292, %301 : vector<1x1x8xf32>
      %cst_321 = arith.constant 0.00255102036 : f32
      %303 = vector.broadcast %cst_321 : f32 to vector<1x1x8xf32>
      %304 = arith.mulf %302, %303 : vector<1x1x8xf32>
      %c0_322 = arith.constant 0 : index
      %c0_323 = arith.constant 0 : index
      %305 = vector.load %arg4[%c0_322, %c0_323] : memref<1x8xf32, #tpu.memory_space<vmem>>, vector<1x8xf32>
      %306 = vector.shape_cast %305 : vector<1x8xf32> to vector<1x1x8xf32>
      %cst_324 = arith.constant 9.99999974E-6 : f32
      %307 = vector.broadcast %cst_324 : f32 to vector<1x1x8xf32>
      %308 = arith.addf %304, %307 : vector<1x1x8xf32>
      %309 = math.rsqrt %308 : vector<1x1x8xf32>
      %310 = arith.mulf %306, %309 : vector<1x1x8xf32>
      %c0_325 = arith.constant 0 : index
      %c0_326 = arith.constant 0 : index
      %311 = vector.load %arg5[%c0_325, %c0_326] : memref<1x8xf32, #tpu.memory_space<vmem>>, vector<1x8xf32>
      %312 = vector.shape_cast %311 : vector<1x8xf32> to vector<1x1x8xf32>
      %313 = arith.mulf %281, %310 : vector<1x1x8xf32>
      %314 = arith.subf %312, %313 : vector<1x1x8xf32>
      %c0_327 = arith.constant 0 : index
      %c0_328 = arith.constant 0 : index
      %c0_329 = arith.constant 0 : index
      %c0_330 = arith.constant 0 : index
      %315 = vector.load %arg9[%c0_327, %c0_328, %c0_329, %c0_330] : memref<2x16x16x8xf32, #tpu.memory_space<vmem>>, vector<1x16x16x8xf32>
      %316 = vector.shape_cast %315 : vector<1x16x16x8xf32> to vector<16x16x8xf32>
      %317 = vector.broadcast %310 : vector<1x1x8xf32> to vector<16x16x8xf32>
      %318 = arith.mulf %316, %317 : vector<16x16x8xf32>
      %319 = vector.broadcast %314 : vector<1x1x8xf32> to vector<16x16x8xf32>
      %320 = arith.addf %318, %319 : vector<16x16x8xf32>
      %cst_331 = arith.constant 0.000000e+00 : f32
      %321 = vector.broadcast %cst_331 : f32 to vector<16x16x8xf32>
      %322 = arith.cmpf ogt, %320, %321 : vector<16x16x8xf32>
      %cst_332 = arith.constant 0.00999999977 : f32
      %323 = vector.broadcast %cst_332 : f32 to vector<16x16x8xf32>
      %324 = arith.mulf %323, %320 : vector<16x16x8xf32>
      %325 = arith.select %322, %320, %324 : vector<16x16x8xi1>, vector<16x16x8xf32>
      %326 = vector.extract_strided_slice %325 {offsets = [0, 0, 0], sizes = [12, 16, 8], strides = [1, 1, 1]} : vector<16x16x8xf32> to vector<12x16x8xf32>
      %327 = vector.shape_cast %326 : vector<12x16x8xf32> to vector<3x4x16x8xf32>
      %328 = vector.extract_strided_slice %327 {offsets = [0, 0, 0, 0], sizes = [3, 2, 16, 8], strides = [1, 1, 1, 1]} : vector<3x4x16x8xf32> to vector<3x2x16x8xf32>
      %329 = vector.extract_strided_slice %327 {offsets = [0, 2, 0, 0], sizes = [3, 2, 16, 8], strides = [1, 1, 1, 1]} : vector<3x4x16x8xf32> to vector<3x2x16x8xf32>
      %330 = vector.extract_strided_slice %328 {offsets = [0, 0, 0, 0], sizes = [3, 2, 2, 8], strides = [1, 1, 1, 1]} : vector<3x2x16x8xf32> to vector<3x2x2x8xf32>
      %cst_333 = arith.constant dense<0xFF800000> : vector<3x8xf32>
      %331 = vector.multi_reduction <maximumf>, %330, %cst_333 [1, 2] : vector<3x2x2x8xf32> to vector<3x8xf32>
      %332 = vector.extract_strided_slice %328 {offsets = [0, 0, 2, 0], sizes = [3, 2, 2, 8], strides = [1, 1, 1, 1]} : vector<3x2x16x8xf32> to vector<3x2x2x8xf32>
      %cst_334 = arith.constant dense<0xFF800000> : vector<3x8xf32>
      %333 = vector.multi_reduction <maximumf>, %332, %cst_334 [1, 2] : vector<3x2x2x8xf32> to vector<3x8xf32>
      %334 = vector.extract_strided_slice %329 {offsets = [0, 0, 0, 0], sizes = [3, 2, 2, 8], strides = [1, 1, 1, 1]} : vector<3x2x16x8xf32> to vector<3x2x2x8xf32>
      %cst_335 = arith.constant dense<0xFF800000> : vector<3x8xf32>
      %335 = vector.multi_reduction <maximumf>, %334, %cst_335 [1, 2] : vector<3x2x2x8xf32> to vector<3x8xf32>
      %336 = vector.extract_strided_slice %329 {offsets = [0, 0, 2, 0], sizes = [3, 2, 2, 8], strides = [1, 1, 1, 1]} : vector<3x2x16x8xf32> to vector<3x2x2x8xf32>
      %cst_336 = arith.constant dense<0xFF800000> : vector<3x8xf32>
      %337 = vector.multi_reduction <maximumf>, %336, %cst_336 [1, 2] : vector<3x2x2x8xf32> to vector<3x8xf32>
      %338 = arith.addf %331, %333 : vector<3x8xf32>
      %339 = arith.addf %338, %335 : vector<3x8xf32>
      %340 = arith.addf %339, %337 : vector<3x8xf32>
      %cst_337 = arith.constant 2.500000e-01 : f32
      %341 = vector.broadcast %cst_337 : f32 to vector<3x8xf32>
      %342 = arith.mulf %340, %341 : vector<3x8xf32>
      %c0_338 = arith.constant 0 : index
      %c0_339 = arith.constant 0 : index
      %c0_340 = arith.constant 0 : index
      %c0_341 = arith.constant 0 : index
      %343 = vector.load %arg7[%c0_338, %c0_339, %c0_340, %c0_341] : memref<2x3x3x8xf32, #tpu.memory_space<vmem>>, vector<1x3x1x8xf32>
      %344 = vector.shape_cast %343 : vector<1x3x1x8xf32> to vector<3x8xf32>
      %345 = vector.shape_cast %342 : vector<3x8xf32> to vector<1x3x1x8xf32>
      tpu.vector_store %arg7[%c0_338, %c0_339, %c0_340, %c0_341], %345 {strides = array<i32>} : memref<2x3x3x8xf32, #tpu.memory_space<vmem>>, vector<1x3x1x8xf32>,
      %346 = vector.extract_strided_slice %328 {offsets = [0, 0, 4, 0], sizes = [3, 2, 2, 8], strides = [1, 1, 1, 1]} : vector<3x2x16x8xf32> to vector<3x2x2x8xf32>
      %cst_342 = arith.constant dense<0xFF800000> : vector<3x8xf32>
      %347 = vector.multi_reduction <maximumf>, %346, %cst_342 [1, 2] : vector<3x2x2x8xf32> to vector<3x8xf32>
      %348 = vector.extract_strided_slice %328 {offsets = [0, 0, 6, 0], sizes = [3, 2, 2, 8], strides = [1, 1, 1, 1]} : vector<3x2x16x8xf32> to vector<3x2x2x8xf32>
      %cst_343 = arith.constant dense<0xFF800000> : vector<3x8xf32>
      %349 = vector.multi_reduction <maximumf>, %348, %cst_343 [1, 2] : vector<3x2x2x8xf32> to vector<3x8xf32>
      %350 = vector.extract_strided_slice %329 {offsets = [0, 0, 4, 0], sizes = [3, 2, 2, 8], strides = [1, 1, 1, 1]} : vector<3x2x16x8xf32> to vector<3x2x2x8xf32>
      %cst_344 = arith.constant dense<0xFF800000> : vector<3x8xf32>
      %351 = vector.multi_reduction <maximumf>, %350, %cst_344 [1, 2] : vector<3x2x2x8xf32> to vector<3x8xf32>
      %352 = vector.extract_strided_slice %329 {offsets = [0, 0, 6, 0], sizes = [3, 2, 2, 8], strides = [1, 1, 1, 1]} : vector<3x2x16x8xf32> to vector<3x2x2x8xf32>
      %cst_345 = arith.constant dense<0xFF800000> : vector<3x8xf32>
      %353 = vector.multi_reduction <maximumf>, %352, %cst_345 [1, 2] : vector<3x2x2x8xf32> to vector<3x8xf32>
      %354 = arith.addf %347, %349 : vector<3x8xf32>
      %355 = arith.addf %354, %351 : vector<3x8xf32>
      %356 = arith.addf %355, %353 : vector<3x8xf32>
      %cst_346 = arith.constant 2.500000e-01 : f32
      %357 = vector.broadcast %cst_346 : f32 to vector<3x8xf32>
      %358 = arith.mulf %356, %357 : vector<3x8xf32>
      %c0_347 = arith.constant 0 : index
      %c0_348 = arith.constant 0 : index
      %c1_349 = arith.constant 1 : index
      %c0_350 = arith.constant 0 : index
      %359 = vector.load %arg7[%c0_347, %c0_348, %c1_349, %c0_350] : memref<2x3x3x8xf32, #tpu.memory_space<vmem>>, vector<1x3x1x8xf32>
      %360 = vector.shape_cast %359 : vector<1x3x1x8xf32> to vector<3x8xf32>
      %361 = vector.shape_cast %358 : vector<3x8xf32> to vector<1x3x1x8xf32>
      tpu.vector_store %arg7[%c0_347, %c0_348, %c1_349, %c0_350], %361 {strides = array<i32>} : memref<2x3x3x8xf32, #tpu.memory_space<vmem>>, vector<1x3x1x8xf32>,
      %362 = vector.extract_strided_slice %328 {offsets = [0, 0, 8, 0], sizes = [3, 2, 2, 8], strides = [1, 1, 1, 1]} : vector<3x2x16x8xf32> to vector<3x2x2x8xf32>
      %cst_351 = arith.constant dense<0xFF800000> : vector<3x8xf32>
      %363 = vector.multi_reduction <maximumf>, %362, %cst_351 [1, 2] : vector<3x2x2x8xf32> to vector<3x8xf32>
      %364 = vector.extract_strided_slice %328 {offsets = [0, 0, 10, 0], sizes = [3, 2, 2, 8], strides = [1, 1, 1, 1]} : vector<3x2x16x8xf32> to vector<3x2x2x8xf32>
      %cst_352 = arith.constant dense<0xFF800000> : vector<3x8xf32>
      %365 = vector.multi_reduction <maximumf>, %364, %cst_352 [1, 2] : vector<3x2x2x8xf32> to vector<3x8xf32>
      %366 = vector.extract_strided_slice %329 {offsets = [0, 0, 8, 0], sizes = [3, 2, 2, 8], strides = [1, 1, 1, 1]} : vector<3x2x16x8xf32> to vector<3x2x2x8xf32>
      %cst_353 = arith.constant dense<0xFF800000> : vector<3x8xf32>
      %367 = vector.multi_reduction <maximumf>, %366, %cst_353 [1, 2] : vector<3x2x2x8xf32> to vector<3x8xf32>
      %368 = vector.extract_strided_slice %329 {offsets = [0, 0, 10, 0], sizes = [3, 2, 2, 8], strides = [1, 1, 1, 1]} : vector<3x2x16x8xf32> to vector<3x2x2x8xf32>
      %cst_354 = arith.constant dense<0xFF800000> : vector<3x8xf32>
      %369 = vector.multi_reduction <maximumf>, %368, %cst_354 [1, 2] : vector<3x2x2x8xf32> to vector<3x8xf32>
      %370 = arith.addf %363, %365 : vector<3x8xf32>
      %371 = arith.addf %370, %367 : vector<3x8xf32>
      %372 = arith.addf %371, %369 : vector<3x8xf32>
      %cst_355 = arith.constant 2.500000e-01 : f32
      %373 = vector.broadcast %cst_355 : f32 to vector<3x8xf32>
      %374 = arith.mulf %372, %373 : vector<3x8xf32>
      %c0_356 = arith.constant 0 : index
      %c0_357 = arith.constant 0 : index
      %c2_358 = arith.constant 2 : index
      %c0_359 = arith.constant 0 : index
      %375 = vector.load %arg7[%c0_356, %c0_357, %c2_358, %c0_359] : memref<2x3x3x8xf32, #tpu.memory_space<vmem>>, vector<1x3x1x8xf32>
      %376 = vector.shape_cast %375 : vector<1x3x1x8xf32> to vector<3x8xf32>
      %377 = vector.shape_cast %374 : vector<3x8xf32> to vector<1x3x1x8xf32>
      tpu.vector_store %arg7[%c0_356, %c0_357, %c2_358, %c0_359], %377 {strides = array<i32>} : memref<2x3x3x8xf32, #tpu.memory_space<vmem>>, vector<1x3x1x8xf32>,
      %c1_360 = arith.constant 1 : index
      %c0_361 = arith.constant 0 : index
      %c0_362 = arith.constant 0 : index
      %c0_363 = arith.constant 0 : index
      %378 = vector.load %arg9[%c1_360, %c0_361, %c0_362, %c0_363] : memref<2x16x16x8xf32, #tpu.memory_space<vmem>>, vector<1x16x16x8xf32>
      %379 = vector.shape_cast %378 : vector<1x16x16x8xf32> to vector<16x16x8xf32>
      %380 = vector.broadcast %310 : vector<1x1x8xf32> to vector<16x16x8xf32>
      %381 = arith.mulf %379, %380 : vector<16x16x8xf32>
      %382 = vector.broadcast %314 : vector<1x1x8xf32> to vector<16x16x8xf32>
      %383 = arith.addf %381, %382 : vector<16x16x8xf32>
      %cst_364 = arith.constant 0.000000e+00 : f32
      %384 = vector.broadcast %cst_364 : f32 to vector<16x16x8xf32>
      %385 = arith.cmpf ogt, %383, %384 : vector<16x16x8xf32>
      %cst_365 = arith.constant 0.00999999977 : f32
      %386 = vector.broadcast %cst_365 : f32 to vector<16x16x8xf32>
      %387 = arith.mulf %386, %383 : vector<16x16x8xf32>
      %388 = arith.select %385, %383, %387 : vector<16x16x8xi1>, vector<16x16x8xf32>
      %389 = vector.extract_strided_slice %388 {offsets = [0, 0, 0], sizes = [12, 16, 8], strides = [1, 1, 1]} : vector<16x16x8xf32> to vector<12x16x8xf32>
      %390 = vector.shape_cast %389 : vector<12x16x8xf32> to vector<3x4x16x8xf32>
      %391 = vector.extract_strided_slice %390 {offsets = [0, 0, 0, 0], sizes = [3, 2, 16, 8], strides = [1, 1, 1, 1]} : vector<3x4x16x8xf32> to vector<3x2x16x8xf32>
      %392 = vector.extract_strided_slice %390 {offsets = [0, 2, 0, 0], sizes = [3, 2, 16, 8], strides = [1, 1, 1, 1]} : vector<3x4x16x8xf32> to vector<3x2x16x8xf32>
      %393 = vector.extract_strided_slice %391 {offsets = [0, 0, 0, 0], sizes = [3, 2, 2, 8], strides = [1, 1, 1, 1]} : vector<3x2x16x8xf32> to vector<3x2x2x8xf32>
      %cst_366 = arith.constant dense<0xFF800000> : vector<3x8xf32>
      %394 = vector.multi_reduction <maximumf>, %393, %cst_366 [1, 2] : vector<3x2x2x8xf32> to vector<3x8xf32>
      %395 = vector.extract_strided_slice %391 {offsets = [0, 0, 2, 0], sizes = [3, 2, 2, 8], strides = [1, 1, 1, 1]} : vector<3x2x16x8xf32> to vector<3x2x2x8xf32>
      %cst_367 = arith.constant dense<0xFF800000> : vector<3x8xf32>
      %396 = vector.multi_reduction <maximumf>, %395, %cst_367 [1, 2] : vector<3x2x2x8xf32> to vector<3x8xf32>
      %397 = vector.extract_strided_slice %392 {offsets = [0, 0, 0, 0], sizes = [3, 2, 2, 8], strides = [1, 1, 1, 1]} : vector<3x2x16x8xf32> to vector<3x2x2x8xf32>
      %cst_368 = arith.constant dense<0xFF800000> : vector<3x8xf32>
      %398 = vector.multi_reduction <maximumf>, %397, %cst_368 [1, 2] : vector<3x2x2x8xf32> to vector<3x8xf32>
      %399 = vector.extract_strided_slice %392 {offsets = [0, 0, 2, 0], sizes = [3, 2, 2, 8], strides = [1, 1, 1, 1]} : vector<3x2x16x8xf32> to vector<3x2x2x8xf32>
      %cst_369 = arith.constant dense<0xFF800000> : vector<3x8xf32>
      %400 = vector.multi_reduction <maximumf>, %399, %cst_369 [1, 2] : vector<3x2x2x8xf32> to vector<3x8xf32>
      %401 = arith.addf %394, %396 : vector<3x8xf32>
      %402 = arith.addf %401, %398 : vector<3x8xf32>
      %403 = arith.addf %402, %400 : vector<3x8xf32>
      %cst_370 = arith.constant 2.500000e-01 : f32
      %404 = vector.broadcast %cst_370 : f32 to vector<3x8xf32>
      %405 = arith.mulf %403, %404 : vector<3x8xf32>
      %c1_371 = arith.constant 1 : index
      %c0_372 = arith.constant 0 : index
      %c0_373 = arith.constant 0 : index
      %c0_374 = arith.constant 0 : index
      %406 = vector.load %arg7[%c1_371, %c0_372, %c0_373, %c0_374] : memref<2x3x3x8xf32, #tpu.memory_space<vmem>>, vector<1x3x1x8xf32>
      %407 = vector.shape_cast %406 : vector<1x3x1x8xf32> to vector<3x8xf32>
      %408 = vector.shape_cast %405 : vector<3x8xf32> to vector<1x3x1x8xf32>
      tpu.vector_store %arg7[%c1_371, %c0_372, %c0_373, %c0_374], %408 {strides = array<i32>} : memref<2x3x3x8xf32, #tpu.memory_space<vmem>>, vector<1x3x1x8xf32>,
      %409 = vector.extract_strided_slice %391 {offsets = [0, 0, 4, 0], sizes = [3, 2, 2, 8], strides = [1, 1, 1, 1]} : vector<3x2x16x8xf32> to vector<3x2x2x8xf32>
      %cst_375 = arith.constant dense<0xFF800000> : vector<3x8xf32>
      %410 = vector.multi_reduction <maximumf>, %409, %cst_375 [1, 2] : vector<3x2x2x8xf32> to vector<3x8xf32>
      %411 = vector.extract_strided_slice %391 {offsets = [0, 0, 6, 0], sizes = [3, 2, 2, 8], strides = [1, 1, 1, 1]} : vector<3x2x16x8xf32> to vector<3x2x2x8xf32>
      %cst_376 = arith.constant dense<0xFF800000> : vector<3x8xf32>
      %412 = vector.multi_reduction <maximumf>, %411, %cst_376 [1, 2] : vector<3x2x2x8xf32> to vector<3x8xf32>
      %413 = vector.extract_strided_slice %392 {offsets = [0, 0, 4, 0], sizes = [3, 2, 2, 8], strides = [1, 1, 1, 1]} : vector<3x2x16x8xf32> to vector<3x2x2x8xf32>
      %cst_377 = arith.constant dense<0xFF800000> : vector<3x8xf32>
      %414 = vector.multi_reduction <maximumf>, %413, %cst_377 [1, 2] : vector<3x2x2x8xf32> to vector<3x8xf32>
      %415 = vector.extract_strided_slice %392 {offsets = [0, 0, 6, 0], sizes = [3, 2, 2, 8], strides = [1, 1, 1, 1]} : vector<3x2x16x8xf32> to vector<3x2x2x8xf32>
      %cst_378 = arith.constant dense<0xFF800000> : vector<3x8xf32>
      %416 = vector.multi_reduction <maximumf>, %415, %cst_378 [1, 2] : vector<3x2x2x8xf32> to vector<3x8xf32>
      %417 = arith.addf %410, %412 : vector<3x8xf32>
      %418 = arith.addf %417, %414 : vector<3x8xf32>
      %419 = arith.addf %418, %416 : vector<3x8xf32>
      %cst_379 = arith.constant 2.500000e-01 : f32
      %420 = vector.broadcast %cst_379 : f32 to vector<3x8xf32>
      %421 = arith.mulf %419, %420 : vector<3x8xf32>
      %c1_380 = arith.constant 1 : index
      %c0_381 = arith.constant 0 : index
      %c1_382 = arith.constant 1 : index
      %c0_383 = arith.constant 0 : index
      %422 = vector.load %arg7[%c1_380, %c0_381, %c1_382, %c0_383] : memref<2x3x3x8xf32, #tpu.memory_space<vmem>>, vector<1x3x1x8xf32>
      %423 = vector.shape_cast %422 : vector<1x3x1x8xf32> to vector<3x8xf32>
      %424 = vector.shape_cast %421 : vector<3x8xf32> to vector<1x3x1x8xf32>
      tpu.vector_store %arg7[%c1_380, %c0_381, %c1_382, %c0_383], %424 {strides = array<i32>} : memref<2x3x3x8xf32, #tpu.memory_space<vmem>>, vector<1x3x1x8xf32>,
      %425 = vector.extract_strided_slice %391 {offsets = [0, 0, 8, 0], sizes = [3, 2, 2, 8], strides = [1, 1, 1, 1]} : vector<3x2x16x8xf32> to vector<3x2x2x8xf32>
      %cst_384 = arith.constant dense<0xFF800000> : vector<3x8xf32>
      %426 = vector.multi_reduction <maximumf>, %425, %cst_384 [1, 2] : vector<3x2x2x8xf32> to vector<3x8xf32>
      %427 = vector.extract_strided_slice %391 {offsets = [0, 0, 10, 0], sizes = [3, 2, 2, 8], strides = [1, 1, 1, 1]} : vector<3x2x16x8xf32> to vector<3x2x2x8xf32>
      %cst_385 = arith.constant dense<0xFF800000> : vector<3x8xf32>
      %428 = vector.multi_reduction <maximumf>, %427, %cst_385 [1, 2] : vector<3x2x2x8xf32> to vector<3x8xf32>
      %429 = vector.extract_strided_slice %392 {offsets = [0, 0, 8, 0], sizes = [3, 2, 2, 8], strides = [1, 1, 1, 1]} : vector<3x2x16x8xf32> to vector<3x2x2x8xf32>
      %cst_386 = arith.constant dense<0xFF800000> : vector<3x8xf32>
      %430 = vector.multi_reduction <maximumf>, %429, %cst_386 [1, 2] : vector<3x2x2x8xf32> to vector<3x8xf32>
      %431 = vector.extract_strided_slice %392 {offsets = [0, 0, 10, 0], sizes = [3, 2, 2, 8], strides = [1, 1, 1, 1]} : vector<3x2x16x8xf32> to vector<3x2x2x8xf32>
      %cst_387 = arith.constant dense<0xFF800000> : vector<3x8xf32>
      %432 = vector.multi_reduction <maximumf>, %431, %cst_387 [1, 2] : vector<3x2x2x8xf32> to vector<3x8xf32>
      %433 = arith.addf %426, %428 : vector<3x8xf32>
      %434 = arith.addf %433, %430 : vector<3x8xf32>
      %435 = arith.addf %434, %432 : vector<3x8xf32>
      %cst_388 = arith.constant 2.500000e-01 : f32
      %436 = vector.broadcast %cst_388 : f32 to vector<3x8xf32>
      %437 = arith.mulf %435, %436 : vector<3x8xf32>
      %c1_389 = arith.constant 1 : index
      %c0_390 = arith.constant 0 : index
      %c2_391 = arith.constant 2 : index
      %c0_392 = arith.constant 0 : index
      %438 = vector.load %arg7[%c1_389, %c0_390, %c2_391, %c0_392] : memref<2x3x3x8xf32, #tpu.memory_space<vmem>>, vector<1x3x1x8xf32>
      %439 = vector.shape_cast %438 : vector<1x3x1x8xf32> to vector<3x8xf32>
      %440 = vector.shape_cast %437 : vector<3x8xf32> to vector<1x3x1x8xf32>
      tpu.vector_store %arg7[%c1_389, %c0_390, %c2_391, %c0_392], %440 {strides = array<i32>} : memref<2x3x3x8xf32, #tpu.memory_space<vmem>>, vector<1x3x1x8xf32>,
    } else {
    }
    return
  }
  func.func @transform_0(%arg0: i32, %arg1: i32) -> (i32, i32, i32, i32) {
    %c0_i32 = arith.constant 0 : i32
    %c0_i32_0 = arith.constant 0 : i32
    %c0_i32_1 = arith.constant 0 : i32
    %c0_i32_2 = arith.constant 0 : i32
    return %arg0, %c0_i32, %c0_i32_0, %c0_i32_1 : i32, i32, i32, i32
  }
  func.func @transform_1(%arg0: i32, %arg1: i32) -> (i32, i32) {
    %c0_i32 = arith.constant 0 : i32
    %c0_i32_0 = arith.constant 0 : i32
    %c0_i32_1 = arith.constant 0 : i32
    return %c0_i32, %c0_i32_0 : i32, i32
  }
  func.func @transform_2(%arg0: i32, %arg1: i32) -> (i32, i32) {
    %c0_i32 = arith.constant 0 : i32
    %c0_i32_0 = arith.constant 0 : i32
    %c0_i32_1 = arith.constant 0 : i32
    return %c0_i32, %c0_i32_0 : i32, i32
  }
  func.func @transform_3(%arg0: i32, %arg1: i32) -> (i32, i32) {
    %c0_i32 = arith.constant 0 : i32
    %c0_i32_0 = arith.constant 0 : i32
    %c0_i32_1 = arith.constant 0 : i32
    return %c0_i32, %c0_i32_0 : i32, i32
  }
  func.func @transform_4(%arg0: i32, %arg1: i32) -> (i32, i32, i32) {
    %c0_i32 = arith.constant 0 : i32
    %c0_i32_0 = arith.constant 0 : i32
    %c0_i32_1 = arith.constant 0 : i32
    %c0_i32_2 = arith.constant 0 : i32
    return %c0_i32, %c0_i32_0, %c0_i32_1 : i32, i32, i32
  }
  func.func @transform_5(%arg0: i32, %arg1: i32) -> (i32, i32, i32, i32) {
    %c0_i32 = arith.constant 0 : i32
    %c0_i32_0 = arith.constant 0 : i32
    %c0_i32_1 = arith.constant 0 : i32
    %c0_i32_2 = arith.constant 0 : i32
    %c0_i32_3 = arith.constant 0 : i32
    return %c0_i32, %c0_i32_0, %c0_i32_1, %c0_i32_2 : i32, i32, i32, i32
  }
}

</mosaic_0001>

<llo_original>
// kernel: conv_cnn_forward.1
$region0: #{conv_cnn_forward.1}
  #allocation0 [shape = 'u32[]', space=smem, size = 0x4, offset = 0x4, fixed_abs, tag = 'smem constant byte address 0x4 - core index']
  #allocation1 [shape = 'u32[72,128]{1,0:T(1,128)}', space=vmem, size = 0x9000, scoped, tag = 'internal scratch']
  #allocation2 [shape = 'f32[8,16,256]{2,1,0:T(8,128)}', space=vmem, size = 0x20000, scoped, tag = 'scratch operand']
  #allocation3 [shape = 'f32[2,16,16,8]{3,2,1,0:T(8,128)}', space=vmem, size = 0x40000, scoped, tag = 'scratch operand']
  %s0 = inlined_call_operand.vmem [shape: f32[2,22,22,4], index: 0, kind: input, shape index: {}]
  %s1 = inlined_call_operand.vmem [shape: bf16[256,8], index: 1, kind: input, shape index: {}]
  %s2 = inlined_call_operand.vmem [shape: f32[1,8], index: 2, kind: input, shape index: {}]
  %s3 = inlined_call_operand.vmem [shape: f32[1,8], index: 3, kind: input, shape index: {}]
  %s4 = inlined_call_operand.vmem [shape: f32[16,16,1], index: 4, kind: input, shape index: {}]
  %s5 = inlined_call_operand.vmem [shape: f32[2,3,3,8], index: 5, kind: output, shape index: {}]
  %s6 = sld [smem:[#allocation0]]
  $region57: #{conv_cnn_forward.1} parent=0
    _
  %s8 = ssub.s32 1, %s6
  %s9 = scalar_select 0, %s8, %s6
  loop: start=0, step=1, limit=6
  $region2: #{conv_cnn_forward.1} parent=0 // loop_pre_header
    _
  $region3: #{conv_cnn_forward.1} parent=0 // loop_header
    %s11 = sphi 0, %s15
    %p12 = scmp.ge.s32.totalorder %s11, 6
    %s18 = sphi 0, %s30
    %s19 = sphi 0, %s26
    %s20 = sphi 0, %s18
    %s21 = sphi 0, %s19
    %s22 = sphi 0, %s20
    %s23 = sphi 0, %s21
    %s33 = sphi 0, %s35
    %s36 = sphi 0, %s33
    %s37 = sphi 0, %s36
    %s53 = sphi 0, %s37
    %s57 = sphi 0, %s57
    %s59 = sphi 0, %s57
    %s60 = sphi 0, %s59
    %s74 = sphi 0, %s60
    %s78 = sphi 0, %s78
    %s80 = sphi 0, %s78
    %s81 = sphi 0, %s80
    %s95 = sphi 0, %s81
    %s99 = sphi 0, %s99
    %s101 = sphi 0, %s99
    %s102 = sphi 0, %s101
    %s116 = sphi 0, %s102
    %s120 = sphi 0, %s120
    %s122 = sphi 0, %s120
    %s123 = sphi 0, %s122
    %s137 = sphi 0, %s123
    %s141 = sphi 0, %s141
    %s143 = sphi 0, %s141
    %s144 = sphi 0, %s143
    %s158 = sphi 0, %s144
  $region4: #{conv_cnn_forward.1} parent=0 // loop_header_branch
    %14 = sbr.rel (%p12) target = $region8
  $region5: #{conv_cnn_forward.1} parent=0 // loop_body
    %s16 = ssub.s32 %s11, 1
    %s17 = ssub.s32 %s11, 2
    %s24 = sadd.s32 1, %s19
    %p25 = scmp.ge.s32.totalorder %s24, 2
    %s26 = scalar_select %p25, 0, %s24
    %s27 = sadd.s32 1, %s18
    %s28 = scalar_select %p25, %s27, %s18
    %p29 = scmp.ge.s32.totalorder %s28, 2
    %s30 = scalar_select %p29, 0, %s28
    %s31 = ssub.s32 %s18, %s30
    %p32 = scmp.eq.s32.totalorder %s31, 0
    %s34 = sadd.s32 %s33, 1
    %s35 = scalar_select %p32, %s33, %s34
    %p38 = pneg %p32
    %p39 = scmp.eq.s32.totalorder %s11, 3
    %p40 = por %p38, %p39
    %p41 = scmp.ne.s32.totalorder %s33, %s36
    %p42 = scmp.eq.s32.totalorder %s11, 0
    %p43 = por %p41, %p42
    %p44 = scmp.ne.s32.totalorder %s33, %s36
    %p45 = scmp.eq.s32.totalorder %s16, 3
    %p46 = por %p44, %p45
    %p47 = scmp.ne.s32.totalorder %s36, %s37
    %p48 = scmp.eq.s32.totalorder %s16, 0
    %p49 = por %p47, %p48
    %p50 = scmp.ne.s32.totalorder %s36, %s37
    %p51 = scmp.eq.s32.totalorder %s17, 3
    %p52 = por %p50, %p51
    %p54 = scmp.ne.s32.totalorder %s37, %s53
    %p55 = scmp.eq.s32.totalorder %s17, 0
    %p56 = por %p54, %p55
    %s58 = sadd.s32 %s57, 1
    %p61 = scmp.eq.s32.totalorder %s11, 3
    %p62 = scmp.ne.s32.totalorder %s57, %s59
    %p63 = scmp.eq.s32.totalorder %s11, 0
    %p64 = por %p62, %p63
    %p65 = scmp.ne.s32.totalorder %s57, %s59
    %p66 = scmp.eq.s32.totalorder %s16, 3
    %p67 = por %p65, %p66
    %p68 = scmp.ne.s32.totalorder %s59, %s60
    %p69 = scmp.eq.s32.totalorder %s16, 0
    %p70 = por %p68, %p69
    %p71 = scmp.ne.s32.totalorder %s59, %s60
    %p72 = scmp.eq.s32.totalorder %s17, 3
    %p73 = por %p71, %p72
    %p75 = scmp.ne.s32.totalorder %s60, %s74
    %p76 = scmp.eq.s32.totalorder %s17, 0
    %p77 = por %p75, %p76
    %s79 = sadd.s32 %s78, 1
    %p82 = scmp.eq.s32.totalorder %s11, 3
    %p83 = scmp.ne.s32.totalorder %s78, %s80
    %p84 = scmp.eq.s32.totalorder %s11, 0
    %p85 = por %p83, %p84
    %p86 = scmp.ne.s32.totalorder %s78, %s80
    %p87 = scmp.eq.s32.totalorder %s16, 3
    %p88 = por %p86, %p87
    %p89 = scmp.ne.s32.totalorder %s80, %s81
    %p90 = scmp.eq.s32.totalorder %s16, 0
    %p91 = por %p89, %p90
    %p92 = scmp.ne.s32.totalorder %s80, %s81
    %p93 = scmp.eq.s32.totalorder %s17, 3
    %p94 = por %p92, %p93
    %p96 = scmp.ne.s32.totalorder %s81, %s95
    %p97 = scmp.eq.s32.totalorder %s17, 0
    %p98 = por %p96, %p97
    %s100 = sadd.s32 %s99, 1
    %p103 = scmp.eq.s32.totalorder %s11, 3
    %p104 = scmp.ne.s32.totalorder %s99, %s101
    %p105 = scmp.eq.s32.totalorder %s11, 0
    %p106 = por %p104, %p105
    %p107 = scmp.ne.s32.totalorder %s99, %s101
    %p108 = scmp.eq.s32.totalorder %s16, 3
    %p109 = por %p107, %p108
    %p110 = scmp.ne.s32.totalorder %s101, %s102
    %p111 = scmp.eq.s32.totalorder %s16, 0
    %p112 = por %p110, %p111
    %p113 = scmp.ne.s32.totalorder %s101, %s102
    %p114 = scmp.eq.s32.totalorder %s17, 3
    %p115 = por %p113, %p114
    %p117 = scmp.ne.s32.totalorder %s102, %s116
    %p118 = scmp.eq.s32.totalorder %s17, 0
    %p119 = por %p117, %p118
    %s121 = sadd.s32 %s120, 1
    %p124 = scmp.eq.s32.totalorder %s11, 3
    %p125 = scmp.ne.s32.totalorder %s120, %s122
    %p126 = scmp.eq.s32.totalorder %s11, 0
    %p127 = por %p125, %p126
    %p128 = scmp.ne.s32.totalorder %s120, %s122
    %p129 = scmp.eq.s32.totalorder %s16, 3
    %p130 = por %p128, %p129
    %p131 = scmp.ne.s32.totalorder %s122, %s123
    %p132 = scmp.eq.s32.totalorder %s16, 0
    %p133 = por %p131, %p132
    %p134 = scmp.ne.s32.totalorder %s122, %s123
    %p135 = scmp.eq.s32.totalorder %s17, 3
    %p136 = por %p134, %p135
    %p138 = scmp.ne.s32.totalorder %s123, %s137
    %p139 = scmp.eq.s32.totalorder %s17, 0
    %p140 = por %p138, %p139
    %s142 = sadd.s32 %s141, 1
    %p145 = scmp.eq.s32.totalorder %s11, 3
    %p146 = scmp.ne.s32.totalorder %s141, %s143
    %p147 = scmp.eq.s32.totalorder %s11, 0
    %p148 = por %p146, %p147
    %p149 = scmp.ne.s32.totalorder %s141, %s143
    %p150 = scmp.eq.s32.totalorder %s16, 3
    %p151 = por %p149, %p150
    %p152 = scmp.ne.s32.totalorder %s143, %s144
    %p153 = scmp.eq.s32.totalorder %s16, 0
    %p154 = por %p152, %p153
    %p155 = scmp.ne.s32.totalorder %s143, %s144
    %p156 = scmp.eq.s32.totalorder %s17, 3
    %p157 = por %p155, %p156
    %p159 = scmp.ne.s32.totalorder %s144, %s158
    %p160 = scmp.eq.s32.totalorder %s17, 0
    %p161 = por %p159, %p160
    %p162 = scmp.le.s32.totalorder 1, %s11
    %p163 = scmp.lt.s32.totalorder %s11, 5
    %p164 = pnand %p162, %p163
    %p165 = pneg %p164
    // Predicated region
    $region9: #{conv_cnn_forward.1} parent=5 // pred_check
      _
    $region10: #{conv_cnn_forward.1} parent=5 // pred_check_branch
      %167 = sbr.rel (%p164) target = $region12
    $region11: #{conv_cnn_forward.1} parent=5 // pred_region
      %s168 = ssub.s32 %s11, 1
      // Predicated region
      $region13: #{conv_cnn_forward.1} parent=11 // pred_check
        %p169 = pneg %p70
      $region14: #{conv_cnn_forward.1} parent=11 // pred_check_branch
        %171 = sbr.rel (%p169) target = $region16
      $region15: #{conv_cnn_forward.1} parent=11 // pred_region
        _
      $region16: #{conv_cnn_forward.1} parent=11 // pred_fallthru
        _
      // Predicated region
      $region17: #{conv_cnn_forward.1} parent=11 // pred_check
        %p172 = pneg %p91
      $region18: #{conv_cnn_forward.1} parent=11 // pred_check_branch
        %174 = sbr.rel (%p172) target = $region20
      $region19: #{conv_cnn_forward.1} parent=11 // pred_region
        _
      $region20: #{conv_cnn_forward.1} parent=11 // pred_fallthru
        _
      // Predicated region
      $region21: #{conv_cnn_forward.1} parent=11 // pred_check
        %p175 = pneg %p112
      $region22: #{conv_cnn_forward.1} parent=11 // pred_check_branch
        %177 = sbr.rel (%p175) target = $region24
      $region23: #{conv_cnn_forward.1} parent=11 // pred_region
        _
      $region24: #{conv_cnn_forward.1} parent=11 // pred_fallthru
        _
      // Predicated region
      $region25: #{conv_cnn_forward.1} parent=11 // pred_check
        %p178 = pneg %p133
      $region26: #{conv_cnn_forward.1} parent=11 // pred_check_branch
        %180 = sbr.rel (%p178) target = $region28
      $region27: #{conv_cnn_forward.1} parent=11 // pred_region
        _
      $region28: #{conv_cnn_forward.1} parent=11 // pred_fallthru
        _
    $region12: #{conv_cnn_forward.1} parent=5 // pred_fallthru
      _
    %p181 = scmp.lt.s32.totalorder %s11, 4
    // Predicated region
    $region29: #{conv_cnn_forward.1} parent=5 // pred_check
      %p182 = pneg %p181
    $region30: #{conv_cnn_forward.1} parent=5 // pred_check_branch
      %184 = sbr.rel (%p182) target = $region32
    $region31: #{conv_cnn_forward.1} parent=5 // pred_region
      // Predicated region
      $region33: #{conv_cnn_forward.1} parent=31 // pred_check
        %p185 = pneg %p43
      $region34: #{conv_cnn_forward.1} parent=31 // pred_check_branch
        %187 = sbr.rel (%p185) target = $region36
      $region35: #{conv_cnn_forward.1} parent=31 // pred_region
        %p188 = scmp.lt.s32.totalorder %s18, 1
        %s189 = scalar_select %p188, %s18, 1
        %s190 = smul.addr %s189, 66
        %s191 = smul.addr %s190, 8
        %s192 = scalar_lea.vmem %s0, %s191
      $region36: #{conv_cnn_forward.1} parent=31 // pred_fallthru
        _
    $region32: #{conv_cnn_forward.1} parent=5 // pred_fallthru
      _
    %p193 = scmp.le.s32.totalorder 1, %s11
    %p194 = scmp.lt.s32.totalorder %s11, 5
    %p195 = pnand %p193, %p194
    %p196 = pneg %p195
    // Predicated region
    $region37: #{conv_cnn_forward.1} parent=5 // pred_check
      _
    $region38: #{conv_cnn_forward.1} parent=5 // pred_check_branch
      %198 = sbr.rel (%p195) target = $region40
    $region39: #{conv_cnn_forward.1} parent=5 // pred_region
      %s199 = ssub.s32 %s11, 1
      %p200 = scmp.lt.s32.totalorder %s20, 1
      %s201 = scalar_select %p200, %s20, 1
      %s202 = smul.addr %s201, 66
      %s203 = smul.addr %s202, 8
      %s204 = scalar_lea.vmem %s0, %s203
      %p205 = pneg %p49
      %p206 = pneg %p46
      %p207 = pneg %p70
      %p208 = pneg %p67
      %p209 = pneg %p91
      %p210 = pneg %p88
      %p211 = pneg %p112
      %p212 = pneg %p109
      %p213 = pneg %p133
      %p214 = pneg %p130
      %p215 = pneg %p154
      %p216 = pneg %p151
      %p217 = scmp.lt.s32.totalorder %s20, 1
      %s218 = scalar_select %p217, %s20, 1
      %s219 = smul.addr %s218, 66
      %s220 = smul.addr %s219, 8
      %s221 = scalar_lea.vmem %s0, %s220
      %s222 = smul.u32 %s21, 8
      %vm223 = vcmask 1048096
      %224 = vst.msk [vmem:[#allocation2 + $0x8] sm:$0xff] %vm223, 0.0
      %225 = vst.msk [vmem:[#allocation2 + $0x18] sm:$0xff] %vm223, 0.0
      %226 = vst.msk [vmem:[#allocation2 + $0x28] sm:$0xff] %vm223, 0.0
      %227 = vst.msk [vmem:[#allocation2 + $0x38] sm:$0xff] %vm223, 0.0
      %228 = vst.msk [vmem:[#allocation2 + $0x48] sm:$0xff] %vm223, 0.0
      %229 = vst.msk [vmem:[#allocation2 + $0x58] sm:$0xff] %vm223, 0.0
      %230 = vst.msk [vmem:[#allocation2 + $0x68] sm:$0xff] %vm223, 0.0
      %231 = vst.msk [vmem:[#allocation2 + $0x78] sm:$0xff] %vm223, 0.0
      %232 = vst.msk [vmem:[#allocation2 + $0x88] sm:$0xff] %vm223, 0.0
      %233 = vst.msk [vmem:[#allocation2 + $0x98] sm:$0xff] %vm223, 0.0
      %234 = vst.msk [vmem:[#allocation2 + $0xa8] sm:$0xff] %vm223, 0.0
      %235 = vst.msk [vmem:[#allocation2 + $0xb8] sm:$0xff] %vm223, 0.0
      %236 = vst.msk [vmem:[#allocation2 + $0xc8] sm:$0xff] %vm223, 0.0
      %237 = vst.msk [vmem:[#allocation2 + $0xd8] sm:$0xff] %vm223, 0.0
      %238 = vst.msk [vmem:[#allocation2 + $0xe8] sm:$0xff] %vm223, 0.0
      %239 = vst.msk [vmem:[#allocation2 + $0xf8] sm:$0xff] %vm223, 0.0
      %s240 = smul.u32 %s222, 24
      %s241 = scalar_lea.vmem %s221, %s240
      %v242 = vld [vmem:[%s241] sm:$0xff]
      %v243 = vld [vmem:[%s241 + $0x8] sm:$0xff]
      %v244 = vld [vmem:[%s241 + $0x18] sm:$0xff]
      %v245 = vld [vmem:[%s241 + $0x20] sm:$0xff]
      %v246 = vld [vmem:[%s241 + $0x30] sm:$0xff]
      %v247 = vld [vmem:[%s241 + $0x38] sm:$0xff]
      %v248 = vld [vmem:[%s241 + $0x48] sm:$0xff]
      %v249 = vld [vmem:[%s241 + $0x50] sm:$0xff]
      %v250 = vld [vmem:[%s241 + $0x60] sm:$0xff]
      %v251 = vld [vmem:[%s241 + $0x68] sm:$0xff]
      %v252 = vld [vmem:[%s241 + $0x78] sm:$0xff]
      %v253 = vld [vmem:[%s241 + $0x80] sm:$0xff]
      %v254 = vld [vmem:[%s241 + $0x90] sm:$0xff]
      %v255 = vld [vmem:[%s241 + $0x98] sm:$0xff]
      %v256 = vld [vmem:[%s241 + $0xa8] sm:$0xff]
      %v257 = vld [vmem:[%s241 + $0xb0] sm:$0xff]
      %vm258 = vcmask 31744
      %259 = vst.msk [vmem:[#allocation2] sm:$0xff] %vm258, %v242
      %260 = vst.msk [vmem:[#allocation2 + $0x10] sm:$0xff] %vm258, %v243
      %261 = vst.msk [vmem:[#allocation2 + $0x20] sm:$0xff] %vm258, %v244
      %262 = vst.msk [vmem:[#allocation2 + $0x30] sm:$0xff] %vm258, %v245
      %263 = vst.msk [vmem:[#allocation2 + $0x40] sm:$0xff] %vm258, %v246
      %264 = vst.msk [vmem:[#allocation2 + $0x50] sm:$0xff] %vm258, %v247
      %265 = vst.msk [vmem:[#allocation2 + $0x60] sm:$0xff] %vm258, %v248
      %266 = vst.msk [vmem:[#allocation2 + $0x70] sm:$0xff] %vm258, %v249
      %267 = vst.msk [vmem:[#allocation2 + $0x80] sm:$0xff] %vm258, %v250
      %268 = vst.msk [vmem:[#allocation2 + $0x90] sm:$0xff] %vm258, %v251
      %269 = vst.msk [vmem:[#allocation2 + $0xa0] sm:$0xff] %vm258, %v252
      %270 = vst.msk [vmem:[#allocation2 + $0xb0] sm:$0xff] %vm258, %v253
      %271 = vst.msk [vmem:[#allocation2 + $0xc0] sm:$0xff] %vm258, %v254
      %272 = vst.msk [vmem:[#allocation2 + $0xd0] sm:$0xff] %vm258, %v255
      %273 = vst.msk [vmem:[#allocation2 + $0xe0] sm:$0xff] %vm258, %v256
      %274 = vst.msk [vmem:[#allocation2 + $0xf0] sm:$0xff] %vm258, %v257
      %v275 = vld [vmem:[%s241 + $0x1] sm:$0xff]
      %v276 = vld [vmem:[%s241 + $0x9] sm:$0xff]
      %v277 = vld [vmem:[%s241 + $0x19] sm:$0xff]
      %v278 = vld [vmem:[%s241 + $0x21] sm:$0xff]
      %v279 = vld [vmem:[%s241 + $0x31] sm:$0xff]
      %v280 = vld [vmem:[%s241 + $0x39] sm:$0xff]
      %v281 = vld [vmem:[%s241 + $0x49] sm:$0xff]
      %v282 = vld [vmem:[%s241 + $0x51] sm:$0xff]
      %v283 = vld [vmem:[%s241 + $0x61] sm:$0xff]
      %v284 = vld [vmem:[%s241 + $0x69] sm:$0xff]
      %v285 = vld [vmem:[%s241 + $0x79] sm:$0xff]
      %v286 = vld [vmem:[%s241 + $0x81] sm:$0xff]
      %v287 = vld [vmem:[%s241 + $0x91] sm:$0xff]
      %v288 = vld [vmem:[%s241 + $0x99] sm:$0xff]
      %v289 = vld [vmem:[%s241 + $0xa9] sm:$0xff]
      %v290 = vld [vmem:[%s241 + $0xb1] sm:$0xff]
      %307 = vrot.lane.b32.xlu0 %v275, 4
      %v308 = vpop.permute.xlu0 %307
      %309 = vrot.lane.b32.xlu0 %v276, 4
      %v310 = vpop.permute.xlu0 %309
      %311 = vrot.lane.b32.xlu0 %v277, 4
      %v312 = vpop.permute.xlu0 %311
      %313 = vrot.lane.b32.xlu0 %v278, 4
      %v314 = vpop.permute.xlu0 %313
      %315 = vrot.lane.b32.xlu0 %v279, 4
      %v316 = vpop.permute.xlu0 %315
      %317 = vrot.lane.b32.xlu0 %v280, 4
      %v318 = vpop.permute.xlu0 %317
      %319 = vrot.lane.b32.xlu0 %v281, 4
      %v320 = vpop.permute.xlu0 %319
      %321 = vrot.lane.b32.xlu0 %v282, 4
      %v322 = vpop.permute.xlu0 %321
      %323 = vrot.lane.b32.xlu0 %v283, 4
      %v324 = vpop.permute.xlu0 %323
      %325 = vrot.lane.b32.xlu0 %v284, 4
      %v326 = vpop.permute.xlu0 %325
      %327 = vrot.lane.b32.xlu0 %v285, 4
      %v328 = vpop.permute.xlu0 %327
      %329 = vrot.lane.b32.xlu0 %v286, 4
      %v330 = vpop.permute.xlu0 %329
      %331 = vrot.lane.b32.xlu0 %v287, 4
      %v332 = vpop.permute.xlu0 %331
      %333 = vrot.lane.b32.xlu0 %v288, 4
      %v334 = vpop.permute.xlu0 %333
      %335 = vrot.lane.b32.xlu0 %v289, 4
      %v336 = vpop.permute.xlu0 %335
      %337 = vrot.lane.b32.xlu0 %v290, 4
      %v338 = vpop.permute.xlu0 %337
      %vm355 = vcmask 64544
      %356 = vst.msk [vmem:[#allocation2] sm:$0xff] %vm355, %v308
      %357 = vst.msk [vmem:[#allocation2 + $0x10] sm:$0xff] %vm355, %v310
      %358 = vst.msk [vmem:[#allocation2 + $0x20] sm:$0xff] %vm355, %v312
      %359 = vst.msk [vmem:[#allocation2 + $0x30] sm:$0xff] %vm355, %v314
      %360 = vst.msk [vmem:[#allocation2 + $0x40] sm:$0xff] %vm355, %v316
      %361 = vst.msk [vmem:[#allocation2 + $0x50] sm:$0xff] %vm355, %v318
      %362 = vst.msk [vmem:[#allocation2 + $0x60] sm:$0xff] %vm355, %v320
      %363 = vst.msk [vmem:[#allocation2 + $0x70] sm:$0xff] %vm355, %v322
      %364 = vst.msk [vmem:[#allocation2 + $0x80] sm:$0xff] %vm355, %v324
      %365 = vst.msk [vmem:[#allocation2 + $0x90] sm:$0xff] %vm355, %v326
      %366 = vst.msk [vmem:[#allocation2 + $0xa0] sm:$0xff] %vm355, %v328
      %367 = vst.msk [vmem:[#allocation2 + $0xb0] sm:$0xff] %vm355, %v330
      %368 = vst.msk [vmem:[#allocation2 + $0xc0] sm:$0xff] %vm355, %v332
      %369 = vst.msk [vmem:[#allocation2 + $0xd0] sm:$0xff] %vm355, %v334
      %370 = vst.msk [vmem:[#allocation2 + $0xe0] sm:$0xff] %vm355, %v336
      %371 = vst.msk [vmem:[#allocation2 + $0xf0] sm:$0xff] %vm355, %v338
      %v372 = vld [vmem:[%s241 + $0x2] sm:$0xff]
      %v373 = vld [vmem:[%s241 + $0xa] sm:$0xff]
      %v374 = vld [vmem:[%s241 + $0x1a] sm:$0xff]
      %v375 = vld [vmem:[%s241 + $0x22] sm:$0xff]
      %v376 = vld [vmem:[%s241 + $0x32] sm:$0xff]
      %v377 = vld [vmem:[%s241 + $0x3a] sm:$0xff]
      %v378 = vld [vmem:[%s241 + $0x4a] sm:$0xff]
      %v379 = vld [vmem:[%s241 + $0x52] sm:$0xff]
      %v380 = vld [vmem:[%s241 + $0x62] sm:$0xff]
      %v381 = vld [vmem:[%s241 + $0x6a] sm:$0xff]
      %v382 = vld [vmem:[%s241 + $0x7a] sm:$0xff]
      %v383 = vld [vmem:[%s241 + $0x82] sm:$0xff]
      %v384 = vld [vmem:[%s241 + $0x92] sm:$0xff]
      %v385 = vld [vmem:[%s241 + $0x9a] sm:$0xff]
      %v386 = vld [vmem:[%s241 + $0xaa] sm:$0xff]
      %v387 = vld [vmem:[%s241 + $0xb2] sm:$0xff]
      %404 = vrot.lane.b32.xlu0 %v372, 8
      %v405 = vpop.permute.xlu0 %404
      %406 = vrot.lane.b32.xlu0 %v373, 8
      %v407 = vpop.permute.xlu0 %406
      %408 = vrot.lane.b32.xlu0 %v374, 8
      %v409 = vpop.permute.xlu0 %408
      %410 = vrot.lane.b32.xlu0 %v375, 8
      %v411 = vpop.permute.xlu0 %410
      %412 = vrot.lane.b32.xlu0 %v376, 8
      %v413 = vpop.permute.xlu0 %412
      %414 = vrot.lane.b32.xlu0 %v377, 8
      %v415 = vpop.permute.xlu0 %414
      %416 = vrot.lane.b32.xlu0 %v378, 8
      %v417 = vpop.permute.xlu0 %416
      %418 = vrot.lane.b32.xlu0 %v379, 8
      %v419 = vpop.permute.xlu0 %418
      %420 = vrot.lane.b32.xlu0 %v380, 8
      %v421 = vpop.permute.xlu0 %420
      %422 = vrot.lane.b32.xlu0 %v381, 8
      %v423 = vpop.permute.xlu0 %422
      %424 = vrot.lane.b32.xlu0 %v382, 8
      %v425 = vpop.permute.xlu0 %424
      %426 = vrot.lane.b32.xlu0 %v383, 8
      %v427 = vpop.permute.xlu0 %426
      %428 = vrot.lane.b32.xlu0 %v384, 8
      %v429 = vpop.permute.xlu0 %428
      %430 = vrot.lane.b32.xlu0 %v385, 8
      %v431 = vpop.permute.xlu0 %430
      %432 = vrot.lane.b32.xlu0 %v386, 8
      %v433 = vpop.permute.xlu0 %432
      %434 = vrot.lane.b32.xlu0 %v387, 8
      %v435 = vpop.permute.xlu0 %434
      %vm452 = vcmask 97344
      %453 = vst.msk [vmem:[#allocation2] sm:$0xff] %vm452, %v405
      %454 = vst.msk [vmem:[#allocation2 + $0x10] sm:$0xff] %vm452, %v407
      %455 = vst.msk [vmem:[#allocation2 + $0x20] sm:$0xff] %vm452, %v409
      %456 = vst.msk [vmem:[#allocation2 + $0x30] sm:$0xff] %vm452, %v411
      %457 = vst.msk [vmem:[#allocation2 + $0x40] sm:$0xff] %vm452, %v413
      %458 = vst.msk [vmem:[#allocation2 + $0x50] sm:$0xff] %vm452, %v415
      %459 = vst.msk [vmem:[#allocation2 + $0x60] sm:$0xff] %vm452, %v417
      %460 = vst.msk [vmem:[#allocation2 + $0x70] sm:$0xff] %vm452, %v419
      %461 = vst.msk [vmem:[#allocation2 + $0x80] sm:$0xff] %vm452, %v421
      %462 = vst.msk [vmem:[#allocation2 + $0x90] sm:$0xff] %vm452, %v423
      %463 = vst.msk [vmem:[#allocation2 + $0xa0] sm:$0xff] %vm452, %v425
      %464 = vst.msk [vmem:[#allocation2 + $0xb0] sm:$0xff] %vm452, %v427
      %465 = vst.msk [vmem:[#allocation2 + $0xc0] sm:$0xff] %vm452, %v429
      %466 = vst.msk [vmem:[#allocation2 + $0xd0] sm:$0xff] %vm452, %v431
      %467 = vst.msk [vmem:[#allocation2 + $0xe0] sm:$0xff] %vm452, %v433
      %468 = vst.msk [vmem:[#allocation2 + $0xf0] sm:$0xff] %vm452, %v435
      %v469 = vld [vmem:[%s241 + $0x3] sm:$0xff]
      %v470 = vld [vmem:[%s241 + $0xb] sm:$0xff]
      %v471 = vld [vmem:[%s241 + $0x1b] sm:$0xff]
      %v472 = vld [vmem:[%s241 + $0x23] sm:$0xff]
      %v473 = vld [vmem:[%s241 + $0x33] sm:$0xff]
      %v474 = vld [vmem:[%s241 + $0x3b] sm:$0xff]
      %v475 = vld [vmem:[%s241 + $0x4b] sm:$0xff]
      %v476 = vld [vmem:[%s241 + $0x53] sm:$0xff]
      %v477 = vld [vmem:[%s241 + $0x63] sm:$0xff]
      %v478 = vld [vmem:[%s241 + $0x6b] sm:$0xff]
      %v479 = vld [vmem:[%s241 + $0x7b] sm:$0xff]
      %v480 = vld [vmem:[%s241 + $0x83] sm:$0xff]
      %v481 = vld [vmem:[%s241 + $0x93] sm:$0xff]
      %v482 = vld [vmem:[%s241 + $0x9b] sm:$0xff]
      %v483 = vld [vmem:[%s241 + $0xab] sm:$0xff]
      %v484 = vld [vmem:[%s241 + $0xb3] sm:$0xff]
      %501 = vrot.lane.b32.xlu0 %v469, 12
      %v502 = vpop.permute.xlu0 %501
      %503 = vrot.lane.b32.xlu0 %v470, 12
      %v504 = vpop.permute.xlu0 %503
      %505 = vrot.lane.b32.xlu0 %v471, 12
      %v506 = vpop.permute.xlu0 %505
      %507 = vrot.lane.b32.xlu0 %v472, 12
      %v508 = vpop.permute.xlu0 %507
      %509 = vrot.lane.b32.xlu0 %v473, 12
      %v510 = vpop.permute.xlu0 %509
      %511 = vrot.lane.b32.xlu0 %v474, 12
      %v512 = vpop.permute.xlu0 %511
      %513 = vrot.lane.b32.xlu0 %v475, 12
      %v514 = vpop.permute.xlu0 %513
      %515 = vrot.lane.b32.xlu0 %v476, 12
      %v516 = vpop.permute.xlu0 %515
      %517 = vrot.lane.b32.xlu0 %v477, 12
      %v518 = vpop.permute.xlu0 %517
      %519 = vrot.lane.b32.xlu0 %v478, 12
      %v520 = vpop.permute.xlu0 %519
      %521 = vrot.lane.b32.xlu0 %v479, 12
      %v522 = vpop.permute.xlu0 %521
      %523 = vrot.lane.b32.xlu0 %v480, 12
      %v524 = vpop.permute.xlu0 %523
      %525 = vrot.lane.b32.xlu0 %v481, 12
      %v526 = vpop.permute.xlu0 %525
      %527 = vrot.lane.b32.xlu0 %v482, 12
      %v528 = vpop.permute.xlu0 %527
      %529 = vrot.lane.b32.xlu0 %v483, 12
      %v530 = vpop.permute.xlu0 %529
      %531 = vrot.lane.b32.xlu0 %v484, 12
      %v532 = vpop.permute.xlu0 %531
      %vm549 = vcmask 130144
      %550 = vst.msk [vmem:[#allocation2] sm:$0xff] %vm549, %v502
      %551 = vst.msk [vmem:[#allocation2 + $0x10] sm:$0xff] %vm549, %v504
      %552 = vst.msk [vmem:[#allocation2 + $0x20] sm:$0xff] %vm549, %v506
      %553 = vst.msk [vmem:[#allocation2 + $0x30] sm:$0xff] %vm549, %v508
      %554 = vst.msk [vmem:[#allocation2 + $0x40] sm:$0xff] %vm549, %v510
      %555 = vst.msk [vmem:[#allocation2 + $0x50] sm:$0xff] %vm549, %v512
      %556 = vst.msk [vmem:[#allocation2 + $0x60] sm:$0xff] %vm549, %v514
      %557 = vst.msk [vmem:[#allocation2 + $0x70] sm:$0xff] %vm549, %v516
      %558 = vst.msk [vmem:[#allocation2 + $0x80] sm:$0xff] %vm549, %v518
      %559 = vst.msk [vmem:[#allocation2 + $0x90] sm:$0xff] %vm549, %v520
      %560 = vst.msk [vmem:[#allocation2 + $0xa0] sm:$0xff] %vm549, %v522
      %561 = vst.msk [vmem:[#allocation2 + $0xb0] sm:$0xff] %vm549, %v524
      %562 = vst.msk [vmem:[#allocation2 + $0xc0] sm:$0xff] %vm549, %v526
      %563 = vst.msk [vmem:[#allocation2 + $0xd0] sm:$0xff] %vm549, %v528
      %564 = vst.msk [vmem:[#allocation2 + $0xe0] sm:$0xff] %vm549, %v530
      %565 = vst.msk [vmem:[#allocation2 + $0xf0] sm:$0xff] %vm549, %v532
      %v566 = vld [vmem:[%s241 + $0x4] sm:$0xff]
      %v567 = vld [vmem:[%s241 + $0xc] sm:$0xff]
      %v568 = vld [vmem:[%s241 + $0x1c] sm:$0xff]
      %v569 = vld [vmem:[%s241 + $0x24] sm:$0xff]
      %v570 = vld [vmem:[%s241 + $0x34] sm:$0xff]
      %v571 = vld [vmem:[%s241 + $0x3c] sm:$0xff]
      %v572 = vld [vmem:[%s241 + $0x4c] sm:$0xff]
      %v573 = vld [vmem:[%s241 + $0x54] sm:$0xff]
      %v574 = vld [vmem:[%s241 + $0x64] sm:$0xff]
      %v575 = vld [vmem:[%s241 + $0x6c] sm:$0xff]
      %v576 = vld [vmem:[%s241 + $0x7c] sm:$0xff]
      %v577 = vld [vmem:[%s241 + $0x84] sm:$0xff]
      %v578 = vld [vmem:[%s241 + $0x94] sm:$0xff]
      %v579 = vld [vmem:[%s241 + $0x9c] sm:$0xff]
      %v580 = vld [vmem:[%s241 + $0xac] sm:$0xff]
      %v581 = vld [vmem:[%s241 + $0xb4] sm:$0xff]
      %598 = vrot.lane.b32.xlu0 %v566, 16
      %v599 = vpop.permute.xlu0 %598
      %600 = vrot.lane.b32.xlu0 %v567, 16
      %v601 = vpop.permute.xlu0 %600
      %602 = vrot.lane.b32.xlu0 %v568, 16
      %v603 = vpop.permute.xlu0 %602
      %604 = vrot.lane.b32.xlu0 %v569, 16
      %v605 = vpop.permute.xlu0 %604
      %606 = vrot.lane.b32.xlu0 %v570, 16
      %v607 = vpop.permute.xlu0 %606
      %608 = vrot.lane.b32.xlu0 %v571, 16
      %v609 = vpop.permute.xlu0 %608
      %610 = vrot.lane.b32.xlu0 %v572, 16
      %v611 = vpop.permute.xlu0 %610
      %612 = vrot.lane.b32.xlu0 %v573, 16
      %v613 = vpop.permute.xlu0 %612
      %614 = vrot.lane.b32.xlu0 %v574, 16
      %v615 = vpop.permute.xlu0 %614
      %616 = vrot.lane.b32.xlu0 %v575, 16
      %v617 = vpop.permute.xlu0 %616
      %618 = vrot.lane.b32.xlu0 %v576, 16
      %v619 = vpop.permute.xlu0 %618
      %620 = vrot.lane.b32.xlu0 %v577, 16
      %v621 = vpop.permute.xlu0 %620
      %622 = vrot.lane.b32.xlu0 %v578, 16
      %v623 = vpop.permute.xlu0 %622
      %624 = vrot.lane.b32.xlu0 %v579, 16
      %v625 = vpop.permute.xlu0 %624
      %626 = vrot.lane.b32.xlu0 %v580, 16
      %v627 = vpop.permute.xlu0 %626
      %628 = vrot.lane.b32.xlu0 %v581, 16
      %v629 = vpop.permute.xlu0 %628
      %vm646 = vcmask 162944
      %647 = vst.msk [vmem:[#allocation2] sm:$0xff] %vm646, %v599
      %648 = vst.msk [vmem:[#allocation2 + $0x10] sm:$0xff] %vm646, %v601
      %649 = vst.msk [vmem:[#allocation2 + $0x20] sm:$0xff] %vm646, %v603
      %650 = vst.msk [vmem:[#allocation2 + $0x30] sm:$0xff] %vm646, %v605
      %651 = vst.msk [vmem:[#allocation2 + $0x40] sm:$0xff] %vm646, %v607
      %652 = vst.msk [vmem:[#allocation2 + $0x50] sm:$0xff] %vm646, %v609
      %653 = vst.msk [vmem:[#allocation2 + $0x60] sm:$0xff] %vm646, %v611
      %654 = vst.msk [vmem:[#allocation2 + $0x70] sm:$0xff] %vm646, %v613
      %655 = vst.msk [vmem:[#allocation2 + $0x80] sm:$0xff] %vm646, %v615
      %656 = vst.msk [vmem:[#allocation2 + $0x90] sm:$0xff] %vm646, %v617
      %657 = vst.msk [vmem:[#allocation2 + $0xa0] sm:$0xff] %vm646, %v619
      %658 = vst.msk [vmem:[#allocation2 + $0xb0] sm:$0xff] %vm646, %v621
      %659 = vst.msk [vmem:[#allocation2 + $0xc0] sm:$0xff] %vm646, %v623
      %660 = vst.msk [vmem:[#allocation2 + $0xd0] sm:$0xff] %vm646, %v625
      %661 = vst.msk [vmem:[#allocation2 + $0xe0] sm:$0xff] %vm646, %v627
      %662 = vst.msk [vmem:[#allocation2 + $0xf0] sm:$0xff] %vm646, %v629
      %v663 = vld [vmem:[%s241 + $0x5] sm:$0xff]
      %v664 = vld [vmem:[%s241 + $0xd] sm:$0xff]
      %v665 = vld [vmem:[%s241 + $0x1d] sm:$0xff]
      %v666 = vld [vmem:[%s241 + $0x25] sm:$0xff]
      %v667 = vld [vmem:[%s241 + $0x35] sm:$0xff]
      %v668 = vld [vmem:[%s241 + $0x3d] sm:$0xff]
      %v669 = vld [vmem:[%s241 + $0x4d] sm:$0xff]
      %v670 = vld [vmem:[%s241 + $0x55] sm:$0xff]
      %v671 = vld [vmem:[%s241 + $0x65] sm:$0xff]
      %v672 = vld [vmem:[%s241 + $0x6d] sm:$0xff]
      %v673 = vld [vmem:[%s241 + $0x7d] sm:$0xff]
      %v674 = vld [vmem:[%s241 + $0x85] sm:$0xff]
      %v675 = vld [vmem:[%s241 + $0x95] sm:$0xff]
      %v676 = vld [vmem:[%s241 + $0x9d] sm:$0xff]
      %v677 = vld [vmem:[%s241 + $0xad] sm:$0xff]
      %v678 = vld [vmem:[%s241 + $0xb5] sm:$0xff]
      %695 = vrot.lane.b32.xlu0 %v663, 20
      %v696 = vpop.permute.xlu0 %695
      %697 = vrot.lane.b32.xlu0 %v664, 20
      %v698 = vpop.permute.xlu0 %697
      %699 = vrot.lane.b32.xlu0 %v665, 20
      %v700 = vpop.permute.xlu0 %699
      %701 = vrot.lane.b32.xlu0 %v666, 20
      %v702 = vpop.permute.xlu0 %701
      %703 = vrot.lane.b32.xlu0 %v667, 20
      %v704 = vpop.permute.xlu0 %703
      %705 = vrot.lane.b32.xlu0 %v668, 20
      %v706 = vpop.permute.xlu0 %705
      %707 = vrot.lane.b32.xlu0 %v669, 20
      %v708 = vpop.permute.xlu0 %707
      %709 = vrot.lane.b32.xlu0 %v670, 20
      %v710 = vpop.permute.xlu0 %709
      %711 = vrot.lane.b32.xlu0 %v671, 20
      %v712 = vpop.permute.xlu0 %711
      %713 = vrot.lane.b32.xlu0 %v672, 20
      %v714 = vpop.permute.xlu0 %713
      %715 = vrot.lane.b32.xlu0 %v673, 20
      %v716 = vpop.permute.xlu0 %715
      %717 = vrot.lane.b32.xlu0 %v674, 20
      %v718 = vpop.permute.xlu0 %717
      %719 = vrot.lane.b32.xlu0 %v675, 20
      %v720 = vpop.permute.xlu0 %719
      %721 = vrot.lane.b32.xlu0 %v676, 20
      %v722 = vpop.permute.xlu0 %721
      %723 = vrot.lane.b32.xlu0 %v677, 20
      %v724 = vpop.permute.xlu0 %723
      %725 = vrot.lane.b32.xlu0 %v678, 20
      %v726 = vpop.permute.xlu0 %725
      %vm743 = vcmask 195744
      %744 = vst.msk [vmem:[#allocation2] sm:$0xff] %vm743, %v696
      %745 = vst.msk [vmem:[#allocation2 + $0x10] sm:$0xff] %vm743, %v698
      %746 = vst.msk [vmem:[#allocation2 + $0x20] sm:$0xff] %vm743, %v700
      %747 = vst.msk [vmem:[#allocation2 + $0x30] sm:$0xff] %vm743, %v702
      %748 = vst.msk [vmem:[#allocation2 + $0x40] sm:$0xff] %vm743, %v704
      %749 = vst.msk [vmem:[#allocation2 + $0x50] sm:$0xff] %vm743, %v706
      %750 = vst.msk [vmem:[#allocation2 + $0x60] sm:$0xff] %vm743, %v708
      %751 = vst.msk [vmem:[#allocation2 + $0x70] sm:$0xff] %vm743, %v710
      %752 = vst.msk [vmem:[#allocation2 + $0x80] sm:$0xff] %vm743, %v712
      %753 = vst.msk [vmem:[#allocation2 + $0x90] sm:$0xff] %vm743, %v714
      %754 = vst.msk [vmem:[#allocation2 + $0xa0] sm:$0xff] %vm743, %v716
      %755 = vst.msk [vmem:[#allocation2 + $0xb0] sm:$0xff] %vm743, %v718
      %756 = vst.msk [vmem:[#allocation2 + $0xc0] sm:$0xff] %vm743, %v720
      %757 = vst.msk [vmem:[#allocation2 + $0xd0] sm:$0xff] %vm743, %v722
      %758 = vst.msk [vmem:[#allocation2 + $0xe0] sm:$0xff] %vm743, %v724
      %759 = vst.msk [vmem:[#allocation2 + $0xf0] sm:$0xff] %vm743, %v726
      %v760 = vld [vmem:[%s241 + $0x6] sm:$0xff]
      %v761 = vld [vmem:[%s241 + $0xe] sm:$0xff]
      %v762 = vld [vmem:[%s241 + $0x1e] sm:$0xff]
      %v763 = vld [vmem:[%s241 + $0x26] sm:$0xff]
      %v764 = vld [vmem:[%s241 + $0x36] sm:$0xff]
      %v765 = vld [vmem:[%s241 + $0x3e] sm:$0xff]
      %v766 = vld [vmem:[%s241 + $0x4e] sm:$0xff]
      %v767 = vld [vmem:[%s241 + $0x56] sm:$0xff]
      %v768 = vld [vmem:[%s241 + $0x66] sm:$0xff]
      %v769 = vld [vmem:[%s241 + $0x6e] sm:$0xff]
      %v770 = vld [vmem:[%s241 + $0x7e] sm:$0xff]
      %v771 = vld [vmem:[%s241 + $0x86] sm:$0xff]
      %v772 = vld [vmem:[%s241 + $0x96] sm:$0xff]
      %v773 = vld [vmem:[%s241 + $0x9e] sm:$0xff]
      %v774 = vld [vmem:[%s241 + $0xae] sm:$0xff]
      %v775 = vld [vmem:[%s241 + $0xb6] sm:$0xff]
      %792 = vrot.lane.b32.xlu0 %v760, 24
      %v793 = vpop.permute.xlu0 %792
      %794 = vrot.lane.b32.xlu0 %v761, 24
      %v795 = vpop.permute.xlu0 %794
      %796 = vrot.lane.b32.xlu0 %v762, 24
      %v797 = vpop.permute.xlu0 %796
      %798 = vrot.lane.b32.xlu0 %v763, 24
      %v799 = vpop.permute.xlu0 %798
      %800 = vrot.lane.b32.xlu0 %v764, 24
      %v801 = vpop.permute.xlu0 %800
      %802 = vrot.lane.b32.xlu0 %v765, 24
      %v803 = vpop.permute.xlu0 %802
      %804 = vrot.lane.b32.xlu0 %v766, 24
      %v805 = vpop.permute.xlu0 %804
      %806 = vrot.lane.b32.xlu0 %v767, 24
      %v807 = vpop.permute.xlu0 %806
      %808 = vrot.lane.b32.xlu0 %v768, 24
      %v809 = vpop.permute.xlu0 %808
      %810 = vrot.lane.b32.xlu0 %v769, 24
      %v811 = vpop.permute.xlu0 %810
      %812 = vrot.lane.b32.xlu0 %v770, 24
      %v813 = vpop.permute.xlu0 %812
      %814 = vrot.lane.b32.xlu0 %v771, 24
      %v815 = vpop.permute.xlu0 %814
      %816 = vrot.lane.b32.xlu0 %v772, 24
      %v817 = vpop.permute.xlu0 %816
      %818 = vrot.lane.b32.xlu0 %v773, 24
      %v819 = vpop.permute.xlu0 %818
      %820 = vrot.lane.b32.xlu0 %v774, 24
      %v821 = vpop.permute.xlu0 %820
      %822 = vrot.lane.b32.xlu0 %v775, 24
      %v823 = vpop.permute.xlu0 %822
      %vm840 = vcmask 228544
      %841 = vst.msk [vmem:[#allocation2] sm:$0xff] %vm840, %v793
      %842 = vst.msk [vmem:[#allocation2 + $0x10] sm:$0xff] %vm840, %v795
      %843 = vst.msk [vmem:[#allocation2 + $0x20] sm:$0xff] %vm840, %v797
      %844 = vst.msk [vmem:[#allocation2 + $0x30] sm:$0xff] %vm840, %v799
      %845 = vst.msk [vmem:[#allocation2 + $0x40] sm:$0xff] %vm840, %v801
      %846 = vst.msk [vmem:[#allocation2 + $0x50] sm:$0xff] %vm840, %v803
      %847 = vst.msk [vmem:[#allocation2 + $0x60] sm:$0xff] %vm840, %v805
      %848 = vst.msk [vmem:[#allocation2 + $0x70] sm:$0xff] %vm840, %v807
      %849 = vst.msk [vmem:[#allocation2 + $0x80] sm:$0xff] %vm840, %v809
      %850 = vst.msk [vmem:[#allocation2 + $0x90] sm:$0xff] %vm840, %v811
      %851 = vst.msk [vmem:[#allocation2 + $0xa0] sm:$0xff] %vm840, %v813
      %852 = vst.msk [vmem:[#allocation2 + $0xb0] sm:$0xff] %vm840, %v815
      %853 = vst.msk [vmem:[#allocation2 + $0xc0] sm:$0xff] %vm840, %v817
      %854 = vst.msk [vmem:[#allocation2 + $0xd0] sm:$0xff] %vm840, %v819
      %855 = vst.msk [vmem:[#allocation2 + $0xe0] sm:$0xff] %vm840, %v821
      %856 = vst.msk [vmem:[#allocation2 + $0xf0] sm:$0xff] %vm840, %v823
      %s857 = sadd.s32 %s222, 1
      %s858 = smul.u32 %s857, 24
      %s859 = scalar_lea.vmem %s221, %s858
      %v860 = vld [vmem:[%s859] sm:$0xff]
      %v861 = vld [vmem:[%s859 + $0x8] sm:$0xff]
      %v862 = vld [vmem:[%s859 + $0x18] sm:$0xff]
      %v863 = vld [vmem:[%s859 + $0x20] sm:$0xff]
      %v864 = vld [vmem:[%s859 + $0x30] sm:$0xff]
      %v865 = vld [vmem:[%s859 + $0x38] sm:$0xff]
      %v866 = vld [vmem:[%s859 + $0x48] sm:$0xff]
      %v867 = vld [vmem:[%s859 + $0x50] sm:$0xff]
      %v868 = vld [vmem:[%s859 + $0x60] sm:$0xff]
      %v869 = vld [vmem:[%s859 + $0x68] sm:$0xff]
      %v870 = vld [vmem:[%s859 + $0x78] sm:$0xff]
      %v871 = vld [vmem:[%s859 + $0x80] sm:$0xff]
      %v872 = vld [vmem:[%s859 + $0x90] sm:$0xff]
      %v873 = vld [vmem:[%s859 + $0x98] sm:$0xff]
      %v874 = vld [vmem:[%s859 + $0xa8] sm:$0xff]
      %v875 = vld [vmem:[%s859 + $0xb0] sm:$0xff]
      %892 = vrot.lane.b32.xlu0 %v860, 28
      %v893 = vpop.permute.xlu0 %892
      %894 = vrot.lane.b32.xlu0 %v861, 28
      %v895 = vpop.permute.xlu0 %894
      %896 = vrot.lane.b32.xlu0 %v862, 28
      %v897 = vpop.permute.xlu0 %896
      %898 = vrot.lane.b32.xlu0 %v863, 28
      %v899 = vpop.permute.xlu0 %898
      %900 = vrot.lane.b32.xlu0 %v864, 28
      %v901 = vpop.permute.xlu0 %900
      %902 = vrot.lane.b32.xlu0 %v865, 28
      %v903 = vpop.permute.xlu0 %902
      %904 = vrot.lane.b32.xlu0 %v866, 28
      %v905 = vpop.permute.xlu0 %904
      %906 = vrot.lane.b32.xlu0 %v867, 28
      %v907 = vpop.permute.xlu0 %906
      %908 = vrot.lane.b32.xlu0 %v868, 28
      %v909 = vpop.permute.xlu0 %908
      %910 = vrot.lane.b32.xlu0 %v869, 28
      %v911 = vpop.permute.xlu0 %910
      %912 = vrot.lane.b32.xlu0 %v870, 28
      %v913 = vpop.permute.xlu0 %912
      %914 = vrot.lane.b32.xlu0 %v871, 28
      %v915 = vpop.permute.xlu0 %914
      %916 = vrot.lane.b32.xlu0 %v872, 28
      %v917 = vpop.permute.xlu0 %916
      %918 = vrot.lane.b32.xlu0 %v873, 28
      %v919 = vpop.permute.xlu0 %918
      %920 = vrot.lane.b32.xlu0 %v874, 28
      %v921 = vpop.permute.xlu0 %920
      %922 = vrot.lane.b32.xlu0 %v875, 28
      %v923 = vpop.permute.xlu0 %922
      %vm940 = vcmask 261344
      %941 = vst.msk [vmem:[#allocation2] sm:$0xff] %vm940, %v893
      %942 = vst.msk [vmem:[#allocation2 + $0x10] sm:$0xff] %vm940, %v895
      %943 = vst.msk [vmem:[#allocation2 + $0x20] sm:$0xff] %vm940, %v897
      %944 = vst.msk [vmem:[#allocation2 + $0x30] sm:$0xff] %vm940, %v899
      %945 = vst.msk [vmem:[#allocation2 + $0x40] sm:$0xff] %vm940, %v901
      %946 = vst.msk [vmem:[#allocation2 + $0x50] sm:$0xff] %vm940, %v903
      %947 = vst.msk [vmem:[#allocation2 + $0x60] sm:$0xff] %vm940, %v905
      %948 = vst.msk [vmem:[#allocation2 + $0x70] sm:$0xff] %vm940, %v907
      %949 = vst.msk [vmem:[#allocation2 + $0x80] sm:$0xff] %vm940, %v909
      %950 = vst.msk [vmem:[#allocation2 + $0x90] sm:$0xff] %vm940, %v911
      %951 = vst.msk [vmem:[#allocation2 + $0xa0] sm:$0xff] %vm940, %v913
      %952 = vst.msk [vmem:[#allocation2 + $0xb0] sm:$0xff] %vm940, %v915
      %953 = vst.msk [vmem:[#allocation2 + $0xc0] sm:$0xff] %vm940, %v917
      %954 = vst.msk [vmem:[#allocation2 + $0xd0] sm:$0xff] %vm940, %v919
      %955 = vst.msk [vmem:[#allocation2 + $0xe0] sm:$0xff] %vm940, %v921
      %956 = vst.msk [vmem:[#allocation2 + $0xf0] sm:$0xff] %vm940, %v923
      %v957 = vld [vmem:[%s859 + $0x1] sm:$0xff]
      %v958 = vld [vmem:[%s859 + $0x9] sm:$0xff]
      %v959 = vld [vmem:[%s859 + $0x19] sm:$0xff]
      %v960 = vld [vmem:[%s859 + $0x21] sm:$0xff]
      %v961 = vld [vmem:[%s859 + $0x31] sm:$0xff]
      %v962 = vld [vmem:[%s859 + $0x39] sm:$0xff]
      %v963 = vld [vmem:[%s859 + $0x49] sm:$0xff]
      %v964 = vld [vmem:[%s859 + $0x51] sm:$0xff]
      %v965 = vld [vmem:[%s859 + $0x61] sm:$0xff]
      %v966 = vld [vmem:[%s859 + $0x69] sm:$0xff]
      %v967 = vld [vmem:[%s859 + $0x79] sm:$0xff]
      %v968 = vld [vmem:[%s859 + $0x81] sm:$0xff]
      %v969 = vld [vmem:[%s859 + $0x91] sm:$0xff]
      %v970 = vld [vmem:[%s859 + $0x99] sm:$0xff]
      %v971 = vld [vmem:[%s859 + $0xa9] sm:$0xff]
      %v972 = vld [vmem:[%s859 + $0xb1] sm:$0xff]
      %989 = vrot.lane.b32.xlu0 %v957, 32
      %v990 = vpop.permute.xlu0 %989
      %991 = vrot.lane.b32.xlu0 %v958, 32
      %v992 = vpop.permute.xlu0 %991
      %993 = vrot.lane.b32.xlu0 %v959, 32
      %v994 = vpop.permute.xlu0 %993
      %995 = vrot.lane.b32.xlu0 %v960, 32
      %v996 = vpop.permute.xlu0 %995
      %997 = vrot.lane.b32.xlu0 %v961, 32
      %v998 = vpop.permute.xlu0 %997
      %999 = vrot.lane.b32.xlu0 %v962, 32
      %v1000 = vpop.permute.xlu0 %999
      %1001 = vrot.lane.b32.xlu0 %v963, 32
      %v1002 = vpop.permute.xlu0 %1001
      %1003 = vrot.lane.b32.xlu0 %v964, 32
      %v1004 = vpop.permute.xlu0 %1003
      %1005 = vrot.lane.b32.xlu0 %v965, 32
      %v1006 = vpop.permute.xlu0 %1005
      %1007 = vrot.lane.b32.xlu0 %v966, 32
      %v1008 = vpop.permute.xlu0 %1007
      %1009 = vrot.lane.b32.xlu0 %v967, 32
      %v1010 = vpop.permute.xlu0 %1009
      %1011 = vrot.lane.b32.xlu0 %v968, 32
      %v1012 = vpop.permute.xlu0 %1011
      %1013 = vrot.lane.b32.xlu0 %v969, 32
      %v1014 = vpop.permute.xlu0 %1013
      %1015 = vrot.lane.b32.xlu0 %v970, 32
      %v1016 = vpop.permute.xlu0 %1015
      %1017 = vrot.lane.b32.xlu0 %v971, 32
      %v1018 = vpop.permute.xlu0 %1017
      %1019 = vrot.lane.b32.xlu0 %v972, 32
      %v1020 = vpop.permute.xlu0 %1019
      %vm1037 = vcmask 294144
      %1038 = vst.msk [vmem:[#allocation2] sm:$0xff] %vm1037, %v990
      %1039 = vst.msk [vmem:[#allocation2 + $0x10] sm:$0xff] %vm1037, %v992
      %1040 = vst.msk [vmem:[#allocation2 + $0x20] sm:$0xff] %vm1037, %v994
      %1041 = vst.msk [vmem:[#allocation2 + $0x30] sm:$0xff] %vm1037, %v996
      %1042 = vst.msk [vmem:[#allocation2 + $0x40] sm:$0xff] %vm1037, %v998
      %1043 = vst.msk [vmem:[#allocation2 + $0x50] sm:$0xff] %vm1037, %v1000
      %1044 = vst.msk [vmem:[#allocation2 + $0x60] sm:$0xff] %vm1037, %v1002
      %1045 = vst.msk [vmem:[#allocation2 + $0x70] sm:$0xff] %vm1037, %v1004
      %1046 = vst.msk [vmem:[#allocation2 + $0x80] sm:$0xff] %vm1037, %v1006
      %1047 = vst.msk [vmem:[#allocation2 + $0x90] sm:$0xff] %vm1037, %v1008
      %1048 = vst.msk [vmem:[#allocation2 + $0xa0] sm:$0xff] %vm1037, %v1010
      %1049 = vst.msk [vmem:[#allocation2 + $0xb0] sm:$0xff] %vm1037, %v1012
      %1050 = vst.msk [vmem:[#allocation2 + $0xc0] sm:$0xff] %vm1037, %v1014
      %1051 = vst.msk [vmem:[#allocation2 + $0xd0] sm:$0xff] %vm1037, %v1016
      %1052 = vst.msk [vmem:[#allocation2 + $0xe0] sm:$0xff] %vm1037, %v1018
      %1053 = vst.msk [vmem:[#allocation2 + $0xf0] sm:$0xff] %vm1037, %v1020
      %v1054 = vld [vmem:[%s859 + $0x2] sm:$0xff]
      %v1055 = vld [vmem:[%s859 + $0xa] sm:$0xff]
      %v1056 = vld [vmem:[%s859 + $0x1a] sm:$0xff]
      %v1057 = vld [vmem:[%s859 + $0x22] sm:$0xff]
      %v1058 = vld [vmem:[%s859 + $0x32] sm:$0xff]
      %v1059 = vld [vmem:[%s859 + $0x3a] sm:$0xff]
      %v1060 = vld [vmem:[%s859 + $0x4a] sm:$0xff]
      %v1061 = vld [vmem:[%s859 + $0x52] sm:$0xff]
      %v1062 = vld [vmem:[%s859 + $0x62] sm:$0xff]
      %v1063 = vld [vmem:[%s859 + $0x6a] sm:$0xff]
      %v1064 = vld [vmem:[%s859 + $0x7a] sm:$0xff]
      %v1065 = vld [vmem:[%s859 + $0x82] sm:$0xff]
      %v1066 = vld [vmem:[%s859 + $0x92] sm:$0xff]
      %v1067 = vld [vmem:[%s859 + $0x9a] sm:$0xff]
      %v1068 = vld [vmem:[%s859 + $0xaa] sm:$0xff]
      %v1069 = vld [vmem:[%s859 + $0xb2] sm:$0xff]
      %1086 = vrot.lane.b32.xlu0 %v1054, 36
      %v1087 = vpop.permute.xlu0 %1086
      %1088 = vrot.lane.b32.xlu0 %v1055, 36
      %v1089 = vpop.permute.xlu0 %1088
      %1090 = vrot.lane.b32.xlu0 %v1056, 36
      %v1091 = vpop.permute.xlu0 %1090
      %1092 = vrot.lane.b32.xlu0 %v1057, 36
      %v1093 = vpop.permute.xlu0 %1092
      %1094 = vrot.lane.b32.xlu0 %v1058, 36
      %v1095 = vpop.permute.xlu0 %1094
      %1096 = vrot.lane.b32.xlu0 %v1059, 36
      %v1097 = vpop.permute.xlu0 %1096
      %1098 = vrot.lane.b32.xlu0 %v1060, 36
      %v1099 = vpop.permute.xlu0 %1098
      %1100 = vrot.lane.b32.xlu0 %v1061, 36
      %v1101 = vpop.permute.xlu0 %1100
      %1102 = vrot.lane.b32.xlu0 %v1062, 36
      %v1103 = vpop.permute.xlu0 %1102
      %1104 = vrot.lane.b32.xlu0 %v1063, 36
      %v1105 = vpop.permute.xlu0 %1104
      %1106 = vrot.lane.b32.xlu0 %v1064, 36
      %v1107 = vpop.permute.xlu0 %1106
      %1108 = vrot.lane.b32.xlu0 %v1065, 36
      %v1109 = vpop.permute.xlu0 %1108
      %1110 = vrot.lane.b32.xlu0 %v1066, 36
      %v1111 = vpop.permute.xlu0 %1110
      %1112 = vrot.lane.b32.xlu0 %v1067, 36
      %v1113 = vpop.permute.xlu0 %1112
      %1114 = vrot.lane.b32.xlu0 %v1068, 36
      %v1115 = vpop.permute.xlu0 %1114
      %1116 = vrot.lane.b32.xlu0 %v1069, 36
      %v1117 = vpop.permute.xlu0 %1116
      %vm1134 = vcmask 326944
      %1135 = vst.msk [vmem:[#allocation2] sm:$0xff] %vm1134, %v1087
      %1136 = vst.msk [vmem:[#allocation2 + $0x10] sm:$0xff] %vm1134, %v1089
      %1137 = vst.msk [vmem:[#allocation2 + $0x20] sm:$0xff] %vm1134, %v1091
      %1138 = vst.msk [vmem:[#allocation2 + $0x30] sm:$0xff] %vm1134, %v1093
      %1139 = vst.msk [vmem:[#allocation2 + $0x40] sm:$0xff] %vm1134, %v1095
      %1140 = vst.msk [vmem:[#allocation2 + $0x50] sm:$0xff] %vm1134, %v1097
      %1141 = vst.msk [vmem:[#allocation2 + $0x60] sm:$0xff] %vm1134, %v1099
      %1142 = vst.msk [vmem:[#allocation2 + $0x70] sm:$0xff] %vm1134, %v1101
      %1143 = vst.msk [vmem:[#allocation2 + $0x80] sm:$0xff] %vm1134, %v1103
      %1144 = vst.msk [vmem:[#allocation2 + $0x90] sm:$0xff] %vm1134, %v1105
      %1145 = vst.msk [vmem:[#allocation2 + $0xa0] sm:$0xff] %vm1134, %v1107
      %1146 = vst.msk [vmem:[#allocation2 + $0xb0] sm:$0xff] %vm1134, %v1109
      %1147 = vst.msk [vmem:[#allocation2 + $0xc0] sm:$0xff] %vm1134, %v1111
      %1148 = vst.msk [vmem:[#allocation2 + $0xd0] sm:$0xff] %vm1134, %v1113
      %1149 = vst.msk [vmem:[#allocation2 + $0xe0] sm:$0xff] %vm1134, %v1115
      %1150 = vst.msk [vmem:[#allocation2 + $0xf0] sm:$0xff] %vm1134, %v1117
      %v1151 = vld [vmem:[%s859 + $0x3] sm:$0xff]
      %v1152 = vld [vmem:[%s859 + $0xb] sm:$0xff]
      %v1153 = vld [vmem:[%s859 + $0x1b] sm:$0xff]
      %v1154 = vld [vmem:[%s859 + $0x23] sm:$0xff]
      %v1155 = vld [vmem:[%s859 + $0x33] sm:$0xff]
      %v1156 = vld [vmem:[%s859 + $0x3b] sm:$0xff]
      %v1157 = vld [vmem:[%s859 + $0x4b] sm:$0xff]
      %v1158 = vld [vmem:[%s859 + $0x53] sm:$0xff]
      %v1159 = vld [vmem:[%s859 + $0x63] sm:$0xff]
      %v1160 = vld [vmem:[%s859 + $0x6b] sm:$0xff]
      %v1161 = vld [vmem:[%s859 + $0x7b] sm:$0xff]
      %v1162 = vld [vmem:[%s859 + $0x83] sm:$0xff]
      %v1163 = vld [vmem:[%s859 + $0x93] sm:$0xff]
      %v1164 = vld [vmem:[%s859 + $0x9b] sm:$0xff]
      %v1165 = vld [vmem:[%s859 + $0xab] sm:$0xff]
      %v1166 = vld [vmem:[%s859 + $0xb3] sm:$0xff]
      %1183 = vrot.lane.b32.xlu0 %v1151, 40
      %v1184 = vpop.permute.xlu0 %1183
      %1185 = vrot.lane.b32.xlu0 %v1152, 40
      %v1186 = vpop.permute.xlu0 %1185
      %1187 = vrot.lane.b32.xlu0 %v1153, 40
      %v1188 = vpop.permute.xlu0 %1187
      %1189 = vrot.lane.b32.xlu0 %v1154, 40
      %v1190 = vpop.permute.xlu0 %1189
      %1191 = vrot.lane.b32.xlu0 %v1155, 40
      %v1192 = vpop.permute.xlu0 %1191
      %1193 = vrot.lane.b32.xlu0 %v1156, 40
      %v1194 = vpop.permute.xlu0 %1193
      %1195 = vrot.lane.b32.xlu0 %v1157, 40
      %v1196 = vpop.permute.xlu0 %1195
      %1197 = vrot.lane.b32.xlu0 %v1158, 40
      %v1198 = vpop.permute.xlu0 %1197
      %1199 = vrot.lane.b32.xlu0 %v1159, 40
      %v1200 = vpop.permute.xlu0 %1199
      %1201 = vrot.lane.b32.xlu0 %v1160, 40
      %v1202 = vpop.permute.xlu0 %1201
      %1203 = vrot.lane.b32.xlu0 %v1161, 40
      %v1204 = vpop.permute.xlu0 %1203
      %1205 = vrot.lane.b32.xlu0 %v1162, 40
      %v1206 = vpop.permute.xlu0 %1205
      %1207 = vrot.lane.b32.xlu0 %v1163, 40
      %v1208 = vpop.permute.xlu0 %1207
      %1209 = vrot.lane.b32.xlu0 %v1164, 40
      %v1210 = vpop.permute.xlu0 %1209
      %1211 = vrot.lane.b32.xlu0 %v1165, 40
      %v1212 = vpop.permute.xlu0 %1211
      %1213 = vrot.lane.b32.xlu0 %v1166, 40
      %v1214 = vpop.permute.xlu0 %1213
      %vm1231 = vcmask 359744
      %1232 = vst.msk [vmem:[#allocation2] sm:$0xff] %vm1231, %v1184
      %1233 = vst.msk [vmem:[#allocation2 + $0x10] sm:$0xff] %vm1231, %v1186
      %1234 = vst.msk [vmem:[#allocation2 + $0x20] sm:$0xff] %vm1231, %v1188
      %1235 = vst.msk [vmem:[#allocation2 + $0x30] sm:$0xff] %vm1231, %v1190
      %1236 = vst.msk [vmem:[#allocation2 + $0x40] sm:$0xff] %vm1231, %v1192
      %1237 = vst.msk [vmem:[#allocation2 + $0x50] sm:$0xff] %vm1231, %v1194
      %1238 = vst.msk [vmem:[#allocation2 + $0x60] sm:$0xff] %vm1231, %v1196
      %1239 = vst.msk [vmem:[#allocation2 + $0x70] sm:$0xff] %vm1231, %v1198
      %1240 = vst.msk [vmem:[#allocation2 + $0x80] sm:$0xff] %vm1231, %v1200
      %1241 = vst.msk [vmem:[#allocation2 + $0x90] sm:$0xff] %vm1231, %v1202
      %1242 = vst.msk [vmem:[#allocation2 + $0xa0] sm:$0xff] %vm1231, %v1204
      %1243 = vst.msk [vmem:[#allocation2 + $0xb0] sm:$0xff] %vm1231, %v1206
      %1244 = vst.msk [vmem:[#allocation2 + $0xc0] sm:$0xff] %vm1231, %v1208
      %1245 = vst.msk [vmem:[#allocation2 + $0xd0] sm:$0xff] %vm1231, %v1210
      %1246 = vst.msk [vmem:[#allocation2 + $0xe0] sm:$0xff] %vm1231, %v1212
      %1247 = vst.msk [vmem:[#allocation2 + $0xf0] sm:$0xff] %vm1231, %v1214
      %v1248 = vld [vmem:[%s859 + $0x4] sm:$0xff]
      %v1249 = vld [vmem:[%s859 + $0xc] sm:$0xff]
      %v1250 = vld [vmem:[%s859 + $0x1c] sm:$0xff]
      %v1251 = vld [vmem:[%s859 + $0x24] sm:$0xff]
      %v1252 = vld [vmem:[%s859 + $0x34] sm:$0xff]
      %v1253 = vld [vmem:[%s859 + $0x3c] sm:$0xff]
      %v1254 = vld [vmem:[%s859 + $0x4c] sm:$0xff]
      %v1255 = vld [vmem:[%s859 + $0x54] sm:$0xff]
      %v1256 = vld [vmem:[%s859 + $0x64] sm:$0xff]
      %v1257 = vld [vmem:[%s859 + $0x6c] sm:$0xff]
      %v1258 = vld [vmem:[%s859 + $0x7c] sm:$0xff]
      %v1259 = vld [vmem:[%s859 + $0x84] sm:$0xff]
      %v1260 = vld [vmem:[%s859 + $0x94] sm:$0xff]
      %v1261 = vld [vmem:[%s859 + $0x9c] sm:$0xff]
      %v1262 = vld [vmem:[%s859 + $0xac] sm:$0xff]
      %v1263 = vld [vmem:[%s859 + $0xb4] sm:$0xff]
      %1280 = vrot.lane.b32.xlu0 %v1248, 44
      %v1281 = vpop.permute.xlu0 %1280
      %1282 = vrot.lane.b32.xlu0 %v1249, 44
      %v1283 = vpop.permute.xlu0 %1282
      %1284 = vrot.lane.b32.xlu0 %v1250, 44
      %v1285 = vpop.permute.xlu0 %1284
      %1286 = vrot.lane.b32.xlu0 %v1251, 44
      %v1287 = vpop.permute.xlu0 %1286
      %1288 = vrot.lane.b32.xlu0 %v1252, 44
      %v1289 = vpop.permute.xlu0 %1288
      %1290 = vrot.lane.b32.xlu0 %v1253, 44
      %v1291 = vpop.permute.xlu0 %1290
      %1292 = vrot.lane.b32.xlu0 %v1254, 44
      %v1293 = vpop.permute.xlu0 %1292
      %1294 = vrot.lane.b32.xlu0 %v1255, 44
      %v1295 = vpop.permute.xlu0 %1294
      %1296 = vrot.lane.b32.xlu0 %v1256, 44
      %v1297 = vpop.permute.xlu0 %1296
      %1298 = vrot.lane.b32.xlu0 %v1257, 44
      %v1299 = vpop.permute.xlu0 %1298
      %1300 = vrot.lane.b32.xlu0 %v1258, 44
      %v1301 = vpop.permute.xlu0 %1300
      %1302 = vrot.lane.b32.xlu0 %v1259, 44
      %v1303 = vpop.permute.xlu0 %1302
      %1304 = vrot.lane.b32.xlu0 %v1260, 44
      %v1305 = vpop.permute.xlu0 %1304
      %1306 = vrot.lane.b32.xlu0 %v1261, 44
      %v1307 = vpop.permute.xlu0 %1306
      %1308 = vrot.lane.b32.xlu0 %v1262, 44
      %v1309 = vpop.permute.xlu0 %1308
      %1310 = vrot.lane.b32.xlu0 %v1263, 44
      %v1311 = vpop.permute.xlu0 %1310
      %vm1328 = vcmask 392544
      %1329 = vst.msk [vmem:[#allocation2] sm:$0xff] %vm1328, %v1281
      %1330 = vst.msk [vmem:[#allocation2 + $0x10] sm:$0xff] %vm1328, %v1283
      %1331 = vst.msk [vmem:[#allocation2 + $0x20] sm:$0xff] %vm1328, %v1285
      %1332 = vst.msk [vmem:[#allocation2 + $0x30] sm:$0xff] %vm1328, %v1287
      %1333 = vst.msk [vmem:[#allocation2 + $0x40] sm:$0xff] %vm1328, %v1289
      %1334 = vst.msk [vmem:[#allocation2 + $0x50] sm:$0xff] %vm1328, %v1291
      %1335 = vst.msk [vmem:[#allocation2 + $0x60] sm:$0xff] %vm1328, %v1293
      %1336 = vst.msk [vmem:[#allocation2 + $0x70] sm:$0xff] %vm1328, %v1295
      %1337 = vst.msk [vmem:[#allocation2 + $0x80] sm:$0xff] %vm1328, %v1297
      %1338 = vst.msk [vmem:[#allocation2 + $0x90] sm:$0xff] %vm1328, %v1299
      %1339 = vst.msk [vmem:[#allocation2 + $0xa0] sm:$0xff] %vm1328, %v1301
      %1340 = vst.msk [vmem:[#allocation2 + $0xb0] sm:$0xff] %vm1328, %v1303
      %1341 = vst.msk [vmem:[#allocation2 + $0xc0] sm:$0xff] %vm1328, %v1305
      %1342 = vst.msk [vmem:[#allocation2 + $0xd0] sm:$0xff] %vm1328, %v1307
      %1343 = vst.msk [vmem:[#allocation2 + $0xe0] sm:$0xff] %vm1328, %v1309
      %1344 = vst.msk [vmem:[#allocation2 + $0xf0] sm:$0xff] %vm1328, %v1311
      %v1345 = vld [vmem:[%s859 + $0x5] sm:$0xff]
      %v1346 = vld [vmem:[%s859 + $0xd] sm:$0xff]
      %v1347 = vld [vmem:[%s859 + $0x1d] sm:$0xff]
      %v1348 = vld [vmem:[%s859 + $0x25] sm:$0xff]
      %v1349 = vld [vmem:[%s859 + $0x35] sm:$0xff]
      %v1350 = vld [vmem:[%s859 + $0x3d] sm:$0xff]
      %v1351 = vld [vmem:[%s859 + $0x4d] sm:$0xff]
      %v1352 = vld [vmem:[%s859 + $0x55] sm:$0xff]
      %v1353 = vld [vmem:[%s859 + $0x65] sm:$0xff]
      %v1354 = vld [vmem:[%s859 + $0x6d] sm:$0xff]
      %v1355 = vld [vmem:[%s859 + $0x7d] sm:$0xff]
      %v1356 = vld [vmem:[%s859 + $0x85] sm:$0xff]
      %v1357 = vld [vmem:[%s859 + $0x95] sm:$0xff]
      %v1358 = vld [vmem:[%s859 + $0x9d] sm:$0xff]
      %v1359 = vld [vmem:[%s859 + $0xad] sm:$0xff]
      %v1360 = vld [vmem:[%s859 + $0xb5] sm:$0xff]
      %1377 = vrot.lane.b32.xlu0 %v1345, 48
      %v1378 = vpop.permute.xlu0 %1377
      %1379 = vrot.lane.b32.xlu0 %v1346, 48
      %v1380 = vpop.permute.xlu0 %1379
      %1381 = vrot.lane.b32.xlu0 %v1347, 48
      %v1382 = vpop.permute.xlu0 %1381
      %1383 = vrot.lane.b32.xlu0 %v1348, 48
      %v1384 = vpop.permute.xlu0 %1383
      %1385 = vrot.lane.b32.xlu0 %v1349, 48
      %v1386 = vpop.permute.xlu0 %1385
      %1387 = vrot.lane.b32.xlu0 %v1350, 48
      %v1388 = vpop.permute.xlu0 %1387
      %1389 = vrot.lane.b32.xlu0 %v1351, 48
      %v1390 = vpop.permute.xlu0 %1389
      %1391 = vrot.lane.b32.xlu0 %v1352, 48
      %v1392 = vpop.permute.xlu0 %1391
      %1393 = vrot.lane.b32.xlu0 %v1353, 48
      %v1394 = vpop.permute.xlu0 %1393
      %1395 = vrot.lane.b32.xlu0 %v1354, 48
      %v1396 = vpop.permute.xlu0 %1395
      %1397 = vrot.lane.b32.xlu0 %v1355, 48
      %v1398 = vpop.permute.xlu0 %1397
      %1399 = vrot.lane.b32.xlu0 %v1356, 48
      %v1400 = vpop.permute.xlu0 %1399
      %1401 = vrot.lane.b32.xlu0 %v1357, 48
      %v1402 = vpop.permute.xlu0 %1401
      %1403 = vrot.lane.b32.xlu0 %v1358, 48
      %v1404 = vpop.permute.xlu0 %1403
      %1405 = vrot.lane.b32.xlu0 %v1359, 48
      %v1406 = vpop.permute.xlu0 %1405
      %1407 = vrot.lane.b32.xlu0 %v1360, 48
      %v1408 = vpop.permute.xlu0 %1407
      %vm1425 = vcmask 425344
      %1426 = vst.msk [vmem:[#allocation2] sm:$0xff] %vm1425, %v1378
      %1427 = vst.msk [vmem:[#allocation2 + $0x10] sm:$0xff] %vm1425, %v1380
      %1428 = vst.msk [vmem:[#allocation2 + $0x20] sm:$0xff] %vm1425, %v1382
      %1429 = vst.msk [vmem:[#allocation2 + $0x30] sm:$0xff] %vm1425, %v1384
      %1430 = vst.msk [vmem:[#allocation2 + $0x40] sm:$0xff] %vm1425, %v1386
      %1431 = vst.msk [vmem:[#allocation2 + $0x50] sm:$0xff] %vm1425, %v1388
      %1432 = vst.msk [vmem:[#allocation2 + $0x60] sm:$0xff] %vm1425, %v1390
      %1433 = vst.msk [vmem:[#allocation2 + $0x70] sm:$0xff] %vm1425, %v1392
      %1434 = vst.msk [vmem:[#allocation2 + $0x80] sm:$0xff] %vm1425, %v1394
      %1435 = vst.msk [vmem:[#allocation2 + $0x90] sm:$0xff] %vm1425, %v1396
      %1436 = vst.msk [vmem:[#allocation2 + $0xa0] sm:$0xff] %vm1425, %v1398
      %1437 = vst.msk [vmem:[#allocation2 + $0xb0] sm:$0xff] %vm1425, %v1400
      %1438 = vst.msk [vmem:[#allocation2 + $0xc0] sm:$0xff] %vm1425, %v1402
      %1439 = vst.msk [vmem:[#allocation2 + $0xd0] sm:$0xff] %vm1425, %v1404
      %1440 = vst.msk [vmem:[#allocation2 + $0xe0] sm:$0xff] %vm1425, %v1406
      %1441 = vst.msk [vmem:[#allocation2 + $0xf0] sm:$0xff] %vm1425, %v1408
      %v1442 = vld [vmem:[%s859 + $0x6] sm:$0xff]
      %v1443 = vld [vmem:[%s859 + $0xe] sm:$0xff]
      %v1444 = vld [vmem:[%s859 + $0x1e] sm:$0xff]
      %v1445 = vld [vmem:[%s859 + $0x26] sm:$0xff]
      %v1446 = vld [vmem:[%s859 + $0x36] sm:$0xff]
      %v1447 = vld [vmem:[%s859 + $0x3e] sm:$0xff]
      %v1448 = vld [vmem:[%s859 + $0x4e] sm:$0xff]
      %v1449 = vld [vmem:[%s859 + $0x56] sm:$0xff]
      %v1450 = vld [vmem:[%s859 + $0x66] sm:$0xff]
      %v1451 = vld [vmem:[%s859 + $0x6e] sm:$0xff]
      %v1452 = vld [vmem:[%s859 + $0x7e] sm:$0xff]
      %v1453 = vld [vmem:[%s859 + $0x86] sm:$0xff]
      %v1454 = vld [vmem:[%s859 + $0x96] sm:$0xff]
      %v1455 = vld [vmem:[%s859 + $0x9e] sm:$0xff]
      %v1456 = vld [vmem:[%s859 + $0xae] sm:$0xff]
      %v1457 = vld [vmem:[%s859 + $0xb6] sm:$0xff]
      %1474 = vrot.lane.b32.xlu0 %v1442, 52
      %v1475 = vpop.permute.xlu0 %1474
      %1476 = vrot.lane.b32.xlu0 %v1443, 52
      %v1477 = vpop.permute.xlu0 %1476
      %1478 = vrot.lane.b32.xlu0 %v1444, 52
      %v1479 = vpop.permute.xlu0 %1478
      %1480 = vrot.lane.b32.xlu0 %v1445, 52
      %v1481 = vpop.permute.xlu0 %1480
      %1482 = vrot.lane.b32.xlu0 %v1446, 52
      %v1483 = vpop.permute.xlu0 %1482
      %1484 = vrot.lane.b32.xlu0 %v1447, 52
      %v1485 = vpop.permute.xlu0 %1484
      %1486 = vrot.lane.b32.xlu0 %v1448, 52
      %v1487 = vpop.permute.xlu0 %1486
      %1488 = vrot.lane.b32.xlu0 %v1449, 52
      %v1489 = vpop.permute.xlu0 %1488
      %1490 = vrot.lane.b32.xlu0 %v1450, 52
      %v1491 = vpop.permute.xlu0 %1490
      %1492 = vrot.lane.b32.xlu0 %v1451, 52
      %v1493 = vpop.permute.xlu0 %1492
      %1494 = vrot.lane.b32.xlu0 %v1452, 52
      %v1495 = vpop.permute.xlu0 %1494
      %1496 = vrot.lane.b32.xlu0 %v1453, 52
      %v1497 = vpop.permute.xlu0 %1496
      %1498 = vrot.lane.b32.xlu0 %v1454, 52
      %v1499 = vpop.permute.xlu0 %1498
      %1500 = vrot.lane.b32.xlu0 %v1455, 52
      %v1501 = vpop.permute.xlu0 %1500
      %1502 = vrot.lane.b32.xlu0 %v1456, 52
      %v1503 = vpop.permute.xlu0 %1502
      %1504 = vrot.lane.b32.xlu0 %v1457, 52
      %v1505 = vpop.permute.xlu0 %1504
      %vm1522 = vcmask 458144
      %1523 = vst.msk [vmem:[#allocation2] sm:$0xff] %vm1522, %v1475
      %1524 = vst.msk [vmem:[#allocation2 + $0x10] sm:$0xff] %vm1522, %v1477
      %1525 = vst.msk [vmem:[#allocation2 + $0x20] sm:$0xff] %vm1522, %v1479
      %1526 = vst.msk [vmem:[#allocation2 + $0x30] sm:$0xff] %vm1522, %v1481
      %1527 = vst.msk [vmem:[#allocation2 + $0x40] sm:$0xff] %vm1522, %v1483
      %1528 = vst.msk [vmem:[#allocation2 + $0x50] sm:$0xff] %vm1522, %v1485
      %1529 = vst.msk [vmem:[#allocation2 + $0x60] sm:$0xff] %vm1522, %v1487
      %1530 = vst.msk [vmem:[#allocation2 + $0x70] sm:$0xff] %vm1522, %v1489
      %1531 = vst.msk [vmem:[#allocation2 + $0x80] sm:$0xff] %vm1522, %v1491
      %1532 = vst.msk [vmem:[#allocation2 + $0x90] sm:$0xff] %vm1522, %v1493
      %1533 = vst.msk [vmem:[#allocation2 + $0xa0] sm:$0xff] %vm1522, %v1495
      %1534 = vst.msk [vmem:[#allocation2 + $0xb0] sm:$0xff] %vm1522, %v1497
      %1535 = vst.msk [vmem:[#allocation2 + $0xc0] sm:$0xff] %vm1522, %v1499
      %1536 = vst.msk [vmem:[#allocation2 + $0xd0] sm:$0xff] %vm1522, %v1501
      %1537 = vst.msk [vmem:[#allocation2 + $0xe0] sm:$0xff] %vm1522, %v1503
      %1538 = vst.msk [vmem:[#allocation2 + $0xf0] sm:$0xff] %vm1522, %v1505
      %s1539 = sadd.s32 %s222, 2
      %s1540 = smul.u32 %s1539, 24
      %s1541 = scalar_lea.vmem %s221, %s1540
      %v1542 = vld [vmem:[%s1541] sm:$0xff]
      %v1543 = vld [vmem:[%s1541 + $0x8] sm:$0xff]
      %v1544 = vld [vmem:[%s1541 + $0x18] sm:$0xff]
      %v1545 = vld [vmem:[%s1541 + $0x20] sm:$0xff]
      %v1546 = vld [vmem:[%s1541 + $0x30] sm:$0xff]
      %v1547 = vld [vmem:[%s1541 + $0x38] sm:$0xff]
      %v1548 = vld [vmem:[%s1541 + $0x48] sm:$0xff]
      %v1549 = vld [vmem:[%s1541 + $0x50] sm:$0xff]
      %v1550 = vld [vmem:[%s1541 + $0x60] sm:$0xff]
      %v1551 = vld [vmem:[%s1541 + $0x68] sm:$0xff]
      %v1552 = vld [vmem:[%s1541 + $0x78] sm:$0xff]
      %v1553 = vld [vmem:[%s1541 + $0x80] sm:$0xff]
      %v1554 = vld [vmem:[%s1541 + $0x90] sm:$0xff]
      %v1555 = vld [vmem:[%s1541 + $0x98] sm:$0xff]
      %v1556 = vld [vmem:[%s1541 + $0xa8] sm:$0xff]
      %v1557 = vld [vmem:[%s1541 + $0xb0] sm:$0xff]
      %1574 = vrot.lane.b32.xlu0 %v1542, 56
      %v1575 = vpop.permute.xlu0 %1574
      %1576 = vrot.lane.b32.xlu0 %v1543, 56
      %v1577 = vpop.permute.xlu0 %1576
      %1578 = vrot.lane.b32.xlu0 %v1544, 56
      %v1579 = vpop.permute.xlu0 %1578
      %1580 = vrot.lane.b32.xlu0 %v1545, 56
      %v1581 = vpop.permute.xlu0 %1580
      %1582 = vrot.lane.b32.xlu0 %v1546, 56
      %v1583 = vpop.permute.xlu0 %1582
      %1584 = vrot.lane.b32.xlu0 %v1547, 56
      %v1585 = vpop.permute.xlu0 %1584
      %1586 = vrot.lane.b32.xlu0 %v1548, 56
      %v1587 = vpop.permute.xlu0 %1586
      %1588 = vrot.lane.b32.xlu0 %v1549, 56
      %v1589 = vpop.permute.xlu0 %1588
      %1590 = vrot.lane.b32.xlu0 %v1550, 56
      %v1591 = vpop.permute.xlu0 %1590
      %1592 = vrot.lane.b32.xlu0 %v1551, 56
      %v1593 = vpop.permute.xlu0 %1592
      %1594 = vrot.lane.b32.xlu0 %v1552, 56
      %v1595 = vpop.permute.xlu0 %1594
      %1596 = vrot.lane.b32.xlu0 %v1553, 56
      %v1597 = vpop.permute.xlu0 %1596
      %1598 = vrot.lane.b32.xlu0 %v1554, 56
      %v1599 = vpop.permute.xlu0 %1598
      %1600 = vrot.lane.b32.xlu0 %v1555, 56
      %v1601 = vpop.permute.xlu0 %1600
      %1602 = vrot.lane.b32.xlu0 %v1556, 56
      %v1603 = vpop.permute.xlu0 %1602
      %1604 = vrot.lane.b32.xlu0 %v1557, 56
      %v1605 = vpop.permute.xlu0 %1604
      %vm1622 = vcmask 490944
      %1623 = vst.msk [vmem:[#allocation2] sm:$0xff] %vm1622, %v1575
      %1624 = vst.msk [vmem:[#allocation2 + $0x10] sm:$0xff] %vm1622, %v1577
      %1625 = vst.msk [vmem:[#allocation2 + $0x20] sm:$0xff] %vm1622, %v1579
      %1626 = vst.msk [vmem:[#allocation2 + $0x30] sm:$0xff] %vm1622, %v1581
      %1627 = vst.msk [vmem:[#allocation2 + $0x40] sm:$0xff] %vm1622, %v1583
      %1628 = vst.msk [vmem:[#allocation2 + $0x50] sm:$0xff] %vm1622, %v1585
      %1629 = vst.msk [vmem:[#allocation2 + $0x60] sm:$0xff] %vm1622, %v1587
      %1630 = vst.msk [vmem:[#allocation2 + $0x70] sm:$0xff] %vm1622, %v1589
      %1631 = vst.msk [vmem:[#allocation2 + $0x80] sm:$0xff] %vm1622, %v1591
      %1632 = vst.msk [vmem:[#allocation2 + $0x90] sm:$0xff] %vm1622, %v1593
      %1633 = vst.msk [vmem:[#allocation2 + $0xa0] sm:$0xff] %vm1622, %v1595
      %1634 = vst.msk [vmem:[#allocation2 + $0xb0] sm:$0xff] %vm1622, %v1597
      %1635 = vst.msk [vmem:[#allocation2 + $0xc0] sm:$0xff] %vm1622, %v1599
      %1636 = vst.msk [vmem:[#allocation2 + $0xd0] sm:$0xff] %vm1622, %v1601
      %1637 = vst.msk [vmem:[#allocation2 + $0xe0] sm:$0xff] %vm1622, %v1603
      %1638 = vst.msk [vmem:[#allocation2 + $0xf0] sm:$0xff] %vm1622, %v1605
      %v1639 = vld [vmem:[%s1541 + $0x1] sm:$0xff]
      %v1640 = vld [vmem:[%s1541 + $0x9] sm:$0xff]
      %v1641 = vld [vmem:[%s1541 + $0x19] sm:$0xff]
      %v1642 = vld [vmem:[%s1541 + $0x21] sm:$0xff]
      %v1643 = vld [vmem:[%s1541 + $0x31] sm:$0xff]
      %v1644 = vld [vmem:[%s1541 + $0x39] sm:$0xff]
      %v1645 = vld [vmem:[%s1541 + $0x49] sm:$0xff]
      %v1646 = vld [vmem:[%s1541 + $0x51] sm:$0xff]
      %v1647 = vld [vmem:[%s1541 + $0x61] sm:$0xff]
      %v1648 = vld [vmem:[%s1541 + $0x69] sm:$0xff]
      %v1649 = vld [vmem:[%s1541 + $0x79] sm:$0xff]
      %v1650 = vld [vmem:[%s1541 + $0x81] sm:$0xff]
      %v1651 = vld [vmem:[%s1541 + $0x91] sm:$0xff]
      %v1652 = vld [vmem:[%s1541 + $0x99] sm:$0xff]
      %v1653 = vld [vmem:[%s1541 + $0xa9] sm:$0xff]
      %v1654 = vld [vmem:[%s1541 + $0xb1] sm:$0xff]
      %1671 = vrot.lane.b32.xlu0 %v1639, 60
      %v1672 = vpop.permute.xlu0 %1671
      %1673 = vrot.lane.b32.xlu0 %v1640, 60
      %v1674 = vpop.permute.xlu0 %1673
      %1675 = vrot.lane.b32.xlu0 %v1641, 60
      %v1676 = vpop.permute.xlu0 %1675
      %1677 = vrot.lane.b32.xlu0 %v1642, 60
      %v1678 = vpop.permute.xlu0 %1677
      %1679 = vrot.lane.b32.xlu0 %v1643, 60
      %v1680 = vpop.permute.xlu0 %1679
      %1681 = vrot.lane.b32.xlu0 %v1644, 60
      %v1682 = vpop.permute.xlu0 %1681
      %1683 = vrot.lane.b32.xlu0 %v1645, 60
      %v1684 = vpop.permute.xlu0 %1683
      %1685 = vrot.lane.b32.xlu0 %v1646, 60
      %v1686 = vpop.permute.xlu0 %1685
      %1687 = vrot.lane.b32.xlu0 %v1647, 60
      %v1688 = vpop.permute.xlu0 %1687
      %1689 = vrot.lane.b32.xlu0 %v1648, 60
      %v1690 = vpop.permute.xlu0 %1689
      %1691 = vrot.lane.b32.xlu0 %v1649, 60
      %v1692 = vpop.permute.xlu0 %1691
      %1693 = vrot.lane.b32.xlu0 %v1650, 60
      %v1694 = vpop.permute.xlu0 %1693
      %1695 = vrot.lane.b32.xlu0 %v1651, 60
      %v1696 = vpop.permute.xlu0 %1695
      %1697 = vrot.lane.b32.xlu0 %v1652, 60
      %v1698 = vpop.permute.xlu0 %1697
      %1699 = vrot.lane.b32.xlu0 %v1653, 60
      %v1700 = vpop.permute.xlu0 %1699
      %1701 = vrot.lane.b32.xlu0 %v1654, 60
      %v1702 = vpop.permute.xlu0 %1701
      %vm1719 = vcmask 523744
      %1720 = vst.msk [vmem:[#allocation2] sm:$0xff] %vm1719, %v1672
      %1721 = vst.msk [vmem:[#allocation2 + $0x10] sm:$0xff] %vm1719, %v1674
      %1722 = vst.msk [vmem:[#allocation2 + $0x20] sm:$0xff] %vm1719, %v1676
      %1723 = vst.msk [vmem:[#allocation2 + $0x30] sm:$0xff] %vm1719, %v1678
      %1724 = vst.msk [vmem:[#allocation2 + $0x40] sm:$0xff] %vm1719, %v1680
      %1725 = vst.msk [vmem:[#allocation2 + $0x50] sm:$0xff] %vm1719, %v1682
      %1726 = vst.msk [vmem:[#allocation2 + $0x60] sm:$0xff] %vm1719, %v1684
      %1727 = vst.msk [vmem:[#allocation2 + $0x70] sm:$0xff] %vm1719, %v1686
      %1728 = vst.msk [vmem:[#allocation2 + $0x80] sm:$0xff] %vm1719, %v1688
      %1729 = vst.msk [vmem:[#allocation2 + $0x90] sm:$0xff] %vm1719, %v1690
      %1730 = vst.msk [vmem:[#allocation2 + $0xa0] sm:$0xff] %vm1719, %v1692
      %1731 = vst.msk [vmem:[#allocation2 + $0xb0] sm:$0xff] %vm1719, %v1694
      %1732 = vst.msk [vmem:[#allocation2 + $0xc0] sm:$0xff] %vm1719, %v1696
      %1733 = vst.msk [vmem:[#allocation2 + $0xd0] sm:$0xff] %vm1719, %v1698
      %1734 = vst.msk [vmem:[#allocation2 + $0xe0] sm:$0xff] %vm1719, %v1700
      %1735 = vst.msk [vmem:[#allocation2 + $0xf0] sm:$0xff] %vm1719, %v1702
      %v1736 = vld [vmem:[%s1541 + $0x2] sm:$0xff]
      %v1737 = vld [vmem:[%s1541 + $0xa] sm:$0xff]
      %v1738 = vld [vmem:[%s1541 + $0x1a] sm:$0xff]
      %v1739 = vld [vmem:[%s1541 + $0x22] sm:$0xff]
      %v1740 = vld [vmem:[%s1541 + $0x32] sm:$0xff]
      %v1741 = vld [vmem:[%s1541 + $0x3a] sm:$0xff]
      %v1742 = vld [vmem:[%s1541 + $0x4a] sm:$0xff]
      %v1743 = vld [vmem:[%s1541 + $0x52] sm:$0xff]
      %v1744 = vld [vmem:[%s1541 + $0x62] sm:$0xff]
      %v1745 = vld [vmem:[%s1541 + $0x6a] sm:$0xff]
      %v1746 = vld [vmem:[%s1541 + $0x7a] sm:$0xff]
      %v1747 = vld [vmem:[%s1541 + $0x82] sm:$0xff]
      %v1748 = vld [vmem:[%s1541 + $0x92] sm:$0xff]
      %v1749 = vld [vmem:[%s1541 + $0x9a] sm:$0xff]
      %v1750 = vld [vmem:[%s1541 + $0xaa] sm:$0xff]
      %v1751 = vld [vmem:[%s1541 + $0xb2] sm:$0xff]
      %1768 = vrot.lane.b32.xlu0 %v1736, 64
      %v1769 = vpop.permute.xlu0 %1768
      %1770 = vrot.lane.b32.xlu0 %v1737, 64
      %v1771 = vpop.permute.xlu0 %1770
      %1772 = vrot.lane.b32.xlu0 %v1738, 64
      %v1773 = vpop.permute.xlu0 %1772
      %1774 = vrot.lane.b32.xlu0 %v1739, 64
      %v1775 = vpop.permute.xlu0 %1774
      %1776 = vrot.lane.b32.xlu0 %v1740, 64
      %v1777 = vpop.permute.xlu0 %1776
      %1778 = vrot.lane.b32.xlu0 %v1741, 64
      %v1779 = vpop.permute.xlu0 %1778
      %1780 = vrot.lane.b32.xlu0 %v1742, 64
      %v1781 = vpop.permute.xlu0 %1780
      %1782 = vrot.lane.b32.xlu0 %v1743, 64
      %v1783 = vpop.permute.xlu0 %1782
      %1784 = vrot.lane.b32.xlu0 %v1744, 64
      %v1785 = vpop.permute.xlu0 %1784
      %1786 = vrot.lane.b32.xlu0 %v1745, 64
      %v1787 = vpop.permute.xlu0 %1786
      %1788 = vrot.lane.b32.xlu0 %v1746, 64
      %v1789 = vpop.permute.xlu0 %1788
      %1790 = vrot.lane.b32.xlu0 %v1747, 64
      %v1791 = vpop.permute.xlu0 %1790
      %1792 = vrot.lane.b32.xlu0 %v1748, 64
      %v1793 = vpop.permute.xlu0 %1792
      %1794 = vrot.lane.b32.xlu0 %v1749, 64
      %v1795 = vpop.permute.xlu0 %1794
      %1796 = vrot.lane.b32.xlu0 %v1750, 64
      %v1797 = vpop.permute.xlu0 %1796
      %1798 = vrot.lane.b32.xlu0 %v1751, 64
      %v1799 = vpop.permute.xlu0 %1798
      %vm1816 = vcmask 556544
      %1817 = vst.msk [vmem:[#allocation2] sm:$0xff] %vm1816, %v1769
      %1818 = vst.msk [vmem:[#allocation2 + $0x10] sm:$0xff] %vm1816, %v1771
      %1819 = vst.msk [vmem:[#allocation2 + $0x20] sm:$0xff] %vm1816, %v1773
      %1820 = vst.msk [vmem:[#allocation2 + $0x30] sm:$0xff] %vm1816, %v1775
      %1821 = vst.msk [vmem:[#allocation2 + $0x40] sm:$0xff] %vm1816, %v1777
      %1822 = vst.msk [vmem:[#allocation2 + $0x50] sm:$0xff] %vm1816, %v1779
      %1823 = vst.msk [vmem:[#allocation2 + $0x60] sm:$0xff] %vm1816, %v1781
      %1824 = vst.msk [vmem:[#allocation2 + $0x70] sm:$0xff] %vm1816, %v1783
      %1825 = vst.msk [vmem:[#allocation2 + $0x80] sm:$0xff] %vm1816, %v1785
      %1826 = vst.msk [vmem:[#allocation2 + $0x90] sm:$0xff] %vm1816, %v1787
      %1827 = vst.msk [vmem:[#allocation2 + $0xa0] sm:$0xff] %vm1816, %v1789
      %1828 = vst.msk [vmem:[#allocation2 + $0xb0] sm:$0xff] %vm1816, %v1791
      %1829 = vst.msk [vmem:[#allocation2 + $0xc0] sm:$0xff] %vm1816, %v1793
      %1830 = vst.msk [vmem:[#allocation2 + $0xd0] sm:$0xff] %vm1816, %v1795
      %1831 = vst.msk [vmem:[#allocation2 + $0xe0] sm:$0xff] %vm1816, %v1797
      %1832 = vst.msk [vmem:[#allocation2 + $0xf0] sm:$0xff] %vm1816, %v1799
      %v1833 = vld [vmem:[%s1541 + $0x3] sm:$0xff]
      %v1834 = vld [vmem:[%s1541 + $0xb] sm:$0xff]
      %v1835 = vld [vmem:[%s1541 + $0x1b] sm:$0xff]
      %v1836 = vld [vmem:[%s1541 + $0x23] sm:$0xff]
      %v1837 = vld [vmem:[%s1541 + $0x33] sm:$0xff]
      %v1838 = vld [vmem:[%s1541 + $0x3b] sm:$0xff]
      %v1839 = vld [vmem:[%s1541 + $0x4b] sm:$0xff]
      %v1840 = vld [vmem:[%s1541 + $0x53] sm:$0xff]
      %v1841 = vld [vmem:[%s1541 + $0x63] sm:$0xff]
      %v1842 = vld [vmem:[%s1541 + $0x6b] sm:$0xff]
      %v1843 = vld [vmem:[%s1541 + $0x7b] sm:$0xff]
      %v1844 = vld [vmem:[%s1541 + $0x83] sm:$0xff]
      %v1845 = vld [vmem:[%s1541 + $0x93] sm:$0xff]
      %v1846 = vld [vmem:[%s1541 + $0x9b] sm:$0xff]
      %v1847 = vld [vmem:[%s1541 + $0xab] sm:$0xff]
      %v1848 = vld [vmem:[%s1541 + $0xb3] sm:$0xff]
      %1865 = vrot.lane.b32.xlu0 %v1833, 68
      %v1866 = vpop.permute.xlu0 %1865
      %1867 = vrot.lane.b32.xlu0 %v1834, 68
      %v1868 = vpop.permute.xlu0 %1867
      %1869 = vrot.lane.b32.xlu0 %v1835, 68
      %v1870 = vpop.permute.xlu0 %1869
      %1871 = vrot.lane.b32.xlu0 %v1836, 68
      %v1872 = vpop.permute.xlu0 %1871
      %1873 = vrot.lane.b32.xlu0 %v1837, 68
      %v1874 = vpop.permute.xlu0 %1873
      %1875 = vrot.lane.b32.xlu0 %v1838, 68
      %v1876 = vpop.permute.xlu0 %1875
      %1877 = vrot.lane.b32.xlu0 %v1839, 68
      %v1878 = vpop.permute.xlu0 %1877
      %1879 = vrot.lane.b32.xlu0 %v1840, 68
      %v1880 = vpop.permute.xlu0 %1879
      %1881 = vrot.lane.b32.xlu0 %v1841, 68
      %v1882 = vpop.permute.xlu0 %1881
      %1883 = vrot.lane.b32.xlu0 %v1842, 68
      %v1884 = vpop.permute.xlu0 %1883
      %1885 = vrot.lane.b32.xlu0 %v1843, 68
      %v1886 = vpop.permute.xlu0 %1885
      %1887 = vrot.lane.b32.xlu0 %v1844, 68
      %v1888 = vpop.permute.xlu0 %1887
      %1889 = vrot.lane.b32.xlu0 %v1845, 68
      %v1890 = vpop.permute.xlu0 %1889
      %1891 = vrot.lane.b32.xlu0 %v1846, 68
      %v1892 = vpop.permute.xlu0 %1891
      %1893 = vrot.lane.b32.xlu0 %v1847, 68
      %v1894 = vpop.permute.xlu0 %1893
      %1895 = vrot.lane.b32.xlu0 %v1848, 68
      %v1896 = vpop.permute.xlu0 %1895
      %vm1913 = vcmask 589344
      %1914 = vst.msk [vmem:[#allocation2] sm:$0xff] %vm1913, %v1866
      %1915 = vst.msk [vmem:[#allocation2 + $0x10] sm:$0xff] %vm1913, %v1868
      %1916 = vst.msk [vmem:[#allocation2 + $0x20] sm:$0xff] %vm1913, %v1870
      %1917 = vst.msk [vmem:[#allocation2 + $0x30] sm:$0xff] %vm1913, %v1872
      %1918 = vst.msk [vmem:[#allocation2 + $0x40] sm:$0xff] %vm1913, %v1874
      %1919 = vst.msk [vmem:[#allocation2 + $0x50] sm:$0xff] %vm1913, %v1876
      %1920 = vst.msk [vmem:[#allocation2 + $0x60] sm:$0xff] %vm1913, %v1878
      %1921 = vst.msk [vmem:[#allocation2 + $0x70] sm:$0xff] %vm1913, %v1880
      %1922 = vst.msk [vmem:[#allocation2 + $0x80] sm:$0xff] %vm1913, %v1882
      %1923 = vst.msk [vmem:[#allocation2 + $0x90] sm:$0xff] %vm1913, %v1884
      %1924 = vst.msk [vmem:[#allocation2 + $0xa0] sm:$0xff] %vm1913, %v1886
      %1925 = vst.msk [vmem:[#allocation2 + $0xb0] sm:$0xff] %vm1913, %v1888
      %1926 = vst.msk [vmem:[#allocation2 + $0xc0] sm:$0xff] %vm1913, %v1890
      %1927 = vst.msk [vmem:[#allocation2 + $0xd0] sm:$0xff] %vm1913, %v1892
      %1928 = vst.msk [vmem:[#allocation2 + $0xe0] sm:$0xff] %vm1913, %v1894
      %1929 = vst.msk [vmem:[#allocation2 + $0xf0] sm:$0xff] %vm1913, %v1896
      %v1930 = vld [vmem:[%s1541 + $0x4] sm:$0xff]
      %v1931 = vld [vmem:[%s1541 + $0xc] sm:$0xff]
      %v1932 = vld [vmem:[%s1541 + $0x1c] sm:$0xff]
      %v1933 = vld [vmem:[%s1541 + $0x24] sm:$0xff]
      %v1934 = vld [vmem:[%s1541 + $0x34] sm:$0xff]
      %v1935 = vld [vmem:[%s1541 + $0x3c] sm:$0xff]
      %v1936 = vld [vmem:[%s1541 + $0x4c] sm:$0xff]
      %v1937 = vld [vmem:[%s1541 + $0x54] sm:$0xff]
      %v1938 = vld [vmem:[%s1541 + $0x64] sm:$0xff]
      %v1939 = vld [vmem:[%s1541 + $0x6c] sm:$0xff]
      %v1940 = vld [vmem:[%s1541 + $0x7c] sm:$0xff]
      %v1941 = vld [vmem:[%s1541 + $0x84] sm:$0xff]
      %v1942 = vld [vmem:[%s1541 + $0x94] sm:$0xff]
      %v1943 = vld [vmem:[%s1541 + $0x9c] sm:$0xff]
      %v1944 = vld [vmem:[%s1541 + $0xac] sm:$0xff]
      %v1945 = vld [vmem:[%s1541 + $0xb4] sm:$0xff]
      %1962 = vrot.lane.b32.xlu0 %v1930, 72
      %v1963 = vpop.permute.xlu0 %1962
      %1964 = vrot.lane.b32.xlu0 %v1931, 72
      %v1965 = vpop.permute.xlu0 %1964
      %1966 = vrot.lane.b32.xlu0 %v1932, 72
      %v1967 = vpop.permute.xlu0 %1966
      %1968 = vrot.lane.b32.xlu0 %v1933, 72
      %v1969 = vpop.permute.xlu0 %1968
      %1970 = vrot.lane.b32.xlu0 %v1934, 72
      %v1971 = vpop.permute.xlu0 %1970
      %1972 = vrot.lane.b32.xlu0 %v1935, 72
      %v1973 = vpop.permute.xlu0 %1972
      %1974 = vrot.lane.b32.xlu0 %v1936, 72
      %v1975 = vpop.permute.xlu0 %1974
      %1976 = vrot.lane.b32.xlu0 %v1937, 72
      %v1977 = vpop.permute.xlu0 %1976
      %1978 = vrot.lane.b32.xlu0 %v1938, 72
      %v1979 = vpop.permute.xlu0 %1978
      %1980 = vrot.lane.b32.xlu0 %v1939, 72
      %v1981 = vpop.permute.xlu0 %1980
      %1982 = vrot.lane.b32.xlu0 %v1940, 72
      %v1983 = vpop.permute.xlu0 %1982
      %1984 = vrot.lane.b32.xlu0 %v1941, 72
      %v1985 = vpop.permute.xlu0 %1984
      %1986 = vrot.lane.b32.xlu0 %v1942, 72
      %v1987 = vpop.permute.xlu0 %1986
      %1988 = vrot.lane.b32.xlu0 %v1943, 72
      %v1989 = vpop.permute.xlu0 %1988
      %1990 = vrot.lane.b32.xlu0 %v1944, 72
      %v1991 = vpop.permute.xlu0 %1990
      %1992 = vrot.lane.b32.xlu0 %v1945, 72
      %v1993 = vpop.permute.xlu0 %1992
      %vm2010 = vcmask 622144
      %2011 = vst.msk [vmem:[#allocation2] sm:$0xff] %vm2010, %v1963
      %2012 = vst.msk [vmem:[#allocation2 + $0x10] sm:$0xff] %vm2010, %v1965
      %2013 = vst.msk [vmem:[#allocation2 + $0x20] sm:$0xff] %vm2010, %v1967
      %2014 = vst.msk [vmem:[#allocation2 + $0x30] sm:$0xff] %vm2010, %v1969
      %2015 = vst.msk [vmem:[#allocation2 + $0x40] sm:$0xff] %vm2010, %v1971
      %2016 = vst.msk [vmem:[#allocation2 + $0x50] sm:$0xff] %vm2010, %v1973
      %2017 = vst.msk [vmem:[#allocation2 + $0x60] sm:$0xff] %vm2010, %v1975
      %2018 = vst.msk [vmem:[#allocation2 + $0x70] sm:$0xff] %vm2010, %v1977
      %2019 = vst.msk [vmem:[#allocation2 + $0x80] sm:$0xff] %vm2010, %v1979
      %2020 = vst.msk [vmem:[#allocation2 + $0x90] sm:$0xff] %vm2010, %v1981
      %2021 = vst.msk [vmem:[#allocation2 + $0xa0] sm:$0xff] %vm2010, %v1983
      %2022 = vst.msk [vmem:[#allocation2 + $0xb0] sm:$0xff] %vm2010, %v1985
      %2023 = vst.msk [vmem:[#allocation2 + $0xc0] sm:$0xff] %vm2010, %v1987
      %2024 = vst.msk [vmem:[#allocation2 + $0xd0] sm:$0xff] %vm2010, %v1989
      %2025 = vst.msk [vmem:[#allocation2 + $0xe0] sm:$0xff] %vm2010, %v1991
      %2026 = vst.msk [vmem:[#allocation2 + $0xf0] sm:$0xff] %vm2010, %v1993
      %v2027 = vld [vmem:[%s1541 + $0x5] sm:$0xff]
      %v2028 = vld [vmem:[%s1541 + $0xd] sm:$0xff]
      %v2029 = vld [vmem:[%s1541 + $0x1d] sm:$0xff]
      %v2030 = vld [vmem:[%s1541 + $0x25] sm:$0xff]
      %v2031 = vld [vmem:[%s1541 + $0x35] sm:$0xff]
      %v2032 = vld [vmem:[%s1541 + $0x3d] sm:$0xff]
      %v2033 = vld [vmem:[%s1541 + $0x4d] sm:$0xff]
      %v2034 = vld [vmem:[%s1541 + $0x55] sm:$0xff]
      %v2035 = vld [vmem:[%s1541 + $0x65] sm:$0xff]
      %v2036 = vld [vmem:[%s1541 + $0x6d] sm:$0xff]
      %v2037 = vld [vmem:[%s1541 + $0x7d] sm:$0xff]
      %v2038 = vld [vmem:[%s1541 + $0x85] sm:$0xff]
      %v2039 = vld [vmem:[%s1541 + $0x95] sm:$0xff]
      %v2040 = vld [vmem:[%s1541 + $0x9d] sm:$0xff]
      %v2041 = vld [vmem:[%s1541 + $0xad] sm:$0xff]
      %v2042 = vld [vmem:[%s1541 + $0xb5] sm:$0xff]
      %2059 = vrot.lane.b32.xlu0 %v2027, 76
      %v2060 = vpop.permute.xlu0 %2059
      %2061 = vrot.lane.b32.xlu0 %v2028, 76
      %v2062 = vpop.permute.xlu0 %2061
      %2063 = vrot.lane.b32.xlu0 %v2029, 76
      %v2064 = vpop.permute.xlu0 %2063
      %2065 = vrot.lane.b32.xlu0 %v2030, 76
      %v2066 = vpop.permute.xlu0 %2065
      %2067 = vrot.lane.b32.xlu0 %v2031, 76
      %v2068 = vpop.permute.xlu0 %2067
      %2069 = vrot.lane.b32.xlu0 %v2032, 76
      %v2070 = vpop.permute.xlu0 %2069
      %2071 = vrot.lane.b32.xlu0 %v2033, 76
      %v2072 = vpop.permute.xlu0 %2071
      %2073 = vrot.lane.b32.xlu0 %v2034, 76
      %v2074 = vpop.permute.xlu0 %2073
      %2075 = vrot.lane.b32.xlu0 %v2035, 76
      %v2076 = vpop.permute.xlu0 %2075
      %2077 = vrot.lane.b32.xlu0 %v2036, 76
      %v2078 = vpop.permute.xlu0 %2077
      %2079 = vrot.lane.b32.xlu0 %v2037, 76
      %v2080 = vpop.permute.xlu0 %2079
      %2081 = vrot.lane.b32.xlu0 %v2038, 76
      %v2082 = vpop.permute.xlu0 %2081
      %2083 = vrot.lane.b32.xlu0 %v2039, 76
      %v2084 = vpop.permute.xlu0 %2083
      %2085 = vrot.lane.b32.xlu0 %v2040, 76
      %v2086 = vpop.permute.xlu0 %2085
      %2087 = vrot.lane.b32.xlu0 %v2041, 76
      %v2088 = vpop.permute.xlu0 %2087
      %2089 = vrot.lane.b32.xlu0 %v2042, 76
      %v2090 = vpop.permute.xlu0 %2089
      %vm2107 = vcmask 654944
      %2108 = vst.msk [vmem:[#allocation2] sm:$0xff] %vm2107, %v2060
      %2109 = vst.msk [vmem:[#allocation2 + $0x10] sm:$0xff] %vm2107, %v2062
      %2110 = vst.msk [vmem:[#allocation2 + $0x20] sm:$0xff] %vm2107, %v2064
      %2111 = vst.msk [vmem:[#allocation2 + $0x30] sm:$0xff] %vm2107, %v2066
      %2112 = vst.msk [vmem:[#allocation2 + $0x40] sm:$0xff] %vm2107, %v2068
      %2113 = vst.msk [vmem:[#allocation2 + $0x50] sm:$0xff] %vm2107, %v2070
      %2114 = vst.msk [vmem:[#allocation2 + $0x60] sm:$0xff] %vm2107, %v2072
      %2115 = vst.msk [vmem:[#allocation2 + $0x70] sm:$0xff] %vm2107, %v2074
      %2116 = vst.msk [vmem:[#allocation2 + $0x80] sm:$0xff] %vm2107, %v2076
      %2117 = vst.msk [vmem:[#allocation2 + $0x90] sm:$0xff] %vm2107, %v2078
      %2118 = vst.msk [vmem:[#allocation2 + $0xa0] sm:$0xff] %vm2107, %v2080
      %2119 = vst.msk [vmem:[#allocation2 + $0xb0] sm:$0xff] %vm2107, %v2082
      %2120 = vst.msk [vmem:[#allocation2 + $0xc0] sm:$0xff] %vm2107, %v2084
      %2121 = vst.msk [vmem:[#allocation2 + $0xd0] sm:$0xff] %vm2107, %v2086
      %2122 = vst.msk [vmem:[#allocation2 + $0xe0] sm:$0xff] %vm2107, %v2088
      %2123 = vst.msk [vmem:[#allocation2 + $0xf0] sm:$0xff] %vm2107, %v2090
      %v2124 = vld [vmem:[%s1541 + $0x6] sm:$0xff]
      %v2125 = vld [vmem:[%s1541 + $0xe] sm:$0xff]
      %v2126 = vld [vmem:[%s1541 + $0x1e] sm:$0xff]
      %v2127 = vld [vmem:[%s1541 + $0x26] sm:$0xff]
      %v2128 = vld [vmem:[%s1541 + $0x36] sm:$0xff]
      %v2129 = vld [vmem:[%s1541 + $0x3e] sm:$0xff]
      %v2130 = vld [vmem:[%s1541 + $0x4e] sm:$0xff]
      %v2131 = vld [vmem:[%s1541 + $0x56] sm:$0xff]
      %v2132 = vld [vmem:[%s1541 + $0x66] sm:$0xff]
      %v2133 = vld [vmem:[%s1541 + $0x6e] sm:$0xff]
      %v2134 = vld [vmem:[%s1541 + $0x7e] sm:$0xff]
      %v2135 = vld [vmem:[%s1541 + $0x86] sm:$0xff]
      %v2136 = vld [vmem:[%s1541 + $0x96] sm:$0xff]
      %v2137 = vld [vmem:[%s1541 + $0x9e] sm:$0xff]
      %v2138 = vld [vmem:[%s1541 + $0xae] sm:$0xff]
      %v2139 = vld [vmem:[%s1541 + $0xb6] sm:$0xff]
      %2156 = vrot.lane.b32.xlu0 %v2124, 80
      %v2157 = vpop.permute.xlu0 %2156
      %2158 = vrot.lane.b32.xlu0 %v2125, 80
      %v2159 = vpop.permute.xlu0 %2158
      %2160 = vrot.lane.b32.xlu0 %v2126, 80
      %v2161 = vpop.permute.xlu0 %2160
      %2162 = vrot.lane.b32.xlu0 %v2127, 80
      %v2163 = vpop.permute.xlu0 %2162
      %2164 = vrot.lane.b32.xlu0 %v2128, 80
      %v2165 = vpop.permute.xlu0 %2164
      %2166 = vrot.lane.b32.xlu0 %v2129, 80
      %v2167 = vpop.permute.xlu0 %2166
      %2168 = vrot.lane.b32.xlu0 %v2130, 80
      %v2169 = vpop.permute.xlu0 %2168
      %2170 = vrot.lane.b32.xlu0 %v2131, 80
      %v2171 = vpop.permute.xlu0 %2170
      %2172 = vrot.lane.b32.xlu0 %v2132, 80
      %v2173 = vpop.permute.xlu0 %2172
      %2174 = vrot.lane.b32.xlu0 %v2133, 80
      %v2175 = vpop.permute.xlu0 %2174
      %2176 = vrot.lane.b32.xlu0 %v2134, 80
      %v2177 = vpop.permute.xlu0 %2176
      %2178 = vrot.lane.b32.xlu0 %v2135, 80
      %v2179 = vpop.permute.xlu0 %2178
      %2180 = vrot.lane.b32.xlu0 %v2136, 80
      %v2181 = vpop.permute.xlu0 %2180
      %2182 = vrot.lane.b32.xlu0 %v2137, 80
      %v2183 = vpop.permute.xlu0 %2182
      %2184 = vrot.lane.b32.xlu0 %v2138, 80
      %v2185 = vpop.permute.xlu0 %2184
      %2186 = vrot.lane.b32.xlu0 %v2139, 80
      %v2187 = vpop.permute.xlu0 %2186
      %vm2204 = vcmask 687744
      %2205 = vst.msk [vmem:[#allocation2] sm:$0xff] %vm2204, %v2157
      %2206 = vst.msk [vmem:[#allocation2 + $0x10] sm:$0xff] %vm2204, %v2159
      %2207 = vst.msk [vmem:[#allocation2 + $0x20] sm:$0xff] %vm2204, %v2161
      %2208 = vst.msk [vmem:[#allocation2 + $0x30] sm:$0xff] %vm2204, %v2163
      %2209 = vst.msk [vmem:[#allocation2 + $0x40] sm:$0xff] %vm2204, %v2165
      %2210 = vst.msk [vmem:[#allocation2 + $0x50] sm:$0xff] %vm2204, %v2167
      %2211 = vst.msk [vmem:[#allocation2 + $0x60] sm:$0xff] %vm2204, %v2169
      %2212 = vst.msk [vmem:[#allocation2 + $0x70] sm:$0xff] %vm2204, %v2171
      %2213 = vst.msk [vmem:[#allocation2 + $0x80] sm:$0xff] %vm2204, %v2173
      %2214 = vst.msk [vmem:[#allocation2 + $0x90] sm:$0xff] %vm2204, %v2175
      %2215 = vst.msk [vmem:[#allocation2 + $0xa0] sm:$0xff] %vm2204, %v2177
      %2216 = vst.msk [vmem:[#allocation2 + $0xb0] sm:$0xff] %vm2204, %v2179
      %2217 = vst.msk [vmem:[#allocation2 + $0xc0] sm:$0xff] %vm2204, %v2181
      %2218 = vst.msk [vmem:[#allocation2 + $0xd0] sm:$0xff] %vm2204, %v2183
      %2219 = vst.msk [vmem:[#allocation2 + $0xe0] sm:$0xff] %vm2204, %v2185
      %2220 = vst.msk [vmem:[#allocation2 + $0xf0] sm:$0xff] %vm2204, %v2187
      %s2221 = sadd.s32 %s222, 3
      %s2222 = smul.u32 %s2221, 24
      %s2223 = scalar_lea.vmem %s221, %s2222
      %v2224 = vld [vmem:[%s2223] sm:$0xff]
      %v2225 = vld [vmem:[%s2223 + $0x8] sm:$0xff]
      %v2226 = vld [vmem:[%s2223 + $0x18] sm:$0xff]
      %v2227 = vld [vmem:[%s2223 + $0x20] sm:$0xff]
      %v2228 = vld [vmem:[%s2223 + $0x30] sm:$0xff]
      %v2229 = vld [vmem:[%s2223 + $0x38] sm:$0xff]
      %v2230 = vld [vmem:[%s2223 + $0x48] sm:$0xff]
      %v2231 = vld [vmem:[%s2223 + $0x50] sm:$0xff]
      %v2232 = vld [vmem:[%s2223 + $0x60] sm:$0xff]
      %v2233 = vld [vmem:[%s2223 + $0x68] sm:$0xff]
      %v2234 = vld [vmem:[%s2223 + $0x78] sm:$0xff]
      %v2235 = vld [vmem:[%s2223 + $0x80] sm:$0xff]
      %v2236 = vld [vmem:[%s2223 + $0x90] sm:$0xff]
      %v2237 = vld [vmem:[%s2223 + $0x98] sm:$0xff]
      %v2238 = vld [vmem:[%s2223 + $0xa8] sm:$0xff]
      %v2239 = vld [vmem:[%s2223 + $0xb0] sm:$0xff]
      %2256 = vrot.lane.b32.xlu0 %v2224, 84
      %v2257 = vpop.permute.xlu0 %2256
      %2258 = vrot.lane.b32.xlu0 %v2225, 84
      %v2259 = vpop.permute.xlu0 %2258
      %2260 = vrot.lane.b32.xlu0 %v2226, 84
      %v2261 = vpop.permute.xlu0 %2260
      %2262 = vrot.lane.b32.xlu0 %v2227, 84
      %v2263 = vpop.permute.xlu0 %2262
      %2264 = vrot.lane.b32.xlu0 %v2228, 84
      %v2265 = vpop.permute.xlu0 %2264
      %2266 = vrot.lane.b32.xlu0 %v2229, 84
      %v2267 = vpop.permute.xlu0 %2266
      %2268 = vrot.lane.b32.xlu0 %v2230, 84
      %v2269 = vpop.permute.xlu0 %2268
      %2270 = vrot.lane.b32.xlu0 %v2231, 84
      %v2271 = vpop.permute.xlu0 %2270
      %2272 = vrot.lane.b32.xlu0 %v2232, 84
      %v2273 = vpop.permute.xlu0 %2272
      %2274 = vrot.lane.b32.xlu0 %v2233, 84
      %v2275 = vpop.permute.xlu0 %2274
      %2276 = vrot.lane.b32.xlu0 %v2234, 84
      %v2277 = vpop.permute.xlu0 %2276
      %2278 = vrot.lane.b32.xlu0 %v2235, 84
      %v2279 = vpop.permute.xlu0 %2278
      %2280 = vrot.lane.b32.xlu0 %v2236, 84
      %v2281 = vpop.permute.xlu0 %2280
      %2282 = vrot.lane.b32.xlu0 %v2237, 84
      %v2283 = vpop.permute.xlu0 %2282
      %2284 = vrot.lane.b32.xlu0 %v2238, 84
      %v2285 = vpop.permute.xlu0 %2284
      %2286 = vrot.lane.b32.xlu0 %v2239, 84
      %v2287 = vpop.permute.xlu0 %2286
      %vm2304 = vcmask 720544
      %2305 = vst.msk [vmem:[#allocation2] sm:$0xff] %vm2304, %v2257
      %2306 = vst.msk [vmem:[#allocation2 + $0x10] sm:$0xff] %vm2304, %v2259
      %2307 = vst.msk [vmem:[#allocation2 + $0x20] sm:$0xff] %vm2304, %v2261
      %2308 = vst.msk [vmem:[#allocation2 + $0x30] sm:$0xff] %vm2304, %v2263
      %2309 = vst.msk [vmem:[#allocation2 + $0x40] sm:$0xff] %vm2304, %v2265
      %2310 = vst.msk [vmem:[#allocation2 + $0x50] sm:$0xff] %vm2304, %v2267
      %2311 = vst.msk [vmem:[#allocation2 + $0x60] sm:$0xff] %vm2304, %v2269
      %2312 = vst.msk [vmem:[#allocation2 + $0x70] sm:$0xff] %vm2304, %v2271
      %2313 = vst.msk [vmem:[#allocation2 + $0x80] sm:$0xff] %vm2304, %v2273
      %2314 = vst.msk [vmem:[#allocation2 + $0x90] sm:$0xff] %vm2304, %v2275
      %2315 = vst.msk [vmem:[#allocation2 + $0xa0] sm:$0xff] %vm2304, %v2277
      %2316 = vst.msk [vmem:[#allocation2 + $0xb0] sm:$0xff] %vm2304, %v2279
      %2317 = vst.msk [vmem:[#allocation2 + $0xc0] sm:$0xff] %vm2304, %v2281
      %2318 = vst.msk [vmem:[#allocation2 + $0xd0] sm:$0xff] %vm2304, %v2283
      %2319 = vst.msk [vmem:[#allocation2 + $0xe0] sm:$0xff] %vm2304, %v2285
      %2320 = vst.msk [vmem:[#allocation2 + $0xf0] sm:$0xff] %vm2304, %v2287
      %v2321 = vld [vmem:[%s2223 + $0x1] sm:$0xff]
      %v2322 = vld [vmem:[%s2223 + $0x9] sm:$0xff]
      %v2323 = vld [vmem:[%s2223 + $0x19] sm:$0xff]
      %v2324 = vld [vmem:[%s2223 + $0x21] sm:$0xff]
      %v2325 = vld [vmem:[%s2223 + $0x31] sm:$0xff]
      %v2326 = vld [vmem:[%s2223 + $0x39] sm:$0xff]
      %v2327 = vld [vmem:[%s2223 + $0x49] sm:$0xff]
      %v2328 = vld [vmem:[%s2223 + $0x51] sm:$0xff]
      %v2329 = vld [vmem:[%s2223 + $0x61] sm:$0xff]
      %v2330 = vld [vmem:[%s2223 + $0x69] sm:$0xff]
      %v2331 = vld [vmem:[%s2223 + $0x79] sm:$0xff]
      %v2332 = vld [vmem:[%s2223 + $0x81] sm:$0xff]
      %v2333 = vld [vmem:[%s2223 + $0x91] sm:$0xff]
      %v2334 = vld [vmem:[%s2223 + $0x99] sm:$0xff]
      %v2335 = vld [vmem:[%s2223 + $0xa9] sm:$0xff]
      %v2336 = vld [vmem:[%s2223 + $0xb1] sm:$0xff]
      %2353 = vrot.lane.b32.xlu0 %v2321, 88
      %v2354 = vpop.permute.xlu0 %2353
      %2355 = vrot.lane.b32.xlu0 %v2322, 88
      %v2356 = vpop.permute.xlu0 %2355
      %2357 = vrot.lane.b32.xlu0 %v2323, 88
      %v2358 = vpop.permute.xlu0 %2357
      %2359 = vrot.lane.b32.xlu0 %v2324, 88
      %v2360 = vpop.permute.xlu0 %2359
      %2361 = vrot.lane.b32.xlu0 %v2325, 88
      %v2362 = vpop.permute.xlu0 %2361
      %2363 = vrot.lane.b32.xlu0 %v2326, 88
      %v2364 = vpop.permute.xlu0 %2363
      %2365 = vrot.lane.b32.xlu0 %v2327, 88
      %v2366 = vpop.permute.xlu0 %2365
      %2367 = vrot.lane.b32.xlu0 %v2328, 88
      %v2368 = vpop.permute.xlu0 %2367
      %2369 = vrot.lane.b32.xlu0 %v2329, 88
      %v2370 = vpop.permute.xlu0 %2369
      %2371 = vrot.lane.b32.xlu0 %v2330, 88
      %v2372 = vpop.permute.xlu0 %2371
      %2373 = vrot.lane.b32.xlu0 %v2331, 88
      %v2374 = vpop.permute.xlu0 %2373
      %2375 = vrot.lane.b32.xlu0 %v2332, 88
      %v2376 = vpop.permute.xlu0 %2375
      %2377 = vrot.lane.b32.xlu0 %v2333, 88
      %v2378 = vpop.permute.xlu0 %2377
      %2379 = vrot.lane.b32.xlu0 %v2334, 88
      %v2380 = vpop.permute.xlu0 %2379
      %2381 = vrot.lane.b32.xlu0 %v2335, 88
      %v2382 = vpop.permute.xlu0 %2381
      %2383 = vrot.lane.b32.xlu0 %v2336, 88
      %v2384 = vpop.permute.xlu0 %2383
      %vm2401 = vcmask 753344
      %2402 = vst.msk [vmem:[#allocation2] sm:$0xff] %vm2401, %v2354
      %2403 = vst.msk [vmem:[#allocation2 + $0x10] sm:$0xff] %vm2401, %v2356
      %2404 = vst.msk [vmem:[#allocation2 + $0x20] sm:$0xff] %vm2401, %v2358
      %2405 = vst.msk [vmem:[#allocation2 + $0x30] sm:$0xff] %vm2401, %v2360
      %2406 = vst.msk [vmem:[#allocation2 + $0x40] sm:$0xff] %vm2401, %v2362
      %2407 = vst.msk [vmem:[#allocation2 + $0x50] sm:$0xff] %vm2401, %v2364
      %2408 = vst.msk [vmem:[#allocation2 + $0x60] sm:$0xff] %vm2401, %v2366
      %2409 = vst.msk [vmem:[#allocation2 + $0x70] sm:$0xff] %vm2401, %v2368
      %2410 = vst.msk [vmem:[#allocation2 + $0x80] sm:$0xff] %vm2401, %v2370
      %2411 = vst.msk [vmem:[#allocation2 + $0x90] sm:$0xff] %vm2401, %v2372
      %2412 = vst.msk [vmem:[#allocation2 + $0xa0] sm:$0xff] %vm2401, %v2374
      %2413 = vst.msk [vmem:[#allocation2 + $0xb0] sm:$0xff] %vm2401, %v2376
      %2414 = vst.msk [vmem:[#allocation2 + $0xc0] sm:$0xff] %vm2401, %v2378
      %2415 = vst.msk [vmem:[#allocation2 + $0xd0] sm:$0xff] %vm2401, %v2380
      %2416 = vst.msk [vmem:[#allocation2 + $0xe0] sm:$0xff] %vm2401, %v2382
      %2417 = vst.msk [vmem:[#allocation2 + $0xf0] sm:$0xff] %vm2401, %v2384
      %v2418 = vld [vmem:[%s2223 + $0x2] sm:$0xff]
      %v2419 = vld [vmem:[%s2223 + $0xa] sm:$0xff]
      %v2420 = vld [vmem:[%s2223 + $0x1a] sm:$0xff]
      %v2421 = vld [vmem:[%s2223 + $0x22] sm:$0xff]
      %v2422 = vld [vmem:[%s2223 + $0x32] sm:$0xff]
      %v2423 = vld [vmem:[%s2223 + $0x3a] sm:$0xff]
      %v2424 = vld [vmem:[%s2223 + $0x4a] sm:$0xff]
      %v2425 = vld [vmem:[%s2223 + $0x52] sm:$0xff]
      %v2426 = vld [vmem:[%s2223 + $0x62] sm:$0xff]
      %v2427 = vld [vmem:[%s2223 + $0x6a] sm:$0xff]
      %v2428 = vld [vmem:[%s2223 + $0x7a] sm:$0xff]
      %v2429 = vld [vmem:[%s2223 + $0x82] sm:$0xff]
      %v2430 = vld [vmem:[%s2223 + $0x92] sm:$0xff]
      %v2431 = vld [vmem:[%s2223 + $0x9a] sm:$0xff]
      %v2432 = vld [vmem:[%s2223 + $0xaa] sm:$0xff]
      %v2433 = vld [vmem:[%s2223 + $0xb2] sm:$0xff]
      %2450 = vrot.lane.b32.xlu0 %v2418, 92
      %v2451 = vpop.permute.xlu0 %2450
      %2452 = vrot.lane.b32.xlu0 %v2419, 92
      %v2453 = vpop.permute.xlu0 %2452
      %2454 = vrot.lane.b32.xlu0 %v2420, 92
      %v2455 = vpop.permute.xlu0 %2454
      %2456 = vrot.lane.b32.xlu0 %v2421, 92
      %v2457 = vpop.permute.xlu0 %2456
      %2458 = vrot.lane.b32.xlu0 %v2422, 92
      %v2459 = vpop.permute.xlu0 %2458
      %2460 = vrot.lane.b32.xlu0 %v2423, 92
      %v2461 = vpop.permute.xlu0 %2460
      %2462 = vrot.lane.b32.xlu0 %v2424, 92
      %v2463 = vpop.permute.xlu0 %2462
      %2464 = vrot.lane.b32.xlu0 %v2425, 92
      %v2465 = vpop.permute.xlu0 %2464
      %2466 = vrot.lane.b32.xlu0 %v2426, 92
      %v2467 = vpop.permute.xlu0 %2466
      %2468 = vrot.lane.b32.xlu0 %v2427, 92
      %v2469 = vpop.permute.xlu0 %2468
      %2470 = vrot.lane.b32.xlu0 %v2428, 92
      %v2471 = vpop.permute.xlu0 %2470
      %2472 = vrot.lane.b32.xlu0 %v2429, 92
      %v2473 = vpop.permute.xlu0 %2472
      %2474 = vrot.lane.b32.xlu0 %v2430, 92
      %v2475 = vpop.permute.xlu0 %2474
      %2476 = vrot.lane.b32.xlu0 %v2431, 92
      %v2477 = vpop.permute.xlu0 %2476
      %2478 = vrot.lane.b32.xlu0 %v2432, 92
      %v2479 = vpop.permute.xlu0 %2478
      %2480 = vrot.lane.b32.xlu0 %v2433, 92
      %v2481 = vpop.permute.xlu0 %2480
      %vm2498 = vcmask 786144
      %2499 = vst.msk [vmem:[#allocation2] sm:$0xff] %vm2498, %v2451
      %2500 = vst.msk [vmem:[#allocation2 + $0x10] sm:$0xff] %vm2498, %v2453
      %2501 = vst.msk [vmem:[#allocation2 + $0x20] sm:$0xff] %vm2498, %v2455
      %2502 = vst.msk [vmem:[#allocation2 + $0x30] sm:$0xff] %vm2498, %v2457
      %2503 = vst.msk [vmem:[#allocation2 + $0x40] sm:$0xff] %vm2498, %v2459
      %2504 = vst.msk [vmem:[#allocation2 + $0x50] sm:$0xff] %vm2498, %v2461
      %2505 = vst.msk [vmem:[#allocation2 + $0x60] sm:$0xff] %vm2498, %v2463
      %2506 = vst.msk [vmem:[#allocation2 + $0x70] sm:$0xff] %vm2498, %v2465
      %2507 = vst.msk [vmem:[#allocation2 + $0x80] sm:$0xff] %vm2498, %v2467
      %2508 = vst.msk [vmem:[#allocation2 + $0x90] sm:$0xff] %vm2498, %v2469
      %2509 = vst.msk [vmem:[#allocation2 + $0xa0] sm:$0xff] %vm2498, %v2471
      %2510 = vst.msk [vmem:[#allocation2 + $0xb0] sm:$0xff] %vm2498, %v2473
      %2511 = vst.msk [vmem:[#allocation2 + $0xc0] sm:$0xff] %vm2498, %v2475
      %2512 = vst.msk [vmem:[#allocation2 + $0xd0] sm:$0xff] %vm2498, %v2477
      %2513 = vst.msk [vmem:[#allocation2 + $0xe0] sm:$0xff] %vm2498, %v2479
      %2514 = vst.msk [vmem:[#allocation2 + $0xf0] sm:$0xff] %vm2498, %v2481
      %v2515 = vld [vmem:[%s2223 + $0x3] sm:$0xff]
      %v2516 = vld [vmem:[%s2223 + $0xb] sm:$0xff]
      %v2517 = vld [vmem:[%s2223 + $0x1b] sm:$0xff]
      %v2518 = vld [vmem:[%s2223 + $0x23] sm:$0xff]
      %v2519 = vld [vmem:[%s2223 + $0x33] sm:$0xff]
      %v2520 = vld [vmem:[%s2223 + $0x3b] sm:$0xff]
      %v2521 = vld [vmem:[%s2223 + $0x4b] sm:$0xff]
      %v2522 = vld [vmem:[%s2223 + $0x53] sm:$0xff]
      %v2523 = vld [vmem:[%s2223 + $0x63] sm:$0xff]
      %v2524 = vld [vmem:[%s2223 + $0x6b] sm:$0xff]
      %v2525 = vld [vmem:[%s2223 + $0x7b] sm:$0xff]
      %v2526 = vld [vmem:[%s2223 + $0x83] sm:$0xff]
      %v2527 = vld [vmem:[%s2223 + $0x93] sm:$0xff]
      %v2528 = vld [vmem:[%s2223 + $0x9b] sm:$0xff]
      %v2529 = vld [vmem:[%s2223 + $0xab] sm:$0xff]
      %v2530 = vld [vmem:[%s2223 + $0xb3] sm:$0xff]
      %2547 = vrot.lane.b32.xlu0 %v2515, 96
      %v2548 = vpop.permute.xlu0 %2547
      %2549 = vrot.lane.b32.xlu0 %v2516, 96
      %v2550 = vpop.permute.xlu0 %2549
      %2551 = vrot.lane.b32.xlu0 %v2517, 96
      %v2552 = vpop.permute.xlu0 %2551
      %2553 = vrot.lane.b32.xlu0 %v2518, 96
      %v2554 = vpop.permute.xlu0 %2553
      %2555 = vrot.lane.b32.xlu0 %v2519, 96
      %v2556 = vpop.permute.xlu0 %2555
      %2557 = vrot.lane.b32.xlu0 %v2520, 96
      %v2558 = vpop.permute.xlu0 %2557
      %2559 = vrot.lane.b32.xlu0 %v2521, 96
      %v2560 = vpop.permute.xlu0 %2559
      %2561 = vrot.lane.b32.xlu0 %v2522, 96
      %v2562 = vpop.permute.xlu0 %2561
      %2563 = vrot.lane.b32.xlu0 %v2523, 96
      %v2564 = vpop.permute.xlu0 %2563
      %2565 = vrot.lane.b32.xlu0 %v2524, 96
      %v2566 = vpop.permute.xlu0 %2565
      %2567 = vrot.lane.b32.xlu0 %v2525, 96
      %v2568 = vpop.permute.xlu0 %2567
      %2569 = vrot.lane.b32.xlu0 %v2526, 96
      %v2570 = vpop.permute.xlu0 %2569
      %2571 = vrot.lane.b32.xlu0 %v2527, 96
      %v2572 = vpop.permute.xlu0 %2571
      %2573 = vrot.lane.b32.xlu0 %v2528, 96
      %v2574 = vpop.permute.xlu0 %2573
      %2575 = vrot.lane.b32.xlu0 %v2529, 96
      %v2576 = vpop.permute.xlu0 %2575
      %2577 = vrot.lane.b32.xlu0 %v2530, 96
      %v2578 = vpop.permute.xlu0 %2577
      %vm2595 = vcmask 818944
      %2596 = vst.msk [vmem:[#allocation2] sm:$0xff] %vm2595, %v2548
      %2597 = vst.msk [vmem:[#allocation2 + $0x10] sm:$0xff] %vm2595, %v2550
      %2598 = vst.msk [vmem:[#allocation2 + $0x20] sm:$0xff] %vm2595, %v2552
      %2599 = vst.msk [vmem:[#allocation2 + $0x30] sm:$0xff] %vm2595, %v2554
      %2600 = vst.msk [vmem:[#allocation2 + $0x40] sm:$0xff] %vm2595, %v2556
      %2601 = vst.msk [vmem:[#allocation2 + $0x50] sm:$0xff] %vm2595, %v2558
      %2602 = vst.msk [vmem:[#allocation2 + $0x60] sm:$0xff] %vm2595, %v2560
      %2603 = vst.msk [vmem:[#allocation2 + $0x70] sm:$0xff] %vm2595, %v2562
      %2604 = vst.msk [vmem:[#allocation2 + $0x80] sm:$0xff] %vm2595, %v2564
      %2605 = vst.msk [vmem:[#allocation2 + $0x90] sm:$0xff] %vm2595, %v2566
      %2606 = vst.msk [vmem:[#allocation2 + $0xa0] sm:$0xff] %vm2595, %v2568
      %2607 = vst.msk [vmem:[#allocation2 + $0xb0] sm:$0xff] %vm2595, %v2570
      %2608 = vst.msk [vmem:[#allocation2 + $0xc0] sm:$0xff] %vm2595, %v2572
      %2609 = vst.msk [vmem:[#allocation2 + $0xd0] sm:$0xff] %vm2595, %v2574
      %2610 = vst.msk [vmem:[#allocation2 + $0xe0] sm:$0xff] %vm2595, %v2576
      %2611 = vst.msk [vmem:[#allocation2 + $0xf0] sm:$0xff] %vm2595, %v2578
      %v2612 = vld [vmem:[%s2223 + $0x4] sm:$0xff]
      %v2613 = vld [vmem:[%s2223 + $0xc] sm:$0xff]
      %v2614 = vld [vmem:[%s2223 + $0x1c] sm:$0xff]
      %v2615 = vld [vmem:[%s2223 + $0x24] sm:$0xff]
      %v2616 = vld [vmem:[%s2223 + $0x34] sm:$0xff]
      %v2617 = vld [vmem:[%s2223 + $0x3c] sm:$0xff]
      %v2618 = vld [vmem:[%s2223 + $0x4c] sm:$0xff]
      %v2619 = vld [vmem:[%s2223 + $0x54] sm:$0xff]
      %v2620 = vld [vmem:[%s2223 + $0x64] sm:$0xff]
      %v2621 = vld [vmem:[%s2223 + $0x6c] sm:$0xff]
      %v2622 = vld [vmem:[%s2223 + $0x7c] sm:$0xff]
      %v2623 = vld [vmem:[%s2223 + $0x84] sm:$0xff]
      %v2624 = vld [vmem:[%s2223 + $0x94] sm:$0xff]
      %v2625 = vld [vmem:[%s2223 + $0x9c] sm:$0xff]
      %v2626 = vld [vmem:[%s2223 + $0xac] sm:$0xff]
      %v2627 = vld [vmem:[%s2223 + $0xb4] sm:$0xff]
      %2644 = vrot.lane.b32.xlu0 %v2612, 100
      %v2645 = vpop.permute.xlu0 %2644
      %2646 = vrot.lane.b32.xlu0 %v2613, 100
      %v2647 = vpop.permute.xlu0 %2646
      %2648 = vrot.lane.b32.xlu0 %v2614, 100
      %v2649 = vpop.permute.xlu0 %2648
      %2650 = vrot.lane.b32.xlu0 %v2615, 100
      %v2651 = vpop.permute.xlu0 %2650
      %2652 = vrot.lane.b32.xlu0 %v2616, 100
      %v2653 = vpop.permute.xlu0 %2652
      %2654 = vrot.lane.b32.xlu0 %v2617, 100
      %v2655 = vpop.permute.xlu0 %2654
      %2656 = vrot.lane.b32.xlu0 %v2618, 100
      %v2657 = vpop.permute.xlu0 %2656
      %2658 = vrot.lane.b32.xlu0 %v2619, 100
      %v2659 = vpop.permute.xlu0 %2658
      %2660 = vrot.lane.b32.xlu0 %v2620, 100
      %v2661 = vpop.permute.xlu0 %2660
      %2662 = vrot.lane.b32.xlu0 %v2621, 100
      %v2663 = vpop.permute.xlu0 %2662
      %2664 = vrot.lane.b32.xlu0 %v2622, 100
      %v2665 = vpop.permute.xlu0 %2664
      %2666 = vrot.lane.b32.xlu0 %v2623, 100
      %v2667 = vpop.permute.xlu0 %2666
      %2668 = vrot.lane.b32.xlu0 %v2624, 100
      %v2669 = vpop.permute.xlu0 %2668
      %2670 = vrot.lane.b32.xlu0 %v2625, 100
      %v2671 = vpop.permute.xlu0 %2670
      %2672 = vrot.lane.b32.xlu0 %v2626, 100
      %v2673 = vpop.permute.xlu0 %2672
      %2674 = vrot.lane.b32.xlu0 %v2627, 100
      %v2675 = vpop.permute.xlu0 %2674
      %vm2692 = vcmask 851744
      %2693 = vst.msk [vmem:[#allocation2] sm:$0xff] %vm2692, %v2645
      %2694 = vst.msk [vmem:[#allocation2 + $0x10] sm:$0xff] %vm2692, %v2647
      %2695 = vst.msk [vmem:[#allocation2 + $0x20] sm:$0xff] %vm2692, %v2649
      %2696 = vst.msk [vmem:[#allocation2 + $0x30] sm:$0xff] %vm2692, %v2651
      %2697 = vst.msk [vmem:[#allocation2 + $0x40] sm:$0xff] %vm2692, %v2653
      %2698 = vst.msk [vmem:[#allocation2 + $0x50] sm:$0xff] %vm2692, %v2655
      %2699 = vst.msk [vmem:[#allocation2 + $0x60] sm:$0xff] %vm2692, %v2657
      %2700 = vst.msk [vmem:[#allocation2 + $0x70] sm:$0xff] %vm2692, %v2659
      %2701 = vst.msk [vmem:[#allocation2 + $0x80] sm:$0xff] %vm2692, %v2661
      %2702 = vst.msk [vmem:[#allocation2 + $0x90] sm:$0xff] %vm2692, %v2663
      %2703 = vst.msk [vmem:[#allocation2 + $0xa0] sm:$0xff] %vm2692, %v2665
      %2704 = vst.msk [vmem:[#allocation2 + $0xb0] sm:$0xff] %vm2692, %v2667
      %2705 = vst.msk [vmem:[#allocation2 + $0xc0] sm:$0xff] %vm2692, %v2669
      %2706 = vst.msk [vmem:[#allocation2 + $0xd0] sm:$0xff] %vm2692, %v2671
      %2707 = vst.msk [vmem:[#allocation2 + $0xe0] sm:$0xff] %vm2692, %v2673
      %2708 = vst.msk [vmem:[#allocation2 + $0xf0] sm:$0xff] %vm2692, %v2675
      %v2709 = vld [vmem:[%s2223 + $0x5] sm:$0xff]
      %v2710 = vld [vmem:[%s2223 + $0xd] sm:$0xff]
      %v2711 = vld [vmem:[%s2223 + $0x1d] sm:$0xff]
      %v2712 = vld [vmem:[%s2223 + $0x25] sm:$0xff]
      %v2713 = vld [vmem:[%s2223 + $0x35] sm:$0xff]
      %v2714 = vld [vmem:[%s2223 + $0x3d] sm:$0xff]
      %v2715 = vld [vmem:[%s2223 + $0x4d] sm:$0xff]
      %v2716 = vld [vmem:[%s2223 + $0x55] sm:$0xff]
      %v2717 = vld [vmem:[%s2223 + $0x65] sm:$0xff]
      %v2718 = vld [vmem:[%s2223 + $0x6d] sm:$0xff]
      %v2719 = vld [vmem:[%s2223 + $0x7d] sm:$0xff]
      %v2720 = vld [vmem:[%s2223 + $0x85] sm:$0xff]
      %v2721 = vld [vmem:[%s2223 + $0x95] sm:$0xff]
      %v2722 = vld [vmem:[%s2223 + $0x9d] sm:$0xff]
      %v2723 = vld [vmem:[%s2223 + $0xad] sm:$0xff]
      %v2724 = vld [vmem:[%s2223 + $0xb5] sm:$0xff]
      %2741 = vrot.lane.b32.xlu0 %v2709, 104
      %v2742 = vpop.permute.xlu0 %2741
      %2743 = vrot.lane.b32.xlu0 %v2710, 104
      %v2744 = vpop.permute.xlu0 %2743
      %2745 = vrot.lane.b32.xlu0 %v2711, 104
      %v2746 = vpop.permute.xlu0 %2745
      %2747 = vrot.lane.b32.xlu0 %v2712, 104
      %v2748 = vpop.permute.xlu0 %2747
      %2749 = vrot.lane.b32.xlu0 %v2713, 104
      %v2750 = vpop.permute.xlu0 %2749
      %2751 = vrot.lane.b32.xlu0 %v2714, 104
      %v2752 = vpop.permute.xlu0 %2751
      %2753 = vrot.lane.b32.xlu0 %v2715, 104
      %v2754 = vpop.permute.xlu0 %2753
      %2755 = vrot.lane.b32.xlu0 %v2716, 104
      %v2756 = vpop.permute.xlu0 %2755
      %2757 = vrot.lane.b32.xlu0 %v2717, 104
      %v2758 = vpop.permute.xlu0 %2757
      %2759 = vrot.lane.b32.xlu0 %v2718, 104
      %v2760 = vpop.permute.xlu0 %2759
      %2761 = vrot.lane.b32.xlu0 %v2719, 104
      %v2762 = vpop.permute.xlu0 %2761
      %2763 = vrot.lane.b32.xlu0 %v2720, 104
      %v2764 = vpop.permute.xlu0 %2763
      %2765 = vrot.lane.b32.xlu0 %v2721, 104
      %v2766 = vpop.permute.xlu0 %2765
      %2767 = vrot.lane.b32.xlu0 %v2722, 104
      %v2768 = vpop.permute.xlu0 %2767
      %2769 = vrot.lane.b32.xlu0 %v2723, 104
      %v2770 = vpop.permute.xlu0 %2769
      %2771 = vrot.lane.b32.xlu0 %v2724, 104
      %v2772 = vpop.permute.xlu0 %2771
      %vm2789 = vcmask 884544
      %2790 = vst.msk [vmem:[#allocation2] sm:$0xff] %vm2789, %v2742
      %2791 = vst.msk [vmem:[#allocation2 + $0x10] sm:$0xff] %vm2789, %v2744
      %2792 = vst.msk [vmem:[#allocation2 + $0x20] sm:$0xff] %vm2789, %v2746
      %2793 = vst.msk [vmem:[#allocation2 + $0x30] sm:$0xff] %vm2789, %v2748
      %2794 = vst.msk [vmem:[#allocation2 + $0x40] sm:$0xff] %vm2789, %v2750
      %2795 = vst.msk [vmem:[#allocation2 + $0x50] sm:$0xff] %vm2789, %v2752
      %2796 = vst.msk [vmem:[#allocation2 + $0x60] sm:$0xff] %vm2789, %v2754
      %2797 = vst.msk [vmem:[#allocation2 + $0x70] sm:$0xff] %vm2789, %v2756
      %2798 = vst.msk [vmem:[#allocation2 + $0x80] sm:$0xff] %vm2789, %v2758
      %2799 = vst.msk [vmem:[#allocation2 + $0x90] sm:$0xff] %vm2789, %v2760
      %2800 = vst.msk [vmem:[#allocation2 + $0xa0] sm:$0xff] %vm2789, %v2762
      %2801 = vst.msk [vmem:[#allocation2 + $0xb0] sm:$0xff] %vm2789, %v2764
      %2802 = vst.msk [vmem:[#allocation2 + $0xc0] sm:$0xff] %vm2789, %v2766
      %2803 = vst.msk [vmem:[#allocation2 + $0xd0] sm:$0xff] %vm2789, %v2768
      %2804 = vst.msk [vmem:[#allocation2 + $0xe0] sm:$0xff] %vm2789, %v2770
      %2805 = vst.msk [vmem:[#allocation2 + $0xf0] sm:$0xff] %vm2789, %v2772
      %v2806 = vld [vmem:[%s2223 + $0x6] sm:$0xff]
      %v2807 = vld [vmem:[%s2223 + $0xe] sm:$0xff]
      %v2808 = vld [vmem:[%s2223 + $0x1e] sm:$0xff]
      %v2809 = vld [vmem:[%s2223 + $0x26] sm:$0xff]
      %v2810 = vld [vmem:[%s2223 + $0x36] sm:$0xff]
      %v2811 = vld [vmem:[%s2223 + $0x3e] sm:$0xff]
      %v2812 = vld [vmem:[%s2223 + $0x4e] sm:$0xff]
      %v2813 = vld [vmem:[%s2223 + $0x56] sm:$0xff]
      %v2814 = vld [vmem:[%s2223 + $0x66] sm:$0xff]
      %v2815 = vld [vmem:[%s2223 + $0x6e] sm:$0xff]
      %v2816 = vld [vmem:[%s2223 + $0x7e] sm:$0xff]
      %v2817 = vld [vmem:[%s2223 + $0x86] sm:$0xff]
      %v2818 = vld [vmem:[%s2223 + $0x96] sm:$0xff]
      %v2819 = vld [vmem:[%s2223 + $0x9e] sm:$0xff]
      %v2820 = vld [vmem:[%s2223 + $0xae] sm:$0xff]
      %v2821 = vld [vmem:[%s2223 + $0xb6] sm:$0xff]
      %2838 = vrot.lane.b32.xlu0 %v2806, 108
      %v2839 = vpop.permute.xlu0 %2838
      %2840 = vrot.lane.b32.xlu0 %v2807, 108
      %v2841 = vpop.permute.xlu0 %2840
      %2842 = vrot.lane.b32.xlu0 %v2808, 108
      %v2843 = vpop.permute.xlu0 %2842
      %2844 = vrot.lane.b32.xlu0 %v2809, 108
      %v2845 = vpop.permute.xlu0 %2844
      %2846 = vrot.lane.b32.xlu0 %v2810, 108
      %v2847 = vpop.permute.xlu0 %2846
      %2848 = vrot.lane.b32.xlu0 %v2811, 108
      %v2849 = vpop.permute.xlu0 %2848
      %2850 = vrot.lane.b32.xlu0 %v2812, 108
      %v2851 = vpop.permute.xlu0 %2850
      %2852 = vrot.lane.b32.xlu0 %v2813, 108
      %v2853 = vpop.permute.xlu0 %2852
      %2854 = vrot.lane.b32.xlu0 %v2814, 108
      %v2855 = vpop.permute.xlu0 %2854
      %2856 = vrot.lane.b32.xlu0 %v2815, 108
      %v2857 = vpop.permute.xlu0 %2856
      %2858 = vrot.lane.b32.xlu0 %v2816, 108
      %v2859 = vpop.permute.xlu0 %2858
      %2860 = vrot.lane.b32.xlu0 %v2817, 108
      %v2861 = vpop.permute.xlu0 %2860
      %2862 = vrot.lane.b32.xlu0 %v2818, 108
      %v2863 = vpop.permute.xlu0 %2862
      %2864 = vrot.lane.b32.xlu0 %v2819, 108
      %v2865 = vpop.permute.xlu0 %2864
      %2866 = vrot.lane.b32.xlu0 %v2820, 108
      %v2867 = vpop.permute.xlu0 %2866
      %2868 = vrot.lane.b32.xlu0 %v2821, 108
      %v2869 = vpop.permute.xlu0 %2868
      %vm2886 = vcmask 917344
      %2887 = vst.msk [vmem:[#allocation2] sm:$0xff] %vm2886, %v2839
      %2888 = vst.msk [vmem:[#allocation2 + $0x10] sm:$0xff] %vm2886, %v2841
      %2889 = vst.msk [vmem:[#allocation2 + $0x20] sm:$0xff] %vm2886, %v2843
      %2890 = vst.msk [vmem:[#allocation2 + $0x30] sm:$0xff] %vm2886, %v2845
      %2891 = vst.msk [vmem:[#allocation2 + $0x40] sm:$0xff] %vm2886, %v2847
      %2892 = vst.msk [vmem:[#allocation2 + $0x50] sm:$0xff] %vm2886, %v2849
      %2893 = vst.msk [vmem:[#allocation2 + $0x60] sm:$0xff] %vm2886, %v2851
      %2894 = vst.msk [vmem:[#allocation2 + $0x70] sm:$0xff] %vm2886, %v2853
      %2895 = vst.msk [vmem:[#allocation2 + $0x80] sm:$0xff] %vm2886, %v2855
      %2896 = vst.msk [vmem:[#allocation2 + $0x90] sm:$0xff] %vm2886, %v2857
      %2897 = vst.msk [vmem:[#allocation2 + $0xa0] sm:$0xff] %vm2886, %v2859
      %2898 = vst.msk [vmem:[#allocation2 + $0xb0] sm:$0xff] %vm2886, %v2861
      %2899 = vst.msk [vmem:[#allocation2 + $0xc0] sm:$0xff] %vm2886, %v2863
      %2900 = vst.msk [vmem:[#allocation2 + $0xd0] sm:$0xff] %vm2886, %v2865
      %2901 = vst.msk [vmem:[#allocation2 + $0xe0] sm:$0xff] %vm2886, %v2867
      %2902 = vst.msk [vmem:[#allocation2 + $0xf0] sm:$0xff] %vm2886, %v2869
      %s2903 = sadd.s32 %s222, 4
      %s2904 = smul.u32 %s2903, 24
      %s2905 = scalar_lea.vmem %s221, %s2904
      %v2906 = vld [vmem:[%s2905] sm:$0xff]
      %v2907 = vld [vmem:[%s2905 + $0x8] sm:$0xff]
      %v2908 = vld [vmem:[%s2905 + $0x18] sm:$0xff]
      %v2909 = vld [vmem:[%s2905 + $0x20] sm:$0xff]
      %v2910 = vld [vmem:[%s2905 + $0x30] sm:$0xff]
      %v2911 = vld [vmem:[%s2905 + $0x38] sm:$0xff]
      %v2912 = vld [vmem:[%s2905 + $0x48] sm:$0xff]
      %v2913 = vld [vmem:[%s2905 + $0x50] sm:$0xff]
      %v2914 = vld [vmem:[%s2905 + $0x60] sm:$0xff]
      %v2915 = vld [vmem:[%s2905 + $0x68] sm:$0xff]
      %v2916 = vld [vmem:[%s2905 + $0x78] sm:$0xff]
      %v2917 = vld [vmem:[%s2905 + $0x80] sm:$0xff]
      %v2918 = vld [vmem:[%s2905 + $0x90] sm:$0xff]
      %v2919 = vld [vmem:[%s2905 + $0x98] sm:$0xff]
      %v2920 = vld [vmem:[%s2905 + $0xa8] sm:$0xff]
      %v2921 = vld [vmem:[%s2905 + $0xb0] sm:$0xff]
      %2938 = vrot.lane.b32.xlu0 %v2906, 112
      %v2939 = vpop.permute.xlu0 %2938
      %2940 = vrot.lane.b32.xlu0 %v2907, 112
      %v2941 = vpop.permute.xlu0 %2940
      %2942 = vrot.lane.b32.xlu0 %v2908, 112
      %v2943 = vpop.permute.xlu0 %2942
      %2944 = vrot.lane.b32.xlu0 %v2909, 112
      %v2945 = vpop.permute.xlu0 %2944
      %2946 = vrot.lane.b32.xlu0 %v2910, 112
      %v2947 = vpop.permute.xlu0 %2946
      %2948 = vrot.lane.b32.xlu0 %v2911, 112
      %v2949 = vpop.permute.xlu0 %2948
      %2950 = vrot.lane.b32.xlu0 %v2912, 112
      %v2951 = vpop.permute.xlu0 %2950
      %2952 = vrot.lane.b32.xlu0 %v2913, 112
      %v2953 = vpop.permute.xlu0 %2952
      %2954 = vrot.lane.b32.xlu0 %v2914, 112
      %v2955 = vpop.permute.xlu0 %2954
      %2956 = vrot.lane.b32.xlu0 %v2915, 112
      %v2957 = vpop.permute.xlu0 %2956
      %2958 = vrot.lane.b32.xlu0 %v2916, 112
      %v2959 = vpop.permute.xlu0 %2958
      %2960 = vrot.lane.b32.xlu0 %v2917, 112
      %v2961 = vpop.permute.xlu0 %2960
      %2962 = vrot.lane.b32.xlu0 %v2918, 112
      %v2963 = vpop.permute.xlu0 %2962
      %2964 = vrot.lane.b32.xlu0 %v2919, 112
      %v2965 = vpop.permute.xlu0 %2964
      %2966 = vrot.lane.b32.xlu0 %v2920, 112
      %v2967 = vpop.permute.xlu0 %2966
      %2968 = vrot.lane.b32.xlu0 %v2921, 112
      %v2969 = vpop.permute.xlu0 %2968
      %vm2986 = vcmask 950144
      %2987 = vst.msk [vmem:[#allocation2] sm:$0xff] %vm2986, %v2939
      %2988 = vst.msk [vmem:[#allocation2 + $0x10] sm:$0xff] %vm2986, %v2941
      %2989 = vst.msk [vmem:[#allocation2 + $0x20] sm:$0xff] %vm2986, %v2943
      %2990 = vst.msk [vmem:[#allocation2 + $0x30] sm:$0xff] %vm2986, %v2945
      %2991 = vst.msk [vmem:[#allocation2 + $0x40] sm:$0xff] %vm2986, %v2947
      %2992 = vst.msk [vmem:[#allocation2 + $0x50] sm:$0xff] %vm2986, %v2949
      %2993 = vst.msk [vmem:[#allocation2 + $0x60] sm:$0xff] %vm2986, %v2951
      %2994 = vst.msk [vmem:[#allocation2 + $0x70] sm:$0xff] %vm2986, %v2953
      %2995 = vst.msk [vmem:[#allocation2 + $0x80] sm:$0xff] %vm2986, %v2955
      %2996 = vst.msk [vmem:[#allocation2 + $0x90] sm:$0xff] %vm2986, %v2957
      %2997 = vst.msk [vmem:[#allocation2 + $0xa0] sm:$0xff] %vm2986, %v2959
      %2998 = vst.msk [vmem:[#allocation2 + $0xb0] sm:$0xff] %vm2986, %v2961
      %2999 = vst.msk [vmem:[#allocation2 + $0xc0] sm:$0xff] %vm2986, %v2963
      %3000 = vst.msk [vmem:[#allocation2 + $0xd0] sm:$0xff] %vm2986, %v2965
      %3001 = vst.msk [vmem:[#allocation2 + $0xe0] sm:$0xff] %vm2986, %v2967
      %3002 = vst.msk [vmem:[#allocation2 + $0xf0] sm:$0xff] %vm2986, %v2969
      %v3003 = vld [vmem:[%s2905 + $0x1] sm:$0xff]
      %v3004 = vld [vmem:[%s2905 + $0x9] sm:$0xff]
      %v3005 = vld [vmem:[%s2905 + $0x19] sm:$0xff]
      %v3006 = vld [vmem:[%s2905 + $0x21] sm:$0xff]
      %v3007 = vld [vmem:[%s2905 + $0x31] sm:$0xff]
      %v3008 = vld [vmem:[%s2905 + $0x39] sm:$0xff]
      %v3009 = vld [vmem:[%s2905 + $0x49] sm:$0xff]
      %v3010 = vld [vmem:[%s2905 + $0x51] sm:$0xff]
      %v3011 = vld [vmem:[%s2905 + $0x61] sm:$0xff]
      %v3012 = vld [vmem:[%s2905 + $0x69] sm:$0xff]
      %v3013 = vld [vmem:[%s2905 + $0x79] sm:$0xff]
      %v3014 = vld [vmem:[%s2905 + $0x81] sm:$0xff]
      %v3015 = vld [vmem:[%s2905 + $0x91] sm:$0xff]
      %v3016 = vld [vmem:[%s2905 + $0x99] sm:$0xff]
      %v3017 = vld [vmem:[%s2905 + $0xa9] sm:$0xff]
      %v3018 = vld [vmem:[%s2905 + $0xb1] sm:$0xff]
      %3035 = vrot.lane.b32.xlu0 %v3003, 116
      %v3036 = vpop.permute.xlu0 %3035
      %3037 = vrot.lane.b32.xlu0 %v3004, 116
      %v3038 = vpop.permute.xlu0 %3037
      %3039 = vrot.lane.b32.xlu0 %v3005, 116
      %v3040 = vpop.permute.xlu0 %3039
      %3041 = vrot.lane.b32.xlu0 %v3006, 116
      %v3042 = vpop.permute.xlu0 %3041
      %3043 = vrot.lane.b32.xlu0 %v3007, 116
      %v3044 = vpop.permute.xlu0 %3043
      %3045 = vrot.lane.b32.xlu0 %v3008, 116
      %v3046 = vpop.permute.xlu0 %3045
      %3047 = vrot.lane.b32.xlu0 %v3009, 116
      %v3048 = vpop.permute.xlu0 %3047
      %3049 = vrot.lane.b32.xlu0 %v3010, 116
      %v3050 = vpop.permute.xlu0 %3049
      %3051 = vrot.lane.b32.xlu0 %v3011, 116
      %v3052 = vpop.permute.xlu0 %3051
      %3053 = vrot.lane.b32.xlu0 %v3012, 116
      %v3054 = vpop.permute.xlu0 %3053
      %3055 = vrot.lane.b32.xlu0 %v3013, 116
      %v3056 = vpop.permute.xlu0 %3055
      %3057 = vrot.lane.b32.xlu0 %v3014, 116
      %v3058 = vpop.permute.xlu0 %3057
      %3059 = vrot.lane.b32.xlu0 %v3015, 116
      %v3060 = vpop.permute.xlu0 %3059
      %3061 = vrot.lane.b32.xlu0 %v3016, 116
      %v3062 = vpop.permute.xlu0 %3061
      %3063 = vrot.lane.b32.xlu0 %v3017, 116
      %v3064 = vpop.permute.xlu0 %3063
      %3065 = vrot.lane.b32.xlu0 %v3018, 116
      %v3066 = vpop.permute.xlu0 %3065
      %vm3083 = vcmask 982944
      %3084 = vst.msk [vmem:[#allocation2] sm:$0xff] %vm3083, %v3036
      %3085 = vst.msk [vmem:[#allocation2 + $0x10] sm:$0xff] %vm3083, %v3038
      %3086 = vst.msk [vmem:[#allocation2 + $0x20] sm:$0xff] %vm3083, %v3040
      %3087 = vst.msk [vmem:[#allocation2 + $0x30] sm:$0xff] %vm3083, %v3042
      %3088 = vst.msk [vmem:[#allocation2 + $0x40] sm:$0xff] %vm3083, %v3044
      %3089 = vst.msk [vmem:[#allocation2 + $0x50] sm:$0xff] %vm3083, %v3046
      %3090 = vst.msk [vmem:[#allocation2 + $0x60] sm:$0xff] %vm3083, %v3048
      %3091 = vst.msk [vmem:[#allocation2 + $0x70] sm:$0xff] %vm3083, %v3050
      %3092 = vst.msk [vmem:[#allocation2 + $0x80] sm:$0xff] %vm3083, %v3052
      %3093 = vst.msk [vmem:[#allocation2 + $0x90] sm:$0xff] %vm3083, %v3054
      %3094 = vst.msk [vmem:[#allocation2 + $0xa0] sm:$0xff] %vm3083, %v3056
      %3095 = vst.msk [vmem:[#allocation2 + $0xb0] sm:$0xff] %vm3083, %v3058
      %3096 = vst.msk [vmem:[#allocation2 + $0xc0] sm:$0xff] %vm3083, %v3060
      %3097 = vst.msk [vmem:[#allocation2 + $0xd0] sm:$0xff] %vm3083, %v3062
      %3098 = vst.msk [vmem:[#allocation2 + $0xe0] sm:$0xff] %vm3083, %v3064
      %3099 = vst.msk [vmem:[#allocation2 + $0xf0] sm:$0xff] %vm3083, %v3066
      %v3100 = vld [vmem:[%s2905 + $0x2] sm:$0xff]
      %v3101 = vld [vmem:[%s2905 + $0xa] sm:$0xff]
      %v3102 = vld [vmem:[%s2905 + $0x1a] sm:$0xff]
      %v3103 = vld [vmem:[%s2905 + $0x22] sm:$0xff]
      %v3104 = vld [vmem:[%s2905 + $0x32] sm:$0xff]
      %v3105 = vld [vmem:[%s2905 + $0x3a] sm:$0xff]
      %v3106 = vld [vmem:[%s2905 + $0x4a] sm:$0xff]
      %v3107 = vld [vmem:[%s2905 + $0x52] sm:$0xff]
      %v3108 = vld [vmem:[%s2905 + $0x62] sm:$0xff]
      %v3109 = vld [vmem:[%s2905 + $0x6a] sm:$0xff]
      %v3110 = vld [vmem:[%s2905 + $0x7a] sm:$0xff]
      %v3111 = vld [vmem:[%s2905 + $0x82] sm:$0xff]
      %v3112 = vld [vmem:[%s2905 + $0x92] sm:$0xff]
      %v3113 = vld [vmem:[%s2905 + $0x9a] sm:$0xff]
      %v3114 = vld [vmem:[%s2905 + $0xaa] sm:$0xff]
      %v3115 = vld [vmem:[%s2905 + $0xb2] sm:$0xff]
      %3132 = vrot.lane.b32.xlu0 %v3100, 120
      %v3133 = vpop.permute.xlu0 %3132
      %3134 = vrot.lane.b32.xlu0 %v3101, 120
      %v3135 = vpop.permute.xlu0 %3134
      %3136 = vrot.lane.b32.xlu0 %v3102, 120
      %v3137 = vpop.permute.xlu0 %3136
      %3138 = vrot.lane.b32.xlu0 %v3103, 120
      %v3139 = vpop.permute.xlu0 %3138
      %3140 = vrot.lane.b32.xlu0 %v3104, 120
      %v3141 = vpop.permute.xlu0 %3140
      %3142 = vrot.lane.b32.xlu0 %v3105, 120
      %v3143 = vpop.permute.xlu0 %3142
      %3144 = vrot.lane.b32.xlu0 %v3106, 120
      %v3145 = vpop.permute.xlu0 %3144
      %3146 = vrot.lane.b32.xlu0 %v3107, 120
      %v3147 = vpop.permute.xlu0 %3146
      %3148 = vrot.lane.b32.xlu0 %v3108, 120
      %v3149 = vpop.permute.xlu0 %3148
      %3150 = vrot.lane.b32.xlu0 %v3109, 120
      %v3151 = vpop.permute.xlu0 %3150
      %3152 = vrot.lane.b32.xlu0 %v3110, 120
      %v3153 = vpop.permute.xlu0 %3152
      %3154 = vrot.lane.b32.xlu0 %v3111, 120
      %v3155 = vpop.permute.xlu0 %3154
      %3156 = vrot.lane.b32.xlu0 %v3112, 120
      %v3157 = vpop.permute.xlu0 %3156
      %3158 = vrot.lane.b32.xlu0 %v3113, 120
      %v3159 = vpop.permute.xlu0 %3158
      %3160 = vrot.lane.b32.xlu0 %v3114, 120
      %v3161 = vpop.permute.xlu0 %3160
      %3162 = vrot.lane.b32.xlu0 %v3115, 120
      %v3163 = vpop.permute.xlu0 %3162
      %vm3180 = vcmask 1015744
      %3181 = vst.msk [vmem:[#allocation2] sm:$0xff] %vm3180, %v3133
      %3182 = vst.msk [vmem:[#allocation2 + $0x10] sm:$0xff] %vm3180, %v3135
      %3183 = vst.msk [vmem:[#allocation2 + $0x20] sm:$0xff] %vm3180, %v3137
      %3184 = vst.msk [vmem:[#allocation2 + $0x30] sm:$0xff] %vm3180, %v3139
      %3185 = vst.msk [vmem:[#allocation2 + $0x40] sm:$0xff] %vm3180, %v3141
      %3186 = vst.msk [vmem:[#allocation2 + $0x50] sm:$0xff] %vm3180, %v3143
      %3187 = vst.msk [vmem:[#allocation2 + $0x60] sm:$0xff] %vm3180, %v3145
      %3188 = vst.msk [vmem:[#allocation2 + $0x70] sm:$0xff] %vm3180, %v3147
      %3189 = vst.msk [vmem:[#allocation2 + $0x80] sm:$0xff] %vm3180, %v3149
      %3190 = vst.msk [vmem:[#allocation2 + $0x90] sm:$0xff] %vm3180, %v3151
      %3191 = vst.msk [vmem:[#allocation2 + $0xa0] sm:$0xff] %vm3180, %v3153
      %3192 = vst.msk [vmem:[#allocation2 + $0xb0] sm:$0xff] %vm3180, %v3155
      %3193 = vst.msk [vmem:[#allocation2 + $0xc0] sm:$0xff] %vm3180, %v3157
      %3194 = vst.msk [vmem:[#allocation2 + $0xd0] sm:$0xff] %vm3180, %v3159
      %3195 = vst.msk [vmem:[#allocation2 + $0xe0] sm:$0xff] %vm3180, %v3161
      %3196 = vst.msk [vmem:[#allocation2 + $0xf0] sm:$0xff] %vm3180, %v3163
      %v3197 = vld [vmem:[%s2905 + $0x3] sm:$0xff]
      %v3198 = vld [vmem:[%s2905 + $0xb] sm:$0xff]
      %v3199 = vld [vmem:[%s2905 + $0x1b] sm:$0xff]
      %v3200 = vld [vmem:[%s2905 + $0x23] sm:$0xff]
      %v3201 = vld [vmem:[%s2905 + $0x33] sm:$0xff]
      %v3202 = vld [vmem:[%s2905 + $0x3b] sm:$0xff]
      %v3203 = vld [vmem:[%s2905 + $0x4b] sm:$0xff]
      %v3204 = vld [vmem:[%s2905 + $0x53] sm:$0xff]
      %v3205 = vld [vmem:[%s2905 + $0x63] sm:$0xff]
      %v3206 = vld [vmem:[%s2905 + $0x6b] sm:$0xff]
      %v3207 = vld [vmem:[%s2905 + $0x7b] sm:$0xff]
      %v3208 = vld [vmem:[%s2905 + $0x83] sm:$0xff]
      %v3209 = vld [vmem:[%s2905 + $0x93] sm:$0xff]
      %v3210 = vld [vmem:[%s2905 + $0x9b] sm:$0xff]
      %v3211 = vld [vmem:[%s2905 + $0xab] sm:$0xff]
      %v3212 = vld [vmem:[%s2905 + $0xb3] sm:$0xff]
      %3229 = vrot.lane.b32.xlu0 %v3197, 124
      %v3230 = vpop.permute.xlu0 %3229
      %3231 = vrot.lane.b32.xlu0 %v3198, 124
      %v3232 = vpop.permute.xlu0 %3231
      %3233 = vrot.lane.b32.xlu0 %v3199, 124
      %v3234 = vpop.permute.xlu0 %3233
      %3235 = vrot.lane.b32.xlu0 %v3200, 124
      %v3236 = vpop.permute.xlu0 %3235
      %3237 = vrot.lane.b32.xlu0 %v3201, 124
      %v3238 = vpop.permute.xlu0 %3237
      %3239 = vrot.lane.b32.xlu0 %v3202, 124
      %v3240 = vpop.permute.xlu0 %3239
      %3241 = vrot.lane.b32.xlu0 %v3203, 124
      %v3242 = vpop.permute.xlu0 %3241
      %3243 = vrot.lane.b32.xlu0 %v3204, 124
      %v3244 = vpop.permute.xlu0 %3243
      %3245 = vrot.lane.b32.xlu0 %v3205, 124
      %v3246 = vpop.permute.xlu0 %3245
      %3247 = vrot.lane.b32.xlu0 %v3206, 124
      %v3248 = vpop.permute.xlu0 %3247
      %3249 = vrot.lane.b32.xlu0 %v3207, 124
      %v3250 = vpop.permute.xlu0 %3249
      %3251 = vrot.lane.b32.xlu0 %v3208, 124
      %v3252 = vpop.permute.xlu0 %3251
      %3253 = vrot.lane.b32.xlu0 %v3209, 124
      %v3254 = vpop.permute.xlu0 %3253
      %3255 = vrot.lane.b32.xlu0 %v3210, 124
      %v3256 = vpop.permute.xlu0 %3255
      %3257 = vrot.lane.b32.xlu0 %v3211, 124
      %v3258 = vpop.permute.xlu0 %3257
      %3259 = vrot.lane.b32.xlu0 %v3212, 124
      %v3260 = vpop.permute.xlu0 %3259
      %vm3277 = vcmask 1048544
      %3278 = vst.msk [vmem:[#allocation2] sm:$0xff] %vm3277, %v3230
      %3279 = vst.msk [vmem:[#allocation2 + $0x10] sm:$0xff] %vm3277, %v3232
      %3280 = vst.msk [vmem:[#allocation2 + $0x20] sm:$0xff] %vm3277, %v3234
      %3281 = vst.msk [vmem:[#allocation2 + $0x30] sm:$0xff] %vm3277, %v3236
      %3282 = vst.msk [vmem:[#allocation2 + $0x40] sm:$0xff] %vm3277, %v3238
      %3283 = vst.msk [vmem:[#allocation2 + $0x50] sm:$0xff] %vm3277, %v3240
      %3284 = vst.msk [vmem:[#allocation2 + $0x60] sm:$0xff] %vm3277, %v3242
      %3285 = vst.msk [vmem:[#allocation2 + $0x70] sm:$0xff] %vm3277, %v3244
      %3286 = vst.msk [vmem:[#allocation2 + $0x80] sm:$0xff] %vm3277, %v3246
      %3287 = vst.msk [vmem:[#allocation2 + $0x90] sm:$0xff] %vm3277, %v3248
      %3288 = vst.msk [vmem:[#allocation2 + $0xa0] sm:$0xff] %vm3277, %v3250
      %3289 = vst.msk [vmem:[#allocation2 + $0xb0] sm:$0xff] %vm3277, %v3252
      %3290 = vst.msk [vmem:[#allocation2 + $0xc0] sm:$0xff] %vm3277, %v3254
      %3291 = vst.msk [vmem:[#allocation2 + $0xd0] sm:$0xff] %vm3277, %v3256
      %3292 = vst.msk [vmem:[#allocation2 + $0xe0] sm:$0xff] %vm3277, %v3258
      %3293 = vst.msk [vmem:[#allocation2 + $0xf0] sm:$0xff] %vm3277, %v3260
      %v3294 = vld [vmem:[%s2905 + $0x4] sm:$0xff]
      %v3295 = vld [vmem:[%s2905 + $0xc] sm:$0xff]
      %v3296 = vld [vmem:[%s2905 + $0x1c] sm:$0xff]
      %v3297 = vld [vmem:[%s2905 + $0x24] sm:$0xff]
      %v3298 = vld [vmem:[%s2905 + $0x34] sm:$0xff]
      %v3299 = vld [vmem:[%s2905 + $0x3c] sm:$0xff]
      %v3300 = vld [vmem:[%s2905 + $0x4c] sm:$0xff]
      %v3301 = vld [vmem:[%s2905 + $0x54] sm:$0xff]
      %v3302 = vld [vmem:[%s2905 + $0x64] sm:$0xff]
      %v3303 = vld [vmem:[%s2905 + $0x6c] sm:$0xff]
      %v3304 = vld [vmem:[%s2905 + $0x7c] sm:$0xff]
      %v3305 = vld [vmem:[%s2905 + $0x84] sm:$0xff]
      %v3306 = vld [vmem:[%s2905 + $0x94] sm:$0xff]
      %v3307 = vld [vmem:[%s2905 + $0x9c] sm:$0xff]
      %v3308 = vld [vmem:[%s2905 + $0xac] sm:$0xff]
      %v3309 = vld [vmem:[%s2905 + $0xb4] sm:$0xff]
      %3310 = vst.msk [vmem:[#allocation2 + $0x8] sm:$0xff] %vm258, %v3294
      %3311 = vst.msk [vmem:[#allocation2 + $0x18] sm:$0xff] %vm258, %v3295
      %3312 = vst.msk [vmem:[#allocation2 + $0x28] sm:$0xff] %vm258, %v3296
      %3313 = vst.msk [vmem:[#allocation2 + $0x38] sm:$0xff] %vm258, %v3297
      %3314 = vst.msk [vmem:[#allocation2 + $0x48] sm:$0xff] %vm258, %v3298
      %3315 = vst.msk [vmem:[#allocation2 + $0x58] sm:$0xff] %vm258, %v3299
      %3316 = vst.msk [vmem:[#allocation2 + $0x68] sm:$0xff] %vm258, %v3300
      %3317 = vst.msk [vmem:[#allocation2 + $0x78] sm:$0xff] %vm258, %v3301
      %3318 = vst.msk [vmem:[#allocation2 + $0x88] sm:$0xff] %vm258, %v3302
      %3319 = vst.msk [vmem:[#allocation2 + $0x98] sm:$0xff] %vm258, %v3303
      %3320 = vst.msk [vmem:[#allocation2 + $0xa8] sm:$0xff] %vm258, %v3304
      %3321 = vst.msk [vmem:[#allocation2 + $0xb8] sm:$0xff] %vm258, %v3305
      %3322 = vst.msk [vmem:[#allocation2 + $0xc8] sm:$0xff] %vm258, %v3306
      %3323 = vst.msk [vmem:[#allocation2 + $0xd8] sm:$0xff] %vm258, %v3307
      %3324 = vst.msk [vmem:[#allocation2 + $0xe8] sm:$0xff] %vm258, %v3308
      %3325 = vst.msk [vmem:[#allocation2 + $0xf8] sm:$0xff] %vm258, %v3309
      %v3326 = vld [vmem:[%s2905 + $0x5] sm:$0xff]
      %v3327 = vld [vmem:[%s2905 + $0xd] sm:$0xff]
      %v3328 = vld [vmem:[%s2905 + $0x1d] sm:$0xff]
      %v3329 = vld [vmem:[%s2905 + $0x25] sm:$0xff]
      %v3330 = vld [vmem:[%s2905 + $0x35] sm:$0xff]
      %v3331 = vld [vmem:[%s2905 + $0x3d] sm:$0xff]
      %v3332 = vld [vmem:[%s2905 + $0x4d] sm:$0xff]
      %v3333 = vld [vmem:[%s2905 + $0x55] sm:$0xff]
      %v3334 = vld [vmem:[%s2905 + $0x65] sm:$0xff]
      %v3335 = vld [vmem:[%s2905 + $0x6d] sm:$0xff]
      %v3336 = vld [vmem:[%s2905 + $0x7d] sm:$0xff]
      %v3337 = vld [vmem:[%s2905 + $0x85] sm:$0xff]
      %v3338 = vld [vmem:[%s2905 + $0x95] sm:$0xff]
      %v3339 = vld [vmem:[%s2905 + $0x9d] sm:$0xff]
      %v3340 = vld [vmem:[%s2905 + $0xad] sm:$0xff]
      %v3341 = vld [vmem:[%s2905 + $0xb5] sm:$0xff]
      %3358 = vrot.lane.b32.xlu0 %v3326, 4
      %v3359 = vpop.permute.xlu0 %3358
      %3360 = vrot.lane.b32.xlu0 %v3327, 4
      %v3361 = vpop.permute.xlu0 %3360
      %3362 = vrot.lane.b32.xlu0 %v3328, 4
      %v3363 = vpop.permute.xlu0 %3362
      %3364 = vrot.lane.b32.xlu0 %v3329, 4
      %v3365 = vpop.permute.xlu0 %3364
      %3366 = vrot.lane.b32.xlu0 %v3330, 4
      %v3367 = vpop.permute.xlu0 %3366
      %3368 = vrot.lane.b32.xlu0 %v3331, 4
      %v3369 = vpop.permute.xlu0 %3368
      %3370 = vrot.lane.b32.xlu0 %v3332, 4
      %v3371 = vpop.permute.xlu0 %3370
      %3372 = vrot.lane.b32.xlu0 %v3333, 4
      %v3373 = vpop.permute.xlu0 %3372
      %3374 = vrot.lane.b32.xlu0 %v3334, 4
      %v3375 = vpop.permute.xlu0 %3374
      %3376 = vrot.lane.b32.xlu0 %v3335, 4
      %v3377 = vpop.permute.xlu0 %3376
      %3378 = vrot.lane.b32.xlu0 %v3336, 4
      %v3379 = vpop.permute.xlu0 %3378
      %3380 = vrot.lane.b32.xlu0 %v3337, 4
      %v3381 = vpop.permute.xlu0 %3380
      %3382 = vrot.lane.b32.xlu0 %v3338, 4
      %v3383 = vpop.permute.xlu0 %3382
      %3384 = vrot.lane.b32.xlu0 %v3339, 4
      %v3385 = vpop.permute.xlu0 %3384
      %3386 = vrot.lane.b32.xlu0 %v3340, 4
      %v3387 = vpop.permute.xlu0 %3386
      %3388 = vrot.lane.b32.xlu0 %v3341, 4
      %v3389 = vpop.permute.xlu0 %3388
      %3406 = vst.msk [vmem:[#allocation2 + $0x8] sm:$0xff] %vm355, %v3359
      %3407 = vst.msk [vmem:[#allocation2 + $0x18] sm:$0xff] %vm355, %v3361
      %3408 = vst.msk [vmem:[#allocation2 + $0x28] sm:$0xff] %vm355, %v3363
      %3409 = vst.msk [vmem:[#allocation2 + $0x38] sm:$0xff] %vm355, %v3365
      %3410 = vst.msk [vmem:[#allocation2 + $0x48] sm:$0xff] %vm355, %v3367
      %3411 = vst.msk [vmem:[#allocation2 + $0x58] sm:$0xff] %vm355, %v3369
      %3412 = vst.msk [vmem:[#allocation2 + $0x68] sm:$0xff] %vm355, %v3371
      %3413 = vst.msk [vmem:[#allocation2 + $0x78] sm:$0xff] %vm355, %v3373
      %3414 = vst.msk [vmem:[#allocation2 + $0x88] sm:$0xff] %vm355, %v3375
      %3415 = vst.msk [vmem:[#allocation2 + $0x98] sm:$0xff] %vm355, %v3377
      %3416 = vst.msk [vmem:[#allocation2 + $0xa8] sm:$0xff] %vm355, %v3379
      %3417 = vst.msk [vmem:[#allocation2 + $0xb8] sm:$0xff] %vm355, %v3381
      %3418 = vst.msk [vmem:[#allocation2 + $0xc8] sm:$0xff] %vm355, %v3383
      %3419 = vst.msk [vmem:[#allocation2 + $0xd8] sm:$0xff] %vm355, %v3385
      %3420 = vst.msk [vmem:[#allocation2 + $0xe8] sm:$0xff] %vm355, %v3387
      %3421 = vst.msk [vmem:[#allocation2 + $0xf8] sm:$0xff] %vm355, %v3389
      %v3422 = vld [vmem:[%s2905 + $0x6] sm:$0xff]
      %v3423 = vld [vmem:[%s2905 + $0xe] sm:$0xff]
      %v3424 = vld [vmem:[%s2905 + $0x1e] sm:$0xff]
      %v3425 = vld [vmem:[%s2905 + $0x26] sm:$0xff]
      %v3426 = vld [vmem:[%s2905 + $0x36] sm:$0xff]
      %v3427 = vld [vmem:[%s2905 + $0x3e] sm:$0xff]
      %v3428 = vld [vmem:[%s2905 + $0x4e] sm:$0xff]
      %v3429 = vld [vmem:[%s2905 + $0x56] sm:$0xff]
      %v3430 = vld [vmem:[%s2905 + $0x66] sm:$0xff]
      %v3431 = vld [vmem:[%s2905 + $0x6e] sm:$0xff]
      %v3432 = vld [vmem:[%s2905 + $0x7e] sm:$0xff]
      %v3433 = vld [vmem:[%s2905 + $0x86] sm:$0xff]
      %v3434 = vld [vmem:[%s2905 + $0x96] sm:$0xff]
      %v3435 = vld [vmem:[%s2905 + $0x9e] sm:$0xff]
      %v3436 = vld [vmem:[%s2905 + $0xae] sm:$0xff]
      %v3437 = vld [vmem:[%s2905 + $0xb6] sm:$0xff]
      %3454 = vrot.lane.b32.xlu0 %v3422, 8
      %v3455 = vpop.permute.xlu0 %3454
      %3456 = vrot.lane.b32.xlu0 %v3423, 8
      %v3457 = vpop.permute.xlu0 %3456
      %3458 = vrot.lane.b32.xlu0 %v3424, 8
      %v3459 = vpop.permute.xlu0 %3458
      %3460 = vrot.lane.b32.xlu0 %v3425, 8
      %v3461 = vpop.permute.xlu0 %3460
      %3462 = vrot.lane.b32.xlu0 %v3426, 8
      %v3463 = vpop.permute.xlu0 %3462
      %3464 = vrot.lane.b32.xlu0 %v3427, 8
      %v3465 = vpop.permute.xlu0 %3464
      %3466 = vrot.lane.b32.xlu0 %v3428, 8
      %v3467 = vpop.permute.xlu0 %3466
      %3468 = vrot.lane.b32.xlu0 %v3429, 8
      %v3469 = vpop.permute.xlu0 %3468
      %3470 = vrot.lane.b32.xlu0 %v3430, 8
      %v3471 = vpop.permute.xlu0 %3470
      %3472 = vrot.lane.b32.xlu0 %v3431, 8
      %v3473 = vpop.permute.xlu0 %3472
      %3474 = vrot.lane.b32.xlu0 %v3432, 8
      %v3475 = vpop.permute.xlu0 %3474
      %3476 = vrot.lane.b32.xlu0 %v3433, 8
      %v3477 = vpop.permute.xlu0 %3476
      %3478 = vrot.lane.b32.xlu0 %v3434, 8
      %v3479 = vpop.permute.xlu0 %3478
      %3480 = vrot.lane.b32.xlu0 %v3435, 8
      %v3481 = vpop.permute.xlu0 %3480
      %3482 = vrot.lane.b32.xlu0 %v3436, 8
      %v3483 = vpop.permute.xlu0 %3482
      %3484 = vrot.lane.b32.xlu0 %v3437, 8
      %v3485 = vpop.permute.xlu0 %3484
      %3502 = vst.msk [vmem:[#allocation2 + $0x8] sm:$0xff] %vm452, %v3455
      %3503 = vst.msk [vmem:[#allocation2 + $0x18] sm:$0xff] %vm452, %v3457
      %3504 = vst.msk [vmem:[#allocation2 + $0x28] sm:$0xff] %vm452, %v3459
      %3505 = vst.msk [vmem:[#allocation2 + $0x38] sm:$0xff] %vm452, %v3461
      %3506 = vst.msk [vmem:[#allocation2 + $0x48] sm:$0xff] %vm452, %v3463
      %3507 = vst.msk [vmem:[#allocation2 + $0x58] sm:$0xff] %vm452, %v3465
      %3508 = vst.msk [vmem:[#allocation2 + $0x68] sm:$0xff] %vm452, %v3467
      %3509 = vst.msk [vmem:[#allocation2 + $0x78] sm:$0xff] %vm452, %v3469
      %3510 = vst.msk [vmem:[#allocation2 + $0x88] sm:$0xff] %vm452, %v3471
      %3511 = vst.msk [vmem:[#allocation2 + $0x98] sm:$0xff] %vm452, %v3473
      %3512 = vst.msk [vmem:[#allocation2 + $0xa8] sm:$0xff] %vm452, %v3475
      %3513 = vst.msk [vmem:[#allocation2 + $0xb8] sm:$0xff] %vm452, %v3477
      %3514 = vst.msk [vmem:[#allocation2 + $0xc8] sm:$0xff] %vm452, %v3479
      %3515 = vst.msk [vmem:[#allocation2 + $0xd8] sm:$0xff] %vm452, %v3481
      %3516 = vst.msk [vmem:[#allocation2 + $0xe8] sm:$0xff] %vm452, %v3483
      %3517 = vst.msk [vmem:[#allocation2 + $0xf8] sm:$0xff] %vm452, %v3485
      %s3518 = sadd.s32 %s222, 5
      %s3519 = smul.u32 %s3518, 24
      %s3520 = scalar_lea.vmem %s221, %s3519
      %v3521 = vld [vmem:[%s3520] sm:$0xff]
      %v3522 = vld [vmem:[%s3520 + $0x8] sm:$0xff]
      %v3523 = vld [vmem:[%s3520 + $0x18] sm:$0xff]
      %v3524 = vld [vmem:[%s3520 + $0x20] sm:$0xff]
      %v3525 = vld [vmem:[%s3520 + $0x30] sm:$0xff]
      %v3526 = vld [vmem:[%s3520 + $0x38] sm:$0xff]
      %v3527 = vld [vmem:[%s3520 + $0x48] sm:$0xff]
      %v3528 = vld [vmem:[%s3520 + $0x50] sm:$0xff]
      %v3529 = vld [vmem:[%s3520 + $0x60] sm:$0xff]
      %v3530 = vld [vmem:[%s3520 + $0x68] sm:$0xff]
      %v3531 = vld [vmem:[%s3520 + $0x78] sm:$0xff]
      %v3532 = vld [vmem:[%s3520 + $0x80] sm:$0xff]
      %v3533 = vld [vmem:[%s3520 + $0x90] sm:$0xff]
      %v3534 = vld [vmem:[%s3520 + $0x98] sm:$0xff]
      %v3535 = vld [vmem:[%s3520 + $0xa8] sm:$0xff]
      %v3536 = vld [vmem:[%s3520 + $0xb0] sm:$0xff]
      %3553 = vrot.lane.b32.xlu0 %v3521, 12
      %v3554 = vpop.permute.xlu0 %3553
      %3555 = vrot.lane.b32.xlu0 %v3522, 12
      %v3556 = vpop.permute.xlu0 %3555
      %3557 = vrot.lane.b32.xlu0 %v3523, 12
      %v3558 = vpop.permute.xlu0 %3557
      %3559 = vrot.lane.b32.xlu0 %v3524, 12
      %v3560 = vpop.permute.xlu0 %3559
      %3561 = vrot.lane.b32.xlu0 %v3525, 12
      %v3562 = vpop.permute.xlu0 %3561
      %3563 = vrot.lane.b32.xlu0 %v3526, 12
      %v3564 = vpop.permute.xlu0 %3563
      %3565 = vrot.lane.b32.xlu0 %v3527, 12
      %v3566 = vpop.permute.xlu0 %3565
      %3567 = vrot.lane.b32.xlu0 %v3528, 12
      %v3568 = vpop.permute.xlu0 %3567
      %3569 = vrot.lane.b32.xlu0 %v3529, 12
      %v3570 = vpop.permute.xlu0 %3569
      %3571 = vrot.lane.b32.xlu0 %v3530, 12
      %v3572 = vpop.permute.xlu0 %3571
      %3573 = vrot.lane.b32.xlu0 %v3531, 12
      %v3574 = vpop.permute.xlu0 %3573
      %3575 = vrot.lane.b32.xlu0 %v3532, 12
      %v3576 = vpop.permute.xlu0 %3575
      %3577 = vrot.lane.b32.xlu0 %v3533, 12
      %v3578 = vpop.permute.xlu0 %3577
      %3579 = vrot.lane.b32.xlu0 %v3534, 12
      %v3580 = vpop.permute.xlu0 %3579
      %3581 = vrot.lane.b32.xlu0 %v3535, 12
      %v3582 = vpop.permute.xlu0 %3581
      %3583 = vrot.lane.b32.xlu0 %v3536, 12
      %v3584 = vpop.permute.xlu0 %3583
      %3601 = vst.msk [vmem:[#allocation2 + $0x8] sm:$0xff] %vm549, %v3554
      %3602 = vst.msk [vmem:[#allocation2 + $0x18] sm:$0xff] %vm549, %v3556
      %3603 = vst.msk [vmem:[#allocation2 + $0x28] sm:$0xff] %vm549, %v3558
      %3604 = vst.msk [vmem:[#allocation2 + $0x38] sm:$0xff] %vm549, %v3560
      %3605 = vst.msk [vmem:[#allocation2 + $0x48] sm:$0xff] %vm549, %v3562
      %3606 = vst.msk [vmem:[#allocation2 + $0x58] sm:$0xff] %vm549, %v3564
      %3607 = vst.msk [vmem:[#allocation2 + $0x68] sm:$0xff] %vm549, %v3566
      %3608 = vst.msk [vmem:[#allocation2 + $0x78] sm:$0xff] %vm549, %v3568
      %3609 = vst.msk [vmem:[#allocation2 + $0x88] sm:$0xff] %vm549, %v3570
      %3610 = vst.msk [vmem:[#allocation2 + $0x98] sm:$0xff] %vm549, %v3572
      %3611 = vst.msk [vmem:[#allocation2 + $0xa8] sm:$0xff] %vm549, %v3574
      %3612 = vst.msk [vmem:[#allocation2 + $0xb8] sm:$0xff] %vm549, %v3576
      %3613 = vst.msk [vmem:[#allocation2 + $0xc8] sm:$0xff] %vm549, %v3578
      %3614 = vst.msk [vmem:[#allocation2 + $0xd8] sm:$0xff] %vm549, %v3580
      %3615 = vst.msk [vmem:[#allocation2 + $0xe8] sm:$0xff] %vm549, %v3582
      %3616 = vst.msk [vmem:[#allocation2 + $0xf8] sm:$0xff] %vm549, %v3584
      %v3617 = vld [vmem:[%s3520 + $0x1] sm:$0xff]
      %v3618 = vld [vmem:[%s3520 + $0x9] sm:$0xff]
      %v3619 = vld [vmem:[%s3520 + $0x19] sm:$0xff]
      %v3620 = vld [vmem:[%s3520 + $0x21] sm:$0xff]
      %v3621 = vld [vmem:[%s3520 + $0x31] sm:$0xff]
      %v3622 = vld [vmem:[%s3520 + $0x39] sm:$0xff]
      %v3623 = vld [vmem:[%s3520 + $0x49] sm:$0xff]
      %v3624 = vld [vmem:[%s3520 + $0x51] sm:$0xff]
      %v3625 = vld [vmem:[%s3520 + $0x61] sm:$0xff]
      %v3626 = vld [vmem:[%s3520 + $0x69] sm:$0xff]
      %v3627 = vld [vmem:[%s3520 + $0x79] sm:$0xff]
      %v3628 = vld [vmem:[%s3520 + $0x81] sm:$0xff]
      %v3629 = vld [vmem:[%s3520 + $0x91] sm:$0xff]
      %v3630 = vld [vmem:[%s3520 + $0x99] sm:$0xff]
      %v3631 = vld [vmem:[%s3520 + $0xa9] sm:$0xff]
      %v3632 = vld [vmem:[%s3520 + $0xb1] sm:$0xff]
      %3649 = vrot.lane.b32.xlu0 %v3617, 16
      %v3650 = vpop.permute.xlu0 %3649
      %3651 = vrot.lane.b32.xlu0 %v3618, 16
      %v3652 = vpop.permute.xlu0 %3651
      %3653 = vrot.lane.b32.xlu0 %v3619, 16
      %v3654 = vpop.permute.xlu0 %3653
      %3655 = vrot.lane.b32.xlu0 %v3620, 16
      %v3656 = vpop.permute.xlu0 %3655
      %3657 = vrot.lane.b32.xlu0 %v3621, 16
      %v3658 = vpop.permute.xlu0 %3657
      %3659 = vrot.lane.b32.xlu0 %v3622, 16
      %v3660 = vpop.permute.xlu0 %3659
      %3661 = vrot.lane.b32.xlu0 %v3623, 16
      %v3662 = vpop.permute.xlu0 %3661
      %3663 = vrot.lane.b32.xlu0 %v3624, 16
      %v3664 = vpop.permute.xlu0 %3663
      %3665 = vrot.lane.b32.xlu0 %v3625, 16
      %v3666 = vpop.permute.xlu0 %3665
      %3667 = vrot.lane.b32.xlu0 %v3626, 16
      %v3668 = vpop.permute.xlu0 %3667
      %3669 = vrot.lane.b32.xlu0 %v3627, 16
      %v3670 = vpop.permute.xlu0 %3669
      %3671 = vrot.lane.b32.xlu0 %v3628, 16
      %v3672 = vpop.permute.xlu0 %3671
      %3673 = vrot.lane.b32.xlu0 %v3629, 16
      %v3674 = vpop.permute.xlu0 %3673
      %3675 = vrot.lane.b32.xlu0 %v3630, 16
      %v3676 = vpop.permute.xlu0 %3675
      %3677 = vrot.lane.b32.xlu0 %v3631, 16
      %v3678 = vpop.permute.xlu0 %3677
      %3679 = vrot.lane.b32.xlu0 %v3632, 16
      %v3680 = vpop.permute.xlu0 %3679
      %3697 = vst.msk [vmem:[#allocation2 + $0x8] sm:$0xff] %vm646, %v3650
      %3698 = vst.msk [vmem:[#allocation2 + $0x18] sm:$0xff] %vm646, %v3652
      %3699 = vst.msk [vmem:[#allocation2 + $0x28] sm:$0xff] %vm646, %v3654
      %3700 = vst.msk [vmem:[#allocation2 + $0x38] sm:$0xff] %vm646, %v3656
      %3701 = vst.msk [vmem:[#allocation2 + $0x48] sm:$0xff] %vm646, %v3658
      %3702 = vst.msk [vmem:[#allocation2 + $0x58] sm:$0xff] %vm646, %v3660
      %3703 = vst.msk [vmem:[#allocation2 + $0x68] sm:$0xff] %vm646, %v3662
      %3704 = vst.msk [vmem:[#allocation2 + $0x78] sm:$0xff] %vm646, %v3664
      %3705 = vst.msk [vmem:[#allocation2 + $0x88] sm:$0xff] %vm646, %v3666
      %3706 = vst.msk [vmem:[#allocation2 + $0x98] sm:$0xff] %vm646, %v3668
      %3707 = vst.msk [vmem:[#allocation2 + $0xa8] sm:$0xff] %vm646, %v3670
      %3708 = vst.msk [vmem:[#allocation2 + $0xb8] sm:$0xff] %vm646, %v3672
      %3709 = vst.msk [vmem:[#allocation2 + $0xc8] sm:$0xff] %vm646, %v3674
      %3710 = vst.msk [vmem:[#allocation2 + $0xd8] sm:$0xff] %vm646, %v3676
      %3711 = vst.msk [vmem:[#allocation2 + $0xe8] sm:$0xff] %vm646, %v3678
      %3712 = vst.msk [vmem:[#allocation2 + $0xf8] sm:$0xff] %vm646, %v3680
      %v3713 = vld [vmem:[%s3520 + $0x2] sm:$0xff]
      %v3714 = vld [vmem:[%s3520 + $0xa] sm:$0xff]
      %v3715 = vld [vmem:[%s3520 + $0x1a] sm:$0xff]
      %v3716 = vld [vmem:[%s3520 + $0x22] sm:$0xff]
      %v3717 = vld [vmem:[%s3520 + $0x32] sm:$0xff]
      %v3718 = vld [vmem:[%s3520 + $0x3a] sm:$0xff]
      %v3719 = vld [vmem:[%s3520 + $0x4a] sm:$0xff]
      %v3720 = vld [vmem:[%s3520 + $0x52] sm:$0xff]
      %v3721 = vld [vmem:[%s3520 + $0x62] sm:$0xff]
      %v3722 = vld [vmem:[%s3520 + $0x6a] sm:$0xff]
      %v3723 = vld [vmem:[%s3520 + $0x7a] sm:$0xff]
      %v3724 = vld [vmem:[%s3520 + $0x82] sm:$0xff]
      %v3725 = vld [vmem:[%s3520 + $0x92] sm:$0xff]
      %v3726 = vld [vmem:[%s3520 + $0x9a] sm:$0xff]
      %v3727 = vld [vmem:[%s3520 + $0xaa] sm:$0xff]
      %v3728 = vld [vmem:[%s3520 + $0xb2] sm:$0xff]
      %3745 = vrot.lane.b32.xlu0 %v3713, 20
      %v3746 = vpop.permute.xlu0 %3745
      %3747 = vrot.lane.b32.xlu0 %v3714, 20
      %v3748 = vpop.permute.xlu0 %3747
      %3749 = vrot.lane.b32.xlu0 %v3715, 20
      %v3750 = vpop.permute.xlu0 %3749
      %3751 = vrot.lane.b32.xlu0 %v3716, 20
      %v3752 = vpop.permute.xlu0 %3751
      %3753 = vrot.lane.b32.xlu0 %v3717, 20
      %v3754 = vpop.permute.xlu0 %3753
      %3755 = vrot.lane.b32.xlu0 %v3718, 20
      %v3756 = vpop.permute.xlu0 %3755
      %3757 = vrot.lane.b32.xlu0 %v3719, 20
      %v3758 = vpop.permute.xlu0 %3757
      %3759 = vrot.lane.b32.xlu0 %v3720, 20
      %v3760 = vpop.permute.xlu0 %3759
      %3761 = vrot.lane.b32.xlu0 %v3721, 20
      %v3762 = vpop.permute.xlu0 %3761
      %3763 = vrot.lane.b32.xlu0 %v3722, 20
      %v3764 = vpop.permute.xlu0 %3763
      %3765 = vrot.lane.b32.xlu0 %v3723, 20
      %v3766 = vpop.permute.xlu0 %3765
      %3767 = vrot.lane.b32.xlu0 %v3724, 20
      %v3768 = vpop.permute.xlu0 %3767
      %3769 = vrot.lane.b32.xlu0 %v3725, 20
      %v3770 = vpop.permute.xlu0 %3769
      %3771 = vrot.lane.b32.xlu0 %v3726, 20
      %v3772 = vpop.permute.xlu0 %3771
      %3773 = vrot.lane.b32.xlu0 %v3727, 20
      %v3774 = vpop.permute.xlu0 %3773
      %3775 = vrot.lane.b32.xlu0 %v3728, 20
      %v3776 = vpop.permute.xlu0 %3775
      %3793 = vst.msk [vmem:[#allocation2 + $0x8] sm:$0xff] %vm743, %v3746
      %3794 = vst.msk [vmem:[#allocation2 + $0x18] sm:$0xff] %vm743, %v3748
      %3795 = vst.msk [vmem:[#allocation2 + $0x28] sm:$0xff] %vm743, %v3750
      %3796 = vst.msk [vmem:[#allocation2 + $0x38] sm:$0xff] %vm743, %v3752
      %3797 = vst.msk [vmem:[#allocation2 + $0x48] sm:$0xff] %vm743, %v3754
      %3798 = vst.msk [vmem:[#allocation2 + $0x58] sm:$0xff] %vm743, %v3756
      %3799 = vst.msk [vmem:[#allocation2 + $0x68] sm:$0xff] %vm743, %v3758
      %3800 = vst.msk [vmem:[#allocation2 + $0x78] sm:$0xff] %vm743, %v3760
      %3801 = vst.msk [vmem:[#allocation2 + $0x88] sm:$0xff] %vm743, %v3762
      %3802 = vst.msk [vmem:[#allocation2 + $0x98] sm:$0xff] %vm743, %v3764
      %3803 = vst.msk [vmem:[#allocation2 + $0xa8] sm:$0xff] %vm743, %v3766
      %3804 = vst.msk [vmem:[#allocation2 + $0xb8] sm:$0xff] %vm743, %v3768
      %3805 = vst.msk [vmem:[#allocation2 + $0xc8] sm:$0xff] %vm743, %v3770
      %3806 = vst.msk [vmem:[#allocation2 + $0xd8] sm:$0xff] %vm743, %v3772
      %3807 = vst.msk [vmem:[#allocation2 + $0xe8] sm:$0xff] %vm743, %v3774
      %3808 = vst.msk [vmem:[#allocation2 + $0xf8] sm:$0xff] %vm743, %v3776
      %v3809 = vld [vmem:[%s3520 + $0x3] sm:$0xff]
      %v3810 = vld [vmem:[%s3520 + $0xb] sm:$0xff]
      %v3811 = vld [vmem:[%s3520 + $0x1b] sm:$0xff]
      %v3812 = vld [vmem:[%s3520 + $0x23] sm:$0xff]
      %v3813 = vld [vmem:[%s3520 + $0x33] sm:$0xff]
      %v3814 = vld [vmem:[%s3520 + $0x3b] sm:$0xff]
      %v3815 = vld [vmem:[%s3520 + $0x4b] sm:$0xff]
      %v3816 = vld [vmem:[%s3520 + $0x53] sm:$0xff]
      %v3817 = vld [vmem:[%s3520 + $0x63] sm:$0xff]
      %v3818 = vld [vmem:[%s3520 + $0x6b] sm:$0xff]
      %v3819 = vld [vmem:[%s3520 + $0x7b] sm:$0xff]
      %v3820 = vld [vmem:[%s3520 + $0x83] sm:$0xff]
      %v3821 = vld [vmem:[%s3520 + $0x93] sm:$0xff]
      %v3822 = vld [vmem:[%s3520 + $0x9b] sm:$0xff]
      %v3823 = vld [vmem:[%s3520 + $0xab] sm:$0xff]
      %v3824 = vld [vmem:[%s3520 + $0xb3] sm:$0xff]
      %3841 = vrot.lane.b32.xlu0 %v3809, 24
      %v3842 = vpop.permute.xlu0 %3841
      %3843 = vrot.lane.b32.xlu0 %v3810, 24
      %v3844 = vpop.permute.xlu0 %3843
      %3845 = vrot.lane.b32.xlu0 %v3811, 24
      %v3846 = vpop.permute.xlu0 %3845
      %3847 = vrot.lane.b32.xlu0 %v3812, 24
      %v3848 = vpop.permute.xlu0 %3847
      %3849 = vrot.lane.b32.xlu0 %v3813, 24
      %v3850 = vpop.permute.xlu0 %3849
      %3851 = vrot.lane.b32.xlu0 %v3814, 24
      %v3852 = vpop.permute.xlu0 %3851
      %3853 = vrot.lane.b32.xlu0 %v3815, 24
      %v3854 = vpop.permute.xlu0 %3853
      %3855 = vrot.lane.b32.xlu0 %v3816, 24
      %v3856 = vpop.permute.xlu0 %3855
      %3857 = vrot.lane.b32.xlu0 %v3817, 24
      %v3858 = vpop.permute.xlu0 %3857
      %3859 = vrot.lane.b32.xlu0 %v3818, 24
      %v3860 = vpop.permute.xlu0 %3859
      %3861 = vrot.lane.b32.xlu0 %v3819, 24
      %v3862 = vpop.permute.xlu0 %3861
      %3863 = vrot.lane.b32.xlu0 %v3820, 24
      %v3864 = vpop.permute.xlu0 %3863
      %3865 = vrot.lane.b32.xlu0 %v3821, 24
      %v3866 = vpop.permute.xlu0 %3865
      %3867 = vrot.lane.b32.xlu0 %v3822, 24
      %v3868 = vpop.permute.xlu0 %3867
      %3869 = vrot.lane.b32.xlu0 %v3823, 24
      %v3870 = vpop.permute.xlu0 %3869
      %3871 = vrot.lane.b32.xlu0 %v3824, 24
      %v3872 = vpop.permute.xlu0 %3871
      %3889 = vst.msk [vmem:[#allocation2 + $0x8] sm:$0xff] %vm840, %v3842
      %3890 = vst.msk [vmem:[#allocation2 + $0x18] sm:$0xff] %vm840, %v3844
      %3891 = vst.msk [vmem:[#allocation2 + $0x28] sm:$0xff] %vm840, %v3846
      %3892 = vst.msk [vmem:[#allocation2 + $0x38] sm:$0xff] %vm840, %v3848
      %3893 = vst.msk [vmem:[#allocation2 + $0x48] sm:$0xff] %vm840, %v3850
      %3894 = vst.msk [vmem:[#allocation2 + $0x58] sm:$0xff] %vm840, %v3852
      %3895 = vst.msk [vmem:[#allocation2 + $0x68] sm:$0xff] %vm840, %v3854
      %3896 = vst.msk [vmem:[#allocation2 + $0x78] sm:$0xff] %vm840, %v3856
      %3897 = vst.msk [vmem:[#allocation2 + $0x88] sm:$0xff] %vm840, %v3858
      %3898 = vst.msk [vmem:[#allocation2 + $0x98] sm:$0xff] %vm840, %v3860
      %3899 = vst.msk [vmem:[#allocation2 + $0xa8] sm:$0xff] %vm840, %v3862
      %3900 = vst.msk [vmem:[#allocation2 + $0xb8] sm:$0xff] %vm840, %v3864
      %3901 = vst.msk [vmem:[#allocation2 + $0xc8] sm:$0xff] %vm840, %v3866
      %3902 = vst.msk [vmem:[#allocation2 + $0xd8] sm:$0xff] %vm840, %v3868
      %3903 = vst.msk [vmem:[#allocation2 + $0xe8] sm:$0xff] %vm840, %v3870
      %3904 = vst.msk [vmem:[#allocation2 + $0xf8] sm:$0xff] %vm840, %v3872
      %v3905 = vld [vmem:[%s3520 + $0x4] sm:$0xff]
      %v3906 = vld [vmem:[%s3520 + $0xc] sm:$0xff]
      %v3907 = vld [vmem:[%s3520 + $0x1c] sm:$0xff]
      %v3908 = vld [vmem:[%s3520 + $0x24] sm:$0xff]
      %v3909 = vld [vmem:[%s3520 + $0x34] sm:$0xff]
      %v3910 = vld [vmem:[%s3520 + $0x3c] sm:$0xff]
      %v3911 = vld [vmem:[%s3520 + $0x4c] sm:$0xff]
      %v3912 = vld [vmem:[%s3520 + $0x54] sm:$0xff]
      %v3913 = vld [vmem:[%s3520 + $0x64] sm:$0xff]
      %v3914 = vld [vmem:[%s3520 + $0x6c] sm:$0xff]
      %v3915 = vld [vmem:[%s3520 + $0x7c] sm:$0xff]
      %v3916 = vld [vmem:[%s3520 + $0x84] sm:$0xff]
      %v3917 = vld [vmem:[%s3520 + $0x94] sm:$0xff]
      %v3918 = vld [vmem:[%s3520 + $0x9c] sm:$0xff]
      %v3919 = vld [vmem:[%s3520 + $0xac] sm:$0xff]
      %v3920 = vld [vmem:[%s3520 + $0xb4] sm:$0xff]
      %3937 = vrot.lane.b32.xlu0 %v3905, 28
      %v3938 = vpop.permute.xlu0 %3937
      %3939 = vrot.lane.b32.xlu0 %v3906, 28
      %v3940 = vpop.permute.xlu0 %3939
      %3941 = vrot.lane.b32.xlu0 %v3907, 28
      %v3942 = vpop.permute.xlu0 %3941
      %3943 = vrot.lane.b32.xlu0 %v3908, 28
      %v3944 = vpop.permute.xlu0 %3943
      %3945 = vrot.lane.b32.xlu0 %v3909, 28
      %v3946 = vpop.permute.xlu0 %3945
      %3947 = vrot.lane.b32.xlu0 %v3910, 28
      %v3948 = vpop.permute.xlu0 %3947
      %3949 = vrot.lane.b32.xlu0 %v3911, 28
      %v3950 = vpop.permute.xlu0 %3949
      %3951 = vrot.lane.b32.xlu0 %v3912, 28
      %v3952 = vpop.permute.xlu0 %3951
      %3953 = vrot.lane.b32.xlu0 %v3913, 28
      %v3954 = vpop.permute.xlu0 %3953
      %3955 = vrot.lane.b32.xlu0 %v3914, 28
      %v3956 = vpop.permute.xlu0 %3955
      %3957 = vrot.lane.b32.xlu0 %v3915, 28
      %v3958 = vpop.permute.xlu0 %3957
      %3959 = vrot.lane.b32.xlu0 %v3916, 28
      %v3960 = vpop.permute.xlu0 %3959
      %3961 = vrot.lane.b32.xlu0 %v3917, 28
      %v3962 = vpop.permute.xlu0 %3961
      %3963 = vrot.lane.b32.xlu0 %v3918, 28
      %v3964 = vpop.permute.xlu0 %3963
      %3965 = vrot.lane.b32.xlu0 %v3919, 28
      %v3966 = vpop.permute.xlu0 %3965
      %3967 = vrot.lane.b32.xlu0 %v3920, 28
      %v3968 = vpop.permute.xlu0 %3967
      %3985 = vst.msk [vmem:[#allocation2 + $0x8] sm:$0xff] %vm940, %v3938
      %3986 = vst.msk [vmem:[#allocation2 + $0x18] sm:$0xff] %vm940, %v3940
      %3987 = vst.msk [vmem:[#allocation2 + $0x28] sm:$0xff] %vm940, %v3942
      %3988 = vst.msk [vmem:[#allocation2 + $0x38] sm:$0xff] %vm940, %v3944
      %3989 = vst.msk [vmem:[#allocation2 + $0x48] sm:$0xff] %vm940, %v3946
      %3990 = vst.msk [vmem:[#allocation2 + $0x58] sm:$0xff] %vm940, %v3948
      %3991 = vst.msk [vmem:[#allocation2 + $0x68] sm:$0xff] %vm940, %v3950
      %3992 = vst.msk [vmem:[#allocation2 + $0x78] sm:$0xff] %vm940, %v3952
      %3993 = vst.msk [vmem:[#allocation2 + $0x88] sm:$0xff] %vm940, %v3954
      %3994 = vst.msk [vmem:[#allocation2 + $0x98] sm:$0xff] %vm940, %v3956
      %3995 = vst.msk [vmem:[#allocation2 + $0xa8] sm:$0xff] %vm940, %v3958
      %3996 = vst.msk [vmem:[#allocation2 + $0xb8] sm:$0xff] %vm940, %v3960
      %3997 = vst.msk [vmem:[#allocation2 + $0xc8] sm:$0xff] %vm940, %v3962
      %3998 = vst.msk [vmem:[#allocation2 + $0xd8] sm:$0xff] %vm940, %v3964
      %3999 = vst.msk [vmem:[#allocation2 + $0xe8] sm:$0xff] %vm940, %v3966
      %4000 = vst.msk [vmem:[#allocation2 + $0xf8] sm:$0xff] %vm940, %v3968
      %v4001 = vld [vmem:[%s3520 + $0x5] sm:$0xff]
      %v4002 = vld [vmem:[%s3520 + $0xd] sm:$0xff]
      %v4003 = vld [vmem:[%s3520 + $0x1d] sm:$0xff]
      %v4004 = vld [vmem:[%s3520 + $0x25] sm:$0xff]
      %v4005 = vld [vmem:[%s3520 + $0x35] sm:$0xff]
      %v4006 = vld [vmem:[%s3520 + $0x3d] sm:$0xff]
      %v4007 = vld [vmem:[%s3520 + $0x4d] sm:$0xff]
      %v4008 = vld [vmem:[%s3520 + $0x55] sm:$0xff]
      %v4009 = vld [vmem:[%s3520 + $0x65] sm:$0xff]
      %v4010 = vld [vmem:[%s3520 + $0x6d] sm:$0xff]
      %v4011 = vld [vmem:[%s3520 + $0x7d] sm:$0xff]
      %v4012 = vld [vmem:[%s3520 + $0x85] sm:$0xff]
      %v4013 = vld [vmem:[%s3520 + $0x95] sm:$0xff]
      %v4014 = vld [vmem:[%s3520 + $0x9d] sm:$0xff]
      %v4015 = vld [vmem:[%s3520 + $0xad] sm:$0xff]
      %v4016 = vld [vmem:[%s3520 + $0xb5] sm:$0xff]
      %4033 = vrot.lane.b32.xlu0 %v4001, 32
      %v4034 = vpop.permute.xlu0 %4033
      %4035 = vrot.lane.b32.xlu0 %v4002, 32
      %v4036 = vpop.permute.xlu0 %4035
      %4037 = vrot.lane.b32.xlu0 %v4003, 32
      %v4038 = vpop.permute.xlu0 %4037
      %4039 = vrot.lane.b32.xlu0 %v4004, 32
      %v4040 = vpop.permute.xlu0 %4039
      %4041 = vrot.lane.b32.xlu0 %v4005, 32
      %v4042 = vpop.permute.xlu0 %4041
      %4043 = vrot.lane.b32.xlu0 %v4006, 32
      %v4044 = vpop.permute.xlu0 %4043
      %4045 = vrot.lane.b32.xlu0 %v4007, 32
      %v4046 = vpop.permute.xlu0 %4045
      %4047 = vrot.lane.b32.xlu0 %v4008, 32
      %v4048 = vpop.permute.xlu0 %4047
      %4049 = vrot.lane.b32.xlu0 %v4009, 32
      %v4050 = vpop.permute.xlu0 %4049
      %4051 = vrot.lane.b32.xlu0 %v4010, 32
      %v4052 = vpop.permute.xlu0 %4051
      %4053 = vrot.lane.b32.xlu0 %v4011, 32
      %v4054 = vpop.permute.xlu0 %4053
      %4055 = vrot.lane.b32.xlu0 %v4012, 32
      %v4056 = vpop.permute.xlu0 %4055
      %4057 = vrot.lane.b32.xlu0 %v4013, 32
      %v4058 = vpop.permute.xlu0 %4057
      %4059 = vrot.lane.b32.xlu0 %v4014, 32
      %v4060 = vpop.permute.xlu0 %4059
      %4061 = vrot.lane.b32.xlu0 %v4015, 32
      %v4062 = vpop.permute.xlu0 %4061
      %4063 = vrot.lane.b32.xlu0 %v4016, 32
      %v4064 = vpop.permute.xlu0 %4063
      %4081 = vst.msk [vmem:[#allocation2 + $0x8] sm:$0xff] %vm1037, %v4034
      %4082 = vst.msk [vmem:[#allocation2 + $0x18] sm:$0xff] %vm1037, %v4036
      %4083 = vst.msk [vmem:[#allocation2 + $0x28] sm:$0xff] %vm1037, %v4038
      %4084 = vst.msk [vmem:[#allocation2 + $0x38] sm:$0xff] %vm1037, %v4040
      %4085 = vst.msk [vmem:[#allocation2 + $0x48] sm:$0xff] %vm1037, %v4042
      %4086 = vst.msk [vmem:[#allocation2 + $0x58] sm:$0xff] %vm1037, %v4044
      %4087 = vst.msk [vmem:[#allocation2 + $0x68] sm:$0xff] %vm1037, %v4046
      %4088 = vst.msk [vmem:[#allocation2 + $0x78] sm:$0xff] %vm1037, %v4048
      %4089 = vst.msk [vmem:[#allocation2 + $0x88] sm:$0xff] %vm1037, %v4050
      %4090 = vst.msk [vmem:[#allocation2 + $0x98] sm:$0xff] %vm1037, %v4052
      %4091 = vst.msk [vmem:[#allocation2 + $0xa8] sm:$0xff] %vm1037, %v4054
      %4092 = vst.msk [vmem:[#allocation2 + $0xb8] sm:$0xff] %vm1037, %v4056
      %4093 = vst.msk [vmem:[#allocation2 + $0xc8] sm:$0xff] %vm1037, %v4058
      %4094 = vst.msk [vmem:[#allocation2 + $0xd8] sm:$0xff] %vm1037, %v4060
      %4095 = vst.msk [vmem:[#allocation2 + $0xe8] sm:$0xff] %vm1037, %v4062
      %4096 = vst.msk [vmem:[#allocation2 + $0xf8] sm:$0xff] %vm1037, %v4064
      %v4097 = vld [vmem:[%s3520 + $0x6] sm:$0xff]
      %v4098 = vld [vmem:[%s3520 + $0xe] sm:$0xff]
      %v4099 = vld [vmem:[%s3520 + $0x1e] sm:$0xff]
      %v4100 = vld [vmem:[%s3520 + $0x26] sm:$0xff]
      %v4101 = vld [vmem:[%s3520 + $0x36] sm:$0xff]
      %v4102 = vld [vmem:[%s3520 + $0x3e] sm:$0xff]
      %v4103 = vld [vmem:[%s3520 + $0x4e] sm:$0xff]
      %v4104 = vld [vmem:[%s3520 + $0x56] sm:$0xff]
      %v4105 = vld [vmem:[%s3520 + $0x66] sm:$0xff]
      %v4106 = vld [vmem:[%s3520 + $0x6e] sm:$0xff]
      %v4107 = vld [vmem:[%s3520 + $0x7e] sm:$0xff]
      %v4108 = vld [vmem:[%s3520 + $0x86] sm:$0xff]
      %v4109 = vld [vmem:[%s3520 + $0x96] sm:$0xff]
      %v4110 = vld [vmem:[%s3520 + $0x9e] sm:$0xff]
      %v4111 = vld [vmem:[%s3520 + $0xae] sm:$0xff]
      %v4112 = vld [vmem:[%s3520 + $0xb6] sm:$0xff]
      %4129 = vrot.lane.b32.xlu0 %v4097, 36
      %v4130 = vpop.permute.xlu0 %4129
      %4131 = vrot.lane.b32.xlu0 %v4098, 36
      %v4132 = vpop.permute.xlu0 %4131
      %4133 = vrot.lane.b32.xlu0 %v4099, 36
      %v4134 = vpop.permute.xlu0 %4133
      %4135 = vrot.lane.b32.xlu0 %v4100, 36
      %v4136 = vpop.permute.xlu0 %4135
      %4137 = vrot.lane.b32.xlu0 %v4101, 36
      %v4138 = vpop.permute.xlu0 %4137
      %4139 = vrot.lane.b32.xlu0 %v4102, 36
      %v4140 = vpop.permute.xlu0 %4139
      %4141 = vrot.lane.b32.xlu0 %v4103, 36
      %v4142 = vpop.permute.xlu0 %4141
      %4143 = vrot.lane.b32.xlu0 %v4104, 36
      %v4144 = vpop.permute.xlu0 %4143
      %4145 = vrot.lane.b32.xlu0 %v4105, 36
      %v4146 = vpop.permute.xlu0 %4145
      %4147 = vrot.lane.b32.xlu0 %v4106, 36
      %v4148 = vpop.permute.xlu0 %4147
      %4149 = vrot.lane.b32.xlu0 %v4107, 36
      %v4150 = vpop.permute.xlu0 %4149
      %4151 = vrot.lane.b32.xlu0 %v4108, 36
      %v4152 = vpop.permute.xlu0 %4151
      %4153 = vrot.lane.b32.xlu0 %v4109, 36
      %v4154 = vpop.permute.xlu0 %4153
      %4155 = vrot.lane.b32.xlu0 %v4110, 36
      %v4156 = vpop.permute.xlu0 %4155
      %4157 = vrot.lane.b32.xlu0 %v4111, 36
      %v4158 = vpop.permute.xlu0 %4157
      %4159 = vrot.lane.b32.xlu0 %v4112, 36
      %v4160 = vpop.permute.xlu0 %4159
      %4177 = vst.msk [vmem:[#allocation2 + $0x8] sm:$0xff] %vm1134, %v4130
      %4178 = vst.msk [vmem:[#allocation2 + $0x18] sm:$0xff] %vm1134, %v4132
      %4179 = vst.msk [vmem:[#allocation2 + $0x28] sm:$0xff] %vm1134, %v4134
      %4180 = vst.msk [vmem:[#allocation2 + $0x38] sm:$0xff] %vm1134, %v4136
      %4181 = vst.msk [vmem:[#allocation2 + $0x48] sm:$0xff] %vm1134, %v4138
      %4182 = vst.msk [vmem:[#allocation2 + $0x58] sm:$0xff] %vm1134, %v4140
      %4183 = vst.msk [vmem:[#allocation2 + $0x68] sm:$0xff] %vm1134, %v4142
      %4184 = vst.msk [vmem:[#allocation2 + $0x78] sm:$0xff] %vm1134, %v4144
      %4185 = vst.msk [vmem:[#allocation2 + $0x88] sm:$0xff] %vm1134, %v4146
      %4186 = vst.msk [vmem:[#allocation2 + $0x98] sm:$0xff] %vm1134, %v4148
      %4187 = vst.msk [vmem:[#allocation2 + $0xa8] sm:$0xff] %vm1134, %v4150
      %4188 = vst.msk [vmem:[#allocation2 + $0xb8] sm:$0xff] %vm1134, %v4152
      %4189 = vst.msk [vmem:[#allocation2 + $0xc8] sm:$0xff] %vm1134, %v4154
      %4190 = vst.msk [vmem:[#allocation2 + $0xd8] sm:$0xff] %vm1134, %v4156
      %4191 = vst.msk [vmem:[#allocation2 + $0xe8] sm:$0xff] %vm1134, %v4158
      %4192 = vst.msk [vmem:[#allocation2 + $0xf8] sm:$0xff] %vm1134, %v4160
      %s4193 = sadd.s32 %s222, 6
      %s4194 = smul.u32 %s4193, 24
      %s4195 = scalar_lea.vmem %s221, %s4194
      %v4196 = vld [vmem:[%s4195] sm:$0xff]
      %v4197 = vld [vmem:[%s4195 + $0x8] sm:$0xff]
      %v4198 = vld [vmem:[%s4195 + $0x18] sm:$0xff]
      %v4199 = vld [vmem:[%s4195 + $0x20] sm:$0xff]
      %v4200 = vld [vmem:[%s4195 + $0x30] sm:$0xff]
      %v4201 = vld [vmem:[%s4195 + $0x38] sm:$0xff]
      %v4202 = vld [vmem:[%s4195 + $0x48] sm:$0xff]
      %v4203 = vld [vmem:[%s4195 + $0x50] sm:$0xff]
      %v4204 = vld [vmem:[%s4195 + $0x60] sm:$0xff]
      %v4205 = vld [vmem:[%s4195 + $0x68] sm:$0xff]
      %v4206 = vld [vmem:[%s4195 + $0x78] sm:$0xff]
      %v4207 = vld [vmem:[%s4195 + $0x80] sm:$0xff]
      %v4208 = vld [vmem:[%s4195 + $0x90] sm:$0xff]
      %v4209 = vld [vmem:[%s4195 + $0x98] sm:$0xff]
      %v4210 = vld [vmem:[%s4195 + $0xa8] sm:$0xff]
      %v4211 = vld [vmem:[%s4195 + $0xb0] sm:$0xff]
      %4228 = vrot.lane.b32.xlu0 %v4196, 40
      %v4229 = vpop.permute.xlu0 %4228
      %4230 = vrot.lane.b32.xlu0 %v4197, 40
      %v4231 = vpop.permute.xlu0 %4230
      %4232 = vrot.lane.b32.xlu0 %v4198, 40
      %v4233 = vpop.permute.xlu0 %4232
      %4234 = vrot.lane.b32.xlu0 %v4199, 40
      %v4235 = vpop.permute.xlu0 %4234
      %4236 = vrot.lane.b32.xlu0 %v4200, 40
      %v4237 = vpop.permute.xlu0 %4236
      %4238 = vrot.lane.b32.xlu0 %v4201, 40
      %v4239 = vpop.permute.xlu0 %4238
      %4240 = vrot.lane.b32.xlu0 %v4202, 40
      %v4241 = vpop.permute.xlu0 %4240
      %4242 = vrot.lane.b32.xlu0 %v4203, 40
      %v4243 = vpop.permute.xlu0 %4242
      %4244 = vrot.lane.b32.xlu0 %v4204, 40
      %v4245 = vpop.permute.xlu0 %4244
      %4246 = vrot.lane.b32.xlu0 %v4205, 40
      %v4247 = vpop.permute.xlu0 %4246
      %4248 = vrot.lane.b32.xlu0 %v4206, 40
      %v4249 = vpop.permute.xlu0 %4248
      %4250 = vrot.lane.b32.xlu0 %v4207, 40
      %v4251 = vpop.permute.xlu0 %4250
      %4252 = vrot.lane.b32.xlu0 %v4208, 40
      %v4253 = vpop.permute.xlu0 %4252
      %4254 = vrot.lane.b32.xlu0 %v4209, 40
      %v4255 = vpop.permute.xlu0 %4254
      %4256 = vrot.lane.b32.xlu0 %v4210, 40
      %v4257 = vpop.permute.xlu0 %4256
      %4258 = vrot.lane.b32.xlu0 %v4211, 40
      %v4259 = vpop.permute.xlu0 %4258
      %4276 = vst.msk [vmem:[#allocation2 + $0x8] sm:$0xff] %vm1231, %v4229
      %4277 = vst.msk [vmem:[#allocation2 + $0x18] sm:$0xff] %vm1231, %v4231
      %4278 = vst.msk [vmem:[#allocation2 + $0x28] sm:$0xff] %vm1231, %v4233
      %4279 = vst.msk [vmem:[#allocation2 + $0x38] sm:$0xff] %vm1231, %v4235
      %4280 = vst.msk [vmem:[#allocation2 + $0x48] sm:$0xff] %vm1231, %v4237
      %4281 = vst.msk [vmem:[#allocation2 + $0x58] sm:$0xff] %vm1231, %v4239
      %4282 = vst.msk [vmem:[#allocation2 + $0x68] sm:$0xff] %vm1231, %v4241
      %4283 = vst.msk [vmem:[#allocation2 + $0x78] sm:$0xff] %vm1231, %v4243
      %4284 = vst.msk [vmem:[#allocation2 + $0x88] sm:$0xff] %vm1231, %v4245
      %4285 = vst.msk [vmem:[#allocation2 + $0x98] sm:$0xff] %vm1231, %v4247
      %4286 = vst.msk [vmem:[#allocation2 + $0xa8] sm:$0xff] %vm1231, %v4249
      %4287 = vst.msk [vmem:[#allocation2 + $0xb8] sm:$0xff] %vm1231, %v4251
      %4288 = vst.msk [vmem:[#allocation2 + $0xc8] sm:$0xff] %vm1231, %v4253
      %4289 = vst.msk [vmem:[#allocation2 + $0xd8] sm:$0xff] %vm1231, %v4255
      %4290 = vst.msk [vmem:[#allocation2 + $0xe8] sm:$0xff] %vm1231, %v4257
      %4291 = vst.msk [vmem:[#allocation2 + $0xf8] sm:$0xff] %vm1231, %v4259
      %v4292 = vld [vmem:[%s4195 + $0x1] sm:$0xff]
      %v4293 = vld [vmem:[%s4195 + $0x9] sm:$0xff]
      %v4294 = vld [vmem:[%s4195 + $0x19] sm:$0xff]
      %v4295 = vld [vmem:[%s4195 + $0x21] sm:$0xff]
      %v4296 = vld [vmem:[%s4195 + $0x31] sm:$0xff]
      %v4297 = vld [vmem:[%s4195 + $0x39] sm:$0xff]
      %v4298 = vld [vmem:[%s4195 + $0x49] sm:$0xff]
      %v4299 = vld [vmem:[%s4195 + $0x51] sm:$0xff]
      %v4300 = vld [vmem:[%s4195 + $0x61] sm:$0xff]
      %v4301 = vld [vmem:[%s4195 + $0x69] sm:$0xff]
      %v4302 = vld [vmem:[%s4195 + $0x79] sm:$0xff]
      %v4303 = vld [vmem:[%s4195 + $0x81] sm:$0xff]
      %v4304 = vld [vmem:[%s4195 + $0x91] sm:$0xff]
      %v4305 = vld [vmem:[%s4195 + $0x99] sm:$0xff]
      %v4306 = vld [vmem:[%s4195 + $0xa9] sm:$0xff]
      %v4307 = vld [vmem:[%s4195 + $0xb1] sm:$0xff]
      %4324 = vrot.lane.b32.xlu0 %v4292, 44
      %v4325 = vpop.permute.xlu0 %4324
      %4326 = vrot.lane.b32.xlu0 %v4293, 44
      %v4327 = vpop.permute.xlu0 %4326
      %4328 = vrot.lane.b32.xlu0 %v4294, 44
      %v4329 = vpop.permute.xlu0 %4328
      %4330 = vrot.lane.b32.xlu0 %v4295, 44
      %v4331 = vpop.permute.xlu0 %4330
      %4332 = vrot.lane.b32.xlu0 %v4296, 44
      %v4333 = vpop.permute.xlu0 %4332
      %4334 = vrot.lane.b32.xlu0 %v4297, 44
      %v4335 = vpop.permute.xlu0 %4334
      %4336 = vrot.lane.b32.xlu0 %v4298, 44
      %v4337 = vpop.permute.xlu0 %4336
      %4338 = vrot.lane.b32.xlu0 %v4299, 44
      %v4339 = vpop.permute.xlu0 %4338
      %4340 = vrot.lane.b32.xlu0 %v4300, 44
      %v4341 = vpop.permute.xlu0 %4340
      %4342 = vrot.lane.b32.xlu0 %v4301, 44
      %v4343 = vpop.permute.xlu0 %4342
      %4344 = vrot.lane.b32.xlu0 %v4302, 44
      %v4345 = vpop.permute.xlu0 %4344
      %4346 = vrot.lane.b32.xlu0 %v4303, 44
      %v4347 = vpop.permute.xlu0 %4346
      %4348 = vrot.lane.b32.xlu0 %v4304, 44
      %v4349 = vpop.permute.xlu0 %4348
      %4350 = vrot.lane.b32.xlu0 %v4305, 44
      %v4351 = vpop.permute.xlu0 %4350
      %4352 = vrot.lane.b32.xlu0 %v4306, 44
      %v4353 = vpop.permute.xlu0 %4352
      %4354 = vrot.lane.b32.xlu0 %v4307, 44
      %v4355 = vpop.permute.xlu0 %4354
      %4372 = vst.msk [vmem:[#allocation2 + $0x8] sm:$0xff] %vm1328, %v4325
      %4373 = vst.msk [vmem:[#allocation2 + $0x18] sm:$0xff] %vm1328, %v4327
      %4374 = vst.msk [vmem:[#allocation2 + $0x28] sm:$0xff] %vm1328, %v4329
      %4375 = vst.msk [vmem:[#allocation2 + $0x38] sm:$0xff] %vm1328, %v4331
      %4376 = vst.msk [vmem:[#allocation2 + $0x48] sm:$0xff] %vm1328, %v4333
      %4377 = vst.msk [vmem:[#allocation2 + $0x58] sm:$0xff] %vm1328, %v4335
      %4378 = vst.msk [vmem:[#allocation2 + $0x68] sm:$0xff] %vm1328, %v4337
      %4379 = vst.msk [vmem:[#allocation2 + $0x78] sm:$0xff] %vm1328, %v4339
      %4380 = vst.msk [vmem:[#allocation2 + $0x88] sm:$0xff] %vm1328, %v4341
      %4381 = vst.msk [vmem:[#allocation2 + $0x98] sm:$0xff] %vm1328, %v4343
      %4382 = vst.msk [vmem:[#allocation2 + $0xa8] sm:$0xff] %vm1328, %v4345
      %4383 = vst.msk [vmem:[#allocation2 + $0xb8] sm:$0xff] %vm1328, %v4347
      %4384 = vst.msk [vmem:[#allocation2 + $0xc8] sm:$0xff] %vm1328, %v4349
      %4385 = vst.msk [vmem:[#allocation2 + $0xd8] sm:$0xff] %vm1328, %v4351
      %4386 = vst.msk [vmem:[#allocation2 + $0xe8] sm:$0xff] %vm1328, %v4353
      %4387 = vst.msk [vmem:[#allocation2 + $0xf8] sm:$0xff] %vm1328, %v4355
      %v4388 = vld [vmem:[%s4195 + $0x2] sm:$0xff]
      %v4389 = vld [vmem:[%s4195 + $0xa] sm:$0xff]
      %v4390 = vld [vmem:[%s4195 + $0x1a] sm:$0xff]
      %v4391 = vld [vmem:[%s4195 + $0x22] sm:$0xff]
      %v4392 = vld [vmem:[%s4195 + $0x32] sm:$0xff]
      %v4393 = vld [vmem:[%s4195 + $0x3a] sm:$0xff]
      %v4394 = vld [vmem:[%s4195 + $0x4a] sm:$0xff]
      %v4395 = vld [vmem:[%s4195 + $0x52] sm:$0xff]
      %v4396 = vld [vmem:[%s4195 + $0x62] sm:$0xff]
      %v4397 = vld [vmem:[%s4195 + $0x6a] sm:$0xff]
      %v4398 = vld [vmem:[%s4195 + $0x7a] sm:$0xff]
      %v4399 = vld [vmem:[%s4195 + $0x82] sm:$0xff]
      %v4400 = vld [vmem:[%s4195 + $0x92] sm:$0xff]
      %v4401 = vld [vmem:[%s4195 + $0x9a] sm:$0xff]
      %v4402 = vld [vmem:[%s4195 + $0xaa] sm:$0xff]
      %v4403 = vld [vmem:[%s4195 + $0xb2] sm:$0xff]
      %4420 = vrot.lane.b32.xlu0 %v4388, 48
      %v4421 = vpop.permute.xlu0 %4420
      %4422 = vrot.lane.b32.xlu0 %v4389, 48
      %v4423 = vpop.permute.xlu0 %4422
      %4424 = vrot.lane.b32.xlu0 %v4390, 48
      %v4425 = vpop.permute.xlu0 %4424
      %4426 = vrot.lane.b32.xlu0 %v4391, 48
      %v4427 = vpop.permute.xlu0 %4426
      %4428 = vrot.lane.b32.xlu0 %v4392, 48
      %v4429 = vpop.permute.xlu0 %4428
      %4430 = vrot.lane.b32.xlu0 %v4393, 48
      %v4431 = vpop.permute.xlu0 %4430
      %4432 = vrot.lane.b32.xlu0 %v4394, 48
      %v4433 = vpop.permute.xlu0 %4432
      %4434 = vrot.lane.b32.xlu0 %v4395, 48
      %v4435 = vpop.permute.xlu0 %4434
      %4436 = vrot.lane.b32.xlu0 %v4396, 48
      %v4437 = vpop.permute.xlu0 %4436
      %4438 = vrot.lane.b32.xlu0 %v4397, 48
      %v4439 = vpop.permute.xlu0 %4438
      %4440 = vrot.lane.b32.xlu0 %v4398, 48
      %v4441 = vpop.permute.xlu0 %4440
      %4442 = vrot.lane.b32.xlu0 %v4399, 48
      %v4443 = vpop.permute.xlu0 %4442
      %4444 = vrot.lane.b32.xlu0 %v4400, 48
      %v4445 = vpop.permute.xlu0 %4444
      %4446 = vrot.lane.b32.xlu0 %v4401, 48
      %v4447 = vpop.permute.xlu0 %4446
      %4448 = vrot.lane.b32.xlu0 %v4402, 48
      %v4449 = vpop.permute.xlu0 %4448
      %4450 = vrot.lane.b32.xlu0 %v4403, 48
      %v4451 = vpop.permute.xlu0 %4450
      %4468 = vst.msk [vmem:[#allocation2 + $0x8] sm:$0xff] %vm1425, %v4421
      %4469 = vst.msk [vmem:[#allocation2 + $0x18] sm:$0xff] %vm1425, %v4423
      %4470 = vst.msk [vmem:[#allocation2 + $0x28] sm:$0xff] %vm1425, %v4425
      %4471 = vst.msk [vmem:[#allocation2 + $0x38] sm:$0xff] %vm1425, %v4427
      %4472 = vst.msk [vmem:[#allocation2 + $0x48] sm:$0xff] %vm1425, %v4429
      %4473 = vst.msk [vmem:[#allocation2 + $0x58] sm:$0xff] %vm1425, %v4431
      %4474 = vst.msk [vmem:[#allocation2 + $0x68] sm:$0xff] %vm1425, %v4433
      %4475 = vst.msk [vmem:[#allocation2 + $0x78] sm:$0xff] %vm1425, %v4435
      %4476 = vst.msk [vmem:[#allocation2 + $0x88] sm:$0xff] %vm1425, %v4437
      %4477 = vst.msk [vmem:[#allocation2 + $0x98] sm:$0xff] %vm1425, %v4439
      %4478 = vst.msk [vmem:[#allocation2 + $0xa8] sm:$0xff] %vm1425, %v4441
      %4479 = vst.msk [vmem:[#allocation2 + $0xb8] sm:$0xff] %vm1425, %v4443
      %4480 = vst.msk [vmem:[#allocation2 + $0xc8] sm:$0xff] %vm1425, %v4445
      %4481 = vst.msk [vmem:[#allocation2 + $0xd8] sm:$0xff] %vm1425, %v4447
      %4482 = vst.msk [vmem:[#allocation2 + $0xe8] sm:$0xff] %vm1425, %v4449
      %4483 = vst.msk [vmem:[#allocation2 + $0xf8] sm:$0xff] %vm1425, %v4451
      %v4484 = vld [vmem:[%s4195 + $0x3] sm:$0xff]
      %v4485 = vld [vmem:[%s4195 + $0xb] sm:$0xff]
      %v4486 = vld [vmem:[%s4195 + $0x1b] sm:$0xff]
      %v4487 = vld [vmem:[%s4195 + $0x23] sm:$0xff]
      %v4488 = vld [vmem:[%s4195 + $0x33] sm:$0xff]
      %v4489 = vld [vmem:[%s4195 + $0x3b] sm:$0xff]
      %v4490 = vld [vmem:[%s4195 + $0x4b] sm:$0xff]
      %v4491 = vld [vmem:[%s4195 + $0x53] sm:$0xff]
      %v4492 = vld [vmem:[%s4195 + $0x63] sm:$0xff]
      %v4493 = vld [vmem:[%s4195 + $0x6b] sm:$0xff]
      %v4494 = vld [vmem:[%s4195 + $0x7b] sm:$0xff]
      %v4495 = vld [vmem:[%s4195 + $0x83] sm:$0xff]
      %v4496 = vld [vmem:[%s4195 + $0x93] sm:$0xff]
      %v4497 = vld [vmem:[%s4195 + $0x9b] sm:$0xff]
      %v4498 = vld [vmem:[%s4195 + $0xab] sm:$0xff]
      %v4499 = vld [vmem:[%s4195 + $0xb3] sm:$0xff]
      %4516 = vrot.lane.b32.xlu0 %v4484, 52
      %v4517 = vpop.permute.xlu0 %4516
      %4518 = vrot.lane.b32.xlu0 %v4485, 52
      %v4519 = vpop.permute.xlu0 %4518
      %4520 = vrot.lane.b32.xlu0 %v4486, 52
      %v4521 = vpop.permute.xlu0 %4520
      %4522 = vrot.lane.b32.xlu0 %v4487, 52
      %v4523 = vpop.permute.xlu0 %4522
      %4524 = vrot.lane.b32.xlu0 %v4488, 52
      %v4525 = vpop.permute.xlu0 %4524
      %4526 = vrot.lane.b32.xlu0 %v4489, 52
      %v4527 = vpop.permute.xlu0 %4526
      %4528 = vrot.lane.b32.xlu0 %v4490, 52
      %v4529 = vpop.permute.xlu0 %4528
      %4530 = vrot.lane.b32.xlu0 %v4491, 52
      %v4531 = vpop.permute.xlu0 %4530
      %4532 = vrot.lane.b32.xlu0 %v4492, 52
      %v4533 = vpop.permute.xlu0 %4532
      %4534 = vrot.lane.b32.xlu0 %v4493, 52
      %v4535 = vpop.permute.xlu0 %4534
      %4536 = vrot.lane.b32.xlu0 %v4494, 52
      %v4537 = vpop.permute.xlu0 %4536
      %4538 = vrot.lane.b32.xlu0 %v4495, 52
      %v4539 = vpop.permute.xlu0 %4538
      %4540 = vrot.lane.b32.xlu0 %v4496, 52
      %v4541 = vpop.permute.xlu0 %4540
      %4542 = vrot.lane.b32.xlu0 %v4497, 52
      %v4543 = vpop.permute.xlu0 %4542
      %4544 = vrot.lane.b32.xlu0 %v4498, 52
      %v4545 = vpop.permute.xlu0 %4544
      %4546 = vrot.lane.b32.xlu0 %v4499, 52
      %v4547 = vpop.permute.xlu0 %4546
      %4564 = vst.msk [vmem:[#allocation2 + $0x8] sm:$0xff] %vm1522, %v4517
      %4565 = vst.msk [vmem:[#allocation2 + $0x18] sm:$0xff] %vm1522, %v4519
      %4566 = vst.msk [vmem:[#allocation2 + $0x28] sm:$0xff] %vm1522, %v4521
      %4567 = vst.msk [vmem:[#allocation2 + $0x38] sm:$0xff] %vm1522, %v4523
      %4568 = vst.msk [vmem:[#allocation2 + $0x48] sm:$0xff] %vm1522, %v4525
      %4569 = vst.msk [vmem:[#allocation2 + $0x58] sm:$0xff] %vm1522, %v4527
      %4570 = vst.msk [vmem:[#allocation2 + $0x68] sm:$0xff] %vm1522, %v4529
      %4571 = vst.msk [vmem:[#allocation2 + $0x78] sm:$0xff] %vm1522, %v4531
      %4572 = vst.msk [vmem:[#allocation2 + $0x88] sm:$0xff] %vm1522, %v4533
      %4573 = vst.msk [vmem:[#allocation2 + $0x98] sm:$0xff] %vm1522, %v4535
      %4574 = vst.msk [vmem:[#allocation2 + $0xa8] sm:$0xff] %vm1522, %v4537
      %4575 = vst.msk [vmem:[#allocation2 + $0xb8] sm:$0xff] %vm1522, %v4539
      %4576 = vst.msk [vmem:[#allocation2 + $0xc8] sm:$0xff] %vm1522, %v4541
      %4577 = vst.msk [vmem:[#allocation2 + $0xd8] sm:$0xff] %vm1522, %v4543
      %4578 = vst.msk [vmem:[#allocation2 + $0xe8] sm:$0xff] %vm1522, %v4545
      %4579 = vst.msk [vmem:[#allocation2 + $0xf8] sm:$0xff] %vm1522, %v4547
      %v4580 = vld [vmem:[%s4195 + $0x4] sm:$0xff]
      %v4581 = vld [vmem:[%s4195 + $0xc] sm:$0xff]
      %v4582 = vld [vmem:[%s4195 + $0x1c] sm:$0xff]
      %v4583 = vld [vmem:[%s4195 + $0x24] sm:$0xff]
      %v4584 = vld [vmem:[%s4195 + $0x34] sm:$0xff]
      %v4585 = vld [vmem:[%s4195 + $0x3c] sm:$0xff]
      %v4586 = vld [vmem:[%s4195 + $0x4c] sm:$0xff]
      %v4587 = vld [vmem:[%s4195 + $0x54] sm:$0xff]
      %v4588 = vld [vmem:[%s4195 + $0x64] sm:$0xff]
      %v4589 = vld [vmem:[%s4195 + $0x6c] sm:$0xff]
      %v4590 = vld [vmem:[%s4195 + $0x7c] sm:$0xff]
      %v4591 = vld [vmem:[%s4195 + $0x84] sm:$0xff]
      %v4592 = vld [vmem:[%s4195 + $0x94] sm:$0xff]
      %v4593 = vld [vmem:[%s4195 + $0x9c] sm:$0xff]
      %v4594 = vld [vmem:[%s4195 + $0xac] sm:$0xff]
      %v4595 = vld [vmem:[%s4195 + $0xb4] sm:$0xff]
      %4612 = vrot.lane.b32.xlu0 %v4580, 56
      %v4613 = vpop.permute.xlu0 %4612
      %4614 = vrot.lane.b32.xlu0 %v4581, 56
      %v4615 = vpop.permute.xlu0 %4614
      %4616 = vrot.lane.b32.xlu0 %v4582, 56
      %v4617 = vpop.permute.xlu0 %4616
      %4618 = vrot.lane.b32.xlu0 %v4583, 56
      %v4619 = vpop.permute.xlu0 %4618
      %4620 = vrot.lane.b32.xlu0 %v4584, 56
      %v4621 = vpop.permute.xlu0 %4620
      %4622 = vrot.lane.b32.xlu0 %v4585, 56
      %v4623 = vpop.permute.xlu0 %4622
      %4624 = vrot.lane.b32.xlu0 %v4586, 56
      %v4625 = vpop.permute.xlu0 %4624
      %4626 = vrot.lane.b32.xlu0 %v4587, 56
      %v4627 = vpop.permute.xlu0 %4626
      %4628 = vrot.lane.b32.xlu0 %v4588, 56
      %v4629 = vpop.permute.xlu0 %4628
      %4630 = vrot.lane.b32.xlu0 %v4589, 56
      %v4631 = vpop.permute.xlu0 %4630
      %4632 = vrot.lane.b32.xlu0 %v4590, 56
      %v4633 = vpop.permute.xlu0 %4632
      %4634 = vrot.lane.b32.xlu0 %v4591, 56
      %v4635 = vpop.permute.xlu0 %4634
      %4636 = vrot.lane.b32.xlu0 %v4592, 56
      %v4637 = vpop.permute.xlu0 %4636
      %4638 = vrot.lane.b32.xlu0 %v4593, 56
      %v4639 = vpop.permute.xlu0 %4638
      %4640 = vrot.lane.b32.xlu0 %v4594, 56
      %v4641 = vpop.permute.xlu0 %4640
      %4642 = vrot.lane.b32.xlu0 %v4595, 56
      %v4643 = vpop.permute.xlu0 %4642
      %4660 = vst.msk [vmem:[#allocation2 + $0x8] sm:$0xff] %vm1622, %v4613
      %4661 = vst.msk [vmem:[#allocation2 + $0x18] sm:$0xff] %vm1622, %v4615
      %4662 = vst.msk [vmem:[#allocation2 + $0x28] sm:$0xff] %vm1622, %v4617
      %4663 = vst.msk [vmem:[#allocation2 + $0x38] sm:$0xff] %vm1622, %v4619
      %4664 = vst.msk [vmem:[#allocation2 + $0x48] sm:$0xff] %vm1622, %v4621
      %4665 = vst.msk [vmem:[#allocation2 + $0x58] sm:$0xff] %vm1622, %v4623
      %4666 = vst.msk [vmem:[#allocation2 + $0x68] sm:$0xff] %vm1622, %v4625
      %4667 = vst.msk [vmem:[#allocation2 + $0x78] sm:$0xff] %vm1622, %v4627
      %4668 = vst.msk [vmem:[#allocation2 + $0x88] sm:$0xff] %vm1622, %v4629
      %4669 = vst.msk [vmem:[#allocation2 + $0x98] sm:$0xff] %vm1622, %v4631
      %4670 = vst.msk [vmem:[#allocation2 + $0xa8] sm:$0xff] %vm1622, %v4633
      %4671 = vst.msk [vmem:[#allocation2 + $0xb8] sm:$0xff] %vm1622, %v4635
      %4672 = vst.msk [vmem:[#allocation2 + $0xc8] sm:$0xff] %vm1622, %v4637
      %4673 = vst.msk [vmem:[#allocation2 + $0xd8] sm:$0xff] %vm1622, %v4639
      %4674 = vst.msk [vmem:[#allocation2 + $0xe8] sm:$0xff] %vm1622, %v4641
      %4675 = vst.msk [vmem:[#allocation2 + $0xf8] sm:$0xff] %vm1622, %v4643
      %v4676 = vld [vmem:[%s4195 + $0x5] sm:$0xff]
      %v4677 = vld [vmem:[%s4195 + $0xd] sm:$0xff]
      %v4678 = vld [vmem:[%s4195 + $0x1d] sm:$0xff]
      %v4679 = vld [vmem:[%s4195 + $0x25] sm:$0xff]
      %v4680 = vld [vmem:[%s4195 + $0x35] sm:$0xff]
      %v4681 = vld [vmem:[%s4195 + $0x3d] sm:$0xff]
      %v4682 = vld [vmem:[%s4195 + $0x4d] sm:$0xff]
      %v4683 = vld [vmem:[%s4195 + $0x55] sm:$0xff]
      %v4684 = vld [vmem:[%s4195 + $0x65] sm:$0xff]
      %v4685 = vld [vmem:[%s4195 + $0x6d] sm:$0xff]
      %v4686 = vld [vmem:[%s4195 + $0x7d] sm:$0xff]
      %v4687 = vld [vmem:[%s4195 + $0x85] sm:$0xff]
      %v4688 = vld [vmem:[%s4195 + $0x95] sm:$0xff]
      %v4689 = vld [vmem:[%s4195 + $0x9d] sm:$0xff]
      %v4690 = vld [vmem:[%s4195 + $0xad] sm:$0xff]
      %v4691 = vld [vmem:[%s4195 + $0xb5] sm:$0xff]
      %4708 = vrot.lane.b32.xlu0 %v4676, 60
      %v4709 = vpop.permute.xlu0 %4708
      %4710 = vrot.lane.b32.xlu0 %v4677, 60
      %v4711 = vpop.permute.xlu0 %4710
      %4712 = vrot.lane.b32.xlu0 %v4678, 60
      %v4713 = vpop.permute.xlu0 %4712
      %4714 = vrot.lane.b32.xlu0 %v4679, 60
      %v4715 = vpop.permute.xlu0 %4714
      %4716 = vrot.lane.b32.xlu0 %v4680, 60
      %v4717 = vpop.permute.xlu0 %4716
      %4718 = vrot.lane.b32.xlu0 %v4681, 60
      %v4719 = vpop.permute.xlu0 %4718
      %4720 = vrot.lane.b32.xlu0 %v4682, 60
      %v4721 = vpop.permute.xlu0 %4720
      %4722 = vrot.lane.b32.xlu0 %v4683, 60
      %v4723 = vpop.permute.xlu0 %4722
      %4724 = vrot.lane.b32.xlu0 %v4684, 60
      %v4725 = vpop.permute.xlu0 %4724
      %4726 = vrot.lane.b32.xlu0 %v4685, 60
      %v4727 = vpop.permute.xlu0 %4726
      %4728 = vrot.lane.b32.xlu0 %v4686, 60
      %v4729 = vpop.permute.xlu0 %4728
      %4730 = vrot.lane.b32.xlu0 %v4687, 60
      %v4731 = vpop.permute.xlu0 %4730
      %4732 = vrot.lane.b32.xlu0 %v4688, 60
      %v4733 = vpop.permute.xlu0 %4732
      %4734 = vrot.lane.b32.xlu0 %v4689, 60
      %v4735 = vpop.permute.xlu0 %4734
      %4736 = vrot.lane.b32.xlu0 %v4690, 60
      %v4737 = vpop.permute.xlu0 %4736
      %4738 = vrot.lane.b32.xlu0 %v4691, 60
      %v4739 = vpop.permute.xlu0 %4738
      %4756 = vst.msk [vmem:[#allocation2 + $0x8] sm:$0xff] %vm1719, %v4709
      %4757 = vst.msk [vmem:[#allocation2 + $0x18] sm:$0xff] %vm1719, %v4711
      %4758 = vst.msk [vmem:[#allocation2 + $0x28] sm:$0xff] %vm1719, %v4713
      %4759 = vst.msk [vmem:[#allocation2 + $0x38] sm:$0xff] %vm1719, %v4715
      %4760 = vst.msk [vmem:[#allocation2 + $0x48] sm:$0xff] %vm1719, %v4717
      %4761 = vst.msk [vmem:[#allocation2 + $0x58] sm:$0xff] %vm1719, %v4719
      %4762 = vst.msk [vmem:[#allocation2 + $0x68] sm:$0xff] %vm1719, %v4721
      %4763 = vst.msk [vmem:[#allocation2 + $0x78] sm:$0xff] %vm1719, %v4723
      %4764 = vst.msk [vmem:[#allocation2 + $0x88] sm:$0xff] %vm1719, %v4725
      %4765 = vst.msk [vmem:[#allocation2 + $0x98] sm:$0xff] %vm1719, %v4727
      %4766 = vst.msk [vmem:[#allocation2 + $0xa8] sm:$0xff] %vm1719, %v4729
      %4767 = vst.msk [vmem:[#allocation2 + $0xb8] sm:$0xff] %vm1719, %v4731
      %4768 = vst.msk [vmem:[#allocation2 + $0xc8] sm:$0xff] %vm1719, %v4733
      %4769 = vst.msk [vmem:[#allocation2 + $0xd8] sm:$0xff] %vm1719, %v4735
      %4770 = vst.msk [vmem:[#allocation2 + $0xe8] sm:$0xff] %vm1719, %v4737
      %4771 = vst.msk [vmem:[#allocation2 + $0xf8] sm:$0xff] %vm1719, %v4739
      %v4772 = vld [vmem:[%s4195 + $0x6] sm:$0xff]
      %v4773 = vld [vmem:[%s4195 + $0xe] sm:$0xff]
      %v4774 = vld [vmem:[%s4195 + $0x1e] sm:$0xff]
      %v4775 = vld [vmem:[%s4195 + $0x26] sm:$0xff]
      %v4776 = vld [vmem:[%s4195 + $0x36] sm:$0xff]
      %v4777 = vld [vmem:[%s4195 + $0x3e] sm:$0xff]
      %v4778 = vld [vmem:[%s4195 + $0x4e] sm:$0xff]
      %v4779 = vld [vmem:[%s4195 + $0x56] sm:$0xff]
      %v4780 = vld [vmem:[%s4195 + $0x66] sm:$0xff]
      %v4781 = vld [vmem:[%s4195 + $0x6e] sm:$0xff]
      %v4782 = vld [vmem:[%s4195 + $0x7e] sm:$0xff]
      %v4783 = vld [vmem:[%s4195 + $0x86] sm:$0xff]
      %v4784 = vld [vmem:[%s4195 + $0x96] sm:$0xff]
      %v4785 = vld [vmem:[%s4195 + $0x9e] sm:$0xff]
      %v4786 = vld [vmem:[%s4195 + $0xae] sm:$0xff]
      %v4787 = vld [vmem:[%s4195 + $0xb6] sm:$0xff]
      %4804 = vrot.lane.b32.xlu0 %v4772, 64
      %v4805 = vpop.permute.xlu0 %4804
      %4806 = vrot.lane.b32.xlu0 %v4773, 64
      %v4807 = vpop.permute.xlu0 %4806
      %4808 = vrot.lane.b32.xlu0 %v4774, 64
      %v4809 = vpop.permute.xlu0 %4808
      %4810 = vrot.lane.b32.xlu0 %v4775, 64
      %v4811 = vpop.permute.xlu0 %4810
      %4812 = vrot.lane.b32.xlu0 %v4776, 64
      %v4813 = vpop.permute.xlu0 %4812
      %4814 = vrot.lane.b32.xlu0 %v4777, 64
      %v4815 = vpop.permute.xlu0 %4814
      %4816 = vrot.lane.b32.xlu0 %v4778, 64
      %v4817 = vpop.permute.xlu0 %4816
      %4818 = vrot.lane.b32.xlu0 %v4779, 64
      %v4819 = vpop.permute.xlu0 %4818
      %4820 = vrot.lane.b32.xlu0 %v4780, 64
      %v4821 = vpop.permute.xlu0 %4820
      %4822 = vrot.lane.b32.xlu0 %v4781, 64
      %v4823 = vpop.permute.xlu0 %4822
      %4824 = vrot.lane.b32.xlu0 %v4782, 64
      %v4825 = vpop.permute.xlu0 %4824
      %4826 = vrot.lane.b32.xlu0 %v4783, 64
      %v4827 = vpop.permute.xlu0 %4826
      %4828 = vrot.lane.b32.xlu0 %v4784, 64
      %v4829 = vpop.permute.xlu0 %4828
      %4830 = vrot.lane.b32.xlu0 %v4785, 64
      %v4831 = vpop.permute.xlu0 %4830
      %4832 = vrot.lane.b32.xlu0 %v4786, 64
      %v4833 = vpop.permute.xlu0 %4832
      %4834 = vrot.lane.b32.xlu0 %v4787, 64
      %v4835 = vpop.permute.xlu0 %4834
      %4852 = vst.msk [vmem:[#allocation2 + $0x8] sm:$0xff] %vm1816, %v4805
      %4853 = vst.msk [vmem:[#allocation2 + $0x18] sm:$0xff] %vm1816, %v4807
      %4854 = vst.msk [vmem:[#allocation2 + $0x28] sm:$0xff] %vm1816, %v4809
      %4855 = vst.msk [vmem:[#allocation2 + $0x38] sm:$0xff] %vm1816, %v4811
      %4856 = vst.msk [vmem:[#allocation2 + $0x48] sm:$0xff] %vm1816, %v4813
      %4857 = vst.msk [vmem:[#allocation2 + $0x58] sm:$0xff] %vm1816, %v4815
      %4858 = vst.msk [vmem:[#allocation2 + $0x68] sm:$0xff] %vm1816, %v4817
      %4859 = vst.msk [vmem:[#allocation2 + $0x78] sm:$0xff] %vm1816, %v4819
      %4860 = vst.msk [vmem:[#allocation2 + $0x88] sm:$0xff] %vm1816, %v4821
      %4861 = vst.msk [vmem:[#allocation2 + $0x98] sm:$0xff] %vm1816, %v4823
      %4862 = vst.msk [vmem:[#allocation2 + $0xa8] sm:$0xff] %vm1816, %v4825
      %4863 = vst.msk [vmem:[#allocation2 + $0xb8] sm:$0xff] %vm1816, %v4827
      %4864 = vst.msk [vmem:[#allocation2 + $0xc8] sm:$0xff] %vm1816, %v4829
      %4865 = vst.msk [vmem:[#allocation2 + $0xd8] sm:$0xff] %vm1816, %v4831
      %4866 = vst.msk [vmem:[#allocation2 + $0xe8] sm:$0xff] %vm1816, %v4833
      %4867 = vst.msk [vmem:[#allocation2 + $0xf8] sm:$0xff] %vm1816, %v4835
      %v4868 = vld [vmem:[#allocation2] sm:$0xff]
      %v4869 = vld [vmem:[#allocation2 + $0x8] sm:$0xff]
      %v4870 = vld [vmem:[#allocation2 + $0x10] sm:$0xff]
      %v4871 = vld [vmem:[#allocation2 + $0x18] sm:$0xff]
      %v4872 = vld [vmem:[#allocation2 + $0x20] sm:$0xff]
      %v4873 = vld [vmem:[#allocation2 + $0x28] sm:$0xff]
      %v4874 = vld [vmem:[#allocation2 + $0x30] sm:$0xff]
      %v4875 = vld [vmem:[#allocation2 + $0x38] sm:$0xff]
      %v4876 = vld [vmem:[#allocation2 + $0x40] sm:$0xff]
      %v4877 = vld [vmem:[#allocation2 + $0x48] sm:$0xff]
      %v4878 = vld [vmem:[#allocation2 + $0x50] sm:$0xff]
      %v4879 = vld [vmem:[#allocation2 + $0x58] sm:$0xff]
      %v4880 = vld [vmem:[#allocation2 + $0x60] sm:$0xff]
      %v4881 = vld [vmem:[#allocation2 + $0x68] sm:$0xff]
      %v4882 = vld [vmem:[#allocation2 + $0x70] sm:$0xff]
      %v4883 = vld [vmem:[#allocation2 + $0x78] sm:$0xff]
      %v4884 = vld [vmem:[#allocation2 + $0x80] sm:$0xff]
      %v4885 = vld [vmem:[#allocation2 + $0x88] sm:$0xff]
      %v4886 = vld [vmem:[#allocation2 + $0x90] sm:$0xff]
      %v4887 = vld [vmem:[#allocation2 + $0x98] sm:$0xff]
      %v4888 = vld [vmem:[#allocation2 + $0xa0] sm:$0xff]
      %v4889 = vld [vmem:[#allocation2 + $0xa8] sm:$0xff]
      %v4890 = vld [vmem:[#allocation2 + $0xb0] sm:$0xff]
      %v4891 = vld [vmem:[#allocation2 + $0xb8] sm:$0xff]
      %v4892 = vld [vmem:[#allocation2 + $0xc0] sm:$0xff]
      %v4893 = vld [vmem:[#allocation2 + $0xc8] sm:$0xff]
      %v4894 = vld [vmem:[#allocation2 + $0xd0] sm:$0xff]
      %v4895 = vld [vmem:[#allocation2 + $0xd8] sm:$0xff]
      %v4896 = vld [vmem:[#allocation2 + $0xe0] sm:$0xff]
      %v4897 = vld [vmem:[#allocation2 + $0xe8] sm:$0xff]
      %v4898 = vld [vmem:[#allocation2 + $0xf0] sm:$0xff]
      %v4899 = vld [vmem:[#allocation2 + $0xf8] sm:$0xff]
      %v4900 = vpack.c.bf16 %v4870, %v4868
      %v4901 = vpack.c.bf16 %v4871, %v4869
      %v4902 = vpack.c.bf16 %v4874, %v4872
      %v4903 = vpack.c.bf16 %v4875, %v4873
      %v4904 = vpack.c.bf16 %v4878, %v4876
      %v4905 = vpack.c.bf16 %v4879, %v4877
      %v4906 = vpack.c.bf16 %v4882, %v4880
      %v4907 = vpack.c.bf16 %v4883, %v4881
      %v4908 = vpack.c.bf16 %v4886, %v4884
      %v4909 = vpack.c.bf16 %v4887, %v4885
      %v4910 = vpack.c.bf16 %v4890, %v4888
      %v4911 = vpack.c.bf16 %v4891, %v4889
      %v4912 = vpack.c.bf16 %v4894, %v4892
      %v4913 = vpack.c.bf16 %v4895, %v4893
      %v4914 = vpack.c.bf16 %v4898, %v4896
      %v4915 = vpack.c.bf16 %v4899, %v4897
      %v4916 = vld [vmem:[%s1] sm:$0xf]
      %v4917 = vld [vmem:[%s1 + $0x4] sm:$0xf]
      %v4918 = vld [vmem:[%s1 + $0x8] sm:$0xf]
      %v4919 = vld [vmem:[%s1 + $0xc] sm:$0xf]
      %v4920 = vld [vmem:[%s1 + $0x10] sm:$0xf]
      %v4921 = vld [vmem:[%s1 + $0x14] sm:$0xf]
      %v4922 = vld [vmem:[%s1 + $0x18] sm:$0xf]
      %v4923 = vld [vmem:[%s1 + $0x1c] sm:$0xf]
      %v4924 = vld [vmem:[%s1 + $0x20] sm:$0xf]
      %v4925 = vld [vmem:[%s1 + $0x24] sm:$0xf]
      %v4926 = vld [vmem:[%s1 + $0x28] sm:$0xf]
      %v4927 = vld [vmem:[%s1 + $0x2c] sm:$0xf]
      %v4928 = vld [vmem:[%s1 + $0x30] sm:$0xf]
      %v4929 = vld [vmem:[%s1 + $0x34] sm:$0xf]
      %v4930 = vld [vmem:[%s1 + $0x38] sm:$0xf]
      %v4931 = vld [vmem:[%s1 + $0x3c] sm:$0xf]
      %v4932 = vld [vmem:[%s1 + $0x40] sm:$0xf]
      %v4933 = vld [vmem:[%s1 + $0x44] sm:$0xf]
      %v4934 = vld [vmem:[%s1 + $0x48] sm:$0xf]
      %v4935 = vld [vmem:[%s1 + $0x4c] sm:$0xf]
      %v4936 = vld [vmem:[%s1 + $0x50] sm:$0xf]
      %v4937 = vld [vmem:[%s1 + $0x54] sm:$0xf]
      %v4938 = vld [vmem:[%s1 + $0x58] sm:$0xf]
      %v4939 = vld [vmem:[%s1 + $0x5c] sm:$0xf]
      %v4940 = vld [vmem:[%s1 + $0x60] sm:$0xf]
      %v4941 = vld [vmem:[%s1 + $0x64] sm:$0xf]
      %v4942 = vld [vmem:[%s1 + $0x68] sm:$0xf]
      %v4943 = vld [vmem:[%s1 + $0x6c] sm:$0xf]
      %v4944 = vld [vmem:[%s1 + $0x70] sm:$0xf]
      %v4945 = vld [vmem:[%s1 + $0x74] sm:$0xf]
      %v4946 = vld [vmem:[%s1 + $0x78] sm:$0xf]
      %v4947 = vld [vmem:[%s1 + $0x7c] sm:$0xf]
      %v4980 = vunpack.c.l.b16 %v4916
      %v4981 = vunpack.c.l.b16 %v4917
      %v4982 = vunpack.c.l.b16 %v4918
      %v4983 = vunpack.c.l.b16 %v4919
      %v4984 = vunpack.c.l.b16 %v4920
      %v4985 = vunpack.c.l.b16 %v4921
      %v4986 = vunpack.c.l.b16 %v4922
      %v4987 = vunpack.c.l.b16 %v4923
      %v4988 = vunpack.c.l.b16 %v4924
      %v4989 = vunpack.c.l.b16 %v4925
      %v4990 = vunpack.c.l.b16 %v4926
      %v4991 = vunpack.c.l.b16 %v4927
      %v4992 = vunpack.c.l.b16 %v4928
      %v4993 = vunpack.c.l.b16 %v4929
      %v4994 = vunpack.c.l.b16 %v4930
      %v4995 = vunpack.c.l.b16 %v4931
      %v4996 = vunpack.c.l.b16 %v4932
      %v4997 = vunpack.c.l.b16 %v4933
      %v4998 = vunpack.c.l.b16 %v4934
      %v4999 = vunpack.c.l.b16 %v4935
      %v5000 = vunpack.c.l.b16 %v4936
      %v5001 = vunpack.c.l.b16 %v4937
      %v5002 = vunpack.c.l.b16 %v4938
      %v5003 = vunpack.c.l.b16 %v4939
      %v5004 = vunpack.c.l.b16 %v4940
      %v5005 = vunpack.c.l.b16 %v4941
      %v5006 = vunpack.c.l.b16 %v4942
      %v5007 = vunpack.c.l.b16 %v4943
      %v5008 = vunpack.c.l.b16 %v4944
      %v5009 = vunpack.c.l.b16 %v4945
      %v5010 = vunpack.c.l.b16 %v4946
      %v5011 = vunpack.c.l.b16 %v4947
      %v5012 = vpack.c.b16 %v4981, %v4980
      %v5013 = vpack.c.b16 %v4983, %v4982
      %v5014 = vpack.c.b16 %v4985, %v4984
      %v5015 = vpack.c.b16 %v4987, %v4986
      %v5016 = vpack.c.b16 %v4989, %v4988
      %v5017 = vpack.c.b16 %v4991, %v4990
      %v5018 = vpack.c.b16 %v4993, %v4992
      %v5019 = vpack.c.b16 %v4995, %v4994
      %v5020 = vpack.c.b16 %v4997, %v4996
      %v5021 = vpack.c.b16 %v4999, %v4998
      %v5022 = vpack.c.b16 %v5001, %v5000
      %v5023 = vpack.c.b16 %v5003, %v5002
      %v5024 = vpack.c.b16 %v5005, %v5004
      %v5025 = vpack.c.b16 %v5007, %v5006
      %v5026 = vpack.c.b16 %v5009, %v5008
      %v5027 = vpack.c.b16 %v5011, %v5010
      %5044 = vmatpush.bf16.msra.mxu0 %v5019
      %5045 = vmatpush.bf16.msra.mxu0 %v5018
      %5046 = vmatpush.bf16.msra.mxu0 %v5017
      %5047 = vmatpush.bf16.msra.mxu0 %v5016
      %5048 = vmatpush.bf16.msra.mxu0 %v5015
      %5049 = vmatpush.bf16.msra.mxu0 %v5014
      %5050 = vmatpush.bf16.msra.mxu0 %v5013
      %5051 = vmatpush.bf16.msra.mxu0 %v5012
      %5052 = vmatmul.bf16.gmra.mxu0 %v4900
      %v5053 = vpop.f32.mrf.mxu0
      %v5054 = vadd.f32 0.0, %v5053
      %v5055 = vpop.f32.mrf.mxu0
      %v5056 = vadd.f32 0.0, %v5055
      %5057 = vmatmul.bf16.gmra.mxu0 %v4902
      %v5058 = vpop.f32.mrf.mxu0
      %v5059 = vadd.f32 0.0, %v5058
      %v5060 = vpop.f32.mrf.mxu0
      %v5061 = vadd.f32 0.0, %v5060
      %5062 = vmatmul.bf16.gmra.mxu0 %v4904
      %v5063 = vpop.f32.mrf.mxu0
      %v5064 = vadd.f32 0.0, %v5063
      %v5065 = vpop.f32.mrf.mxu0
      %v5066 = vadd.f32 0.0, %v5065
      %5067 = vmatmul.bf16.gmra.mxu0 %v4906
      %v5068 = vpop.f32.mrf.mxu0
      %v5069 = vadd.f32 0.0, %v5068
      %v5070 = vpop.f32.mrf.mxu0
      %v5071 = vadd.f32 0.0, %v5070
      %5072 = vmatmul.bf16.gmra.mxu0 %v4908
      %v5073 = vpop.f32.mrf.mxu0
      %v5074 = vadd.f32 0.0, %v5073
      %v5075 = vpop.f32.mrf.mxu0
      %v5076 = vadd.f32 0.0, %v5075
      %5077 = vmatmul.bf16.gmra.mxu0 %v4910
      %v5078 = vpop.f32.mrf.mxu0
      %v5079 = vadd.f32 0.0, %v5078
      %v5080 = vpop.f32.mrf.mxu0
      %v5081 = vadd.f32 0.0, %v5080
      %5082 = vmatmul.bf16.gmra.mxu0 %v4912
      %v5083 = vpop.f32.mrf.mxu0
      %v5084 = vadd.f32 0.0, %v5083
      %v5085 = vpop.f32.mrf.mxu0
      %v5086 = vadd.f32 0.0, %v5085
      %5087 = vmatmul.bf16.gmra.mxu0 %v4914
      %v5088 = vpop.f32.mrf.mxu0
      %v5089 = vadd.f32 0.0, %v5088
      %v5090 = vpop.f32.mrf.mxu0
      %v5091 = vadd.f32 0.0, %v5090
      %5092 = vdwg.mxu0
      %5093 = vmatpush.bf16.msra.mxu0 %v5027
      %5094 = vmatpush.bf16.msra.mxu0 %v5026
      %5095 = vmatpush.bf16.msra.mxu0 %v5025
      %5096 = vmatpush.bf16.msra.mxu0 %v5024
      %5097 = vmatpush.bf16.msra.mxu0 %v5023
      %5098 = vmatpush.bf16.msra.mxu0 %v5022
      %5099 = vmatpush.bf16.msra.mxu0 %v5021
      %5100 = vmatpush.bf16.msra.mxu0 %v5020
      %5101 = vmatmul.bf16.gmra.mxu0 %v4901
      %v5102 = vpop.f32.mrf.mxu0
      %v5103 = vadd.f32 %v5054, %v5102
      %v5104 = vpop.f32.mrf.mxu0
      %v5105 = vadd.f32 %v5056, %v5104
      %5106 = vmatmul.bf16.gmra.mxu0 %v4903
      %v5107 = vpop.f32.mrf.mxu0
      %v5108 = vadd.f32 %v5059, %v5107
      %v5109 = vpop.f32.mrf.mxu0
      %v5110 = vadd.f32 %v5061, %v5109
      %5111 = vmatmul.bf16.gmra.mxu0 %v4905
      %v5112 = vpop.f32.mrf.mxu0
      %v5113 = vadd.f32 %v5064, %v5112
      %v5114 = vpop.f32.mrf.mxu0
      %v5115 = vadd.f32 %v5066, %v5114
      %5116 = vmatmul.bf16.gmra.mxu0 %v4907
      %v5117 = vpop.f32.mrf.mxu0
      %v5118 = vadd.f32 %v5069, %v5117
      %v5119 = vpop.f32.mrf.mxu0
      %v5120 = vadd.f32 %v5071, %v5119
      %5121 = vmatmul.bf16.gmra.mxu0 %v4909
      %v5122 = vpop.f32.mrf.mxu0
      %v5123 = vadd.f32 %v5074, %v5122
      %v5124 = vpop.f32.mrf.mxu0
      %v5125 = vadd.f32 %v5076, %v5124
      %5126 = vmatmul.bf16.gmra.mxu0 %v4911
      %v5127 = vpop.f32.mrf.mxu0
      %v5128 = vadd.f32 %v5079, %v5127
      %v5129 = vpop.f32.mrf.mxu0
      %v5130 = vadd.f32 %v5081, %v5129
      %5131 = vmatmul.bf16.gmra.mxu0 %v4913
      %v5132 = vpop.f32.mrf.mxu0
      %v5133 = vadd.f32 %v5084, %v5132
      %v5134 = vpop.f32.mrf.mxu0
      %v5135 = vadd.f32 %v5086, %v5134
      %5136 = vmatmul.bf16.gmra.mxu0 %v4915
      %v5137 = vpop.f32.mrf.mxu0
      %v5138 = vadd.f32 %v5089, %v5137
      %v5139 = vpop.f32.mrf.mxu0
      %v5140 = vadd.f32 %v5091, %v5139
      %5141 = vdwg.mxu0
      %s5142 = smul.u32 %s222, 16
      %s5143 = smul.u32 %s20, 256
      %s5144 = sadd.s32 %s5142, %s5143
      %s5145 = scalar_lea.vmem [#allocation3], %s5144
      %vm5146 = vcmask 64512
      %5147 = vst.msk [vmem:[%s5145] sm:$0xff] %vm5146, %v5103
      %5148 = vst.msk [vmem:[%s5145 + $0x8] sm:$0xff] %vm5146, %v5105
      %5149 = vst.msk [vmem:[%s5145 + $0x10] sm:$0xff] %vm5146, %v5108
      %5150 = vst.msk [vmem:[%s5145 + $0x18] sm:$0xff] %vm5146, %v5110
      %5151 = vst.msk [vmem:[%s5145 + $0x20] sm:$0xff] %vm5146, %v5113
      %5152 = vst.msk [vmem:[%s5145 + $0x28] sm:$0xff] %vm5146, %v5115
      %5153 = vst.msk [vmem:[%s5145 + $0x30] sm:$0xff] %vm5146, %v5118
      %5154 = vst.msk [vmem:[%s5145 + $0x38] sm:$0xff] %vm5146, %v5120
      %5155 = vst.msk [vmem:[%s5145 + $0x40] sm:$0xff] %vm5146, %v5123
      %5156 = vst.msk [vmem:[%s5145 + $0x48] sm:$0xff] %vm5146, %v5125
      %5157 = vst.msk [vmem:[%s5145 + $0x50] sm:$0xff] %vm5146, %v5128
      %5158 = vst.msk [vmem:[%s5145 + $0x58] sm:$0xff] %vm5146, %v5130
      %5159 = vst.msk [vmem:[%s5145 + $0x60] sm:$0xff] %vm5146, %v5133
      %5160 = vst.msk [vmem:[%s5145 + $0x68] sm:$0xff] %vm5146, %v5135
      %5161 = vst.msk [vmem:[%s5145 + $0x70] sm:$0xff] %vm5146, %v5138
      %5162 = vst.msk [vmem:[%s5145 + $0x78] sm:$0xff] %vm5146, %v5140
      %p5163 = scmp.eq.s32.totalorder %s20, 1
      %p5164 = scmp.eq.s32.totalorder %s21, 1
      %p5165 = pnand %p5163, %p5164
      %p5166 = pneg %p5165
      // Predicated region
      $region41: #{conv_cnn_forward.1} parent=39 // pred_check
        _
      $region42: #{conv_cnn_forward.1} parent=39 // pred_check_branch
        %5168 = sbr.rel (%p5165) target = $region44
      $region43: #{conv_cnn_forward.1} parent=39 // pred_region
        %v5169 = vld [vmem:[%s4] sm:$0xff]
        %v5170 = vld [vmem:[%s4 + $0x8] sm:$0xff]
        %v5171 = vld [vmem:[%s4 + $0x10] sm:$0xff]
        %v5172 = vld [vmem:[%s4 + $0x18] sm:$0xff]
        %v5173 = vld [vmem:[%s4 + $0x20] sm:$0xff]
        %v5174 = vld [vmem:[%s4 + $0x28] sm:$0xff]
        %v5175 = vld [vmem:[%s4 + $0x30] sm:$0xff]
        %v5176 = vld [vmem:[%s4 + $0x38] sm:$0xff]
        %v5177 = vld [vmem:[%s4 + $0x40] sm:$0xff]
        %v5178 = vld [vmem:[%s4 + $0x48] sm:$0xff]
        %v5179 = vld [vmem:[%s4 + $0x50] sm:$0xff]
        %v5180 = vld [vmem:[%s4 + $0x58] sm:$0xff]
        %v5181 = vld [vmem:[%s4 + $0x60] sm:$0xff]
        %v5182 = vld [vmem:[%s4 + $0x68] sm:$0xff]
        %v5183 = vld [vmem:[%s4 + $0x70] sm:$0xff]
        %v5184 = vld [vmem:[%s4 + $0x78] sm:$0xff]
        %v5185 = vld [vmem:[%s4 + $0x80] sm:$0xff]
        %v5186 = vld [vmem:[%s4 + $0x88] sm:$0xff]
        %v5187 = vld [vmem:[%s4 + $0x90] sm:$0xff]
        %v5188 = vld [vmem:[%s4 + $0x98] sm:$0xff]
        %v5189 = vld [vmem:[%s4 + $0xa0] sm:$0xff]
        %v5190 = vld [vmem:[%s4 + $0xa8] sm:$0xff]
        %v5191 = vld [vmem:[%s4 + $0xb0] sm:$0xff]
        %v5192 = vld [vmem:[%s4 + $0xb8] sm:$0xff]
        %v5193 = vld [vmem:[%s4 + $0xc0] sm:$0xff]
        %v5194 = vld [vmem:[%s4 + $0xc8] sm:$0xff]
        %v5195 = vld [vmem:[%s4 + $0xd0] sm:$0xff]
        %v5196 = vld [vmem:[%s4 + $0xd8] sm:$0xff]
        %v5197 = vld [vmem:[%s4 + $0xe0] sm:$0xff]
        %v5198 = vld [vmem:[%s4 + $0xe8] sm:$0xff]
        %v5199 = vld [vmem:[%s4 + $0xf0] sm:$0xff]
        %v5200 = vld [vmem:[%s4 + $0xf8] sm:$0xff]
        %v5201 = vld [vmem:[#allocation3] sm:$0xff]
        %v5202 = vld [vmem:[#allocation3 + $0x8] sm:$0xff]
        %v5203 = vld [vmem:[#allocation3 + $0x10] sm:$0xff]
        %v5204 = vld [vmem:[#allocation3 + $0x18] sm:$0xff]
        %v5205 = vld [vmem:[#allocation3 + $0x20] sm:$0xff]
        %v5206 = vld [vmem:[#allocation3 + $0x28] sm:$0xff]
        %v5207 = vld [vmem:[#allocation3 + $0x30] sm:$0xff]
        %v5208 = vld [vmem:[#allocation3 + $0x38] sm:$0xff]
        %v5209 = vld [vmem:[#allocation3 + $0x40] sm:$0xff]
        %v5210 = vld [vmem:[#allocation3 + $0x48] sm:$0xff]
        %v5211 = vld [vmem:[#allocation3 + $0x50] sm:$0xff]
        %v5212 = vld [vmem:[#allocation3 + $0x58] sm:$0xff]
        %v5213 = vld [vmem:[#allocation3 + $0x60] sm:$0xff]
        %v5214 = vld [vmem:[#allocation3 + $0x68] sm:$0xff]
        %v5215 = vld [vmem:[#allocation3 + $0x70] sm:$0xff]
        %v5216 = vld [vmem:[#allocation3 + $0x78] sm:$0xff]
        %v5217 = vld [vmem:[#allocation3 + $0x80] sm:$0xff]
        %v5218 = vld [vmem:[#allocation3 + $0x88] sm:$0xff]
        %v5219 = vld [vmem:[#allocation3 + $0x90] sm:$0xff]
        %v5220 = vld [vmem:[#allocation3 + $0x98] sm:$0xff]
        %v5221 = vld [vmem:[#allocation3 + $0xa0] sm:$0xff]
        %v5222 = vld [vmem:[#allocation3 + $0xa8] sm:$0xff]
        %v5223 = vld [vmem:[#allocation3 + $0xb0] sm:$0xff]
        %v5224 = vld [vmem:[#allocation3 + $0xb8] sm:$0xff]
        %v5225 = vld [vmem:[#allocation3 + $0xc0] sm:$0xff]
        %v5226 = vld [vmem:[#allocation3 + $0xc8] sm:$0xff]
        %v5227 = vld [vmem:[#allocation3 + $0xd0] sm:$0xff]
        %v5228 = vld [vmem:[#allocation3 + $0xd8] sm:$0xff]
        %v5229 = vld [vmem:[#allocation3 + $0xe0] sm:$0xff]
        %v5230 = vld [vmem:[#allocation3 + $0xe8] sm:$0xff]
        %v5231 = vld [vmem:[#allocation3 + $0xf0] sm:$0xff]
        %v5232 = vld [vmem:[#allocation3 + $0xf8] sm:$0xff]
        %5234 = vset.pattern.permute.xlu0 0
        %5235 = vperm.xlu0 %5234, %v5169
        %v5236 = vpop.permute.xlu0 %5235
        %5239 = vset.pattern.permute.xlu0 0
        %5240 = vperm.xlu0 %5239, %v5170
        %v5241 = vpop.permute.xlu0 %5240
        %5244 = vset.pattern.permute.xlu0 0
        %5245 = vperm.xlu0 %5244, %v5171
        %v5246 = vpop.permute.xlu0 %5245
        %5249 = vset.pattern.permute.xlu0 0
        %5250 = vperm.xlu0 %5249, %v5172
        %v5251 = vpop.permute.xlu0 %5250
        %5254 = vset.pattern.permute.xlu0 0
        %5255 = vperm.xlu0 %5254, %v5173
        %v5256 = vpop.permute.xlu0 %5255
        %5259 = vset.pattern.permute.xlu0 0
        %5260 = vperm.xlu0 %5259, %v5174
        %v5261 = vpop.permute.xlu0 %5260
        %5264 = vset.pattern.permute.xlu0 0
        %5265 = vperm.xlu0 %5264, %v5175
        %v5266 = vpop.permute.xlu0 %5265
        %5269 = vset.pattern.permute.xlu0 0
        %5270 = vperm.xlu0 %5269, %v5176
        %v5271 = vpop.permute.xlu0 %5270
        %5274 = vset.pattern.permute.xlu0 0
        %5275 = vperm.xlu0 %5274, %v5177
        %v5276 = vpop.permute.xlu0 %5275
        %5279 = vset.pattern.permute.xlu0 0
        %5280 = vperm.xlu0 %5279, %v5178
        %v5281 = vpop.permute.xlu0 %5280
        %5284 = vset.pattern.permute.xlu0 0
        %5285 = vperm.xlu0 %5284, %v5179
        %v5286 = vpop.permute.xlu0 %5285
        %5289 = vset.pattern.permute.xlu0 0
        %5290 = vperm.xlu0 %5289, %v5180
        %v5291 = vpop.permute.xlu0 %5290
        %5294 = vset.pattern.permute.xlu0 0
        %5295 = vperm.xlu0 %5294, %v5181
        %v5296 = vpop.permute.xlu0 %5295
        %5299 = vset.pattern.permute.xlu0 0
        %5300 = vperm.xlu0 %5299, %v5182
        %v5301 = vpop.permute.xlu0 %5300
        %5304 = vset.pattern.permute.xlu0 0
        %5305 = vperm.xlu0 %5304, %v5183
        %v5306 = vpop.permute.xlu0 %5305
        %5309 = vset.pattern.permute.xlu0 0
        %5310 = vperm.xlu0 %5309, %v5184
        %v5311 = vpop.permute.xlu0 %5310
        %5314 = vset.pattern.permute.xlu0 0
        %5315 = vperm.xlu0 %5314, %v5185
        %v5316 = vpop.permute.xlu0 %5315
        %5319 = vset.pattern.permute.xlu0 0
        %5320 = vperm.xlu0 %5319, %v5186
        %v5321 = vpop.permute.xlu0 %5320
        %5324 = vset.pattern.permute.xlu0 0
        %5325 = vperm.xlu0 %5324, %v5187
        %v5326 = vpop.permute.xlu0 %5325
        %5329 = vset.pattern.permute.xlu0 0
        %5330 = vperm.xlu0 %5329, %v5188
        %v5331 = vpop.permute.xlu0 %5330
        %5334 = vset.pattern.permute.xlu0 0
        %5335 = vperm.xlu0 %5334, %v5189
        %v5336 = vpop.permute.xlu0 %5335
        %5339 = vset.pattern.permute.xlu0 0
        %5340 = vperm.xlu0 %5339, %v5190
        %v5341 = vpop.permute.xlu0 %5340
        %5344 = vset.pattern.permute.xlu0 0
        %5345 = vperm.xlu0 %5344, %v5191
        %v5346 = vpop.permute.xlu0 %5345
        %5349 = vset.pattern.permute.xlu0 0
        %5350 = vperm.xlu0 %5349, %v5192
        %v5351 = vpop.permute.xlu0 %5350
        %5354 = vset.pattern.permute.xlu0 0
        %5355 = vperm.xlu0 %5354, %v5193
        %v5356 = vpop.permute.xlu0 %5355
        %5359 = vset.pattern.permute.xlu0 0
        %5360 = vperm.xlu0 %5359, %v5194
        %v5361 = vpop.permute.xlu0 %5360
        %5364 = vset.pattern.permute.xlu0 0
        %5365 = vperm.xlu0 %5364, %v5195
        %v5366 = vpop.permute.xlu0 %5365
        %5369 = vset.pattern.permute.xlu0 0
        %5370 = vperm.xlu0 %5369, %v5196
        %v5371 = vpop.permute.xlu0 %5370
        %5374 = vset.pattern.permute.xlu0 0
        %5375 = vperm.xlu0 %5374, %v5197
        %v5376 = vpop.permute.xlu0 %5375
        %5379 = vset.pattern.permute.xlu0 0
        %5380 = vperm.xlu0 %5379, %v5198
        %v5381 = vpop.permute.xlu0 %5380
        %5384 = vset.pattern.permute.xlu0 0
        %5385 = vperm.xlu0 %5384, %v5199
        %v5386 = vpop.permute.xlu0 %5385
        %5389 = vset.pattern.permute.xlu0 0
        %5390 = vperm.xlu0 %5389, %v5200
        %v5391 = vpop.permute.xlu0 %5390
        %v5393 = vmul.f32 %v5201, %v5236
        %v5394 = vmul.f32 %v5202, %v5241
        %v5395 = vmul.f32 %v5203, %v5246
        %v5396 = vmul.f32 %v5204, %v5251
        %v5397 = vmul.f32 %v5205, %v5256
        %v5398 = vmul.f32 %v5206, %v5261
        %v5399 = vmul.f32 %v5207, %v5266
        %v5400 = vmul.f32 %v5208, %v5271
        %v5401 = vmul.f32 %v5209, %v5276
        %v5402 = vmul.f32 %v5210, %v5281
        %v5403 = vmul.f32 %v5211, %v5286
        %v5404 = vmul.f32 %v5212, %v5291
        %v5405 = vmul.f32 %v5213, %v5296
        %v5406 = vmul.f32 %v5214, %v5301
        %v5407 = vmul.f32 %v5215, %v5306
        %v5408 = vmul.f32 %v5216, %v5311
        %v5409 = vmul.f32 %v5217, %v5316
        %v5410 = vmul.f32 %v5218, %v5321
        %v5411 = vmul.f32 %v5219, %v5326
        %v5412 = vmul.f32 %v5220, %v5331
        %v5413 = vmul.f32 %v5221, %v5336
        %v5414 = vmul.f32 %v5222, %v5341
        %v5415 = vmul.f32 %v5223, %v5346
        %v5416 = vmul.f32 %v5224, %v5351
        %v5417 = vmul.f32 %v5225, %v5356
        %v5418 = vmul.f32 %v5226, %v5361
        %v5419 = vmul.f32 %v5227, %v5366
        %v5420 = vmul.f32 %v5228, %v5371
        %v5421 = vmul.f32 %v5229, %v5376
        %v5422 = vmul.f32 %v5230, %v5381
        %v5423 = vmul.f32 %v5231, %v5386
        %v5424 = vmul.f32 %v5232, %v5391
        %v5425 = vsel %vm5146, %v5393, 0.0
        %v5426 = vsel %vm5146, %v5394, 0.0
        %v5427 = vadd.f32 %v5425, %v5426
        %v5428 = vsel %vm5146, %v5395, 0.0
        %v5429 = vadd.f32 %v5427, %v5428
        %v5430 = vsel %vm5146, %v5396, 0.0
        %v5431 = vadd.f32 %v5429, %v5430
        %v5432 = vsel %vm5146, %v5397, 0.0
        %v5433 = vadd.f32 %v5431, %v5432
        %v5434 = vsel %vm5146, %v5398, 0.0
        %v5435 = vadd.f32 %v5433, %v5434
        %v5436 = vsel %vm5146, %v5399, 0.0
        %v5437 = vadd.f32 %v5435, %v5436
        %v5438 = vsel %vm5146, %v5400, 0.0
        %v5439 = vadd.f32 %v5437, %v5438
        %v5440 = vsel %vm5146, %v5401, 0.0
        %v5441 = vadd.f32 %v5439, %v5440
        %v5442 = vsel %vm5146, %v5402, 0.0
        %v5443 = vadd.f32 %v5441, %v5442
        %v5444 = vsel %vm5146, %v5403, 0.0
        %v5445 = vadd.f32 %v5443, %v5444
        %v5446 = vsel %vm5146, %v5404, 0.0
        %v5447 = vadd.f32 %v5445, %v5446
        %v5448 = vsel %vm5146, %v5405, 0.0
        %v5449 = vadd.f32 %v5447, %v5448
        %v5450 = vsel %vm5146, %v5406, 0.0
        %v5451 = vadd.f32 %v5449, %v5450
        %v5452 = vsel %vm5146, %v5407, 0.0
        %v5453 = vadd.f32 %v5451, %v5452
        %v5454 = vsel %vm5146, %v5408, 0.0
        %v5455 = vadd.f32 %v5453, %v5454
        %v5456 = vsel %vm5146, %v5409, 0.0
        %v5457 = vadd.f32 %v5455, %v5456
        %v5458 = vsel %vm5146, %v5410, 0.0
        %v5459 = vadd.f32 %v5457, %v5458
        %v5460 = vsel %vm5146, %v5411, 0.0
        %v5461 = vadd.f32 %v5459, %v5460
        %v5462 = vsel %vm5146, %v5412, 0.0
        %v5463 = vadd.f32 %v5461, %v5462
        %v5464 = vsel %vm5146, %v5413, 0.0
        %v5465 = vadd.f32 %v5463, %v5464
        %v5466 = vsel %vm5146, %v5414, 0.0
        %v5467 = vadd.f32 %v5465, %v5466
        %v5468 = vsel %vm5146, %v5415, 0.0
        %v5469 = vadd.f32 %v5467, %v5468
        %v5470 = vsel %vm5146, %v5416, 0.0
        %v5471 = vadd.f32 %v5469, %v5470
        %v5472 = vsel %vm5146, %v5417, 0.0
        %v5473 = vadd.f32 %v5471, %v5472
        %v5474 = vsel %vm5146, %v5418, 0.0
        %v5475 = vadd.f32 %v5473, %v5474
        %v5476 = vsel %vm5146, %v5419, 0.0
        %v5477 = vadd.f32 %v5475, %v5476
        %v5478 = vsel %vm5146, %v5420, 0.0
        %v5479 = vadd.f32 %v5477, %v5478
        %v5480 = vsel %vm5146, %v5421, 0.0
        %v5481 = vadd.f32 %v5479, %v5480
        %v5482 = vsel %vm5146, %v5422, 0.0
        %v5483 = vadd.f32 %v5481, %v5482
        %v5484 = vsel %vm5146, %v5423, 0.0
        %v5485 = vadd.f32 %v5483, %v5484
        %v5486 = vsel %vm5146, %v5424, 0.0
        %v5487 = vadd.f32 %v5485, %v5486
        %v5488 = vrot.slane %v5487, 4
        %v5489 = vadd.f32 %v5487, %v5488
        %v5490 = vrot.slane %v5489, 2
        %v5491 = vadd.f32 %v5489, %v5490
        %v5492 = vrot.slane %v5491, 1
        %v5493 = vadd.f32 %v5491, %v5492
        %v5494 = vadd.f32 %v5493, 0.0
        %s5495 = scalar_lea.vmem [#allocation3], 256
        %v5496 = vld [vmem:[%s5495] sm:$0xff]
        %v5497 = vld [vmem:[%s5495 + $0x8] sm:$0xff]
        %v5498 = vld [vmem:[%s5495 + $0x10] sm:$0xff]
        %v5499 = vld [vmem:[%s5495 + $0x18] sm:$0xff]
        %v5500 = vld [vmem:[%s5495 + $0x20] sm:$0xff]
        %v5501 = vld [vmem:[%s5495 + $0x28] sm:$0xff]
        %v5502 = vld [vmem:[%s5495 + $0x30] sm:$0xff]
        %v5503 = vld [vmem:[%s5495 + $0x38] sm:$0xff]
        %v5504 = vld [vmem:[%s5495 + $0x40] sm:$0xff]
        %v5505 = vld [vmem:[%s5495 + $0x48] sm:$0xff]
        %v5506 = vld [vmem:[%s5495 + $0x50] sm:$0xff]
        %v5507 = vld [vmem:[%s5495 + $0x58] sm:$0xff]
        %v5508 = vld [vmem:[%s5495 + $0x60] sm:$0xff]
        %v5509 = vld [vmem:[%s5495 + $0x68] sm:$0xff]
        %v5510 = vld [vmem:[%s5495 + $0x70] sm:$0xff]
        %v5511 = vld [vmem:[%s5495 + $0x78] sm:$0xff]
        %v5512 = vld [vmem:[%s5495 + $0x80] sm:$0xff]
        %v5513 = vld [vmem:[%s5495 + $0x88] sm:$0xff]
        %v5514 = vld [vmem:[%s5495 + $0x90] sm:$0xff]
        %v5515 = vld [vmem:[%s5495 + $0x98] sm:$0xff]
        %v5516 = vld [vmem:[%s5495 + $0xa0] sm:$0xff]
        %v5517 = vld [vmem:[%s5495 + $0xa8] sm:$0xff]
        %v5518 = vld [vmem:[%s5495 + $0xb0] sm:$0xff]
        %v5519 = vld [vmem:[%s5495 + $0xb8] sm:$0xff]
        %v5520 = vld [vmem:[%s5495 + $0xc0] sm:$0xff]
        %v5521 = vld [vmem:[%s5495 + $0xc8] sm:$0xff]
        %v5522 = vld [vmem:[%s5495 + $0xd0] sm:$0xff]
        %v5523 = vld [vmem:[%s5495 + $0xd8] sm:$0xff]
        %v5524 = vld [vmem:[%s5495 + $0xe0] sm:$0xff]
        %v5525 = vld [vmem:[%s5495 + $0xe8] sm:$0xff]
        %v5526 = vld [vmem:[%s5495 + $0xf0] sm:$0xff]
        %v5527 = vld [vmem:[%s5495 + $0xf8] sm:$0xff]
        %v5528 = vmul.f32 %v5496, %v5236
        %v5529 = vmul.f32 %v5497, %v5241
        %v5530 = vmul.f32 %v5498, %v5246
        %v5531 = vmul.f32 %v5499, %v5251
        %v5532 = vmul.f32 %v5500, %v5256
        %v5533 = vmul.f32 %v5501, %v5261
        %v5534 = vmul.f32 %v5502, %v5266
        %v5535 = vmul.f32 %v5503, %v5271
        %v5536 = vmul.f32 %v5504, %v5276
        %v5537 = vmul.f32 %v5505, %v5281
        %v5538 = vmul.f32 %v5506, %v5286
        %v5539 = vmul.f32 %v5507, %v5291
        %v5540 = vmul.f32 %v5508, %v5296
        %v5541 = vmul.f32 %v5509, %v5301
        %v5542 = vmul.f32 %v5510, %v5306
        %v5543 = vmul.f32 %v5511, %v5311
        %v5544 = vmul.f32 %v5512, %v5316
        %v5545 = vmul.f32 %v5513, %v5321
        %v5546 = vmul.f32 %v5514, %v5326
        %v5547 = vmul.f32 %v5515, %v5331
        %v5548 = vmul.f32 %v5516, %v5336
        %v5549 = vmul.f32 %v5517, %v5341
        %v5550 = vmul.f32 %v5518, %v5346
        %v5551 = vmul.f32 %v5519, %v5351
        %v5552 = vmul.f32 %v5520, %v5356
        %v5553 = vmul.f32 %v5521, %v5361
        %v5554 = vmul.f32 %v5522, %v5366
        %v5555 = vmul.f32 %v5523, %v5371
        %v5556 = vmul.f32 %v5524, %v5376
        %v5557 = vmul.f32 %v5525, %v5381
        %v5558 = vmul.f32 %v5526, %v5386
        %v5559 = vmul.f32 %v5527, %v5391
        %v5560 = vsel %vm5146, %v5528, 0.0
        %v5561 = vsel %vm5146, %v5529, 0.0
        %v5562 = vadd.f32 %v5560, %v5561
        %v5563 = vsel %vm5146, %v5530, 0.0
        %v5564 = vadd.f32 %v5562, %v5563
        %v5565 = vsel %vm5146, %v5531, 0.0
        %v5566 = vadd.f32 %v5564, %v5565
        %v5567 = vsel %vm5146, %v5532, 0.0
        %v5568 = vadd.f32 %v5566, %v5567
        %v5569 = vsel %vm5146, %v5533, 0.0
        %v5570 = vadd.f32 %v5568, %v5569
        %v5571 = vsel %vm5146, %v5534, 0.0
        %v5572 = vadd.f32 %v5570, %v5571
        %v5573 = vsel %vm5146, %v5535, 0.0
        %v5574 = vadd.f32 %v5572, %v5573
        %v5575 = vsel %vm5146, %v5536, 0.0
        %v5576 = vadd.f32 %v5574, %v5575
        %v5577 = vsel %vm5146, %v5537, 0.0
        %v5578 = vadd.f32 %v5576, %v5577
        %v5579 = vsel %vm5146, %v5538, 0.0
        %v5580 = vadd.f32 %v5578, %v5579
        %v5581 = vsel %vm5146, %v5539, 0.0
        %v5582 = vadd.f32 %v5580, %v5581
        %v5583 = vsel %vm5146, %v5540, 0.0
        %v5584 = vadd.f32 %v5582, %v5583
        %v5585 = vsel %vm5146, %v5541, 0.0
        %v5586 = vadd.f32 %v5584, %v5585
        %v5587 = vsel %vm5146, %v5542, 0.0
        %v5588 = vadd.f32 %v5586, %v5587
        %v5589 = vsel %vm5146, %v5543, 0.0
        %v5590 = vadd.f32 %v5588, %v5589
        %v5591 = vsel %vm5146, %v5544, 0.0
        %v5592 = vadd.f32 %v5590, %v5591
        %v5593 = vsel %vm5146, %v5545, 0.0
        %v5594 = vadd.f32 %v5592, %v5593
        %v5595 = vsel %vm5146, %v5546, 0.0
        %v5596 = vadd.f32 %v5594, %v5595
        %v5597 = vsel %vm5146, %v5547, 0.0
        %v5598 = vadd.f32 %v5596, %v5597
        %v5599 = vsel %vm5146, %v5548, 0.0
        %v5600 = vadd.f32 %v5598, %v5599
        %v5601 = vsel %vm5146, %v5549, 0.0
        %v5602 = vadd.f32 %v5600, %v5601
        %v5603 = vsel %vm5146, %v5550, 0.0
        %v5604 = vadd.f32 %v5602, %v5603
        %v5605 = vsel %vm5146, %v5551, 0.0
        %v5606 = vadd.f32 %v5604, %v5605
        %v5607 = vsel %vm5146, %v5552, 0.0
        %v5608 = vadd.f32 %v5606, %v5607
        %v5609 = vsel %vm5146, %v5553, 0.0
        %v5610 = vadd.f32 %v5608, %v5609
        %v5611 = vsel %vm5146, %v5554, 0.0
        %v5612 = vadd.f32 %v5610, %v5611
        %v5613 = vsel %vm5146, %v5555, 0.0
        %v5614 = vadd.f32 %v5612, %v5613
        %v5615 = vsel %vm5146, %v5556, 0.0
        %v5616 = vadd.f32 %v5614, %v5615
        %v5617 = vsel %vm5146, %v5557, 0.0
        %v5618 = vadd.f32 %v5616, %v5617
        %v5619 = vsel %vm5146, %v5558, 0.0
        %v5620 = vadd.f32 %v5618, %v5619
        %v5621 = vsel %vm5146, %v5559, 0.0
        %v5622 = vadd.f32 %v5620, %v5621
        %v5623 = vrot.slane %v5622, 4
        %v5624 = vadd.f32 %v5622, %v5623
        %v5625 = vrot.slane %v5624, 2
        %v5626 = vadd.f32 %v5624, %v5625
        %v5627 = vrot.slane %v5626, 1
        %v5628 = vadd.f32 %v5626, %v5627
        %v5629 = vadd.f32 %v5494, %v5628
        %v5630 = vmul.f32 %v5629, 0.0025510204
        %v5631 = vsub.f32 %v5201, %v5630
        %v5632 = vsub.f32 %v5202, %v5630
        %v5633 = vsub.f32 %v5203, %v5630
        %v5634 = vsub.f32 %v5204, %v5630
        %v5635 = vsub.f32 %v5205, %v5630
        %v5636 = vsub.f32 %v5206, %v5630
        %v5637 = vsub.f32 %v5207, %v5630
        %v5638 = vsub.f32 %v5208, %v5630
        %v5639 = vsub.f32 %v5209, %v5630
        %v5640 = vsub.f32 %v5210, %v5630
        %v5641 = vsub.f32 %v5211, %v5630
        %v5642 = vsub.f32 %v5212, %v5630
        %v5643 = vsub.f32 %v5213, %v5630
        %v5644 = vsub.f32 %v5214, %v5630
        %v5645 = vsub.f32 %v5215, %v5630
        %v5646 = vsub.f32 %v5216, %v5630
        %v5647 = vsub.f32 %v5217, %v5630
        %v5648 = vsub.f32 %v5218, %v5630
        %v5649 = vsub.f32 %v5219, %v5630
        %v5650 = vsub.f32 %v5220, %v5630
        %v5651 = vsub.f32 %v5221, %v5630
        %v5652 = vsub.f32 %v5222, %v5630
        %v5653 = vsub.f32 %v5223, %v5630
        %v5654 = vsub.f32 %v5224, %v5630
        %v5655 = vsub.f32 %v5225, %v5630
        %v5656 = vsub.f32 %v5226, %v5630
        %v5657 = vsub.f32 %v5227, %v5630
        %v5658 = vsub.f32 %v5228, %v5630
        %v5659 = vsub.f32 %v5229, %v5630
        %v5660 = vsub.f32 %v5230, %v5630
        %v5661 = vsub.f32 %v5231, %v5630
        %v5662 = vsub.f32 %v5232, %v5630
        %v5663 = vmul.f32 %v5631, %v5236
        %v5664 = vmul.f32 %v5632, %v5241
        %v5665 = vmul.f32 %v5633, %v5246
        %v5666 = vmul.f32 %v5634, %v5251
        %v5667 = vmul.f32 %v5635, %v5256
        %v5668 = vmul.f32 %v5636, %v5261
        %v5669 = vmul.f32 %v5637, %v5266
        %v5670 = vmul.f32 %v5638, %v5271
        %v5671 = vmul.f32 %v5639, %v5276
        %v5672 = vmul.f32 %v5640, %v5281
        %v5673 = vmul.f32 %v5641, %v5286
        %v5674 = vmul.f32 %v5642, %v5291
        %v5675 = vmul.f32 %v5643, %v5296
        %v5676 = vmul.f32 %v5644, %v5301
        %v5677 = vmul.f32 %v5645, %v5306
        %v5678 = vmul.f32 %v5646, %v5311
        %v5679 = vmul.f32 %v5647, %v5316
        %v5680 = vmul.f32 %v5648, %v5321
        %v5681 = vmul.f32 %v5649, %v5326
        %v5682 = vmul.f32 %v5650, %v5331
        %v5683 = vmul.f32 %v5651, %v5336
        %v5684 = vmul.f32 %v5652, %v5341
        %v5685 = vmul.f32 %v5653, %v5346
        %v5686 = vmul.f32 %v5654, %v5351
        %v5687 = vmul.f32 %v5655, %v5356
        %v5688 = vmul.f32 %v5656, %v5361
        %v5689 = vmul.f32 %v5657, %v5366
        %v5690 = vmul.f32 %v5658, %v5371
        %v5691 = vmul.f32 %v5659, %v5376
        %v5692 = vmul.f32 %v5660, %v5381
        %v5693 = vmul.f32 %v5661, %v5386
        %v5694 = vmul.f32 %v5662, %v5391
        %v5695 = vmul.f32 %v5663, %v5663
        %v5696 = vmul.f32 %v5664, %v5664
        %v5697 = vmul.f32 %v5665, %v5665
        %v5698 = vmul.f32 %v5666, %v5666
        %v5699 = vmul.f32 %v5667, %v5667
        %v5700 = vmul.f32 %v5668, %v5668
        %v5701 = vmul.f32 %v5669, %v5669
        %v5702 = vmul.f32 %v5670, %v5670
        %v5703 = vmul.f32 %v5671, %v5671
        %v5704 = vmul.f32 %v5672, %v5672
        %v5705 = vmul.f32 %v5673, %v5673
        %v5706 = vmul.f32 %v5674, %v5674
        %v5707 = vmul.f32 %v5675, %v5675
        %v5708 = vmul.f32 %v5676, %v5676
        %v5709 = vmul.f32 %v5677, %v5677
        %v5710 = vmul.f32 %v5678, %v5678
        %v5711 = vmul.f32 %v5679, %v5679
        %v5712 = vmul.f32 %v5680, %v5680
        %v5713 = vmul.f32 %v5681, %v5681
        %v5714 = vmul.f32 %v5682, %v5682
        %v5715 = vmul.f32 %v5683, %v5683
        %v5716 = vmul.f32 %v5684, %v5684
        %v5717 = vmul.f32 %v5685, %v5685
        %v5718 = vmul.f32 %v5686, %v5686
        %v5719 = vmul.f32 %v5687, %v5687
        %v5720 = vmul.f32 %v5688, %v5688
        %v5721 = vmul.f32 %v5689, %v5689
        %v5722 = vmul.f32 %v5690, %v5690
        %v5723 = vmul.f32 %v5691, %v5691
        %v5724 = vmul.f32 %v5692, %v5692
        %v5725 = vmul.f32 %v5693, %v5693
        %v5726 = vmul.f32 %v5694, %v5694
        %v5727 = vsel %vm5146, %v5695, 0.0
        %v5728 = vsel %vm5146, %v5696, 0.0
        %v5729 = vadd.f32 %v5727, %v5728
        %v5730 = vsel %vm5146, %v5697, 0.0
        %v5731 = vadd.f32 %v5729, %v5730
        %v5732 = vsel %vm5146, %v5698, 0.0
        %v5733 = vadd.f32 %v5731, %v5732
        %v5734 = vsel %vm5146, %v5699, 0.0
        %v5735 = vadd.f32 %v5733, %v5734
        %v5736 = vsel %vm5146, %v5700, 0.0
        %v5737 = vadd.f32 %v5735, %v5736
        %v5738 = vsel %vm5146, %v5701, 0.0
        %v5739 = vadd.f32 %v5737, %v5738
        %v5740 = vsel %vm5146, %v5702, 0.0
        %v5741 = vadd.f32 %v5739, %v5740
        %v5742 = vsel %vm5146, %v5703, 0.0
        %v5743 = vadd.f32 %v5741, %v5742
        %v5744 = vsel %vm5146, %v5704, 0.0
        %v5745 = vadd.f32 %v5743, %v5744
        %v5746 = vsel %vm5146, %v5705, 0.0
        %v5747 = vadd.f32 %v5745, %v5746
        %v5748 = vsel %vm5146, %v5706, 0.0
        %v5749 = vadd.f32 %v5747, %v5748
        %v5750 = vsel %vm5146, %v5707, 0.0
        %v5751 = vadd.f32 %v5749, %v5750
        %v5752 = vsel %vm5146, %v5708, 0.0
        %v5753 = vadd.f32 %v5751, %v5752
        %v5754 = vsel %vm5146, %v5709, 0.0
        %v5755 = vadd.f32 %v5753, %v5754
        %v5756 = vsel %vm5146, %v5710, 0.0
        %v5757 = vadd.f32 %v5755, %v5756
        %v5758 = vsel %vm5146, %v5711, 0.0
        %v5759 = vadd.f32 %v5757, %v5758
        %v5760 = vsel %vm5146, %v5712, 0.0
        %v5761 = vadd.f32 %v5759, %v5760
        %v5762 = vsel %vm5146, %v5713, 0.0
        %v5763 = vadd.f32 %v5761, %v5762
        %v5764 = vsel %vm5146, %v5714, 0.0
        %v5765 = vadd.f32 %v5763, %v5764
        %v5766 = vsel %vm5146, %v5715, 0.0
        %v5767 = vadd.f32 %v5765, %v5766
        %v5768 = vsel %vm5146, %v5716, 0.0
        %v5769 = vadd.f32 %v5767, %v5768
        %v5770 = vsel %vm5146, %v5717, 0.0
        %v5771 = vadd.f32 %v5769, %v5770
        %v5772 = vsel %vm5146, %v5718, 0.0
        %v5773 = vadd.f32 %v5771, %v5772
        %v5774 = vsel %vm5146, %v5719, 0.0
        %v5775 = vadd.f32 %v5773, %v5774
        %v5776 = vsel %vm5146, %v5720, 0.0
        %v5777 = vadd.f32 %v5775, %v5776
        %v5778 = vsel %vm5146, %v5721, 0.0
        %v5779 = vadd.f32 %v5777, %v5778
        %v5780 = vsel %vm5146, %v5722, 0.0
        %v5781 = vadd.f32 %v5779, %v5780
        %v5782 = vsel %vm5146, %v5723, 0.0
        %v5783 = vadd.f32 %v5781, %v5782
        %v5784 = vsel %vm5146, %v5724, 0.0
        %v5785 = vadd.f32 %v5783, %v5784
        %v5786 = vsel %vm5146, %v5725, 0.0
        %v5787 = vadd.f32 %v5785, %v5786
        %v5788 = vsel %vm5146, %v5726, 0.0
        %v5789 = vadd.f32 %v5787, %v5788
        %v5790 = vrot.slane %v5789, 4
        %v5791 = vadd.f32 %v5789, %v5790
        %v5792 = vrot.slane %v5791, 2
        %v5793 = vadd.f32 %v5791, %v5792
        %v5794 = vrot.slane %v5793, 1
        %v5795 = vadd.f32 %v5793, %v5794
        %v5796 = vadd.f32 %v5795, 0.0
        %v5797 = vsub.f32 %v5496, %v5630
        %v5798 = vsub.f32 %v5497, %v5630
        %v5799 = vsub.f32 %v5498, %v5630
        %v5800 = vsub.f32 %v5499, %v5630
        %v5801 = vsub.f32 %v5500, %v5630
        %v5802 = vsub.f32 %v5501, %v5630
        %v5803 = vsub.f32 %v5502, %v5630
        %v5804 = vsub.f32 %v5503, %v5630
        %v5805 = vsub.f32 %v5504, %v5630
        %v5806 = vsub.f32 %v5505, %v5630
        %v5807 = vsub.f32 %v5506, %v5630
        %v5808 = vsub.f32 %v5507, %v5630
        %v5809 = vsub.f32 %v5508, %v5630
        %v5810 = vsub.f32 %v5509, %v5630
        %v5811 = vsub.f32 %v5510, %v5630
        %v5812 = vsub.f32 %v5511, %v5630
        %v5813 = vsub.f32 %v5512, %v5630
        %v5814 = vsub.f32 %v5513, %v5630
        %v5815 = vsub.f32 %v5514, %v5630
        %v5816 = vsub.f32 %v5515, %v5630
        %v5817 = vsub.f32 %v5516, %v5630
        %v5818 = vsub.f32 %v5517, %v5630
        %v5819 = vsub.f32 %v5518, %v5630
        %v5820 = vsub.f32 %v5519, %v5630
        %v5821 = vsub.f32 %v5520, %v5630
        %v5822 = vsub.f32 %v5521, %v5630
        %v5823 = vsub.f32 %v5522, %v5630
        %v5824 = vsub.f32 %v5523, %v5630
        %v5825 = vsub.f32 %v5524, %v5630
        %v5826 = vsub.f32 %v5525, %v5630
        %v5827 = vsub.f32 %v5526, %v5630
        %v5828 = vsub.f32 %v5527, %v5630
        %v5829 = vmul.f32 %v5797, %v5236
        %v5830 = vmul.f32 %v5798, %v5241
        %v5831 = vmul.f32 %v5799, %v5246
        %v5832 = vmul.f32 %v5800, %v5251
        %v5833 = vmul.f32 %v5801, %v5256
        %v5834 = vmul.f32 %v5802, %v5261
        %v5835 = vmul.f32 %v5803, %v5266
        %v5836 = vmul.f32 %v5804, %v5271
        %v5837 = vmul.f32 %v5805, %v5276
        %v5838 = vmul.f32 %v5806, %v5281
        %v5839 = vmul.f32 %v5807, %v5286
        %v5840 = vmul.f32 %v5808, %v5291
        %v5841 = vmul.f32 %v5809, %v5296
        %v5842 = vmul.f32 %v5810, %v5301
        %v5843 = vmul.f32 %v5811, %v5306
        %v5844 = vmul.f32 %v5812, %v5311
        %v5845 = vmul.f32 %v5813, %v5316
        %v5846 = vmul.f32 %v5814, %v5321
        %v5847 = vmul.f32 %v5815, %v5326
        %v5848 = vmul.f32 %v5816, %v5331
        %v5849 = vmul.f32 %v5817, %v5336
        %v5850 = vmul.f32 %v5818, %v5341
        %v5851 = vmul.f32 %v5819, %v5346
        %v5852 = vmul.f32 %v5820, %v5351
        %v5853 = vmul.f32 %v5821, %v5356
        %v5854 = vmul.f32 %v5822, %v5361
        %v5855 = vmul.f32 %v5823, %v5366
        %v5856 = vmul.f32 %v5824, %v5371
        %v5857 = vmul.f32 %v5825, %v5376
        %v5858 = vmul.f32 %v5826, %v5381
        %v5859 = vmul.f32 %v5827, %v5386
        %v5860 = vmul.f32 %v5828, %v5391
        %v5861 = vmul.f32 %v5829, %v5829
        %v5862 = vmul.f32 %v5830, %v5830
        %v5863 = vmul.f32 %v5831, %v5831
        %v5864 = vmul.f32 %v5832, %v5832
        %v5865 = vmul.f32 %v5833, %v5833
        %v5866 = vmul.f32 %v5834, %v5834
        %v5867 = vmul.f32 %v5835, %v5835
        %v5868 = vmul.f32 %v5836, %v5836
        %v5869 = vmul.f32 %v5837, %v5837
        %v5870 = vmul.f32 %v5838, %v5838
        %v5871 = vmul.f32 %v5839, %v5839
        %v5872 = vmul.f32 %v5840, %v5840
        %v5873 = vmul.f32 %v5841, %v5841
        %v5874 = vmul.f32 %v5842, %v5842
        %v5875 = vmul.f32 %v5843, %v5843
        %v5876 = vmul.f32 %v5844, %v5844
        %v5877 = vmul.f32 %v5845, %v5845
        %v5878 = vmul.f32 %v5846, %v5846
        %v5879 = vmul.f32 %v5847, %v5847
        %v5880 = vmul.f32 %v5848, %v5848
        %v5881 = vmul.f32 %v5849, %v5849
        %v5882 = vmul.f32 %v5850, %v5850
        %v5883 = vmul.f32 %v5851, %v5851
        %v5884 = vmul.f32 %v5852, %v5852
        %v5885 = vmul.f32 %v5853, %v5853
        %v5886 = vmul.f32 %v5854, %v5854
        %v5887 = vmul.f32 %v5855, %v5855
        %v5888 = vmul.f32 %v5856, %v5856
        %v5889 = vmul.f32 %v5857, %v5857
        %v5890 = vmul.f32 %v5858, %v5858
        %v5891 = vmul.f32 %v5859, %v5859
        %v5892 = vmul.f32 %v5860, %v5860
        %v5893 = vsel %vm5146, %v5861, 0.0
        %v5894 = vsel %vm5146, %v5862, 0.0
        %v5895 = vadd.f32 %v5893, %v5894
        %v5896 = vsel %vm5146, %v5863, 0.0
        %v5897 = vadd.f32 %v5895, %v5896
        %v5898 = vsel %vm5146, %v5864, 0.0
        %v5899 = vadd.f32 %v5897, %v5898
        %v5900 = vsel %vm5146, %v5865, 0.0
        %v5901 = vadd.f32 %v5899, %v5900
        %v5902 = vsel %vm5146, %v5866, 0.0
        %v5903 = vadd.f32 %v5901, %v5902
        %v5904 = vsel %vm5146, %v5867, 0.0
        %v5905 = vadd.f32 %v5903, %v5904
        %v5906 = vsel %vm5146, %v5868, 0.0
        %v5907 = vadd.f32 %v5905, %v5906
        %v5908 = vsel %vm5146, %v5869, 0.0
        %v5909 = vadd.f32 %v5907, %v5908
        %v5910 = vsel %vm5146, %v5870, 0.0
        %v5911 = vadd.f32 %v5909, %v5910
        %v5912 = vsel %vm5146, %v5871, 0.0
        %v5913 = vadd.f32 %v5911, %v5912
        %v5914 = vsel %vm5146, %v5872, 0.0
        %v5915 = vadd.f32 %v5913, %v5914
        %v5916 = vsel %vm5146, %v5873, 0.0
        %v5917 = vadd.f32 %v5915, %v5916
        %v5918 = vsel %vm5146, %v5874, 0.0
        %v5919 = vadd.f32 %v5917, %v5918
        %v5920 = vsel %vm5146, %v5875, 0.0
        %v5921 = vadd.f32 %v5919, %v5920
        %v5922 = vsel %vm5146, %v5876, 0.0
        %v5923 = vadd.f32 %v5921, %v5922
        %v5924 = vsel %vm5146, %v5877, 0.0
        %v5925 = vadd.f32 %v5923, %v5924
        %v5926 = vsel %vm5146, %v5878, 0.0
        %v5927 = vadd.f32 %v5925, %v5926
        %v5928 = vsel %vm5146, %v5879, 0.0
        %v5929 = vadd.f32 %v5927, %v5928
        %v5930 = vsel %vm5146, %v5880, 0.0
        %v5931 = vadd.f32 %v5929, %v5930
        %v5932 = vsel %vm5146, %v5881, 0.0
        %v5933 = vadd.f32 %v5931, %v5932
        %v5934 = vsel %vm5146, %v5882, 0.0
        %v5935 = vadd.f32 %v5933, %v5934
        %v5936 = vsel %vm5146, %v5883, 0.0
        %v5937 = vadd.f32 %v5935, %v5936
        %v5938 = vsel %vm5146, %v5884, 0.0
        %v5939 = vadd.f32 %v5937, %v5938
        %v5940 = vsel %vm5146, %v5885, 0.0
        %v5941 = vadd.f32 %v5939, %v5940
        %v5942 = vsel %vm5146, %v5886, 0.0
        %v5943 = vadd.f32 %v5941, %v5942
        %v5944 = vsel %vm5146, %v5887, 0.0
        %v5945 = vadd.f32 %v5943, %v5944
        %v5946 = vsel %vm5146, %v5888, 0.0
        %v5947 = vadd.f32 %v5945, %v5946
        %v5948 = vsel %vm5146, %v5889, 0.0
        %v5949 = vadd.f32 %v5947, %v5948
        %v5950 = vsel %vm5146, %v5890, 0.0
        %v5951 = vadd.f32 %v5949, %v5950
        %v5952 = vsel %vm5146, %v5891, 0.0
        %v5953 = vadd.f32 %v5951, %v5952
        %v5954 = vsel %vm5146, %v5892, 0.0
        %v5955 = vadd.f32 %v5953, %v5954
        %v5956 = vrot.slane %v5955, 4
        %v5957 = vadd.f32 %v5955, %v5956
        %v5958 = vrot.slane %v5957, 2
        %v5959 = vadd.f32 %v5957, %v5958
        %v5960 = vrot.slane %v5959, 1
        %v5961 = vadd.f32 %v5959, %v5960
        %v5962 = vadd.f32 %v5796, %v5961
        %v5963 = vmul.f32 %v5962, 0.0025510204
        %v5964 = vld [vmem:[%s2] sm:$0x1]
        %v5965 = vadd.f32 %v5963, 1e-05
        %v5966 = vrsqrt.pop %v5965
        %v5967 = vmul.f32 %v5966, %v5965
        %v5968 = vmul.f32 %v5967, %v5966
        %v5969 = vmul.f32 0.5, %v5968
        %v5970 = vsub.f32 1.5, %v5969
        %v5971 = vmul.f32 %v5966, %v5970
        %vm5972 = vweird.f32 %v5965
        %vm5973 = vweird.f32 %v5966
        %vm5974 = vmor %vm5972, %vm5973
        %v5975 = vsel %vm5974, %v5966, %v5971
        %v5976 = vmul.f32 %v5964, %v5975
        %v5977 = vld [vmem:[%s3] sm:$0x1]
        %v5978 = vmul.f32 %v5630, %v5976
        %v5979 = vsub.f32 %v5977, %v5978
        %v5981 = vperm.slane %v5976, 0
        %v5983 = vmul.f32 %v5201, %v5981
        %v5984 = vmul.f32 %v5202, %v5981
        %v5985 = vmul.f32 %v5203, %v5981
        %v5986 = vmul.f32 %v5204, %v5981
        %v5987 = vmul.f32 %v5205, %v5981
        %v5988 = vmul.f32 %v5206, %v5981
        %v5989 = vmul.f32 %v5207, %v5981
        %v5990 = vmul.f32 %v5208, %v5981
        %v5991 = vmul.f32 %v5209, %v5981
        %v5992 = vmul.f32 %v5210, %v5981
        %v5993 = vmul.f32 %v5211, %v5981
        %v5994 = vmul.f32 %v5212, %v5981
        %v5995 = vmul.f32 %v5213, %v5981
        %v5996 = vmul.f32 %v5214, %v5981
        %v5997 = vmul.f32 %v5215, %v5981
        %v5998 = vmul.f32 %v5216, %v5981
        %v5999 = vmul.f32 %v5217, %v5981
        %v6000 = vmul.f32 %v5218, %v5981
        %v6001 = vmul.f32 %v5219, %v5981
        %v6002 = vmul.f32 %v5220, %v5981
        %v6003 = vmul.f32 %v5221, %v5981
        %v6004 = vmul.f32 %v5222, %v5981
        %v6005 = vmul.f32 %v5223, %v5981
        %v6006 = vmul.f32 %v5224, %v5981
        %v6008 = vperm.slane %v5979, 0
        %v6010 = vadd.f32 %v5983, %v6008
        %v6011 = vadd.f32 %v5984, %v6008
        %v6012 = vadd.f32 %v5985, %v6008
        %v6013 = vadd.f32 %v5986, %v6008
        %v6014 = vadd.f32 %v5987, %v6008
        %v6015 = vadd.f32 %v5988, %v6008
        %v6016 = vadd.f32 %v5989, %v6008
        %v6017 = vadd.f32 %v5990, %v6008
        %v6018 = vadd.f32 %v5991, %v6008
        %v6019 = vadd.f32 %v5992, %v6008
        %v6020 = vadd.f32 %v5993, %v6008
        %v6021 = vadd.f32 %v5994, %v6008
        %v6022 = vadd.f32 %v5995, %v6008
        %v6023 = vadd.f32 %v5996, %v6008
        %v6024 = vadd.f32 %v5997, %v6008
        %v6025 = vadd.f32 %v5998, %v6008
        %v6026 = vadd.f32 %v5999, %v6008
        %v6027 = vadd.f32 %v6000, %v6008
        %v6028 = vadd.f32 %v6001, %v6008
        %v6029 = vadd.f32 %v6002, %v6008
        %v6030 = vadd.f32 %v6003, %v6008
        %v6031 = vadd.f32 %v6004, %v6008
        %v6032 = vadd.f32 %v6005, %v6008
        %v6033 = vadd.f32 %v6006, %v6008
        %vm6034 = vcmp.gt.f32.partialorder %v6010, 0.0
        %vm6035 = vcmp.gt.f32.partialorder %v6011, 0.0
        %vm6036 = vcmp.gt.f32.partialorder %v6012, 0.0
        %vm6037 = vcmp.gt.f32.partialorder %v6013, 0.0
        %vm6038 = vcmp.gt.f32.partialorder %v6014, 0.0
        %vm6039 = vcmp.gt.f32.partialorder %v6015, 0.0
        %vm6040 = vcmp.gt.f32.partialorder %v6016, 0.0
        %vm6041 = vcmp.gt.f32.partialorder %v6017, 0.0
        %vm6042 = vcmp.gt.f32.partialorder %v6018, 0.0
        %vm6043 = vcmp.gt.f32.partialorder %v6019, 0.0
        %vm6044 = vcmp.gt.f32.partialorder %v6020, 0.0
        %vm6045 = vcmp.gt.f32.partialorder %v6021, 0.0
        %vm6046 = vcmp.gt.f32.partialorder %v6022, 0.0
        %vm6047 = vcmp.gt.f32.partialorder %v6023, 0.0
        %vm6048 = vcmp.gt.f32.partialorder %v6024, 0.0
        %vm6049 = vcmp.gt.f32.partialorder %v6025, 0.0
        %vm6050 = vcmp.gt.f32.partialorder %v6026, 0.0
        %vm6051 = vcmp.gt.f32.partialorder %v6027, 0.0
        %vm6052 = vcmp.gt.f32.partialorder %v6028, 0.0
        %vm6053 = vcmp.gt.f32.partialorder %v6029, 0.0
        %vm6054 = vcmp.gt.f32.partialorder %v6030, 0.0
        %vm6055 = vcmp.gt.f32.partialorder %v6031, 0.0
        %vm6056 = vcmp.gt.f32.partialorder %v6032, 0.0
        %vm6057 = vcmp.gt.f32.partialorder %v6033, 0.0
        %v6058 = vmul.f32 %v6010, 0.01
        %v6059 = vmul.f32 %v6011, 0.01
        %v6060 = vmul.f32 %v6012, 0.01
        %v6061 = vmul.f32 %v6013, 0.01
        %v6062 = vmul.f32 %v6014, 0.01
        %v6063 = vmul.f32 %v6015, 0.01
        %v6064 = vmul.f32 %v6016, 0.01
        %v6065 = vmul.f32 %v6017, 0.01
        %v6066 = vmul.f32 %v6018, 0.01
        %v6067 = vmul.f32 %v6019, 0.01
        %v6068 = vmul.f32 %v6020, 0.01
        %v6069 = vmul.f32 %v6021, 0.01
        %v6070 = vmul.f32 %v6022, 0.01
        %v6071 = vmul.f32 %v6023, 0.01
        %v6072 = vmul.f32 %v6024, 0.01
        %v6073 = vmul.f32 %v6025, 0.01
        %v6074 = vmul.f32 %v6026, 0.01
        %v6075 = vmul.f32 %v6027, 0.01
        %v6076 = vmul.f32 %v6028, 0.01
        %v6077 = vmul.f32 %v6029, 0.01
        %v6078 = vmul.f32 %v6030, 0.01
        %v6079 = vmul.f32 %v6031, 0.01
        %v6080 = vmul.f32 %v6032, 0.01
        %v6081 = vmul.f32 %v6033, 0.01
        %v6082 = vsel %vm6034, %v6010, %v6058
        %v6083 = vsel %vm6035, %v6011, %v6059
        %v6084 = vsel %vm6036, %v6012, %v6060
        %v6085 = vsel %vm6037, %v6013, %v6061
        %v6086 = vsel %vm6038, %v6014, %v6062
        %v6087 = vsel %vm6039, %v6015, %v6063
        %v6088 = vsel %vm6040, %v6016, %v6064
        %v6089 = vsel %vm6041, %v6017, %v6065
        %v6090 = vsel %vm6042, %v6018, %v6066
        %v6091 = vsel %vm6043, %v6019, %v6067
        %v6092 = vsel %vm6044, %v6020, %v6068
        %v6093 = vsel %vm6045, %v6021, %v6069
        %v6094 = vsel %vm6046, %v6022, %v6070
        %v6095 = vsel %vm6047, %v6023, %v6071
        %v6096 = vsel %vm6048, %v6024, %v6072
        %v6097 = vsel %vm6049, %v6025, %v6073
        %v6098 = vsel %vm6050, %v6026, %v6074
        %v6099 = vsel %vm6051, %v6027, %v6075
        %v6100 = vsel %vm6052, %v6028, %v6076
        %v6101 = vsel %vm6053, %v6029, %v6077
        %v6102 = vsel %vm6054, %v6030, %v6078
        %v6103 = vsel %vm6055, %v6031, %v6079
        %v6104 = vsel %vm6056, %v6032, %v6080
        %v6105 = vsel %vm6057, %v6033, %v6081
        %vm6106 = vcmask 58368
        %v6107 = vsel %vm6106, %v6082, -inf
        %v6108 = vsel %vm6106, %v6084, -inf
        %v6109 = vmax.f32 %v6107, %v6108
        %v6110 = vrot.slane %v6109, 4
        %v6111 = vmax.f32 %v6109, %v6110
        %v6112 = vrot.slane %v6111, 2
        %v6113 = vmax.f32 %v6111, %v6112
        %v6114 = vrot.slane %v6113, 1
        %v6115 = vmax.f32 %v6113, %v6114
        %v6116 = vsel %vm6106, %v6090, -inf
        %v6117 = vsel %vm6106, %v6092, -inf
        %v6118 = vmax.f32 %v6116, %v6117
        %v6119 = vrot.slane %v6118, 4
        %v6120 = vmax.f32 %v6118, %v6119
        %v6121 = vrot.slane %v6120, 2
        %v6122 = vmax.f32 %v6120, %v6121
        %v6123 = vrot.slane %v6122, 1
        %v6124 = vmax.f32 %v6122, %v6123
        %v6125 = vsel %vm6106, %v6098, -inf
        %v6126 = vsel %vm6106, %v6100, -inf
        %v6127 = vmax.f32 %v6125, %v6126
        %v6128 = vrot.slane %v6127, 4
        %v6129 = vmax.f32 %v6127, %v6128
        %v6130 = vrot.slane %v6129, 2
        %v6131 = vmax.f32 %v6129, %v6130
        %v6132 = vrot.slane %v6131, 1
        %v6133 = vmax.f32 %v6131, %v6132
        %vm6134 = vcmask 60418
        %v6135 = vsel %vm6134, %v6082, -inf
        %v6136 = vsel %vm6134, %v6084, -inf
        %v6137 = vmax.f32 %v6135, %v6136
        %v6138 = vrot.slane %v6137, 4
        %v6139 = vmax.f32 %v6137, %v6138
        %v6140 = vrot.slane %v6139, 2
        %v6141 = vmax.f32 %v6139, %v6140
        %v6142 = vrot.slane %v6141, 1
        %v6143 = vmax.f32 %v6141, %v6142
        %v6144 = vsel %vm6134, %v6090, -inf
        %v6145 = vsel %vm6134, %v6092, -inf
        %v6146 = vmax.f32 %v6144, %v6145
        %v6147 = vrot.slane %v6146, 4
        %v6148 = vmax.f32 %v6146, %v6147
        %v6149 = vrot.slane %v6148, 2
        %v6150 = vmax.f32 %v6148, %v6149
        %v6151 = vrot.slane %v6150, 1
        %v6152 = vmax.f32 %v6150, %v6151
        %v6153 = vsel %vm6134, %v6098, -inf
        %v6154 = vsel %vm6134, %v6100, -inf
        %v6155 = vmax.f32 %v6153, %v6154
        %v6156 = vrot.slane %v6155, 4
        %v6157 = vmax.f32 %v6155, %v6156
        %v6158 = vrot.slane %v6157, 2
        %v6159 = vmax.f32 %v6157, %v6158
        %v6160 = vrot.slane %v6159, 1
        %v6161 = vmax.f32 %v6159, %v6160
        %v6162 = vsel %vm6106, %v6086, -inf
        %v6163 = vsel %vm6106, %v6088, -inf
        %v6164 = vmax.f32 %v6162, %v6163
        %v6165 = vrot.slane %v6164, 4
        %v6166 = vmax.f32 %v6164, %v6165
        %v6167 = vrot.slane %v6166, 2
        %v6168 = vmax.f32 %v6166, %v6167
        %v6169 = vrot.slane %v6168, 1
        %v6170 = vmax.f32 %v6168, %v6169
        %v6171 = vsel %vm6106, %v6094, -inf
        %v6172 = vsel %vm6106, %v6096, -inf
        %v6173 = vmax.f32 %v6171, %v6172
        %v6174 = vrot.slane %v6173, 4
        %v6175 = vmax.f32 %v6173, %v6174
        %v6176 = vrot.slane %v6175, 2
        %v6177 = vmax.f32 %v6175, %v6176
        %v6178 = vrot.slane %v6177, 1
        %v6179 = vmax.f32 %v6177, %v6178
        %v6180 = vsel %vm6106, %v6102, -inf
        %v6181 = vsel %vm6106, %v6104, -inf
        %v6182 = vmax.f32 %v6180, %v6181
        %v6183 = vrot.slane %v6182, 4
        %v6184 = vmax.f32 %v6182, %v6183
        %v6185 = vrot.slane %v6184, 2
        %v6186 = vmax.f32 %v6184, %v6185
        %v6187 = vrot.slane %v6186, 1
        %v6188 = vmax.f32 %v6186, %v6187
        %v6189 = vsel %vm6134, %v6086, -inf
        %v6190 = vsel %vm6134, %v6088, -inf
        %v6191 = vmax.f32 %v6189, %v6190
        %v6192 = vrot.slane %v6191, 4
        %v6193 = vmax.f32 %v6191, %v6192
        %v6194 = vrot.slane %v6193, 2
        %v6195 = vmax.f32 %v6193, %v6194
        %v6196 = vrot.slane %v6195, 1
        %v6197 = vmax.f32 %v6195, %v6196
        %v6198 = vsel %vm6134, %v6094, -inf
        %v6199 = vsel %vm6134, %v6096, -inf
        %v6200 = vmax.f32 %v6198, %v6199
        %v6201 = vrot.slane %v6200, 4
        %v6202 = vmax.f32 %v6200, %v6201
        %v6203 = vrot.slane %v6202, 2
        %v6204 = vmax.f32 %v6202, %v6203
        %v6205 = vrot.slane %v6204, 1
        %v6206 = vmax.f32 %v6204, %v6205
        %v6207 = vsel %vm6134, %v6102, -inf
        %v6208 = vsel %vm6134, %v6104, -inf
        %v6209 = vmax.f32 %v6207, %v6208
        %v6210 = vrot.slane %v6209, 4
        %v6211 = vmax.f32 %v6209, %v6210
        %v6212 = vrot.slane %v6211, 2
        %v6213 = vmax.f32 %v6211, %v6212
        %v6214 = vrot.slane %v6213, 1
        %v6215 = vmax.f32 %v6213, %v6214
        %v6216 = vadd.f32 %v6115, %v6143
        %v6217 = vadd.f32 %v6124, %v6152
        %v6218 = vadd.f32 %v6133, %v6161
        %v6219 = vadd.f32 %v6216, %v6170
        %v6220 = vadd.f32 %v6217, %v6179
        %v6221 = vadd.f32 %v6218, %v6188
        %v6222 = vadd.f32 %v6219, %v6197
        %v6223 = vadd.f32 %v6220, %v6206
        %v6224 = vadd.f32 %v6221, %v6215
        %v6225 = vmul.f32 %v6222, 0.25
        %v6226 = vmul.f32 %v6223, 0.25
        %v6227 = vmul.f32 %v6224, 0.25
        %vm6228 = vcmask 57344
        %6229 = vst.msk [vmem:[%s5] sm:$0x1] %vm6228, %v6225
        %6230 = vst.msk [vmem:[%s5 + $0x4] sm:$0x1] %vm6228, %v6226
        %6231 = vst.msk [vmem:[%s5 + $0x8] sm:$0x1] %vm6228, %v6227
        %vm6232 = vcmask 62468
        %v6233 = vsel %vm6232, %v6082, -inf
        %v6234 = vsel %vm6232, %v6084, -inf
        %v6235 = vmax.f32 %v6233, %v6234
        %v6236 = vrot.slane %v6235, 4
        %v6237 = vmax.f32 %v6235, %v6236
        %v6238 = vrot.slane %v6237, 2
        %v6239 = vmax.f32 %v6237, %v6238
        %v6240 = vrot.slane %v6239, 1
        %v6241 = vmax.f32 %v6239, %v6240
        %v6242 = vsel %vm6232, %v6090, -inf
        %v6243 = vsel %vm6232, %v6092, -inf
        %v6244 = vmax.f32 %v6242, %v6243
        %v6245 = vrot.slane %v6244, 4
        %v6246 = vmax.f32 %v6244, %v6245
        %v6247 = vrot.slane %v6246, 2
        %v6248 = vmax.f32 %v6246, %v6247
        %v6249 = vrot.slane %v6248, 1
        %v6250 = vmax.f32 %v6248, %v6249
        %v6251 = vsel %vm6232, %v6098, -inf
        %v6252 = vsel %vm6232, %v6100, -inf
        %v6253 = vmax.f32 %v6251, %v6252
        %v6254 = vrot.slane %v6253, 4
        %v6255 = vmax.f32 %v6253, %v6254
        %v6256 = vrot.slane %v6255, 2
        %v6257 = vmax.f32 %v6255, %v6256
        %v6258 = vrot.slane %v6257, 1
        %v6259 = vmax.f32 %v6257, %v6258
        %vm6260 = vcmask 64518
        %v6261 = vsel %vm6260, %v6082, -inf
        %v6262 = vsel %vm6260, %v6084, -inf
        %v6263 = vmax.f32 %v6261, %v6262
        %v6264 = vrot.slane %v6263, 4
        %v6265 = vmax.f32 %v6263, %v6264
        %v6266 = vrot.slane %v6265, 2
        %v6267 = vmax.f32 %v6265, %v6266
        %v6268 = vrot.slane %v6267, 1
        %v6269 = vmax.f32 %v6267, %v6268
        %v6270 = vsel %vm6260, %v6090, -inf
        %v6271 = vsel %vm6260, %v6092, -inf
        %v6272 = vmax.f32 %v6270, %v6271
        %v6273 = vrot.slane %v6272, 4
        %v6274 = vmax.f32 %v6272, %v6273
        %v6275 = vrot.slane %v6274, 2
        %v6276 = vmax.f32 %v6274, %v6275
        %v6277 = vrot.slane %v6276, 1
        %v6278 = vmax.f32 %v6276, %v6277
        %v6279 = vsel %vm6260, %v6098, -inf
        %v6280 = vsel %vm6260, %v6100, -inf
        %v6281 = vmax.f32 %v6279, %v6280
        %v6282 = vrot.slane %v6281, 4
        %v6283 = vmax.f32 %v6281, %v6282
        %v6284 = vrot.slane %v6283, 2
        %v6285 = vmax.f32 %v6283, %v6284
        %v6286 = vrot.slane %v6285, 1
        %v6287 = vmax.f32 %v6285, %v6286
        %v6288 = vsel %vm6232, %v6086, -inf
        %v6289 = vsel %vm6232, %v6088, -inf
        %v6290 = vmax.f32 %v6288, %v6289
        %v6291 = vrot.slane %v6290, 4
        %v6292 = vmax.f32 %v6290, %v6291
        %v6293 = vrot.slane %v6292, 2
        %v6294 = vmax.f32 %v6292, %v6293
        %v6295 = vrot.slane %v6294, 1
        %v6296 = vmax.f32 %v6294, %v6295
        %v6297 = vsel %vm6232, %v6094, -inf
        %v6298 = vsel %vm6232, %v6096, -inf
        %v6299 = vmax.f32 %v6297, %v6298
        %v6300 = vrot.slane %v6299, 4
        %v6301 = vmax.f32 %v6299, %v6300
        %v6302 = vrot.slane %v6301, 2
        %v6303 = vmax.f32 %v6301, %v6302
        %v6304 = vrot.slane %v6303, 1
        %v6305 = vmax.f32 %v6303, %v6304
        %v6306 = vsel %vm6232, %v6102, -inf
        %v6307 = vsel %vm6232, %v6104, -inf
        %v6308 = vmax.f32 %v6306, %v6307
        %v6309 = vrot.slane %v6308, 4
        %v6310 = vmax.f32 %v6308, %v6309
        %v6311 = vrot.slane %v6310, 2
        %v6312 = vmax.f32 %v6310, %v6311
        %v6313 = vrot.slane %v6312, 1
        %v6314 = vmax.f32 %v6312, %v6313
        %v6315 = vsel %vm6260, %v6086, -inf
        %v6316 = vsel %vm6260, %v6088, -inf
        %v6317 = vmax.f32 %v6315, %v6316
        %v6318 = vrot.slane %v6317, 4
        %v6319 = vmax.f32 %v6317, %v6318
        %v6320 = vrot.slane %v6319, 2
        %v6321 = vmax.f32 %v6319, %v6320
        %v6322 = vrot.slane %v6321, 1
        %v6323 = vmax.f32 %v6321, %v6322
        %v6324 = vsel %vm6260, %v6094, -inf
        %v6325 = vsel %vm6260, %v6096, -inf
        %v6326 = vmax.f32 %v6324, %v6325
        %v6327 = vrot.slane %v6326, 4
        %v6328 = vmax.f32 %v6326, %v6327
        %v6329 = vrot.slane %v6328, 2
        %v6330 = vmax.f32 %v6328, %v6329
        %v6331 = vrot.slane %v6330, 1
        %v6332 = vmax.f32 %v6330, %v6331
        %v6333 = vsel %vm6260, %v6102, -inf
        %v6334 = vsel %vm6260, %v6104, -inf
        %v6335 = vmax.f32 %v6333, %v6334
        %v6336 = vrot.slane %v6335, 4
        %v6337 = vmax.f32 %v6335, %v6336
        %v6338 = vrot.slane %v6337, 2
        %v6339 = vmax.f32 %v6337, %v6338
        %v6340 = vrot.slane %v6339, 1
        %v6341 = vmax.f32 %v6339, %v6340
        %v6342 = vadd.f32 %v6241, %v6269
        %v6343 = vadd.f32 %v6250, %v6278
        %v6344 = vadd.f32 %v6259, %v6287
        %v6345 = vadd.f32 %v6342, %v6296
        %v6346 = vadd.f32 %v6343, %v6305
        %v6347 = vadd.f32 %v6344, %v6314
        %v6348 = vadd.f32 %v6345, %v6323
        %v6349 = vadd.f32 %v6346, %v6332
        %v6350 = vadd.f32 %v6347, %v6341
        %v6351 = vmul.f32 %v6348, 0.25
        %v6352 = vmul.f32 %v6349, 0.25
        %v6353 = vmul.f32 %v6350, 0.25
        %6354 = vst.msk [vmem:[%s5 + $0x1] sm:$0x1] %vm6228, %v6351
        %6355 = vst.msk [vmem:[%s5 + $0x5] sm:$0x1] %vm6228, %v6352
        %6356 = vst.msk [vmem:[%s5 + $0x9] sm:$0x1] %vm6228, %v6353
        %v6357 = vsel %vm6106, %v6083, -inf
        %v6358 = vsel %vm6106, %v6085, -inf
        %v6359 = vmax.f32 %v6357, %v6358
        %v6360 = vrot.slane %v6359, 4
        %v6361 = vmax.f32 %v6359, %v6360
        %v6362 = vrot.slane %v6361, 2
        %v6363 = vmax.f32 %v6361, %v6362
        %v6364 = vrot.slane %v6363, 1
        %v6365 = vmax.f32 %v6363, %v6364
        %v6366 = vsel %vm6106, %v6091, -inf
        %v6367 = vsel %vm6106, %v6093, -inf
        %v6368 = vmax.f32 %v6366, %v6367
        %v6369 = vrot.slane %v6368, 4
        %v6370 = vmax.f32 %v6368, %v6369
        %v6371 = vrot.slane %v6370, 2
        %v6372 = vmax.f32 %v6370, %v6371
        %v6373 = vrot.slane %v6372, 1
        %v6374 = vmax.f32 %v6372, %v6373
        %v6375 = vsel %vm6106, %v6099, -inf
        %v6376 = vsel %vm6106, %v6101, -inf
        %v6377 = vmax.f32 %v6375, %v6376
        %v6378 = vrot.slane %v6377, 4
        %v6379 = vmax.f32 %v6377, %v6378
        %v6380 = vrot.slane %v6379, 2
        %v6381 = vmax.f32 %v6379, %v6380
        %v6382 = vrot.slane %v6381, 1
        %v6383 = vmax.f32 %v6381, %v6382
        %v6384 = vsel %vm6134, %v6083, -inf
        %v6385 = vsel %vm6134, %v6085, -inf
        %v6386 = vmax.f32 %v6384, %v6385
        %v6387 = vrot.slane %v6386, 4
        %v6388 = vmax.f32 %v6386, %v6387
        %v6389 = vrot.slane %v6388, 2
        %v6390 = vmax.f32 %v6388, %v6389
        %v6391 = vrot.slane %v6390, 1
        %v6392 = vmax.f32 %v6390, %v6391
        %v6393 = vsel %vm6134, %v6091, -inf
        %v6394 = vsel %vm6134, %v6093, -inf
        %v6395 = vmax.f32 %v6393, %v6394
        %v6396 = vrot.slane %v6395, 4
        %v6397 = vmax.f32 %v6395, %v6396
        %v6398 = vrot.slane %v6397, 2
        %v6399 = vmax.f32 %v6397, %v6398
        %v6400 = vrot.slane %v6399, 1
        %v6401 = vmax.f32 %v6399, %v6400
        %v6402 = vsel %vm6134, %v6099, -inf
        %v6403 = vsel %vm6134, %v6101, -inf
        %v6404 = vmax.f32 %v6402, %v6403
        %v6405 = vrot.slane %v6404, 4
        %v6406 = vmax.f32 %v6404, %v6405
        %v6407 = vrot.slane %v6406, 2
        %v6408 = vmax.f32 %v6406, %v6407
        %v6409 = vrot.slane %v6408, 1
        %v6410 = vmax.f32 %v6408, %v6409
        %v6411 = vsel %vm6106, %v6087, -inf
        %v6412 = vsel %vm6106, %v6089, -inf
        %v6413 = vmax.f32 %v6411, %v6412
        %v6414 = vrot.slane %v6413, 4
        %v6415 = vmax.f32 %v6413, %v6414
        %v6416 = vrot.slane %v6415, 2
        %v6417 = vmax.f32 %v6415, %v6416
        %v6418 = vrot.slane %v6417, 1
        %v6419 = vmax.f32 %v6417, %v6418
        %v6420 = vsel %vm6106, %v6095, -inf
        %v6421 = vsel %vm6106, %v6097, -inf
        %v6422 = vmax.f32 %v6420, %v6421
        %v6423 = vrot.slane %v6422, 4
        %v6424 = vmax.f32 %v6422, %v6423
        %v6425 = vrot.slane %v6424, 2
        %v6426 = vmax.f32 %v6424, %v6425
        %v6427 = vrot.slane %v6426, 1
        %v6428 = vmax.f32 %v6426, %v6427
        %v6429 = vsel %vm6106, %v6103, -inf
        %v6430 = vsel %vm6106, %v6105, -inf
        %v6431 = vmax.f32 %v6429, %v6430
        %v6432 = vrot.slane %v6431, 4
        %v6433 = vmax.f32 %v6431, %v6432
        %v6434 = vrot.slane %v6433, 2
        %v6435 = vmax.f32 %v6433, %v6434
        %v6436 = vrot.slane %v6435, 1
        %v6437 = vmax.f32 %v6435, %v6436
        %v6438 = vsel %vm6134, %v6087, -inf
        %v6439 = vsel %vm6134, %v6089, -inf
        %v6440 = vmax.f32 %v6438, %v6439
        %v6441 = vrot.slane %v6440, 4
        %v6442 = vmax.f32 %v6440, %v6441
        %v6443 = vrot.slane %v6442, 2
        %v6444 = vmax.f32 %v6442, %v6443
        %v6445 = vrot.slane %v6444, 1
        %v6446 = vmax.f32 %v6444, %v6445
        %v6447 = vsel %vm6134, %v6095, -inf
        %v6448 = vsel %vm6134, %v6097, -inf
        %v6449 = vmax.f32 %v6447, %v6448
        %v6450 = vrot.slane %v6449, 4
        %v6451 = vmax.f32 %v6449, %v6450
        %v6452 = vrot.slane %v6451, 2
        %v6453 = vmax.f32 %v6451, %v6452
        %v6454 = vrot.slane %v6453, 1
        %v6455 = vmax.f32 %v6453, %v6454
        %v6456 = vsel %vm6134, %v6103, -inf
        %v6457 = vsel %vm6134, %v6105, -inf
        %v6458 = vmax.f32 %v6456, %v6457
        %v6459 = vrot.slane %v6458, 4
        %v6460 = vmax.f32 %v6458, %v6459
        %v6461 = vrot.slane %v6460, 2
        %v6462 = vmax.f32 %v6460, %v6461
        %v6463 = vrot.slane %v6462, 1
        %v6464 = vmax.f32 %v6462, %v6463
        %v6465 = vadd.f32 %v6365, %v6392
        %v6466 = vadd.f32 %v6374, %v6401
        %v6467 = vadd.f32 %v6383, %v6410
        %v6468 = vadd.f32 %v6465, %v6419
        %v6469 = vadd.f32 %v6466, %v6428
        %v6470 = vadd.f32 %v6467, %v6437
        %v6471 = vadd.f32 %v6468, %v6446
        %v6472 = vadd.f32 %v6469, %v6455
        %v6473 = vadd.f32 %v6470, %v6464
        %v6474 = vmul.f32 %v6471, 0.25
        %v6475 = vmul.f32 %v6472, 0.25
        %v6476 = vmul.f32 %v6473, 0.25
        %6477 = vst.msk [vmem:[%s5 + $0x2] sm:$0x1] %vm6228, %v6474
        %6478 = vst.msk [vmem:[%s5 + $0x6] sm:$0x1] %vm6228, %v6475
        %6479 = vst.msk [vmem:[%s5 + $0xa] sm:$0x1] %vm6228, %v6476
        %v6480 = vld [vmem:[%s5495] sm:$0xff]
        %v6481 = vld [vmem:[%s5495 + $0x8] sm:$0xff]
        %v6482 = vld [vmem:[%s5495 + $0x10] sm:$0xff]
        %v6483 = vld [vmem:[%s5495 + $0x18] sm:$0xff]
        %v6484 = vld [vmem:[%s5495 + $0x20] sm:$0xff]
        %v6485 = vld [vmem:[%s5495 + $0x28] sm:$0xff]
        %v6486 = vld [vmem:[%s5495 + $0x30] sm:$0xff]
        %v6487 = vld [vmem:[%s5495 + $0x38] sm:$0xff]
        %v6488 = vld [vmem:[%s5495 + $0x40] sm:$0xff]
        %v6489 = vld [vmem:[%s5495 + $0x48] sm:$0xff]
        %v6490 = vld [vmem:[%s5495 + $0x50] sm:$0xff]
        %v6491 = vld [vmem:[%s5495 + $0x58] sm:$0xff]
        %v6492 = vld [vmem:[%s5495 + $0x60] sm:$0xff]
        %v6493 = vld [vmem:[%s5495 + $0x68] sm:$0xff]
        %v6494 = vld [vmem:[%s5495 + $0x70] sm:$0xff]
        %v6495 = vld [vmem:[%s5495 + $0x78] sm:$0xff]
        %v6496 = vld [vmem:[%s5495 + $0x80] sm:$0xff]
        %v6497 = vld [vmem:[%s5495 + $0x88] sm:$0xff]
        %v6498 = vld [vmem:[%s5495 + $0x90] sm:$0xff]
        %v6499 = vld [vmem:[%s5495 + $0x98] sm:$0xff]
        %v6500 = vld [vmem:[%s5495 + $0xa0] sm:$0xff]
        %v6501 = vld [vmem:[%s5495 + $0xa8] sm:$0xff]
        %v6502 = vld [vmem:[%s5495 + $0xb0] sm:$0xff]
        %v6503 = vld [vmem:[%s5495 + $0xb8] sm:$0xff]
        %v6504 = vmul.f32 %v6480, %v5981
        %v6505 = vmul.f32 %v6481, %v5981
        %v6506 = vmul.f32 %v6482, %v5981
        %v6507 = vmul.f32 %v6483, %v5981
        %v6508 = vmul.f32 %v6484, %v5981
        %v6509 = vmul.f32 %v6485, %v5981
        %v6510 = vmul.f32 %v6486, %v5981
        %v6511 = vmul.f32 %v6487, %v5981
        %v6512 = vmul.f32 %v6488, %v5981
        %v6513 = vmul.f32 %v6489, %v5981
        %v6514 = vmul.f32 %v6490, %v5981
        %v6515 = vmul.f32 %v6491, %v5981
        %v6516 = vmul.f32 %v6492, %v5981
        %v6517 = vmul.f32 %v6493, %v5981
        %v6518 = vmul.f32 %v6494, %v5981
        %v6519 = vmul.f32 %v6495, %v5981
        %v6520 = vmul.f32 %v6496, %v5981
        %v6521 = vmul.f32 %v6497, %v5981
        %v6522 = vmul.f32 %v6498, %v5981
        %v6523 = vmul.f32 %v6499, %v5981
        %v6524 = vmul.f32 %v6500, %v5981
        %v6525 = vmul.f32 %v6501, %v5981
        %v6526 = vmul.f32 %v6502, %v5981
        %v6527 = vmul.f32 %v6503, %v5981
        %v6528 = vadd.f32 %v6504, %v6008
        %v6529 = vadd.f32 %v6505, %v6008
        %v6530 = vadd.f32 %v6506, %v6008
        %v6531 = vadd.f32 %v6507, %v6008
        %v6532 = vadd.f32 %v6508, %v6008
        %v6533 = vadd.f32 %v6509, %v6008
        %v6534 = vadd.f32 %v6510, %v6008
        %v6535 = vadd.f32 %v6511, %v6008
        %v6536 = vadd.f32 %v6512, %v6008
        %v6537 = vadd.f32 %v6513, %v6008
        %v6538 = vadd.f32 %v6514, %v6008
        %v6539 = vadd.f32 %v6515, %v6008
        %v6540 = vadd.f32 %v6516, %v6008
        %v6541 = vadd.f32 %v6517, %v6008
        %v6542 = vadd.f32 %v6518, %v6008
        %v6543 = vadd.f32 %v6519, %v6008
        %v6544 = vadd.f32 %v6520, %v6008
        %v6545 = vadd.f32 %v6521, %v6008
        %v6546 = vadd.f32 %v6522, %v6008
        %v6547 = vadd.f32 %v6523, %v6008
        %v6548 = vadd.f32 %v6524, %v6008
        %v6549 = vadd.f32 %v6525, %v6008
        %v6550 = vadd.f32 %v6526, %v6008
        %v6551 = vadd.f32 %v6527, %v6008
        %vm6552 = vcmp.gt.f32.partialorder %v6528, 0.0
        %vm6553 = vcmp.gt.f32.partialorder %v6529, 0.0
        %vm6554 = vcmp.gt.f32.partialorder %v6530, 0.0
        %vm6555 = vcmp.gt.f32.partialorder %v6531, 0.0
        %vm6556 = vcmp.gt.f32.partialorder %v6532, 0.0
        %vm6557 = vcmp.gt.f32.partialorder %v6533, 0.0
        %vm6558 = vcmp.gt.f32.partialorder %v6534, 0.0
        %vm6559 = vcmp.gt.f32.partialorder %v6535, 0.0
        %vm6560 = vcmp.gt.f32.partialorder %v6536, 0.0
        %vm6561 = vcmp.gt.f32.partialorder %v6537, 0.0
        %vm6562 = vcmp.gt.f32.partialorder %v6538, 0.0
        %vm6563 = vcmp.gt.f32.partialorder %v6539, 0.0
        %vm6564 = vcmp.gt.f32.partialorder %v6540, 0.0
        %vm6565 = vcmp.gt.f32.partialorder %v6541, 0.0
        %vm6566 = vcmp.gt.f32.partialorder %v6542, 0.0
        %vm6567 = vcmp.gt.f32.partialorder %v6543, 0.0
        %vm6568 = vcmp.gt.f32.partialorder %v6544, 0.0
        %vm6569 = vcmp.gt.f32.partialorder %v6545, 0.0
        %vm6570 = vcmp.gt.f32.partialorder %v6546, 0.0
        %vm6571 = vcmp.gt.f32.partialorder %v6547, 0.0
        %vm6572 = vcmp.gt.f32.partialorder %v6548, 0.0
        %vm6573 = vcmp.gt.f32.partialorder %v6549, 0.0
        %vm6574 = vcmp.gt.f32.partialorder %v6550, 0.0
        %vm6575 = vcmp.gt.f32.partialorder %v6551, 0.0
        %v6576 = vmul.f32 %v6528, 0.01
        %v6577 = vmul.f32 %v6529, 0.01
        %v6578 = vmul.f32 %v6530, 0.01
        %v6579 = vmul.f32 %v6531, 0.01
        %v6580 = vmul.f32 %v6532, 0.01
        %v6581 = vmul.f32 %v6533, 0.01
        %v6582 = vmul.f32 %v6534, 0.01
        %v6583 = vmul.f32 %v6535, 0.01
        %v6584 = vmul.f32 %v6536, 0.01
        %v6585 = vmul.f32 %v6537, 0.01
        %v6586 = vmul.f32 %v6538, 0.01
        %v6587 = vmul.f32 %v6539, 0.01
        %v6588 = vmul.f32 %v6540, 0.01
        %v6589 = vmul.f32 %v6541, 0.01
        %v6590 = vmul.f32 %v6542, 0.01
        %v6591 = vmul.f32 %v6543, 0.01
        %v6592 = vmul.f32 %v6544, 0.01
        %v6593 = vmul.f32 %v6545, 0.01
        %v6594 = vmul.f32 %v6546, 0.01
        %v6595 = vmul.f32 %v6547, 0.01
        %v6596 = vmul.f32 %v6548, 0.01
        %v6597 = vmul.f32 %v6549, 0.01
        %v6598 = vmul.f32 %v6550, 0.01
        %v6599 = vmul.f32 %v6551, 0.01
        %v6600 = vsel %vm6552, %v6528, %v6576
        %v6601 = vsel %vm6553, %v6529, %v6577
        %v6602 = vsel %vm6554, %v6530, %v6578
        %v6603 = vsel %vm6555, %v6531, %v6579
        %v6604 = vsel %vm6556, %v6532, %v6580
        %v6605 = vsel %vm6557, %v6533, %v6581
        %v6606 = vsel %vm6558, %v6534, %v6582
        %v6607 = vsel %vm6559, %v6535, %v6583
        %v6608 = vsel %vm6560, %v6536, %v6584
        %v6609 = vsel %vm6561, %v6537, %v6585
        %v6610 = vsel %vm6562, %v6538, %v6586
        %v6611 = vsel %vm6563, %v6539, %v6587
        %v6612 = vsel %vm6564, %v6540, %v6588
        %v6613 = vsel %vm6565, %v6541, %v6589
        %v6614 = vsel %vm6566, %v6542, %v6590
        %v6615 = vsel %vm6567, %v6543, %v6591
        %v6616 = vsel %vm6568, %v6544, %v6592
        %v6617 = vsel %vm6569, %v6545, %v6593
        %v6618 = vsel %vm6570, %v6546, %v6594
        %v6619 = vsel %vm6571, %v6547, %v6595
        %v6620 = vsel %vm6572, %v6548, %v6596
        %v6621 = vsel %vm6573, %v6549, %v6597
        %v6622 = vsel %vm6574, %v6550, %v6598
        %v6623 = vsel %vm6575, %v6551, %v6599
        %v6624 = vsel %vm6106, %v6600, -inf
        %v6625 = vsel %vm6106, %v6602, -inf
        %v6626 = vmax.f32 %v6624, %v6625
        %v6627 = vrot.slane %v6626, 4
        %v6628 = vmax.f32 %v6626, %v6627
        %v6629 = vrot.slane %v6628, 2
        %v6630 = vmax.f32 %v6628, %v6629
        %v6631 = vrot.slane %v6630, 1
        %v6632 = vmax.f32 %v6630, %v6631
        %v6633 = vsel %vm6106, %v6608, -inf
        %v6634 = vsel %vm6106, %v6610, -inf
        %v6635 = vmax.f32 %v6633, %v6634
        %v6636 = vrot.slane %v6635, 4
        %v6637 = vmax.f32 %v6635, %v6636
        %v6638 = vrot.slane %v6637, 2
        %v6639 = vmax.f32 %v6637, %v6638
        %v6640 = vrot.slane %v6639, 1
        %v6641 = vmax.f32 %v6639, %v6640
        %v6642 = vsel %vm6106, %v6616, -inf
        %v6643 = vsel %vm6106, %v6618, -inf
        %v6644 = vmax.f32 %v6642, %v6643
        %v6645 = vrot.slane %v6644, 4
        %v6646 = vmax.f32 %v6644, %v6645
        %v6647 = vrot.slane %v6646, 2
        %v6648 = vmax.f32 %v6646, %v6647
        %v6649 = vrot.slane %v6648, 1
        %v6650 = vmax.f32 %v6648, %v6649
        %v6651 = vsel %vm6134, %v6600, -inf
        %v6652 = vsel %vm6134, %v6602, -inf
        %v6653 = vmax.f32 %v6651, %v6652
        %v6654 = vrot.slane %v6653, 4
        %v6655 = vmax.f32 %v6653, %v6654
        %v6656 = vrot.slane %v6655, 2
        %v6657 = vmax.f32 %v6655, %v6656
        %v6658 = vrot.slane %v6657, 1
        %v6659 = vmax.f32 %v6657, %v6658
        %v6660 = vsel %vm6134, %v6608, -inf
        %v6661 = vsel %vm6134, %v6610, -inf
        %v6662 = vmax.f32 %v6660, %v6661
        %v6663 = vrot.slane %v6662, 4
        %v6664 = vmax.f32 %v6662, %v6663
        %v6665 = vrot.slane %v6664, 2
        %v6666 = vmax.f32 %v6664, %v6665
        %v6667 = vrot.slane %v6666, 1
        %v6668 = vmax.f32 %v6666, %v6667
        %v6669 = vsel %vm6134, %v6616, -inf
        %v6670 = vsel %vm6134, %v6618, -inf
        %v6671 = vmax.f32 %v6669, %v6670
        %v6672 = vrot.slane %v6671, 4
        %v6673 = vmax.f32 %v6671, %v6672
        %v6674 = vrot.slane %v6673, 2
        %v6675 = vmax.f32 %v6673, %v6674
        %v6676 = vrot.slane %v6675, 1
        %v6677 = vmax.f32 %v6675, %v6676
        %v6678 = vsel %vm6106, %v6604, -inf
        %v6679 = vsel %vm6106, %v6606, -inf
        %v6680 = vmax.f32 %v6678, %v6679
        %v6681 = vrot.slane %v6680, 4
        %v6682 = vmax.f32 %v6680, %v6681
        %v6683 = vrot.slane %v6682, 2
        %v6684 = vmax.f32 %v6682, %v6683
        %v6685 = vrot.slane %v6684, 1
        %v6686 = vmax.f32 %v6684, %v6685
        %v6687 = vsel %vm6106, %v6612, -inf
        %v6688 = vsel %vm6106, %v6614, -inf
        %v6689 = vmax.f32 %v6687, %v6688
        %v6690 = vrot.slane %v6689, 4
        %v6691 = vmax.f32 %v6689, %v6690
        %v6692 = vrot.slane %v6691, 2
        %v6693 = vmax.f32 %v6691, %v6692
        %v6694 = vrot.slane %v6693, 1
        %v6695 = vmax.f32 %v6693, %v6694
        %v6696 = vsel %vm6106, %v6620, -inf
        %v6697 = vsel %vm6106, %v6622, -inf
        %v6698 = vmax.f32 %v6696, %v6697
        %v6699 = vrot.slane %v6698, 4
        %v6700 = vmax.f32 %v6698, %v6699
        %v6701 = vrot.slane %v6700, 2
        %v6702 = vmax.f32 %v6700, %v6701
        %v6703 = vrot.slane %v6702, 1
        %v6704 = vmax.f32 %v6702, %v6703
        %v6705 = vsel %vm6134, %v6604, -inf
        %v6706 = vsel %vm6134, %v6606, -inf
        %v6707 = vmax.f32 %v6705, %v6706
        %v6708 = vrot.slane %v6707, 4
        %v6709 = vmax.f32 %v6707, %v6708
        %v6710 = vrot.slane %v6709, 2
        %v6711 = vmax.f32 %v6709, %v6710
        %v6712 = vrot.slane %v6711, 1
        %v6713 = vmax.f32 %v6711, %v6712
        %v6714 = vsel %vm6134, %v6612, -inf
        %v6715 = vsel %vm6134, %v6614, -inf
        %v6716 = vmax.f32 %v6714, %v6715
        %v6717 = vrot.slane %v6716, 4
        %v6718 = vmax.f32 %v6716, %v6717
        %v6719 = vrot.slane %v6718, 2
        %v6720 = vmax.f32 %v6718, %v6719
        %v6721 = vrot.slane %v6720, 1
        %v6722 = vmax.f32 %v6720, %v6721
        %v6723 = vsel %vm6134, %v6620, -inf
        %v6724 = vsel %vm6134, %v6622, -inf
        %v6725 = vmax.f32 %v6723, %v6724
        %v6726 = vrot.slane %v6725, 4
        %v6727 = vmax.f32 %v6725, %v6726
        %v6728 = vrot.slane %v6727, 2
        %v6729 = vmax.f32 %v6727, %v6728
        %v6730 = vrot.slane %v6729, 1
        %v6731 = vmax.f32 %v6729, %v6730
        %v6732 = vadd.f32 %v6632, %v6659
        %v6733 = vadd.f32 %v6641, %v6668
        %v6734 = vadd.f32 %v6650, %v6677
        %v6735 = vadd.f32 %v6732, %v6686
        %v6736 = vadd.f32 %v6733, %v6695
        %v6737 = vadd.f32 %v6734, %v6704
        %v6738 = vadd.f32 %v6735, %v6713
        %v6739 = vadd.f32 %v6736, %v6722
        %v6740 = vadd.f32 %v6737, %v6731
        %v6741 = vmul.f32 %v6738, 0.25
        %v6742 = vmul.f32 %v6739, 0.25
        %v6743 = vmul.f32 %v6740, 0.25
        %s6744 = scalar_lea.vmem %s5, 12
        %6745 = vst.msk [vmem:[%s6744] sm:$0x1] %vm6228, %v6741
        %6746 = vst.msk [vmem:[%s6744 + $0x4] sm:$0x1] %vm6228, %v6742
        %6747 = vst.msk [vmem:[%s6744 + $0x8] sm:$0x1] %vm6228, %v6743
        %v6748 = vsel %vm6232, %v6600, -inf
        %v6749 = vsel %vm6232, %v6602, -inf
        %v6750 = vmax.f32 %v6748, %v6749
        %v6751 = vrot.slane %v6750, 4
        %v6752 = vmax.f32 %v6750, %v6751
        %v6753 = vrot.slane %v6752, 2
        %v6754 = vmax.f32 %v6752, %v6753
        %v6755 = vrot.slane %v6754, 1
        %v6756 = vmax.f32 %v6754, %v6755
        %v6757 = vsel %vm6232, %v6608, -inf
        %v6758 = vsel %vm6232, %v6610, -inf
        %v6759 = vmax.f32 %v6757, %v6758
        %v6760 = vrot.slane %v6759, 4
        %v6761 = vmax.f32 %v6759, %v6760
        %v6762 = vrot.slane %v6761, 2
        %v6763 = vmax.f32 %v6761, %v6762
        %v6764 = vrot.slane %v6763, 1
        %v6765 = vmax.f32 %v6763, %v6764
        %v6766 = vsel %vm6232, %v6616, -inf
        %v6767 = vsel %vm6232, %v6618, -inf
        %v6768 = vmax.f32 %v6766, %v6767
        %v6769 = vrot.slane %v6768, 4
        %v6770 = vmax.f32 %v6768, %v6769
        %v6771 = vrot.slane %v6770, 2
        %v6772 = vmax.f32 %v6770, %v6771
        %v6773 = vrot.slane %v6772, 1
        %v6774 = vmax.f32 %v6772, %v6773
        %v6775 = vsel %vm6260, %v6600, -inf
        %v6776 = vsel %vm6260, %v6602, -inf
        %v6777 = vmax.f32 %v6775, %v6776
        %v6778 = vrot.slane %v6777, 4
        %v6779 = vmax.f32 %v6777, %v6778
        %v6780 = vrot.slane %v6779, 2
        %v6781 = vmax.f32 %v6779, %v6780
        %v6782 = vrot.slane %v6781, 1
        %v6783 = vmax.f32 %v6781, %v6782
        %v6784 = vsel %vm6260, %v6608, -inf
        %v6785 = vsel %vm6260, %v6610, -inf
        %v6786 = vmax.f32 %v6784, %v6785
        %v6787 = vrot.slane %v6786, 4
        %v6788 = vmax.f32 %v6786, %v6787
        %v6789 = vrot.slane %v6788, 2
        %v6790 = vmax.f32 %v6788, %v6789
        %v6791 = vrot.slane %v6790, 1
        %v6792 = vmax.f32 %v6790, %v6791
        %v6793 = vsel %vm6260, %v6616, -inf
        %v6794 = vsel %vm6260, %v6618, -inf
        %v6795 = vmax.f32 %v6793, %v6794
        %v6796 = vrot.slane %v6795, 4
        %v6797 = vmax.f32 %v6795, %v6796
        %v6798 = vrot.slane %v6797, 2
        %v6799 = vmax.f32 %v6797, %v6798
        %v6800 = vrot.slane %v6799, 1
        %v6801 = vmax.f32 %v6799, %v6800
        %v6802 = vsel %vm6232, %v6604, -inf
        %v6803 = vsel %vm6232, %v6606, -inf
        %v6804 = vmax.f32 %v6802, %v6803
        %v6805 = vrot.slane %v6804, 4
        %v6806 = vmax.f32 %v6804, %v6805
        %v6807 = vrot.slane %v6806, 2
        %v6808 = vmax.f32 %v6806, %v6807
        %v6809 = vrot.slane %v6808, 1
        %v6810 = vmax.f32 %v6808, %v6809
        %v6811 = vsel %vm6232, %v6612, -inf
        %v6812 = vsel %vm6232, %v6614, -inf
        %v6813 = vmax.f32 %v6811, %v6812
        %v6814 = vrot.slane %v6813, 4
        %v6815 = vmax.f32 %v6813, %v6814
        %v6816 = vrot.slane %v6815, 2
        %v6817 = vmax.f32 %v6815, %v6816
        %v6818 = vrot.slane %v6817, 1
        %v6819 = vmax.f32 %v6817, %v6818
        %v6820 = vsel %vm6232, %v6620, -inf
        %v6821 = vsel %vm6232, %v6622, -inf
        %v6822 = vmax.f32 %v6820, %v6821
        %v6823 = vrot.slane %v6822, 4
        %v6824 = vmax.f32 %v6822, %v6823
        %v6825 = vrot.slane %v6824, 2
        %v6826 = vmax.f32 %v6824, %v6825
        %v6827 = vrot.slane %v6826, 1
        %v6828 = vmax.f32 %v6826, %v6827
        %v6829 = vsel %vm6260, %v6604, -inf
        %v6830 = vsel %vm6260, %v6606, -inf
        %v6831 = vmax.f32 %v6829, %v6830
        %v6832 = vrot.slane %v6831, 4
        %v6833 = vmax.f32 %v6831, %v6832
        %v6834 = vrot.slane %v6833, 2
        %v6835 = vmax.f32 %v6833, %v6834
        %v6836 = vrot.slane %v6835, 1
        %v6837 = vmax.f32 %v6835, %v6836
        %v6838 = vsel %vm6260, %v6612, -inf
        %v6839 = vsel %vm6260, %v6614, -inf
        %v6840 = vmax.f32 %v6838, %v6839
        %v6841 = vrot.slane %v6840, 4
        %v6842 = vmax.f32 %v6840, %v6841
        %v6843 = vrot.slane %v6842, 2
        %v6844 = vmax.f32 %v6842, %v6843
        %v6845 = vrot.slane %v6844, 1
        %v6846 = vmax.f32 %v6844, %v6845
        %v6847 = vsel %vm6260, %v6620, -inf
        %v6848 = vsel %vm6260, %v6622, -inf
        %v6849 = vmax.f32 %v6847, %v6848
        %v6850 = vrot.slane %v6849, 4
        %v6851 = vmax.f32 %v6849, %v6850
        %v6852 = vrot.slane %v6851, 2
        %v6853 = vmax.f32 %v6851, %v6852
        %v6854 = vrot.slane %v6853, 1
        %v6855 = vmax.f32 %v6853, %v6854
        %v6856 = vadd.f32 %v6756, %v6783
        %v6857 = vadd.f32 %v6765, %v6792
        %v6858 = vadd.f32 %v6774, %v6801
        %v6859 = vadd.f32 %v6856, %v6810
        %v6860 = vadd.f32 %v6857, %v6819
        %v6861 = vadd.f32 %v6858, %v6828
        %v6862 = vadd.f32 %v6859, %v6837
        %v6863 = vadd.f32 %v6860, %v6846
        %v6864 = vadd.f32 %v6861, %v6855
        %v6865 = vmul.f32 %v6862, 0.25
        %v6866 = vmul.f32 %v6863, 0.25
        %v6867 = vmul.f32 %v6864, 0.25
        %6868 = vst.msk [vmem:[%s6744 + $0x1] sm:$0x1] %vm6228, %v6865
        %6869 = vst.msk [vmem:[%s6744 + $0x5] sm:$0x1] %vm6228, %v6866
        %6870 = vst.msk [vmem:[%s6744 + $0x9] sm:$0x1] %vm6228, %v6867
        %v6871 = vsel %vm6106, %v6601, -inf
        %v6872 = vsel %vm6106, %v6603, -inf
        %v6873 = vmax.f32 %v6871, %v6872
        %v6874 = vrot.slane %v6873, 4
        %v6875 = vmax.f32 %v6873, %v6874
        %v6876 = vrot.slane %v6875, 2
        %v6877 = vmax.f32 %v6875, %v6876
        %v6878 = vrot.slane %v6877, 1
        %v6879 = vmax.f32 %v6877, %v6878
        %v6880 = vsel %vm6106, %v6609, -inf
        %v6881 = vsel %vm6106, %v6611, -inf
        %v6882 = vmax.f32 %v6880, %v6881
        %v6883 = vrot.slane %v6882, 4
        %v6884 = vmax.f32 %v6882, %v6883
        %v6885 = vrot.slane %v6884, 2
        %v6886 = vmax.f32 %v6884, %v6885
        %v6887 = vrot.slane %v6886, 1
        %v6888 = vmax.f32 %v6886, %v6887
        %v6889 = vsel %vm6106, %v6617, -inf
        %v6890 = vsel %vm6106, %v6619, -inf
        %v6891 = vmax.f32 %v6889, %v6890
        %v6892 = vrot.slane %v6891, 4
        %v6893 = vmax.f32 %v6891, %v6892
        %v6894 = vrot.slane %v6893, 2
        %v6895 = vmax.f32 %v6893, %v6894
        %v6896 = vrot.slane %v6895, 1
        %v6897 = vmax.f32 %v6895, %v6896
        %v6898 = vsel %vm6134, %v6601, -inf
        %v6899 = vsel %vm6134, %v6603, -inf
        %v6900 = vmax.f32 %v6898, %v6899
        %v6901 = vrot.slane %v6900, 4
        %v6902 = vmax.f32 %v6900, %v6901
        %v6903 = vrot.slane %v6902, 2
        %v6904 = vmax.f32 %v6902, %v6903
        %v6905 = vrot.slane %v6904, 1
        %v6906 = vmax.f32 %v6904, %v6905
        %v6907 = vsel %vm6134, %v6609, -inf
        %v6908 = vsel %vm6134, %v6611, -inf
        %v6909 = vmax.f32 %v6907, %v6908
        %v6910 = vrot.slane %v6909, 4
        %v6911 = vmax.f32 %v6909, %v6910
        %v6912 = vrot.slane %v6911, 2
        %v6913 = vmax.f32 %v6911, %v6912
        %v6914 = vrot.slane %v6913, 1
        %v6915 = vmax.f32 %v6913, %v6914
        %v6916 = vsel %vm6134, %v6617, -inf
        %v6917 = vsel %vm6134, %v6619, -inf
        %v6918 = vmax.f32 %v6916, %v6917
        %v6919 = vrot.slane %v6918, 4
        %v6920 = vmax.f32 %v6918, %v6919
        %v6921 = vrot.slane %v6920, 2
        %v6922 = vmax.f32 %v6920, %v6921
        %v6923 = vrot.slane %v6922, 1
        %v6924 = vmax.f32 %v6922, %v6923
        %v6925 = vsel %vm6106, %v6605, -inf
        %v6926 = vsel %vm6106, %v6607, -inf
        %v6927 = vmax.f32 %v6925, %v6926
        %v6928 = vrot.slane %v6927, 4
        %v6929 = vmax.f32 %v6927, %v6928
        %v6930 = vrot.slane %v6929, 2
        %v6931 = vmax.f32 %v6929, %v6930
        %v6932 = vrot.slane %v6931, 1
        %v6933 = vmax.f32 %v6931, %v6932
        %v6934 = vsel %vm6106, %v6613, -inf
        %v6935 = vsel %vm6106, %v6615, -inf
        %v6936 = vmax.f32 %v6934, %v6935
        %v6937 = vrot.slane %v6936, 4
        %v6938 = vmax.f32 %v6936, %v6937
        %v6939 = vrot.slane %v6938, 2
        %v6940 = vmax.f32 %v6938, %v6939
        %v6941 = vrot.slane %v6940, 1
        %v6942 = vmax.f32 %v6940, %v6941
        %v6943 = vsel %vm6106, %v6621, -inf
        %v6944 = vsel %vm6106, %v6623, -inf
        %v6945 = vmax.f32 %v6943, %v6944
        %v6946 = vrot.slane %v6945, 4
        %v6947 = vmax.f32 %v6945, %v6946
        %v6948 = vrot.slane %v6947, 2
        %v6949 = vmax.f32 %v6947, %v6948
        %v6950 = vrot.slane %v6949, 1
        %v6951 = vmax.f32 %v6949, %v6950
        %v6952 = vsel %vm6134, %v6605, -inf
        %v6953 = vsel %vm6134, %v6607, -inf
        %v6954 = vmax.f32 %v6952, %v6953
        %v6955 = vrot.slane %v6954, 4
        %v6956 = vmax.f32 %v6954, %v6955
        %v6957 = vrot.slane %v6956, 2
        %v6958 = vmax.f32 %v6956, %v6957
        %v6959 = vrot.slane %v6958, 1
        %v6960 = vmax.f32 %v6958, %v6959
        %v6961 = vsel %vm6134, %v6613, -inf
        %v6962 = vsel %vm6134, %v6615, -inf
        %v6963 = vmax.f32 %v6961, %v6962
        %v6964 = vrot.slane %v6963, 4
        %v6965 = vmax.f32 %v6963, %v6964
        %v6966 = vrot.slane %v6965, 2
        %v6967 = vmax.f32 %v6965, %v6966
        %v6968 = vrot.slane %v6967, 1
        %v6969 = vmax.f32 %v6967, %v6968
        %v6970 = vsel %vm6134, %v6621, -inf
        %v6971 = vsel %vm6134, %v6623, -inf
        %v6972 = vmax.f32 %v6970, %v6971
        %v6973 = vrot.slane %v6972, 4
        %v6974 = vmax.f32 %v6972, %v6973
        %v6975 = vrot.slane %v6974, 2
        %v6976 = vmax.f32 %v6974, %v6975
        %v6977 = vrot.slane %v6976, 1
        %v6978 = vmax.f32 %v6976, %v6977
        %v6979 = vadd.f32 %v6879, %v6906
        %v6980 = vadd.f32 %v6888, %v6915
        %v6981 = vadd.f32 %v6897, %v6924
        %v6982 = vadd.f32 %v6979, %v6933
        %v6983 = vadd.f32 %v6980, %v6942
        %v6984 = vadd.f32 %v6981, %v6951
        %v6985 = vadd.f32 %v6982, %v6960
        %v6986 = vadd.f32 %v6983, %v6969
        %v6987 = vadd.f32 %v6984, %v6978
        %v6988 = vmul.f32 %v6985, 0.25
        %v6989 = vmul.f32 %v6986, 0.25
        %v6990 = vmul.f32 %v6987, 0.25
        %6991 = vst.msk [vmem:[%s6744 + $0x2] sm:$0x1] %vm6228, %v6988
        %6992 = vst.msk [vmem:[%s6744 + $0x6] sm:$0x1] %vm6228, %v6989
        %6993 = vst.msk [vmem:[%s6744 + $0xa] sm:$0x1] %vm6228, %v6990
      $region44: #{conv_cnn_forward.1} parent=39 // pred_fallthru
        _
      // Predicated region
      $region45: #{conv_cnn_forward.1} parent=39 // pred_check
        %p6994 = pneg %p151
      $region46: #{conv_cnn_forward.1} parent=39 // pred_check_branch
        %6996 = sbr.rel (%p6994) target = $region48
      $region47: #{conv_cnn_forward.1} parent=39 // pred_region
        _
      $region48: #{conv_cnn_forward.1} parent=39 // pred_fallthru
        _
      // Predicated region
      $region49: #{conv_cnn_forward.1} parent=39 // pred_check
        %p6997 = pneg %p151
      $region50: #{conv_cnn_forward.1} parent=39 // pred_check_branch
        %6999 = sbr.rel (%p6997) target = $region52
      $region51: #{conv_cnn_forward.1} parent=39 // pred_region
        _
      $region52: #{conv_cnn_forward.1} parent=39 // pred_fallthru
        _
    $region40: #{conv_cnn_forward.1} parent=5 // pred_fallthru
      _
    %p7000 = scmp.le.s32.totalorder 2, %s11
    // Predicated region
    $region53: #{conv_cnn_forward.1} parent=5 // pred_check
      %p7001 = pneg %p7000
    $region54: #{conv_cnn_forward.1} parent=5 // pred_check_branch
      %7003 = sbr.rel (%p7001) target = $region56
    $region55: #{conv_cnn_forward.1} parent=5 // pred_region
      %s7004 = ssub.s32 %s11, 2
    $region56: #{conv_cnn_forward.1} parent=5 // pred_fallthru
      _
  $region6: #{conv_cnn_forward.1} parent=0 // loop_footer
    %s15 = sadd.s32 1, %s11
  $region7: #{conv_cnn_forward.1} parent=0 // loop_footer_branch
    %10 = sbr.rel target = $region3
  $region8: #{conv_cnn_forward.1} parent=0 // loop_exit
    _

</llo_original>
